<compile_context>
chip_gen: v7x
topology: tpu7x:2x2x1
jax: 0.10.0
libtpu: 0.0.40
codegen_flags: <defaults>
</compile_context>

<pallas_src>
import functools
import math

import jax
import jax.numpy as jnp
import numpy as np
from jax.experimental import pallas as pl
from jax.experimental.pallas import tpu as pltpu

_NEG = -1e30
_LANES = 128


# ---------------------------------------------------------------------------
# the fused Informer kernel (runs once per batch element: grid=(B,))
# ---------------------------------------------------------------------------
def _informer_kernel(*refs, names, cfg, vidx):
    in_refs, out_ref = refs[:-1], refs[-1]
    P = dict(zip(names, in_refs))
    H, D = cfg["H"], cfg["D"]
    E = D // H
    scale = 1.0 / math.sqrt(E)

    vecs = P["vecs"][...]                               # [Nv, 128] vector slab

    def V(name):
        r, w = vidx[name]
        return vecs[r:r + 1, :w]

    # ---- per-shape constants, built once per trace (JAX does not CSE
    # broadcast_in_dim, so hoist them out of the layer/head loops). ----
    cache = {}

    def iota2(shape, dim):
        key = ("iota", shape, dim)
        if key not in cache:
            cache[key] = jax.lax.broadcasted_iota(jnp.int32, shape, dim)
        return cache[key]

    def causal_mask(L):
        key = ("causal", L)
        if key not in cache:
            cache[key] = iota2((L, L), 1) <= iota2((L, L), 0)
        return cache[key]

    def causal_f32(L):
        key = ("causal_f", L)
        if key not in cache:
            cache[key] = causal_mask(L).astype(jnp.float32)
        return cache[key]

    def tie_mask(L):
        key = ("tie", L)
        if key not in cache:
            cache[key] = iota2((L, L), 1) < iota2((L, L), 0)
        return cache[key]

    def pool_sel(Lout, L):
        key = ("pool", Lout, L)
        if key not in cache:
            cache[key] = (iota2((Lout, L), 1)
                          == 2 * iota2((Lout, L), 0)).astype(jnp.float32)
        return cache[key]

    def ones_col(L):
        key = ("ones", L)
        if key not in cache:
            cache[key] = jnp.ones((L, 1), jnp.float32)
        return cache[key]

    def mix_perm(L):
        # [H*L, H*L] permutation: row (c*L + l) selects stacked row (l*H + c),
        # realizing the (H,L,E)->(L,H*E) 'mix=True' reinterpretation once.
        # Built without integer div/mod (sum of banded equality masks).
        key = ("mix", L)
        if key not in cache:
            n = H * L
            r_out = iota2((n, n), 0)
            r_in = iota2((n, n), 1)
            m = None
            for c in range(H):
                band = ((r_out >= c * L) & (r_out < (c + 1) * L)
                        & (r_in == (r_out - c * L) * H + c))
                m = band if m is None else (m | band)
            cache[key] = m.astype(jnp.float32)
        return cache[key]

    # ---- math helpers ----
    def softmax(s):
        m = jnp.max(s, axis=-1, keepdims=True)
        e = jnp.exp(s - m)
        return e * pl.reciprocal(jnp.sum(e, axis=-1, keepdims=True), approx=True)

    def gelu(x):
        c = math.sqrt(2.0 / math.pi)
        return 0.5 * x * (1.0 + jnp.tanh(c * (x + 0.044715 * x * x * x)))

    def layer_norm(x, g, b, eps=1e-5):
        mu = jnp.mean(x, axis=-1, keepdims=True)
        var = jnp.mean((x - mu) ** 2, axis=-1, keepdims=True)
        return (x - mu) * jax.lax.rsqrt(var + eps) * g + b

    def mm(a, b):
        return jnp.dot(a, b, preferred_element_type=jnp.float32)

    # ---- one head of attention (all masks hoisted/cached) ----
    def attn_one(q, k, v, kind, counts, sampled, u):
        Lq, Lk = q.shape[0], k.shape[0]
        s = jax.lax.dot_general(q, k, (((1,), (1,)), ((), ())),
                                preferred_element_type=jnp.float32)      # [Lq,Lk]
        if kind == "full":
            return mm(softmax(s * scale), v)
        if kind == "prob_causal":
            s_soft = jnp.where(causal_mask(Lq), s * scale, _NEG)
        else:                                  # "prob": encoder, unmasked
            s_soft = s * scale
        attn_out = mm(softmax(s_soft), v)
        if u >= Lq:                            # every query selected -> dense
            return attn_out
        # default context for non-selected queries
        if kind == "prob_causal":
            default = mm(causal_f32(Lq), v)                  # cumsum(V)
        else:
            default = jnp.mean(v, axis=0, keepdims=True)     # mean(V)
        # sparsity measure M over randomly sampled (unscaled) scores
        s_max = jnp.max(jnp.where(sampled, s, _NEG), axis=-1, keepdims=True)
        s_sum = jnp.sum(s * counts, axis=-1, keepdims=True)
        m_col = s_max - s_sum / float(Lk)                                # [Lq,1]
        # lane-oriented copy of M via a rank-1 matmul (avoids a vreg transpose)
        m_row = jax.lax.dot_general(ones_col(Lq), m_col,
                                    (((1,), (1,)), ((), ())),
                                    preferred_element_type=jnp.float32)  # [Lq,Lq]
        beats = (m_row > m_col) | ((m_row == m_col) & tie_mask(Lq))
        rank = jnp.sum(beats.astype(jnp.float32), axis=-1, keepdims=True)
        sel = rank < float(u)
        return jnp.where(sel, attn_out, default)

    def run_heads(q_all, k_all, v_all, kind, counts, sampled, u):
        outs = []
        for h in range(H):
            outs.append(attn_one(q_all[:, h * E:(h + 1) * E],
                                 k_all[:, h * E:(h + 1) * E],
                                 v_all[:, h * E:(h + 1) * E],
                                 kind, counts, sampled, u))
        return outs

    def self_attn(x, wqkv, bqkv, wo, bo, kind, counts, u, mix):
        Lq = x.shape[0]
        qkv = mm(x, wqkv) + bqkv                                         # [Lq,3D]
        sampled = (counts > 0.0) if (counts is not None and u < Lq) else None
        outs = run_heads(qkv[:, :D], qkv[:, D:2 * D], qkv[:, 2 * D:],
                         kind, counts, sampled, u)
        if mix:
            stacked = jnp.concatenate(outs, axis=0)                      # [H*Lq,E]
            reord = mm(mix_perm(Lq), stacked)
            merged = jnp.concatenate(
                [reord[c * Lq:(c + 1) * Lq, :] for c in range(H)], axis=1)
        else:
            merged = jnp.concatenate(outs, axis=1)                       # [Lq,D]
        return mm(merged, wo) + bo

    def cross_attn(xq, xkv, wq, bq, wkv, bkv, wo, bo):
        q_all = mm(xq, wq) + bq                                          # [Lq,D]
        kv = mm(xkv, wkv) + bkv                                          # [Lk,2D]
        outs = run_heads(q_all, kv[:, :D], kv[:, D:], "full", None, None, 0)
        merged = jnp.concatenate(outs, axis=1)
        return mm(merged, wo) + bo

    # ----------------- encoder -----------------
    x = (mm(P["enc_x_cat"][...], P["enc_tok_w"][...])
         + V("enc_tok_b") + P["enc_add"][...])                           # [Le,D]
    L = cfg["enc_lens"][0]
    for l in range(cfg["e_layers"]):
        att = self_attn(x, P["e_wqkv"][l], V(f"e_bqkv_{l}"),
                        P["e_wo"][l], V(f"e_bo_{l}"),
                        "prob", P[f"enc_cnt_{l}"][...], cfg["enc_u"][l], mix=False)
        y = layer_norm(x + att, V(f"e_ln1_g_{l}"), V(f"e_ln1_b_{l}"))
        ff = gelu(mm(y, P["e_ff1"][l]) + V(f"e_ff1_b_{l}"))
        ff = mm(ff, P["e_ff2"][l]) + V(f"e_ff2_b_{l}")
        x = layer_norm(y + ff, V(f"e_ln2_g_{l}"), V(f"e_ln2_b_{l}"))
        if l < cfg["e_layers"] - 1:
            # ConvLayer: circular conv(k=3) + BatchNorm(eval) + ELU + MaxPool(3,2,1)
            cw = P["c_w"][l]                                             # [3D,D]
            x_prev = jnp.concatenate([x[L - 1:L, :], x[:L - 1, :]], axis=0)
            x_next = jnp.concatenate([x[1:L, :], x[:1, :]], axis=0)
            yc = (mm(x_prev, cw[:D]) + mm(x, cw[D:2 * D]) + mm(x_next, cw[2 * D:])
                  + V(f"c_b_{l}"))
            yc = ((yc - V(f"c_bn_m_{l}")) * jax.lax.rsqrt(V(f"c_bn_v_{l}") + 1e-5)
                  * V(f"c_bn_g_{l}") + V(f"c_bn_b_{l}"))
            yc = jnp.where(yc > 0.0, yc, jnp.exp(jnp.minimum(yc, 0.0)) - 1.0)
            Lout = (L - 1) // 2 + 1
            neg = jnp.full((1, D), _NEG, dtype=jnp.float32)
            yp = jnp.concatenate([neg, yc, neg], axis=0)                 # [L+2,D]
            win = jnp.maximum(jnp.maximum(yp[0:L, :], yp[1:L + 1, :]),
                              yp[2:L + 2, :])
            x = mm(pool_sel(Lout, L), win)     # stride-2 pick, hoisted 0/1 matrix
            L = Lout
    enc = layer_norm(x, V("e_norm_g"), V("e_norm_b"))

    # ----------------- decoder -----------------
    x = (mm(P["dec_x_cat"][...], P["dec_tok_w"][...])
         + V("dec_tok_b") + P["dec_add"][...])                           # [Ld,D]
    for l in range(cfg["d_layers"]):
        att = self_attn(x, P["d_sa_wqkv"][l], V(f"d_sa_bqkv_{l}"),
                        P["d_sa_wo"][l], V(f"d_sa_bo_{l}"),
                        "prob_causal", P["dec_cnt"][l], cfg["dec_u"], mix=True)
        x = layer_norm(x + att, V(f"d_ln1_g_{l}"), V(f"d_ln1_b_{l}"))
        att = cross_attn(x, enc, P["d_ca_wq"][l], V(f"d_ca_bq_{l}"),
                         P["d_ca_wkv"][l], V(f"d_ca_bkv_{l}"),
                         P["d_ca_wo"][l], V(f"d_ca_bo_{l}"))
        y = layer_norm(x + att, V(f"d_ln2_g_{l}"), V(f"d_ln2_b_{l}"))
        ff = gelu(mm(y, P["d_ff1"][l]) + V(f"d_ff1_b_{l}"))
        ff = mm(ff, P["d_ff2"][l]) + V(f"d_ff2_b_{l}")
        x = layer_norm(y + ff, V(f"d_ln3_g_{l}"), V(f"d_ln3_b_{l}"))
    x = layer_norm(x, V("d_norm_g"), V("d_norm_b"))

    # lane-dense store: projection zero-padded to 128 columns in the wrapper
    out_ref[...] = mm(x, P["proj_w"][...]) + V("proj_b")


# ---------------------------------------------------------------------------
# wrapper-side helpers (pure JAX glue: embedding tables, sampling, packing)
# ---------------------------------------------------------------------------
def _sinusoid_table(n, d):
    pos = np.arange(n, dtype=np.float32)[:, None]
    div = np.exp(np.arange(0, d, 2, dtype=np.float32) * (-math.log(10000.0) / d))
    tab = np.zeros((n, d), dtype=np.float32)
    tab[:, 0::2] = np.sin(pos * div)
    tab[:, 1::2] = np.cos(pos * div)
    return jnp.asarray(tab)


def _embedding_add(x_mark, D):
    """Positional + fixed temporal embedding (embed='fixed', freq='h')."""
    B, L, _ = x_mark.shape
    pe = _sinusoid_table(L, D)
    month = _sinusoid_table(13, D)
    day = _sinusoid_table(32, D)
    wday = _sinusoid_table(7, D)
    hour = _sinusoid_table(24, D)
    temporal = (jnp.take(month, x_mark[:, :, 0], axis=0)
                + jnp.take(day, x_mark[:, :, 1], axis=0)
                + jnp.take(wday, x_mark[:, :, 2], axis=0)
                + jnp.take(hour, x_mark[:, :, 3], axis=0))
    return temporal + pe[None, :, :]          # [B, L, D]


def _circular_cat(x):
    """[B,L,C] -> [B,L,3C] rows [x_{t-1}, x_t, x_{t+1}] (circular padding)."""
    return jnp.concatenate(
        [jnp.roll(x, 1, axis=1), x, jnp.roll(x, -1, axis=1)], axis=-1)


def make_prob_aux(key, cfg, Le, Ld):
    """ProbAttention sample-count matrices + top-u sizes (deterministic key)."""
    factor = cfg["factor"]
    e_layers, d_layers = cfg["e_layers"], cfg["d_layers"]
    enc_lens = [Le]
    for _ in range(e_layers - 1):
        enc_lens.append((enc_lens[-1] - 1) // 2 + 1)

    def u_of(L):
        return min(factor * int(np.ceil(np.log(L))), L)

    keys = jax.random.split(key, e_layers + d_layers)
    enc_counts = []
    for i, L in enumerate(enc_lens):
        idx = jax.random.randint(keys[i], (L, u_of(L)), 0, L)
        enc_counts.append(jnp.sum(jax.nn.one_hot(idx, L, dtype=jnp.float32), axis=1))
    dec_counts = []
    for j in range(d_layers):
        idx = jax.random.randint(keys[e_layers + j], (Ld, u_of(Ld)), 0, Ld)
        dec_counts.append(jnp.sum(jax.nn.one_hot(idx, Ld, dtype=jnp.float32), axis=1))
    return dict(enc_lens=enc_lens,
                enc_u=[u_of(L) for L in enc_lens],
                dec_u=u_of(Ld),
                enc_counts=enc_counts,
                dec_counts=jnp.stack(dec_counts, axis=0))


def informer_forward(params, aux, x_enc, x_mark_enc, x_dec, x_mark_dec, cfg):
    B, Le, _ = x_enc.shape
    Ld = x_dec.shape[1]
    D, H = cfg["D"], cfg["H"]

    inp = {}
    # ----- batched activations -----
    inp["enc_x_cat"] = _circular_cat(x_enc)                     # [B,Le,3*enc_in]
    inp["enc_add"] = _embedding_add(x_mark_enc, D)              # [B,Le,D]
    inp["dec_x_cat"] = _circular_cat(x_dec)                     # [B,Ld,3*dec_in]
    inp["dec_add"] = _embedding_add(x_mark_dec, D)              # [B,Ld,D]

    # ----- single [N,128] vector slab for every bias / LN / BN vector -----
    vec_rows = []
    vidx = {}

    def reg(name, v):
        v = jnp.reshape(jnp.asarray(v, jnp.float32), (1, -1))
        vidx[name] = (len(vec_rows), int(v.shape[1]))
        vec_rows.append(jnp.pad(v, ((0, 0), (0, _LANES - v.shape[1]))))

    enc_tok_w, enc_tok_b = params["enc_tok"]
    dec_tok_w, dec_tok_b = params["dec_tok"]
    inp["enc_tok_w"] = enc_tok_w
    inp["dec_tok_w"] = dec_tok_w
    reg("enc_tok_b", enc_tok_b)
    reg("dec_tok_b", dec_tok_b)

    enc_layers = params["enc_layers"]
    inp["e_wqkv"] = jnp.stack(
        [jnp.concatenate([l["attn"]["wq"], l["attn"]["wk"], l["attn"]["wv"]],
                         axis=1) for l in enc_layers])
    inp["e_wo"] = jnp.stack([l["attn"]["wo"] for l in enc_layers])
    inp["e_ff1"] = jnp.stack([l["ff1"][0] for l in enc_layers])
    inp["e_ff2"] = jnp.stack([l["ff2"][0] for l in enc_layers])
    for i, l in enumerate(enc_layers):
        reg(f"e_bqkv_{i}", jnp.concatenate(
            [l["attn"]["bq"], l["attn"]["bk"], l["attn"]["bv"]], axis=1))
        reg(f"e_bo_{i}", l["attn"]["bo"])
        reg(f"e_ln1_g_{i}", l["ln1"][0]); reg(f"e_ln1_b_{i}", l["ln1"][1])
        reg(f"e_ff1_b_{i}", l["ff1"][1]); reg(f"e_ff2_b_{i}", l["ff2"][1])
        reg(f"e_ln2_g_{i}", l["ln2"][0]); reg(f"e_ln2_b_{i}", l["ln2"][1])

    conv_layers = params["conv_layers"]
    if conv_layers:
        inp["c_w"] = jnp.stack([c["w"] for c in conv_layers])
        for i, c in enumerate(conv_layers):
            reg(f"c_b_{i}", c["b"])
            reg(f"c_bn_g_{i}", c["bn_g"]); reg(f"c_bn_b_{i}", c["bn_b"])
            reg(f"c_bn_m_{i}", c["bn_m"]); reg(f"c_bn_v_{i}", c["bn_v"])
    reg("e_norm_g", params["enc_norm"][0]); reg("e_norm_b", params["enc_norm"][1])

    dec_layers = params["dec_layers"]
    inp["d_sa_wqkv"] = jnp.stack(
        [jnp.concatenate([l["sa"]["wq"], l["sa"]["wk"], l["sa"]["wv"]], axis=1)
         for l in dec_layers])
    inp["d_sa_wo"] = jnp.stack([l["sa"]["wo"] for l in dec_layers])
    inp["d_ca_wq"] = jnp.stack([l["ca"]["wq"] for l in dec_layers])
    inp["d_ca_wkv"] = jnp.stack(
        [jnp.concatenate([l["ca"]["wk"], l["ca"]["wv"]], axis=1) for l in dec_layers])
    inp["d_ca_wo"] = jnp.stack([l["ca"]["wo"] for l in dec_layers])
    inp["d_ff1"] = jnp.stack([l["ff1"][0] for l in dec_layers])
    inp["d_ff2"] = jnp.stack([l["ff2"][0] for l in dec_layers])
    for i, l in enumerate(dec_layers):
        reg(f"d_sa_bqkv_{i}", jnp.concatenate(
            [l["sa"]["bq"], l["sa"]["bk"], l["sa"]["bv"]], axis=1))
        reg(f"d_sa_bo_{i}", l["sa"]["bo"])
        reg(f"d_ln1_g_{i}", l["ln1"][0]); reg(f"d_ln1_b_{i}", l["ln1"][1])
        reg(f"d_ca_bq_{i}", l["ca"]["bq"])
        reg(f"d_ca_bkv_{i}", jnp.concatenate([l["ca"]["bk"], l["ca"]["bv"]], axis=1))
        reg(f"d_ca_bo_{i}", l["ca"]["bo"])
        reg(f"d_ln2_g_{i}", l["ln2"][0]); reg(f"d_ln2_b_{i}", l["ln2"][1])
        reg(f"d_ff1_b_{i}", l["ff1"][1]); reg(f"d_ff2_b_{i}", l["ff2"][1])
        reg(f"d_ln3_g_{i}", l["ln3"][0]); reg(f"d_ln3_b_{i}", l["ln3"][1])
    reg("d_norm_g", params["dec_norm"][0]); reg("d_norm_b", params["dec_norm"][1])

    proj_w, proj_b = params["proj"]
    inp["proj_w"] = jnp.pad(proj_w, ((0, 0), (0, _LANES - proj_w.shape[1])))
    reg("proj_b", jnp.pad(proj_b, ((0, 0), (0, _LANES - proj_b.shape[1]))))

    for i, c in enumerate(aux["enc_counts"]):
        inp[f"enc_cnt_{i}"] = c
    inp["dec_cnt"] = aux["dec_counts"]

    inp["vecs"] = jnp.concatenate(vec_rows, axis=0)

    # ----- specs -----
    names = tuple(inp.keys())
    args = [inp[n] for n in names]
    batched = {"enc_x_cat", "enc_add", "dec_x_cat", "dec_add"}
    in_specs = []
    for n, a in zip(names, args):
        shp = tuple(int(d) for d in a.shape)
        if n in batched:
            in_specs.append(pl.BlockSpec(
                (None,) + shp[1:],
                lambda b, _r=len(shp): (b,) + (0,) * (_r - 1)))
        else:  # weights / counts: VMEM-resident across the batch grid
            in_specs.append(pl.BlockSpec(
                shp, lambda b, _r=len(shp): (0,) * _r))
    out_spec = pl.BlockSpec((None, Ld, _LANES), lambda b: (b, 0, 0))

    kcfg = dict(H=H, D=D, Ld=Ld,
                e_layers=cfg["e_layers"], d_layers=cfg["d_layers"],
                enc_lens=tuple(int(v) for v in aux["enc_lens"]),
                enc_u=tuple(int(v) for v in aux["enc_u"]),
                dec_u=int(aux["dec_u"]))

    out = pl.pallas_call(
        functools.partial(_informer_kernel, names=names, cfg=kcfg, vidx=dict(vidx)),
        out_shape=jax.ShapeDtypeStruct((B, Ld, _LANES), jnp.float32),
        grid=(B,),
        in_specs=in_specs,
        out_specs=out_spec,
        compiler_params=pltpu.CompilerParams(
            dimension_semantics=("parallel",),
            vmem_limit_bytes=32 * 1024 * 1024),
    )(*args)
    return out[:, -cfg["pred_len"]:, :cfg["c_out"]]


# ---------------------------------------------------------------------------
# parameter construction (deterministic)
# ---------------------------------------------------------------------------
def init_informer_params(key, cfg):
    D, H, F = cfg["D"], cfg["H"], cfg["F"]
    keys = iter(jax.random.split(key, 512))

    def linear(n_in, n_out):
        bound = 1.0 / math.sqrt(n_in)
        w = jax.random.uniform(next(keys), (n_in, n_out), jnp.float32, -bound, bound)
        b = jax.random.uniform(next(keys), (1, n_out), jnp.float32, -bound, bound)
        return w, b

    def conv3(c_in, c_o):
        fan_in = 3 * c_in
        w = jax.random.normal(next(keys), (fan_in, c_o), jnp.float32) * math.sqrt(2.0 / fan_in)
        bound = 1.0 / math.sqrt(fan_in)
        b = jax.random.uniform(next(keys), (1, c_o), jnp.float32, -bound, bound)
        return w, b

    def norm():
        return jnp.ones((1, D), jnp.float32), jnp.zeros((1, D), jnp.float32)

    def attn():
        wq, bq = linear(D, D)
        wk, bk = linear(D, D)
        wv, bv = linear(D, D)
        wo, bo = linear(D, D)
        return dict(wq=wq, bq=bq, wk=wk, bk=bk, wv=wv, bv=bv, wo=wo, bo=bo)

    def enc_layer():
        return dict(attn=attn(), ln1=norm(), ff1=linear(D, F), ff2=linear(F, D), ln2=norm())

    def conv_layer():
        w, b = conv3(D, D)
        return dict(w=w, b=b,
                    bn_g=jnp.ones((1, D), jnp.float32), bn_b=jnp.zeros((1, D), jnp.float32),
                    bn_m=jnp.zeros((1, D), jnp.float32), bn_v=jnp.ones((1, D), jnp.float32))

    def dec_layer():
        return dict(sa=attn(), ca=attn(), ln1=norm(), ln2=norm(), ln3=norm(),
                    ff1=linear(D, F), ff2=linear(F, D))

    return dict(
        enc_tok=conv3(cfg["enc_in"], D),
        dec_tok=conv3(cfg["dec_in"], D),
        enc_layers=[enc_layer() for _ in range(cfg["e_layers"])],
        conv_layers=[conv_layer() for _ in range(cfg["e_layers"] - 1)],
        enc_norm=norm(),
        dec_layers=[dec_layer() for _ in range(cfg["d_layers"])],
        dec_norm=norm(),
        proj=linear(D, cfg["c_out"]),
    )


# ---------------------------------------------------------------------------
# pure-JAX reference (same parameters / same sampling aux) for the check
# ---------------------------------------------------------------------------
def informer_reference(params, aux, x_enc, x_mark_enc, x_dec, x_mark_dec, cfg):
    D, H = cfg["D"], cfg["H"]
    B, Le, _ = x_enc.shape
    Ld = x_dec.shape[1]
    E = D // H

    def token_conv(x, w, b):
        cat = jnp.concatenate([jnp.roll(x, 1, axis=1), x, jnp.roll(x, -1, axis=1)], axis=-1)
        return cat @ w + b

    def layer_norm(x, g, b, eps=1e-5):
        mu = x.mean(-1, keepdims=True)
        var = ((x - mu) ** 2).mean(-1, keepdims=True)
        return (x - mu) / jnp.sqrt(var + eps) * g + b

    def gelu(x):
        c = math.sqrt(2.0 / math.pi)
        return 0.5 * x * (1.0 + jnp.tanh(c * (x + 0.044715 * x ** 3)))

    def split_heads(t):
        b, l, _ = t.shape
        return t.reshape(b, l, H, E).transpose(0, 2, 1, 3)

    def attention_layer(xq, xkv, w, kind, counts=None, u=None, mix=False):
        b, Lq, _ = xq.shape
        Lk = xkv.shape[1]
        q = split_heads(xq @ w["wq"] + w["bq"])
        k = split_heads(xkv @ w["wk"] + w["bk"])
        v = split_heads(xkv @ w["wv"] + w["bv"])
        s = jnp.einsum("bhqe,bhke->bhqk", q, k)
        scale = 1.0 / math.sqrt(E)
        if kind == "full":
            o = jnp.einsum("bhqk,bhke->bhqe", jax.nn.softmax(s * scale, -1), v)
        else:
            if kind == "prob_causal":
                causal = jnp.tril(jnp.ones((Lq, Lk), jnp.float32)) > 0
                s_soft = jnp.where(causal, s * scale, _NEG)
                default = jnp.einsum("qk,bhke->bhqe", causal.astype(jnp.float32), v)
            else:
                s_soft = s * scale
                default = v.mean(axis=2, keepdims=True)
            attn_out = jnp.einsum("bhqk,bhke->bhqe", jax.nn.softmax(s_soft, -1), v)
            if u >= Lq:
                o = attn_out
            else:
                sampled = counts > 0.0
                smax = jnp.max(jnp.where(sampled, s, _NEG), axis=-1)
                ssum = jnp.sum(s * counts, axis=-1)
                M = smax - ssum / float(Lk)
                idx = jnp.arange(Lq)
                gt = M[..., None, :] > M[..., :, None]
                tie = (M[..., None, :] == M[..., :, None]) & (idx[None, :] < idx[:, None])
                rank = jnp.sum(gt | tie, axis=-1)
                sel = rank < u
                o = jnp.where(sel[..., None], attn_out, default)
        if mix:
            merged = o.reshape(b, Lq, H * E)
        else:
            merged = o.transpose(0, 2, 1, 3).reshape(b, Lq, H * E)
        return merged @ w["wo"] + w["bo"]

    def distil(x, c):
        b, L, Dm = x.shape
        cat = jnp.concatenate([jnp.roll(x, 1, axis=1), x, jnp.roll(x, -1, axis=1)], axis=-1)
        y = cat @ c["w"] + c["b"]
        y = (y - c["bn_m"]) / jnp.sqrt(c["bn_v"] + 1e-5) * c["bn_g"] + c["bn_b"]
        y = jnp.where(y > 0.0, y, jnp.exp(jnp.minimum(y, 0.0)) - 1.0)
        neg = jnp.full((b, 1, Dm), _NEG, jnp.float32)
        yp = jnp.concatenate([neg, y, neg], axis=1)
        Lout = (L - 1) // 2 + 1
        win = jnp.maximum(jnp.maximum(yp[:, 0:L], yp[:, 1:L + 1]), yp[:, 2:L + 2])
        return win[:, 0:2 * Lout:2]

    # encoder
    x = token_conv(x_enc, *params["enc_tok"]) + _embedding_add(x_mark_enc, D)
    for i, lp in enumerate(params["enc_layers"]):
        att = attention_layer(x, x, lp["attn"], "prob",
                              counts=aux["enc_counts"][i], u=aux["enc_u"][i])
        y = layer_norm(x + att, *lp["ln1"])
        ff = gelu(y @ lp["ff1"][0] + lp["ff1"][1]) @ lp["ff2"][0] + lp["ff2"][1]
        x = layer_norm(y + ff, *lp["ln2"])
        if i < len(params["enc_layers"]) - 1:
            x = distil(x, params["conv_layers"][i])
    enc = layer_norm(x, *params["enc_norm"])

    # decoder
    x = token_conv(x_dec, *params["dec_tok"]) + _embedding_add(x_mark_dec, D)
    for i, lp in enumerate(params["dec_layers"]):
        att = attention_layer(x, x, lp["sa"], "prob_causal",
                              counts=aux["dec_counts"][i], u=aux["dec_u"], mix=True)
        x = layer_norm(x + att, *lp["ln1"])
        att = attention_layer(x, enc, lp["ca"], "full")
        y = layer_norm(x + att, *lp["ln2"])
        ff = gelu(y @ lp["ff1"][0] + lp["ff1"][1]) @ lp["ff2"][0] + lp["ff2"][1]
        x = layer_norm(y + ff, *lp["ln3"])
    x = layer_norm(x, *params["dec_norm"])
    out = x @ params["proj"][0] + params["proj"][1]
    return out[:, -cfg["pred_len"]:, :]


# ---------------------------------------------------------------------------
if __name__ == "__main__":
    cfg = dict(enc_in=4, dec_in=4, c_out=4, seq_len=16, label_len=8, pred_len=8,
               factor=5, D=32, H=4, F=64, e_layers=2, d_layers=1)
    B = 2
    Ld = cfg["label_len"] + cfg["pred_len"]

    root = jax.random.PRNGKey(0)
    kp, kx1, kx2, km1, km2, ks = jax.random.split(root, 6)
    params = init_informer_params(kp, cfg)
    x_enc = jax.random.normal(kx1, (B, cfg["seq_len"], cfg["enc_in"]), jnp.float32)
    x_dec = jax.random.normal(kx2, (B, Ld, cfg["dec_in"]), jnp.float32)

    def make_marks(key, L):
        k1, k2, k3, k4 = jax.random.split(key, 4)
        return jnp.stack([jax.random.randint(k1, (B, L), 0, 13),   # month
                          jax.random.randint(k2, (B, L), 0, 32),   # day
                          jax.random.randint(k3, (B, L), 0, 7),    # weekday
                          jax.random.randint(k4, (B, L), 0, 24)],  # hour
                         axis=-1)

    x_mark_enc = make_marks(km1, cfg["seq_len"])
    x_mark_dec = make_marks(km2, Ld)

    aux = make_prob_aux(ks, cfg, cfg["seq_len"], Ld)

    out = informer_forward(params, aux, x_enc, x_mark_enc, x_dec, x_mark_dec, cfg)
    out = jax.block_until_ready(out)
    assert out.shape == (B, cfg["pred_len"], cfg["c_out"])

    ref = jax.block_until_ready(
        informer_reference(params, aux, x_enc, x_mark_enc, x_dec, x_mark_dec, cfg))
    np.testing.assert_allclose(np.asarray(out), np.asarray(ref), rtol=5e-3, atol=5e-3)

    print("KERNEL_OK")
</pallas_src>

<mosaic_0001>
module attributes {stable_mosaic.version = 11 : i64} {
  func.func @_informer_kernel(%arg0: i32, %arg1: memref<1x16x12xf32, #tpu.memory_space<vmem>>, %arg2: memref<1x16x32xf32, #tpu.memory_space<vmem>>, %arg3: memref<1x16x12xf32, #tpu.memory_space<vmem>>, %arg4: memref<1x16x32xf32, #tpu.memory_space<vmem>>, %arg5: memref<12x32xf32, #tpu.memory_space<vmem>>, %arg6: memref<12x32xf32, #tpu.memory_space<vmem>>, %arg7: memref<2x32x96xf32, #tpu.memory_space<vmem>>, %arg8: memref<2x32x32xf32, #tpu.memory_space<vmem>>, %arg9: memref<2x32x64xf32, #tpu.memory_space<vmem>>, %arg10: memref<2x64x32xf32, #tpu.memory_space<vmem>>, %arg11: memref<1x96x32xf32, #tpu.memory_space<vmem>>, %arg12: memref<1x32x96xf32, #tpu.memory_space<vmem>>, %arg13: memref<1x32x32xf32, #tpu.memory_space<vmem>>, %arg14: memref<1x32x32xf32, #tpu.memory_space<vmem>>, %arg15: memref<1x32x64xf32, #tpu.memory_space<vmem>>, %arg16: memref<1x32x32xf32, #tpu.memory_space<vmem>>, %arg17: memref<1x32x64xf32, #tpu.memory_space<vmem>>, %arg18: memref<1x64x32xf32, #tpu.memory_space<vmem>>, %arg19: memref<32x128xf32, #tpu.memory_space<vmem>>, %arg20: memref<16x16xf32, #tpu.memory_space<vmem>>, %arg21: memref<8x8xf32, #tpu.memory_space<vmem>>, %arg22: memref<1x16x16xf32, #tpu.memory_space<vmem>>, %arg23: memref<41x128xf32, #tpu.memory_space<vmem>>, %arg24: memref<1x16x128xf32, #tpu.memory_space<vmem>>) attributes {dimension_semantics = [#tpu.dimension_semantics<parallel>], iteration_bounds = array<i64: 2>, scalar_prefetch = 0 : i64, scratch_operands = 0 : i64, tpu.core_type = #tpu.core_type<tc>, window_params = [{transform_indices = @transform_0, window_bounds = array<i64: 1, 16, 12>}, {transform_indices = @transform_1, window_bounds = array<i64: 1, 16, 32>}, {transform_indices = @transform_2, window_bounds = array<i64: 1, 16, 12>}, {transform_indices = @transform_3, window_bounds = array<i64: 1, 16, 32>}, {pipeline_mode = #tpu.pipeline_mode<synchronous>, transform_indices = @transform_4, window_bounds = array<i64: 12, 32>}, {pipeline_mode = #tpu.pipeline_mode<synchronous>, transform_indices = @transform_5, window_bounds = array<i64: 12, 32>}, {pipeline_mode = #tpu.pipeline_mode<synchronous>, transform_indices = @transform_6, window_bounds = array<i64: 2, 32, 96>}, {pipeline_mode = #tpu.pipeline_mode<synchronous>, transform_indices = @transform_7, window_bounds = array<i64: 2, 32, 32>}, {pipeline_mode = #tpu.pipeline_mode<synchronous>, transform_indices = @transform_8, window_bounds = array<i64: 2, 32, 64>}, {pipeline_mode = #tpu.pipeline_mode<synchronous>, transform_indices = @transform_9, window_bounds = array<i64: 2, 64, 32>}, {pipeline_mode = #tpu.pipeline_mode<synchronous>, transform_indices = @transform_10, window_bounds = array<i64: 1, 96, 32>}, {pipeline_mode = #tpu.pipeline_mode<synchronous>, transform_indices = @transform_11, window_bounds = array<i64: 1, 32, 96>}, {pipeline_mode = #tpu.pipeline_mode<synchronous>, transform_indices = @transform_12, window_bounds = array<i64: 1, 32, 32>}, {pipeline_mode = #tpu.pipeline_mode<synchronous>, transform_indices = @transform_13, window_bounds = array<i64: 1, 32, 32>}, {pipeline_mode = #tpu.pipeline_mode<synchronous>, transform_indices = @transform_14, window_bounds = array<i64: 1, 32, 64>}, {pipeline_mode = #tpu.pipeline_mode<synchronous>, transform_indices = @transform_15, window_bounds = array<i64: 1, 32, 32>}, {pipeline_mode = #tpu.pipeline_mode<synchronous>, transform_indices = @transform_16, window_bounds = array<i64: 1, 32, 64>}, {pipeline_mode = #tpu.pipeline_mode<synchronous>, transform_indices = @transform_17, window_bounds = array<i64: 1, 64, 32>}, {pipeline_mode = #tpu.pipeline_mode<synchronous>, transform_indices = @transform_18, window_bounds = array<i64: 32, 128>}, {pipeline_mode = #tpu.pipeline_mode<synchronous>, transform_indices = @transform_19, window_bounds = array<i64: 16, 16>}, {pipeline_mode = #tpu.pipeline_mode<synchronous>, transform_indices = @transform_20, window_bounds = array<i64: 8, 8>}, {pipeline_mode = #tpu.pipeline_mode<synchronous>, transform_indices = @transform_21, window_bounds = array<i64: 1, 16, 16>}, {pipeline_mode = #tpu.pipeline_mode<synchronous>, transform_indices = @transform_22, window_bounds = array<i64: 41, 128>}, {transform_indices = @transform_23, window_bounds = array<i64: 1, 16, 128>}]} {
    %c0 = arith.constant 0 : index
    %c0_0 = arith.constant 0 : index
    %0 = vector.load %arg23[%c0, %c0_0] : memref<41x128xf32, #tpu.memory_space<vmem>>, vector<41x128xf32>
    %c0_1 = arith.constant 0 : index
    %c0_2 = arith.constant 0 : index
    %c0_3 = arith.constant 0 : index
    %1 = vector.load %arg1[%c0_1, %c0_2, %c0_3] : memref<1x16x12xf32, #tpu.memory_space<vmem>>, vector<1x16x12xf32>
    %2 = vector.shape_cast %1 : vector<1x16x12xf32> to vector<16x12xf32>
    %c0_4 = arith.constant 0 : index
    %c0_5 = arith.constant 0 : index
    %3 = vector.load %arg5[%c0_4, %c0_5] : memref<12x32xf32, #tpu.memory_space<vmem>>, vector<12x32xf32>
    %cst = arith.constant dense<0.000000e+00> : vector<16x32xf32>
    %4 = tpu.matmul %2, %3, %cst {dimension_numbers = #tpu.dot_dimension_numbers<[1], [0], [0], [1], [0, 0, 1, 1], [], []>} : vector<16x12xf32>, vector<12x32xf32>, vector<16x32xf32> -> vector<16x32xf32>
    %5 = vector.extract_strided_slice %0 {offsets = [0, 0], sizes = [1, 32], strides = [1, 1]} : vector<41x128xf32> to vector<1x32xf32>
    %6 = vector.broadcast %5 : vector<1x32xf32> to vector<16x32xf32>
    %7 = arith.addf %4, %6 : vector<16x32xf32>
    %c0_6 = arith.constant 0 : index
    %c0_7 = arith.constant 0 : index
    %c0_8 = arith.constant 0 : index
    %8 = vector.load %arg2[%c0_6, %c0_7, %c0_8] : memref<1x16x32xf32, #tpu.memory_space<vmem>>, vector<1x16x32xf32>
    %9 = vector.shape_cast %8 : vector<1x16x32xf32> to vector<16x32xf32>
    %10 = arith.addf %7, %9 : vector<16x32xf32>
    %c0_9 = arith.constant 0 : index
    %c0_10 = arith.constant 0 : index
    %c0_11 = arith.constant 0 : index
    %11 = vector.load %arg7[%c0_9, %c0_10, %c0_11] : memref<2x32x96xf32, #tpu.memory_space<vmem>>, vector<1x32x96xf32>
    %12 = vector.shape_cast %11 : vector<1x32x96xf32> to vector<32x96xf32>
    %13 = vector.extract_strided_slice %0 {offsets = [2, 0], sizes = [1, 96], strides = [1, 1]} : vector<41x128xf32> to vector<1x96xf32>
    %c0_12 = arith.constant 0 : index
    %c0_13 = arith.constant 0 : index
    %c0_14 = arith.constant 0 : index
    %14 = vector.load %arg8[%c0_12, %c0_13, %c0_14] : memref<2x32x32xf32, #tpu.memory_space<vmem>>, vector<1x32x32xf32>
    %15 = vector.shape_cast %14 : vector<1x32x32xf32> to vector<32x32xf32>
    %16 = vector.extract_strided_slice %0 {offsets = [3, 0], sizes = [1, 32], strides = [1, 1]} : vector<41x128xf32> to vector<1x32xf32>
    %c0_15 = arith.constant 0 : index
    %c0_16 = arith.constant 0 : index
    %17 = vector.load %arg20[%c0_15, %c0_16] : memref<16x16xf32, #tpu.memory_space<vmem>>, vector<16x16xf32>
    %cst_17 = arith.constant dense<0.000000e+00> : vector<16x96xf32>
    %18 = tpu.matmul %10, %12, %cst_17 {dimension_numbers = #tpu.dot_dimension_numbers<[1], [0], [0], [1], [0, 0, 1, 1], [], []>} : vector<16x32xf32>, vector<32x96xf32>, vector<16x96xf32> -> vector<16x96xf32>
    %19 = vector.broadcast %13 : vector<1x96xf32> to vector<16x96xf32>
    %20 = arith.addf %18, %19 : vector<16x96xf32>
    %cst_18 = arith.constant 0.000000e+00 : f32
    %21 = vector.broadcast %cst_18 : f32 to vector<16x16xf32>
    %22 = arith.cmpf ogt, %17, %21 : vector<16x16xf32>
    %23 = vector.extract_strided_slice %20 {offsets = [0, 0], sizes = [16, 32], strides = [1, 1]} : vector<16x96xf32> to vector<16x32xf32>
    %24 = vector.extract_strided_slice %20 {offsets = [0, 32], sizes = [16, 32], strides = [1, 1]} : vector<16x96xf32> to vector<16x32xf32>
    %25 = vector.extract_strided_slice %20 {offsets = [0, 64], sizes = [16, 32], strides = [1, 1]} : vector<16x96xf32> to vector<16x32xf32>
    %26 = vector.extract_strided_slice %23 {offsets = [0, 0], sizes = [16, 8], strides = [1, 1]} : vector<16x32xf32> to vector<16x8xf32>
    %27 = vector.extract_strided_slice %24 {offsets = [0, 0], sizes = [16, 8], strides = [1, 1]} : vector<16x32xf32> to vector<16x8xf32>
    %28 = vector.extract_strided_slice %25 {offsets = [0, 0], sizes = [16, 8], strides = [1, 1]} : vector<16x32xf32> to vector<16x8xf32>
    %cst_19 = arith.constant dense<0.000000e+00> : vector<16x16xf32>
    %29 = tpu.matmul %26, %27, %cst_19 {dimension_numbers = #tpu.dot_dimension_numbers<[1], [1], [0], [0], [0, 0, 1, 0], [], []>} : vector<16x8xf32>, vector<16x8xf32>, vector<16x16xf32> -> vector<16x16xf32>
    %cst_20 = arith.constant 0.353553385 : f32
    %30 = vector.broadcast %cst_20 : f32 to vector<16x16xf32>
    %31 = arith.mulf %29, %30 : vector<16x16xf32>
    %cst_21 = arith.constant dense<0xFF800000> : vector<16xf32>
    %32 = vector.multi_reduction <maximumf>, %31, %cst_21 [1] : vector<16x16xf32> to vector<16xf32>
    %33 = vector.shape_cast %32 : vector<16xf32> to vector<16x1xf32>
    %34 = vector.broadcast %33 : vector<16x1xf32> to vector<16x16xf32>
    %35 = arith.subf %31, %34 : vector<16x16xf32>
    %36 = math.exp %35 : vector<16x16xf32>
    %cst_22 = arith.constant dense<0.000000e+00> : vector<16xf32>
    %37 = vector.multi_reduction <add>, %36, %cst_22 [1] : vector<16x16xf32> to vector<16xf32>
    %38 = vector.shape_cast %37 : vector<16xf32> to vector<16x1xf32>
    %39 = tpu.reciprocal %38 {approx = true} : vector<16x1xf32> -> vector<16x1xf32>
    %40 = vector.broadcast %39 : vector<16x1xf32> to vector<16x16xf32>
    %41 = arith.mulf %36, %40 : vector<16x16xf32>
    %cst_23 = arith.constant dense<0.000000e+00> : vector<16x8xf32>
    %42 = tpu.matmul %41, %28, %cst_23 {dimension_numbers = #tpu.dot_dimension_numbers<[1], [0], [0], [1], [0, 0, 1, 1], [], []>} : vector<16x16xf32>, vector<16x8xf32>, vector<16x8xf32> -> vector<16x8xf32>
    %cst_24 = arith.constant dense<0.000000e+00> : vector<8xf32>
    %43 = vector.multi_reduction <add>, %28, %cst_24 [0] : vector<16x8xf32> to vector<8xf32>
    %44 = vector.shape_cast %43 : vector<8xf32> to vector<1x8xf32>
    %cst_25 = arith.constant 1.600000e+01 : f32
    %45 = vector.broadcast %cst_25 : f32 to vector<1x8xf32>
    %46 = arith.divf %44, %45 : vector<1x8xf32>
    %cst_26 = arith.constant -1.000000e+30 : f32
    %47 = vector.broadcast %cst_26 : f32 to vector<16x16xf32>
    %48 = arith.select %22, %29, %47 : vector<16x16xi1>, vector<16x16xf32>
    %cst_27 = arith.constant dense<0xFF800000> : vector<16xf32>
    %49 = vector.multi_reduction <maximumf>, %48, %cst_27 [1] : vector<16x16xf32> to vector<16xf32>
    %50 = vector.shape_cast %49 : vector<16xf32> to vector<16x1xf32>
    %51 = arith.mulf %29, %17 : vector<16x16xf32>
    %cst_28 = arith.constant dense<0.000000e+00> : vector<16xf32>
    %52 = vector.multi_reduction <add>, %51, %cst_28 [1] : vector<16x16xf32> to vector<16xf32>
    %53 = vector.shape_cast %52 : vector<16xf32> to vector<16x1xf32>
    %cst_29 = arith.constant 1.600000e+01 : f32
    %54 = vector.broadcast %cst_29 : f32 to vector<16x1xf32>
    %55 = arith.divf %53, %54 : vector<16x1xf32>
    %56 = arith.subf %50, %55 : vector<16x1xf32>
    %cst_30 = arith.constant 1.000000e+00 : f32
    %57 = vector.broadcast %cst_30 : f32 to vector<16x1xf32>
    %cst_31 = arith.constant dense<0.000000e+00> : vector<16x16xf32>
    %58 = tpu.matmul %57, %56, %cst_31 {dimension_numbers = #tpu.dot_dimension_numbers<[1], [1], [0], [0], [0, 0, 1, 0], [], []>} : vector<16x1xf32>, vector<16x1xf32>, vector<16x16xf32> -> vector<16x16xf32>
    %59 = vector.broadcast %56 : vector<16x1xf32> to vector<16x16xf32>
    %60 = arith.cmpf ogt, %58, %59 : vector<16x16xf32>
    %61 = vector.broadcast %56 : vector<16x1xf32> to vector<16x16xf32>
    %62 = arith.cmpf oeq, %58, %61 : vector<16x16xf32>
    %63 = tpu.iota {dimensions = array<i32: 1>} : vector<16x16xi32>
    %64 = tpu.iota {dimensions = array<i32: 0>} : vector<16x16xi32>
    %65 = arith.cmpi slt, %63, %64 : vector<16x16xi32>
    %66 = arith.andi %62, %65 : vector<16x16xi1>
    %67 = arith.ori %60, %66 : vector<16x16xi1>
    %68 = arith.extui %67 : vector<16x16xi1> to vector<16x16xi32>
    %69 = arith.sitofp %68 : vector<16x16xi32> to vector<16x16xf32>
    %cst_32 = arith.constant dense<0.000000e+00> : vector<16xf32>
    %70 = vector.multi_reduction <add>, %69, %cst_32 [1] : vector<16x16xf32> to vector<16xf32>
    %71 = vector.shape_cast %70 : vector<16xf32> to vector<16x1xf32>
    %cst_33 = arith.constant 1.500000e+01 : f32
    %72 = vector.broadcast %cst_33 : f32 to vector<16x1xf32>
    %73 = arith.cmpf olt, %71, %72 : vector<16x1xf32>
    %74 = vector.shape_cast %73 : vector<16x1xi1> to vector<16x1xi1>
    %75 = vector.broadcast %74 : vector<16x1xi1> to vector<16x8xi1>
    %76 = vector.shape_cast %46 : vector<1x8xf32> to vector<1x8xf32>
    %77 = vector.broadcast %76 : vector<1x8xf32> to vector<16x8xf32>
    %78 = arith.select %75, %42, %77 : vector<16x8xi1>, vector<16x8xf32>
    %79 = vector.extract_strided_slice %23 {offsets = [0, 8], sizes = [16, 8], strides = [1, 1]} : vector<16x32xf32> to vector<16x8xf32>
    %80 = vector.extract_strided_slice %24 {offsets = [0, 8], sizes = [16, 8], strides = [1, 1]} : vector<16x32xf32> to vector<16x8xf32>
    %81 = vector.extract_strided_slice %25 {offsets = [0, 8], sizes = [16, 8], strides = [1, 1]} : vector<16x32xf32> to vector<16x8xf32>
    %cst_34 = arith.constant dense<0.000000e+00> : vector<16x16xf32>
    %82 = tpu.matmul %79, %80, %cst_34 {dimension_numbers = #tpu.dot_dimension_numbers<[1], [1], [0], [0], [0, 0, 1, 0], [], []>} : vector<16x8xf32>, vector<16x8xf32>, vector<16x16xf32> -> vector<16x16xf32>
    %cst_35 = arith.constant 0.353553385 : f32
    %83 = vector.broadcast %cst_35 : f32 to vector<16x16xf32>
    %84 = arith.mulf %82, %83 : vector<16x16xf32>
    %cst_36 = arith.constant dense<0xFF800000> : vector<16xf32>
    %85 = vector.multi_reduction <maximumf>, %84, %cst_36 [1] : vector<16x16xf32> to vector<16xf32>
    %86 = vector.shape_cast %85 : vector<16xf32> to vector<16x1xf32>
    %87 = vector.broadcast %86 : vector<16x1xf32> to vector<16x16xf32>
    %88 = arith.subf %84, %87 : vector<16x16xf32>
    %89 = math.exp %88 : vector<16x16xf32>
    %cst_37 = arith.constant dense<0.000000e+00> : vector<16xf32>
    %90 = vector.multi_reduction <add>, %89, %cst_37 [1] : vector<16x16xf32> to vector<16xf32>
    %91 = vector.shape_cast %90 : vector<16xf32> to vector<16x1xf32>
    %92 = tpu.reciprocal %91 {approx = true} : vector<16x1xf32> -> vector<16x1xf32>
    %93 = vector.broadcast %92 : vector<16x1xf32> to vector<16x16xf32>
    %94 = arith.mulf %89, %93 : vector<16x16xf32>
    %cst_38 = arith.constant dense<0.000000e+00> : vector<16x8xf32>
    %95 = tpu.matmul %94, %81, %cst_38 {dimension_numbers = #tpu.dot_dimension_numbers<[1], [0], [0], [1], [0, 0, 1, 1], [], []>} : vector<16x16xf32>, vector<16x8xf32>, vector<16x8xf32> -> vector<16x8xf32>
    %cst_39 = arith.constant dense<0.000000e+00> : vector<8xf32>
    %96 = vector.multi_reduction <add>, %81, %cst_39 [0] : vector<16x8xf32> to vector<8xf32>
    %97 = vector.shape_cast %96 : vector<8xf32> to vector<1x8xf32>
    %cst_40 = arith.constant 1.600000e+01 : f32
    %98 = vector.broadcast %cst_40 : f32 to vector<1x8xf32>
    %99 = arith.divf %97, %98 : vector<1x8xf32>
    %cst_41 = arith.constant -1.000000e+30 : f32
    %100 = vector.broadcast %cst_41 : f32 to vector<16x16xf32>
    %101 = arith.select %22, %82, %100 : vector<16x16xi1>, vector<16x16xf32>
    %cst_42 = arith.constant dense<0xFF800000> : vector<16xf32>
    %102 = vector.multi_reduction <maximumf>, %101, %cst_42 [1] : vector<16x16xf32> to vector<16xf32>
    %103 = vector.shape_cast %102 : vector<16xf32> to vector<16x1xf32>
    %104 = arith.mulf %82, %17 : vector<16x16xf32>
    %cst_43 = arith.constant dense<0.000000e+00> : vector<16xf32>
    %105 = vector.multi_reduction <add>, %104, %cst_43 [1] : vector<16x16xf32> to vector<16xf32>
    %106 = vector.shape_cast %105 : vector<16xf32> to vector<16x1xf32>
    %cst_44 = arith.constant 1.600000e+01 : f32
    %107 = vector.broadcast %cst_44 : f32 to vector<16x1xf32>
    %108 = arith.divf %106, %107 : vector<16x1xf32>
    %109 = arith.subf %103, %108 : vector<16x1xf32>
    %cst_45 = arith.constant dense<0.000000e+00> : vector<16x16xf32>
    %110 = tpu.matmul %57, %109, %cst_45 {dimension_numbers = #tpu.dot_dimension_numbers<[1], [1], [0], [0], [0, 0, 1, 0], [], []>} : vector<16x1xf32>, vector<16x1xf32>, vector<16x16xf32> -> vector<16x16xf32>
    %111 = vector.broadcast %109 : vector<16x1xf32> to vector<16x16xf32>
    %112 = arith.cmpf ogt, %110, %111 : vector<16x16xf32>
    %113 = vector.broadcast %109 : vector<16x1xf32> to vector<16x16xf32>
    %114 = arith.cmpf oeq, %110, %113 : vector<16x16xf32>
    %115 = arith.andi %114, %65 : vector<16x16xi1>
    %116 = arith.ori %112, %115 : vector<16x16xi1>
    %117 = arith.extui %116 : vector<16x16xi1> to vector<16x16xi32>
    %118 = arith.sitofp %117 : vector<16x16xi32> to vector<16x16xf32>
    %cst_46 = arith.constant dense<0.000000e+00> : vector<16xf32>
    %119 = vector.multi_reduction <add>, %118, %cst_46 [1] : vector<16x16xf32> to vector<16xf32>
    %120 = vector.shape_cast %119 : vector<16xf32> to vector<16x1xf32>
    %cst_47 = arith.constant 1.500000e+01 : f32
    %121 = vector.broadcast %cst_47 : f32 to vector<16x1xf32>
    %122 = arith.cmpf olt, %120, %121 : vector<16x1xf32>
    %123 = vector.shape_cast %122 : vector<16x1xi1> to vector<16x1xi1>
    %124 = vector.broadcast %123 : vector<16x1xi1> to vector<16x8xi1>
    %125 = vector.shape_cast %99 : vector<1x8xf32> to vector<1x8xf32>
    %126 = vector.broadcast %125 : vector<1x8xf32> to vector<16x8xf32>
    %127 = arith.select %124, %95, %126 : vector<16x8xi1>, vector<16x8xf32>
    %128 = vector.extract_strided_slice %23 {offsets = [0, 16], sizes = [16, 8], strides = [1, 1]} : vector<16x32xf32> to vector<16x8xf32>
    %129 = vector.extract_strided_slice %24 {offsets = [0, 16], sizes = [16, 8], strides = [1, 1]} : vector<16x32xf32> to vector<16x8xf32>
    %130 = vector.extract_strided_slice %25 {offsets = [0, 16], sizes = [16, 8], strides = [1, 1]} : vector<16x32xf32> to vector<16x8xf32>
    %cst_48 = arith.constant dense<0.000000e+00> : vector<16x16xf32>
    %131 = tpu.matmul %128, %129, %cst_48 {dimension_numbers = #tpu.dot_dimension_numbers<[1], [1], [0], [0], [0, 0, 1, 0], [], []>} : vector<16x8xf32>, vector<16x8xf32>, vector<16x16xf32> -> vector<16x16xf32>
    %cst_49 = arith.constant 0.353553385 : f32
    %132 = vector.broadcast %cst_49 : f32 to vector<16x16xf32>
    %133 = arith.mulf %131, %132 : vector<16x16xf32>
    %cst_50 = arith.constant dense<0xFF800000> : vector<16xf32>
    %134 = vector.multi_reduction <maximumf>, %133, %cst_50 [1] : vector<16x16xf32> to vector<16xf32>
    %135 = vector.shape_cast %134 : vector<16xf32> to vector<16x1xf32>
    %136 = vector.broadcast %135 : vector<16x1xf32> to vector<16x16xf32>
    %137 = arith.subf %133, %136 : vector<16x16xf32>
    %138 = math.exp %137 : vector<16x16xf32>
    %cst_51 = arith.constant dense<0.000000e+00> : vector<16xf32>
    %139 = vector.multi_reduction <add>, %138, %cst_51 [1] : vector<16x16xf32> to vector<16xf32>
    %140 = vector.shape_cast %139 : vector<16xf32> to vector<16x1xf32>
    %141 = tpu.reciprocal %140 {approx = true} : vector<16x1xf32> -> vector<16x1xf32>
    %142 = vector.broadcast %141 : vector<16x1xf32> to vector<16x16xf32>
    %143 = arith.mulf %138, %142 : vector<16x16xf32>
    %cst_52 = arith.constant dense<0.000000e+00> : vector<16x8xf32>
    %144 = tpu.matmul %143, %130, %cst_52 {dimension_numbers = #tpu.dot_dimension_numbers<[1], [0], [0], [1], [0, 0, 1, 1], [], []>} : vector<16x16xf32>, vector<16x8xf32>, vector<16x8xf32> -> vector<16x8xf32>
    %cst_53 = arith.constant dense<0.000000e+00> : vector<8xf32>
    %145 = vector.multi_reduction <add>, %130, %cst_53 [0] : vector<16x8xf32> to vector<8xf32>
    %146 = vector.shape_cast %145 : vector<8xf32> to vector<1x8xf32>
    %cst_54 = arith.constant 1.600000e+01 : f32
    %147 = vector.broadcast %cst_54 : f32 to vector<1x8xf32>
    %148 = arith.divf %146, %147 : vector<1x8xf32>
    %cst_55 = arith.constant -1.000000e+30 : f32
    %149 = vector.broadcast %cst_55 : f32 to vector<16x16xf32>
    %150 = arith.select %22, %131, %149 : vector<16x16xi1>, vector<16x16xf32>
    %cst_56 = arith.constant dense<0xFF800000> : vector<16xf32>
    %151 = vector.multi_reduction <maximumf>, %150, %cst_56 [1] : vector<16x16xf32> to vector<16xf32>
    %152 = vector.shape_cast %151 : vector<16xf32> to vector<16x1xf32>
    %153 = arith.mulf %131, %17 : vector<16x16xf32>
    %cst_57 = arith.constant dense<0.000000e+00> : vector<16xf32>
    %154 = vector.multi_reduction <add>, %153, %cst_57 [1] : vector<16x16xf32> to vector<16xf32>
    %155 = vector.shape_cast %154 : vector<16xf32> to vector<16x1xf32>
    %cst_58 = arith.constant 1.600000e+01 : f32
    %156 = vector.broadcast %cst_58 : f32 to vector<16x1xf32>
    %157 = arith.divf %155, %156 : vector<16x1xf32>
    %158 = arith.subf %152, %157 : vector<16x1xf32>
    %cst_59 = arith.constant dense<0.000000e+00> : vector<16x16xf32>
    %159 = tpu.matmul %57, %158, %cst_59 {dimension_numbers = #tpu.dot_dimension_numbers<[1], [1], [0], [0], [0, 0, 1, 0], [], []>} : vector<16x1xf32>, vector<16x1xf32>, vector<16x16xf32> -> vector<16x16xf32>
    %160 = vector.broadcast %158 : vector<16x1xf32> to vector<16x16xf32>
    %161 = arith.cmpf ogt, %159, %160 : vector<16x16xf32>
    %162 = vector.broadcast %158 : vector<16x1xf32> to vector<16x16xf32>
    %163 = arith.cmpf oeq, %159, %162 : vector<16x16xf32>
    %164 = arith.andi %163, %65 : vector<16x16xi1>
    %165 = arith.ori %161, %164 : vector<16x16xi1>
    %166 = arith.extui %165 : vector<16x16xi1> to vector<16x16xi32>
    %167 = arith.sitofp %166 : vector<16x16xi32> to vector<16x16xf32>
    %cst_60 = arith.constant dense<0.000000e+00> : vector<16xf32>
    %168 = vector.multi_reduction <add>, %167, %cst_60 [1] : vector<16x16xf32> to vector<16xf32>
    %169 = vector.shape_cast %168 : vector<16xf32> to vector<16x1xf32>
    %cst_61 = arith.constant 1.500000e+01 : f32
    %170 = vector.broadcast %cst_61 : f32 to vector<16x1xf32>
    %171 = arith.cmpf olt, %169, %170 : vector<16x1xf32>
    %172 = vector.shape_cast %171 : vector<16x1xi1> to vector<16x1xi1>
    %173 = vector.broadcast %172 : vector<16x1xi1> to vector<16x8xi1>
    %174 = vector.shape_cast %148 : vector<1x8xf32> to vector<1x8xf32>
    %175 = vector.broadcast %174 : vector<1x8xf32> to vector<16x8xf32>
    %176 = arith.select %173, %144, %175 : vector<16x8xi1>, vector<16x8xf32>
    %177 = vector.extract_strided_slice %23 {offsets = [0, 24], sizes = [16, 8], strides = [1, 1]} : vector<16x32xf32> to vector<16x8xf32>
    %178 = vector.extract_strided_slice %24 {offsets = [0, 24], sizes = [16, 8], strides = [1, 1]} : vector<16x32xf32> to vector<16x8xf32>
    %179 = vector.extract_strided_slice %25 {offsets = [0, 24], sizes = [16, 8], strides = [1, 1]} : vector<16x32xf32> to vector<16x8xf32>
    %cst_62 = arith.constant dense<0.000000e+00> : vector<16x16xf32>
    %180 = tpu.matmul %177, %178, %cst_62 {dimension_numbers = #tpu.dot_dimension_numbers<[1], [1], [0], [0], [0, 0, 1, 0], [], []>} : vector<16x8xf32>, vector<16x8xf32>, vector<16x16xf32> -> vector<16x16xf32>
    %cst_63 = arith.constant 0.353553385 : f32
    %181 = vector.broadcast %cst_63 : f32 to vector<16x16xf32>
    %182 = arith.mulf %180, %181 : vector<16x16xf32>
    %cst_64 = arith.constant dense<0xFF800000> : vector<16xf32>
    %183 = vector.multi_reduction <maximumf>, %182, %cst_64 [1] : vector<16x16xf32> to vector<16xf32>
    %184 = vector.shape_cast %183 : vector<16xf32> to vector<16x1xf32>
    %185 = vector.broadcast %184 : vector<16x1xf32> to vector<16x16xf32>
    %186 = arith.subf %182, %185 : vector<16x16xf32>
    %187 = math.exp %186 : vector<16x16xf32>
    %cst_65 = arith.constant dense<0.000000e+00> : vector<16xf32>
    %188 = vector.multi_reduction <add>, %187, %cst_65 [1] : vector<16x16xf32> to vector<16xf32>
    %189 = vector.shape_cast %188 : vector<16xf32> to vector<16x1xf32>
    %190 = tpu.reciprocal %189 {approx = true} : vector<16x1xf32> -> vector<16x1xf32>
    %191 = vector.broadcast %190 : vector<16x1xf32> to vector<16x16xf32>
    %192 = arith.mulf %187, %191 : vector<16x16xf32>
    %cst_66 = arith.constant dense<0.000000e+00> : vector<16x8xf32>
    %193 = tpu.matmul %192, %179, %cst_66 {dimension_numbers = #tpu.dot_dimension_numbers<[1], [0], [0], [1], [0, 0, 1, 1], [], []>} : vector<16x16xf32>, vector<16x8xf32>, vector<16x8xf32> -> vector<16x8xf32>
    %cst_67 = arith.constant dense<0.000000e+00> : vector<8xf32>
    %194 = vector.multi_reduction <add>, %179, %cst_67 [0] : vector<16x8xf32> to vector<8xf32>
    %195 = vector.shape_cast %194 : vector<8xf32> to vector<1x8xf32>
    %cst_68 = arith.constant 1.600000e+01 : f32
    %196 = vector.broadcast %cst_68 : f32 to vector<1x8xf32>
    %197 = arith.divf %195, %196 : vector<1x8xf32>
    %cst_69 = arith.constant -1.000000e+30 : f32
    %198 = vector.broadcast %cst_69 : f32 to vector<16x16xf32>
    %199 = arith.select %22, %180, %198 : vector<16x16xi1>, vector<16x16xf32>
    %cst_70 = arith.constant dense<0xFF800000> : vector<16xf32>
    %200 = vector.multi_reduction <maximumf>, %199, %cst_70 [1] : vector<16x16xf32> to vector<16xf32>
    %201 = vector.shape_cast %200 : vector<16xf32> to vector<16x1xf32>
    %202 = arith.mulf %180, %17 : vector<16x16xf32>
    %cst_71 = arith.constant dense<0.000000e+00> : vector<16xf32>
    %203 = vector.multi_reduction <add>, %202, %cst_71 [1] : vector<16x16xf32> to vector<16xf32>
    %204 = vector.shape_cast %203 : vector<16xf32> to vector<16x1xf32>
    %cst_72 = arith.constant 1.600000e+01 : f32
    %205 = vector.broadcast %cst_72 : f32 to vector<16x1xf32>
    %206 = arith.divf %204, %205 : vector<16x1xf32>
    %207 = arith.subf %201, %206 : vector<16x1xf32>
    %cst_73 = arith.constant dense<0.000000e+00> : vector<16x16xf32>
    %208 = tpu.matmul %57, %207, %cst_73 {dimension_numbers = #tpu.dot_dimension_numbers<[1], [1], [0], [0], [0, 0, 1, 0], [], []>} : vector<16x1xf32>, vector<16x1xf32>, vector<16x16xf32> -> vector<16x16xf32>
    %209 = vector.broadcast %207 : vector<16x1xf32> to vector<16x16xf32>
    %210 = arith.cmpf ogt, %208, %209 : vector<16x16xf32>
    %211 = vector.broadcast %207 : vector<16x1xf32> to vector<16x16xf32>
    %212 = arith.cmpf oeq, %208, %211 : vector<16x16xf32>
    %213 = arith.andi %212, %65 : vector<16x16xi1>
    %214 = arith.ori %210, %213 : vector<16x16xi1>
    %215 = arith.extui %214 : vector<16x16xi1> to vector<16x16xi32>
    %216 = arith.sitofp %215 : vector<16x16xi32> to vector<16x16xf32>
    %cst_74 = arith.constant dense<0.000000e+00> : vector<16xf32>
    %217 = vector.multi_reduction <add>, %216, %cst_74 [1] : vector<16x16xf32> to vector<16xf32>
    %218 = vector.shape_cast %217 : vector<16xf32> to vector<16x1xf32>
    %cst_75 = arith.constant 1.500000e+01 : f32
    %219 = vector.broadcast %cst_75 : f32 to vector<16x1xf32>
    %220 = arith.cmpf olt, %218, %219 : vector<16x1xf32>
    %221 = vector.shape_cast %220 : vector<16x1xi1> to vector<16x1xi1>
    %222 = vector.broadcast %221 : vector<16x1xi1> to vector<16x8xi1>
    %223 = vector.shape_cast %197 : vector<1x8xf32> to vector<1x8xf32>
    %224 = vector.broadcast %223 : vector<1x8xf32> to vector<16x8xf32>
    %225 = arith.select %222, %193, %224 : vector<16x8xi1>, vector<16x8xf32>
    %226 = tpu.concatenate %78, %127, %176, %225 in 1 : vector<16x8xf32>, vector<16x8xf32>, vector<16x8xf32>, vector<16x8xf32> -> vector<16x32xf32>
    %cst_76 = arith.constant dense<0.000000e+00> : vector<16x32xf32>
    %227 = tpu.matmul %226, %15, %cst_76 {dimension_numbers = #tpu.dot_dimension_numbers<[1], [0], [0], [1], [0, 0, 1, 1], [], []>} : vector<16x32xf32>, vector<32x32xf32>, vector<16x32xf32> -> vector<16x32xf32>
    %228 = vector.broadcast %16 : vector<1x32xf32> to vector<16x32xf32>
    %229 = arith.addf %227, %228 : vector<16x32xf32>
    %230 = arith.addf %10, %229 : vector<16x32xf32>
    %231 = vector.extract_strided_slice %0 {offsets = [4, 0], sizes = [1, 32], strides = [1, 1]} : vector<41x128xf32> to vector<1x32xf32>
    %232 = vector.extract_strided_slice %0 {offsets = [5, 0], sizes = [1, 32], strides = [1, 1]} : vector<41x128xf32> to vector<1x32xf32>
    %cst_77 = arith.constant dense<0.000000e+00> : vector<16xf32>
    %233 = vector.multi_reduction <add>, %230, %cst_77 [1] : vector<16x32xf32> to vector<16xf32>
    %234 = vector.shape_cast %233 : vector<16xf32> to vector<16x1xf32>
    %cst_78 = arith.constant 3.200000e+01 : f32
    %235 = vector.broadcast %cst_78 : f32 to vector<16x1xf32>
    %236 = arith.divf %234, %235 : vector<16x1xf32>
    %237 = vector.broadcast %236 : vector<16x1xf32> to vector<16x32xf32>
    %238 = arith.subf %230, %237 : vector<16x32xf32>
    %239 = arith.mulf %238, %238 : vector<16x32xf32>
    %cst_79 = arith.constant dense<0.000000e+00> : vector<16xf32>
    %240 = vector.multi_reduction <add>, %239, %cst_79 [1] : vector<16x32xf32> to vector<16xf32>
    %241 = vector.shape_cast %240 : vector<16xf32> to vector<16x1xf32>
    %cst_80 = arith.constant 3.200000e+01 : f32
    %242 = vector.broadcast %cst_80 : f32 to vector<16x1xf32>
    %243 = arith.divf %241, %242 : vector<16x1xf32>
    %244 = vector.broadcast %236 : vector<16x1xf32> to vector<16x32xf32>
    %245 = arith.subf %230, %244 : vector<16x32xf32>
    %cst_81 = arith.constant 9.99999974E-6 : f32
    %246 = vector.broadcast %cst_81 : f32 to vector<16x1xf32>
    %247 = arith.addf %243, %246 : vector<16x1xf32>
    %248 = math.rsqrt %247 : vector<16x1xf32>
    %249 = vector.broadcast %248 : vector<16x1xf32> to vector<16x32xf32>
    %250 = arith.mulf %245, %249 : vector<16x32xf32>
    %251 = vector.broadcast %231 : vector<1x32xf32> to vector<16x32xf32>
    %252 = arith.mulf %250, %251 : vector<16x32xf32>
    %253 = vector.broadcast %232 : vector<1x32xf32> to vector<16x32xf32>
    %254 = arith.addf %252, %253 : vector<16x32xf32>
    %c0_82 = arith.constant 0 : index
    %c0_83 = arith.constant 0 : index
    %c0_84 = arith.constant 0 : index
    %255 = vector.load %arg9[%c0_82, %c0_83, %c0_84] : memref<2x32x64xf32, #tpu.memory_space<vmem>>, vector<1x32x64xf32>
    %256 = vector.shape_cast %255 : vector<1x32x64xf32> to vector<32x64xf32>
    %cst_85 = arith.constant dense<0.000000e+00> : vector<16x64xf32>
    %257 = tpu.matmul %254, %256, %cst_85 {dimension_numbers = #tpu.dot_dimension_numbers<[1], [0], [0], [1], [0, 0, 1, 1], [], []>} : vector<16x32xf32>, vector<32x64xf32>, vector<16x64xf32> -> vector<16x64xf32>
    %258 = vector.extract_strided_slice %0 {offsets = [6, 0], sizes = [1, 64], strides = [1, 1]} : vector<41x128xf32> to vector<1x64xf32>
    %259 = vector.broadcast %258 : vector<1x64xf32> to vector<16x64xf32>
    %260 = arith.addf %257, %259 : vector<16x64xf32>
    %cst_86 = arith.constant 5.000000e-01 : f32
    %261 = vector.broadcast %cst_86 : f32 to vector<16x64xf32>
    %262 = arith.mulf %261, %260 : vector<16x64xf32>
    %cst_87 = arith.constant 4.471500e-02 : f32
    %263 = vector.broadcast %cst_87 : f32 to vector<16x64xf32>
    %264 = arith.mulf %263, %260 : vector<16x64xf32>
    %265 = arith.mulf %264, %260 : vector<16x64xf32>
    %266 = arith.mulf %265, %260 : vector<16x64xf32>
    %267 = arith.addf %260, %266 : vector<16x64xf32>
    %cst_88 = arith.constant 0.797884583 : f32
    %268 = vector.broadcast %cst_88 : f32 to vector<16x64xf32>
    %269 = arith.mulf %268, %267 : vector<16x64xf32>
    %270 = math.tanh %269 : vector<16x64xf32>
    %cst_89 = arith.constant 1.000000e+00 : f32
    %271 = vector.broadcast %cst_89 : f32 to vector<16x64xf32>
    %272 = arith.addf %271, %270 : vector<16x64xf32>
    %273 = arith.mulf %262, %272 : vector<16x64xf32>
    %c0_90 = arith.constant 0 : index
    %c0_91 = arith.constant 0 : index
    %c0_92 = arith.constant 0 : index
    %274 = vector.load %arg10[%c0_90, %c0_91, %c0_92] : memref<2x64x32xf32, #tpu.memory_space<vmem>>, vector<1x64x32xf32>
    %275 = vector.shape_cast %274 : vector<1x64x32xf32> to vector<64x32xf32>
    %cst_93 = arith.constant dense<0.000000e+00> : vector<16x32xf32>
    %276 = tpu.matmul %273, %275, %cst_93 {dimension_numbers = #tpu.dot_dimension_numbers<[1], [0], [0], [1], [0, 0, 1, 1], [], []>} : vector<16x64xf32>, vector<64x32xf32>, vector<16x32xf32> -> vector<16x32xf32>
    %277 = vector.extract_strided_slice %0 {offsets = [7, 0], sizes = [1, 32], strides = [1, 1]} : vector<41x128xf32> to vector<1x32xf32>
    %278 = vector.broadcast %277 : vector<1x32xf32> to vector<16x32xf32>
    %279 = arith.addf %276, %278 : vector<16x32xf32>
    %280 = arith.addf %254, %279 : vector<16x32xf32>
    %281 = vector.extract_strided_slice %0 {offsets = [8, 0], sizes = [1, 32], strides = [1, 1]} : vector<41x128xf32> to vector<1x32xf32>
    %282 = vector.extract_strided_slice %0 {offsets = [9, 0], sizes = [1, 32], strides = [1, 1]} : vector<41x128xf32> to vector<1x32xf32>
    %cst_94 = arith.constant dense<0.000000e+00> : vector<16xf32>
    %283 = vector.multi_reduction <add>, %280, %cst_94 [1] : vector<16x32xf32> to vector<16xf32>
    %284 = vector.shape_cast %283 : vector<16xf32> to vector<16x1xf32>
    %cst_95 = arith.constant 3.200000e+01 : f32
    %285 = vector.broadcast %cst_95 : f32 to vector<16x1xf32>
    %286 = arith.divf %284, %285 : vector<16x1xf32>
    %287 = vector.broadcast %286 : vector<16x1xf32> to vector<16x32xf32>
    %288 = arith.subf %280, %287 : vector<16x32xf32>
    %289 = arith.mulf %288, %288 : vector<16x32xf32>
    %cst_96 = arith.constant dense<0.000000e+00> : vector<16xf32>
    %290 = vector.multi_reduction <add>, %289, %cst_96 [1] : vector<16x32xf32> to vector<16xf32>
    %291 = vector.shape_cast %290 : vector<16xf32> to vector<16x1xf32>
    %cst_97 = arith.constant 3.200000e+01 : f32
    %292 = vector.broadcast %cst_97 : f32 to vector<16x1xf32>
    %293 = arith.divf %291, %292 : vector<16x1xf32>
    %294 = vector.broadcast %286 : vector<16x1xf32> to vector<16x32xf32>
    %295 = arith.subf %280, %294 : vector<16x32xf32>
    %cst_98 = arith.constant 9.99999974E-6 : f32
    %296 = vector.broadcast %cst_98 : f32 to vector<16x1xf32>
    %297 = arith.addf %293, %296 : vector<16x1xf32>
    %298 = math.rsqrt %297 : vector<16x1xf32>
    %299 = vector.broadcast %298 : vector<16x1xf32> to vector<16x32xf32>
    %300 = arith.mulf %295, %299 : vector<16x32xf32>
    %301 = vector.broadcast %281 : vector<1x32xf32> to vector<16x32xf32>
    %302 = arith.mulf %300, %301 : vector<16x32xf32>
    %303 = vector.broadcast %282 : vector<1x32xf32> to vector<16x32xf32>
    %304 = arith.addf %302, %303 : vector<16x32xf32>
    %c0_99 = arith.constant 0 : index
    %c0_100 = arith.constant 0 : index
    %c0_101 = arith.constant 0 : index
    %305 = vector.load %arg11[%c0_99, %c0_100, %c0_101] : memref<1x96x32xf32, #tpu.memory_space<vmem>>, vector<1x96x32xf32>
    %306 = vector.shape_cast %305 : vector<1x96x32xf32> to vector<96x32xf32>
    %307 = vector.extract_strided_slice %304 {offsets = [15, 0], sizes = [1, 32], strides = [1, 1]} : vector<16x32xf32> to vector<1x32xf32>
    %308 = vector.extract_strided_slice %304 {offsets = [0, 0], sizes = [15, 32], strides = [1, 1]} : vector<16x32xf32> to vector<15x32xf32>
    %309 = tpu.concatenate %307, %308 in 0 : vector<1x32xf32>, vector<15x32xf32> -> vector<16x32xf32>
    %310 = vector.extract_strided_slice %304 {offsets = [1, 0], sizes = [15, 32], strides = [1, 1]} : vector<16x32xf32> to vector<15x32xf32>
    %311 = vector.extract_strided_slice %304 {offsets = [0, 0], sizes = [1, 32], strides = [1, 1]} : vector<16x32xf32> to vector<1x32xf32>
    %312 = tpu.concatenate %310, %311 in 0 : vector<15x32xf32>, vector<1x32xf32> -> vector<16x32xf32>
    %313 = vector.extract_strided_slice %306 {offsets = [0, 0], sizes = [32, 32], strides = [1, 1]} : vector<96x32xf32> to vector<32x32xf32>
    %cst_102 = arith.constant dense<0.000000e+00> : vector<16x32xf32>
    %314 = tpu.matmul %309, %313, %cst_102 {dimension_numbers = #tpu.dot_dimension_numbers<[1], [0], [0], [1], [0, 0, 1, 1], [], []>} : vector<16x32xf32>, vector<32x32xf32>, vector<16x32xf32> -> vector<16x32xf32>
    %315 = vector.extract_strided_slice %306 {offsets = [32, 0], sizes = [32, 32], strides = [1, 1]} : vector<96x32xf32> to vector<32x32xf32>
    %cst_103 = arith.constant dense<0.000000e+00> : vector<16x32xf32>
    %316 = tpu.matmul %304, %315, %cst_103 {dimension_numbers = #tpu.dot_dimension_numbers<[1], [0], [0], [1], [0, 0, 1, 1], [], []>} : vector<16x32xf32>, vector<32x32xf32>, vector<16x32xf32> -> vector<16x32xf32>
    %317 = arith.addf %314, %316 : vector<16x32xf32>
    %318 = vector.extract_strided_slice %306 {offsets = [64, 0], sizes = [32, 32], strides = [1, 1]} : vector<96x32xf32> to vector<32x32xf32>
    %cst_104 = arith.constant dense<0.000000e+00> : vector<16x32xf32>
    %319 = tpu.matmul %312, %318, %cst_104 {dimension_numbers = #tpu.dot_dimension_numbers<[1], [0], [0], [1], [0, 0, 1, 1], [], []>} : vector<16x32xf32>, vector<32x32xf32>, vector<16x32xf32> -> vector<16x32xf32>
    %320 = arith.addf %317, %319 : vector<16x32xf32>
    %321 = vector.extract_strided_slice %0 {offsets = [18, 0], sizes = [1, 32], strides = [1, 1]} : vector<41x128xf32> to vector<1x32xf32>
    %322 = vector.broadcast %321 : vector<1x32xf32> to vector<16x32xf32>
    %323 = arith.addf %320, %322 : vector<16x32xf32>
    %324 = vector.extract_strided_slice %0 {offsets = [21, 0], sizes = [1, 32], strides = [1, 1]} : vector<41x128xf32> to vector<1x32xf32>
    %325 = vector.broadcast %324 : vector<1x32xf32> to vector<16x32xf32>
    %326 = arith.subf %323, %325 : vector<16x32xf32>
    %327 = vector.extract_strided_slice %0 {offsets = [22, 0], sizes = [1, 32], strides = [1, 1]} : vector<41x128xf32> to vector<1x32xf32>
    %cst_105 = arith.constant 9.99999974E-6 : f32
    %328 = vector.broadcast %cst_105 : f32 to vector<1x32xf32>
    %329 = arith.addf %327, %328 : vector<1x32xf32>
    %330 = math.rsqrt %329 : vector<1x32xf32>
    %331 = vector.broadcast %330 : vector<1x32xf32> to vector<16x32xf32>
    %332 = arith.mulf %326, %331 : vector<16x32xf32>
    %333 = vector.extract_strided_slice %0 {offsets = [19, 0], sizes = [1, 32], strides = [1, 1]} : vector<41x128xf32> to vector<1x32xf32>
    %334 = vector.broadcast %333 : vector<1x32xf32> to vector<16x32xf32>
    %335 = arith.mulf %332, %334 : vector<16x32xf32>
    %336 = vector.extract_strided_slice %0 {offsets = [20, 0], sizes = [1, 32], strides = [1, 1]} : vector<41x128xf32> to vector<1x32xf32>
    %337 = vector.broadcast %336 : vector<1x32xf32> to vector<16x32xf32>
    %338 = arith.addf %335, %337 : vector<16x32xf32>
    %cst_106 = arith.constant 0.000000e+00 : f32
    %339 = vector.broadcast %cst_106 : f32 to vector<16x32xf32>
    %340 = arith.cmpf ogt, %338, %339 : vector<16x32xf32>
    %cst_107 = arith.constant 0.000000e+00 : f32
    %341 = vector.broadcast %cst_107 : f32 to vector<16x32xf32>
    %342 = arith.minimumf %338, %341 : vector<16x32xf32>
    %343 = math.exp %342 : vector<16x32xf32>
    %cst_108 = arith.constant 1.000000e+00 : f32
    %344 = vector.broadcast %cst_108 : f32 to vector<16x32xf32>
    %345 = arith.subf %343, %344 : vector<16x32xf32>
    %346 = arith.select %340, %338, %345 : vector<16x32xi1>, vector<16x32xf32>
    %cst_109 = arith.constant -1.000000e+30 : f32
    %347 = vector.broadcast %cst_109 : f32 to vector<1x32xf32>
    %348 = tpu.concatenate %347, %346, %347 in 0 : vector<1x32xf32>, vector<16x32xf32>, vector<1x32xf32> -> vector<18x32xf32>
    %349 = vector.extract_strided_slice %348 {offsets = [0, 0], sizes = [16, 32], strides = [1, 1]} : vector<18x32xf32> to vector<16x32xf32>
    %350 = vector.extract_strided_slice %348 {offsets = [1, 0], sizes = [16, 32], strides = [1, 1]} : vector<18x32xf32> to vector<16x32xf32>
    %351 = arith.maximumf %349, %350 : vector<16x32xf32>
    %352 = vector.extract_strided_slice %348 {offsets = [2, 0], sizes = [16, 32], strides = [1, 1]} : vector<18x32xf32> to vector<16x32xf32>
    %353 = arith.maximumf %351, %352 : vector<16x32xf32>
    %354 = tpu.iota {dimensions = array<i32: 1>} : vector<8x16xi32>
    %355 = tpu.iota {dimensions = array<i32: 0>} : vector<8x16xi32>
    %c2_i32 = arith.constant 2 : i32
    %356 = vector.broadcast %c2_i32 : i32 to vector<8x16xi32>
    %357 = arith.muli %356, %355 : vector<8x16xi32>
    %358 = arith.cmpi eq, %354, %357 : vector<8x16xi32>
    %359 = arith.extui %358 : vector<8x16xi1> to vector<8x16xi32>
    %360 = arith.sitofp %359 : vector<8x16xi32> to vector<8x16xf32>
    %cst_110 = arith.constant dense<0.000000e+00> : vector<8x32xf32>
    %361 = tpu.matmul %360, %353, %cst_110 {dimension_numbers = #tpu.dot_dimension_numbers<[1], [0], [0], [1], [0, 0, 1, 1], [], []>} : vector<8x16xf32>, vector<16x32xf32>, vector<8x32xf32> -> vector<8x32xf32>
    %c1 = arith.constant 1 : index
    %c0_111 = arith.constant 0 : index
    %c0_112 = arith.constant 0 : index
    %362 = vector.load %arg7[%c1, %c0_111, %c0_112] : memref<2x32x96xf32, #tpu.memory_space<vmem>>, vector<1x32x96xf32>
    %363 = vector.shape_cast %362 : vector<1x32x96xf32> to vector<32x96xf32>
    %364 = vector.extract_strided_slice %0 {offsets = [10, 0], sizes = [1, 96], strides = [1, 1]} : vector<41x128xf32> to vector<1x96xf32>
    %c1_113 = arith.constant 1 : index
    %c0_114 = arith.constant 0 : index
    %c0_115 = arith.constant 0 : index
    %365 = vector.load %arg8[%c1_113, %c0_114, %c0_115] : memref<2x32x32xf32, #tpu.memory_space<vmem>>, vector<1x32x32xf32>
    %366 = vector.shape_cast %365 : vector<1x32x32xf32> to vector<32x32xf32>
    %367 = vector.extract_strided_slice %0 {offsets = [11, 0], sizes = [1, 32], strides = [1, 1]} : vector<41x128xf32> to vector<1x32xf32>
    %cst_116 = arith.constant dense<0.000000e+00> : vector<8x96xf32>
    %368 = tpu.matmul %361, %363, %cst_116 {dimension_numbers = #tpu.dot_dimension_numbers<[1], [0], [0], [1], [0, 0, 1, 1], [], []>} : vector<8x32xf32>, vector<32x96xf32>, vector<8x96xf32> -> vector<8x96xf32>
    %369 = vector.broadcast %364 : vector<1x96xf32> to vector<8x96xf32>
    %370 = arith.addf %368, %369 : vector<8x96xf32>
    %371 = vector.extract_strided_slice %370 {offsets = [0, 0], sizes = [8, 32], strides = [1, 1]} : vector<8x96xf32> to vector<8x32xf32>
    %372 = vector.extract_strided_slice %370 {offsets = [0, 32], sizes = [8, 32], strides = [1, 1]} : vector<8x96xf32> to vector<8x32xf32>
    %373 = vector.extract_strided_slice %370 {offsets = [0, 64], sizes = [8, 32], strides = [1, 1]} : vector<8x96xf32> to vector<8x32xf32>
    %374 = vector.extract_strided_slice %371 {offsets = [0, 0], sizes = [8, 8], strides = [1, 1]} : vector<8x32xf32> to vector<8x8xf32>
    %375 = vector.extract_strided_slice %372 {offsets = [0, 0], sizes = [8, 8], strides = [1, 1]} : vector<8x32xf32> to vector<8x8xf32>
    %376 = vector.extract_strided_slice %373 {offsets = [0, 0], sizes = [8, 8], strides = [1, 1]} : vector<8x32xf32> to vector<8x8xf32>
    %cst_117 = arith.constant dense<0.000000e+00> : vector<8x8xf32>
    %377 = tpu.matmul %374, %375, %cst_117 {dimension_numbers = #tpu.dot_dimension_numbers<[1], [1], [0], [0], [0, 0, 1, 0], [], []>} : vector<8x8xf32>, vector<8x8xf32>, vector<8x8xf32> -> vector<8x8xf32>
    %cst_118 = arith.constant 0.353553385 : f32
    %378 = vector.broadcast %cst_118 : f32 to vector<8x8xf32>
    %379 = arith.mulf %377, %378 : vector<8x8xf32>
    %cst_119 = arith.constant dense<0xFF800000> : vector<8xf32>
    %380 = vector.multi_reduction <maximumf>, %379, %cst_119 [1] : vector<8x8xf32> to vector<8xf32>
    %381 = vector.shape_cast %380 : vector<8xf32> to vector<8x1xf32>
    %382 = vector.broadcast %381 : vector<8x1xf32> to vector<8x8xf32>
    %383 = arith.subf %379, %382 : vector<8x8xf32>
    %384 = math.exp %383 : vector<8x8xf32>
    %cst_120 = arith.constant dense<0.000000e+00> : vector<8xf32>
    %385 = vector.multi_reduction <add>, %384, %cst_120 [1] : vector<8x8xf32> to vector<8xf32>
    %386 = vector.shape_cast %385 : vector<8xf32> to vector<8x1xf32>
    %387 = tpu.reciprocal %386 {approx = true} : vector<8x1xf32> -> vector<8x1xf32>
    %388 = vector.broadcast %387 : vector<8x1xf32> to vector<8x8xf32>
    %389 = arith.mulf %384, %388 : vector<8x8xf32>
    %cst_121 = arith.constant dense<0.000000e+00> : vector<8x8xf32>
    %390 = tpu.matmul %389, %376, %cst_121 {dimension_numbers = #tpu.dot_dimension_numbers<[1], [0], [0], [1], [0, 0, 1, 1], [], []>} : vector<8x8xf32>, vector<8x8xf32>, vector<8x8xf32> -> vector<8x8xf32>
    %391 = vector.extract_strided_slice %371 {offsets = [0, 8], sizes = [8, 8], strides = [1, 1]} : vector<8x32xf32> to vector<8x8xf32>
    %392 = vector.extract_strided_slice %372 {offsets = [0, 8], sizes = [8, 8], strides = [1, 1]} : vector<8x32xf32> to vector<8x8xf32>
    %393 = vector.extract_strided_slice %373 {offsets = [0, 8], sizes = [8, 8], strides = [1, 1]} : vector<8x32xf32> to vector<8x8xf32>
    %cst_122 = arith.constant dense<0.000000e+00> : vector<8x8xf32>
    %394 = tpu.matmul %391, %392, %cst_122 {dimension_numbers = #tpu.dot_dimension_numbers<[1], [1], [0], [0], [0, 0, 1, 0], [], []>} : vector<8x8xf32>, vector<8x8xf32>, vector<8x8xf32> -> vector<8x8xf32>
    %cst_123 = arith.constant 0.353553385 : f32
    %395 = vector.broadcast %cst_123 : f32 to vector<8x8xf32>
    %396 = arith.mulf %394, %395 : vector<8x8xf32>
    %cst_124 = arith.constant dense<0xFF800000> : vector<8xf32>
    %397 = vector.multi_reduction <maximumf>, %396, %cst_124 [1] : vector<8x8xf32> to vector<8xf32>
    %398 = vector.shape_cast %397 : vector<8xf32> to vector<8x1xf32>
    %399 = vector.broadcast %398 : vector<8x1xf32> to vector<8x8xf32>
    %400 = arith.subf %396, %399 : vector<8x8xf32>
    %401 = math.exp %400 : vector<8x8xf32>
    %cst_125 = arith.constant dense<0.000000e+00> : vector<8xf32>
    %402 = vector.multi_reduction <add>, %401, %cst_125 [1] : vector<8x8xf32> to vector<8xf32>
    %403 = vector.shape_cast %402 : vector<8xf32> to vector<8x1xf32>
    %404 = tpu.reciprocal %403 {approx = true} : vector<8x1xf32> -> vector<8x1xf32>
    %405 = vector.broadcast %404 : vector<8x1xf32> to vector<8x8xf32>
    %406 = arith.mulf %401, %405 : vector<8x8xf32>
    %cst_126 = arith.constant dense<0.000000e+00> : vector<8x8xf32>
    %407 = tpu.matmul %406, %393, %cst_126 {dimension_numbers = #tpu.dot_dimension_numbers<[1], [0], [0], [1], [0, 0, 1, 1], [], []>} : vector<8x8xf32>, vector<8x8xf32>, vector<8x8xf32> -> vector<8x8xf32>
    %408 = vector.extract_strided_slice %371 {offsets = [0, 16], sizes = [8, 8], strides = [1, 1]} : vector<8x32xf32> to vector<8x8xf32>
    %409 = vector.extract_strided_slice %372 {offsets = [0, 16], sizes = [8, 8], strides = [1, 1]} : vector<8x32xf32> to vector<8x8xf32>
    %410 = vector.extract_strided_slice %373 {offsets = [0, 16], sizes = [8, 8], strides = [1, 1]} : vector<8x32xf32> to vector<8x8xf32>
    %cst_127 = arith.constant dense<0.000000e+00> : vector<8x8xf32>
    %411 = tpu.matmul %408, %409, %cst_127 {dimension_numbers = #tpu.dot_dimension_numbers<[1], [1], [0], [0], [0, 0, 1, 0], [], []>} : vector<8x8xf32>, vector<8x8xf32>, vector<8x8xf32> -> vector<8x8xf32>
    %cst_128 = arith.constant 0.353553385 : f32
    %412 = vector.broadcast %cst_128 : f32 to vector<8x8xf32>
    %413 = arith.mulf %411, %412 : vector<8x8xf32>
    %cst_129 = arith.constant dense<0xFF800000> : vector<8xf32>
    %414 = vector.multi_reduction <maximumf>, %413, %cst_129 [1] : vector<8x8xf32> to vector<8xf32>
    %415 = vector.shape_cast %414 : vector<8xf32> to vector<8x1xf32>
    %416 = vector.broadcast %415 : vector<8x1xf32> to vector<8x8xf32>
    %417 = arith.subf %413, %416 : vector<8x8xf32>
    %418 = math.exp %417 : vector<8x8xf32>
    %cst_130 = arith.constant dense<0.000000e+00> : vector<8xf32>
    %419 = vector.multi_reduction <add>, %418, %cst_130 [1] : vector<8x8xf32> to vector<8xf32>
    %420 = vector.shape_cast %419 : vector<8xf32> to vector<8x1xf32>
    %421 = tpu.reciprocal %420 {approx = true} : vector<8x1xf32> -> vector<8x1xf32>
    %422 = vector.broadcast %421 : vector<8x1xf32> to vector<8x8xf32>
    %423 = arith.mulf %418, %422 : vector<8x8xf32>
    %cst_131 = arith.constant dense<0.000000e+00> : vector<8x8xf32>
    %424 = tpu.matmul %423, %410, %cst_131 {dimension_numbers = #tpu.dot_dimension_numbers<[1], [0], [0], [1], [0, 0, 1, 1], [], []>} : vector<8x8xf32>, vector<8x8xf32>, vector<8x8xf32> -> vector<8x8xf32>
    %425 = vector.extract_strided_slice %371 {offsets = [0, 24], sizes = [8, 8], strides = [1, 1]} : vector<8x32xf32> to vector<8x8xf32>
    %426 = vector.extract_strided_slice %372 {offsets = [0, 24], sizes = [8, 8], strides = [1, 1]} : vector<8x32xf32> to vector<8x8xf32>
    %427 = vector.extract_strided_slice %373 {offsets = [0, 24], sizes = [8, 8], strides = [1, 1]} : vector<8x32xf32> to vector<8x8xf32>
    %cst_132 = arith.constant dense<0.000000e+00> : vector<8x8xf32>
    %428 = tpu.matmul %425, %426, %cst_132 {dimension_numbers = #tpu.dot_dimension_numbers<[1], [1], [0], [0], [0, 0, 1, 0], [], []>} : vector<8x8xf32>, vector<8x8xf32>, vector<8x8xf32> -> vector<8x8xf32>
    %cst_133 = arith.constant 0.353553385 : f32
    %429 = vector.broadcast %cst_133 : f32 to vector<8x8xf32>
    %430 = arith.mulf %428, %429 : vector<8x8xf32>
    %cst_134 = arith.constant dense<0xFF800000> : vector<8xf32>
    %431 = vector.multi_reduction <maximumf>, %430, %cst_134 [1] : vector<8x8xf32> to vector<8xf32>
    %432 = vector.shape_cast %431 : vector<8xf32> to vector<8x1xf32>
    %433 = vector.broadcast %432 : vector<8x1xf32> to vector<8x8xf32>
    %434 = arith.subf %430, %433 : vector<8x8xf32>
    %435 = math.exp %434 : vector<8x8xf32>
    %cst_135 = arith.constant dense<0.000000e+00> : vector<8xf32>
    %436 = vector.multi_reduction <add>, %435, %cst_135 [1] : vector<8x8xf32> to vector<8xf32>
    %437 = vector.shape_cast %436 : vector<8xf32> to vector<8x1xf32>
    %438 = tpu.reciprocal %437 {approx = true} : vector<8x1xf32> -> vector<8x1xf32>
    %439 = vector.broadcast %438 : vector<8x1xf32> to vector<8x8xf32>
    %440 = arith.mulf %435, %439 : vector<8x8xf32>
    %cst_136 = arith.constant dense<0.000000e+00> : vector<8x8xf32>
    %441 = tpu.matmul %440, %427, %cst_136 {dimension_numbers = #tpu.dot_dimension_numbers<[1], [0], [0], [1], [0, 0, 1, 1], [], []>} : vector<8x8xf32>, vector<8x8xf32>, vector<8x8xf32> -> vector<8x8xf32>
    %442 = tpu.concatenate %390, %407, %424, %441 in 1 : vector<8x8xf32>, vector<8x8xf32>, vector<8x8xf32>, vector<8x8xf32> -> vector<8x32xf32>
    %cst_137 = arith.constant dense<0.000000e+00> : vector<8x32xf32>
    %443 = tpu.matmul %442, %366, %cst_137 {dimension_numbers = #tpu.dot_dimension_numbers<[1], [0], [0], [1], [0, 0, 1, 1], [], []>} : vector<8x32xf32>, vector<32x32xf32>, vector<8x32xf32> -> vector<8x32xf32>
    %444 = vector.broadcast %367 : vector<1x32xf32> to vector<8x32xf32>
    %445 = arith.addf %443, %444 : vector<8x32xf32>
    %446 = arith.addf %361, %445 : vector<8x32xf32>
    %447 = vector.extract_strided_slice %0 {offsets = [12, 0], sizes = [1, 32], strides = [1, 1]} : vector<41x128xf32> to vector<1x32xf32>
    %448 = vector.extract_strided_slice %0 {offsets = [13, 0], sizes = [1, 32], strides = [1, 1]} : vector<41x128xf32> to vector<1x32xf32>
    %cst_138 = arith.constant dense<0.000000e+00> : vector<8xf32>
    %449 = vector.multi_reduction <add>, %446, %cst_138 [1] : vector<8x32xf32> to vector<8xf32>
    %450 = vector.shape_cast %449 : vector<8xf32> to vector<8x1xf32>
    %cst_139 = arith.constant 3.200000e+01 : f32
    %451 = vector.broadcast %cst_139 : f32 to vector<8x1xf32>
    %452 = arith.divf %450, %451 : vector<8x1xf32>
    %453 = vector.broadcast %452 : vector<8x1xf32> to vector<8x32xf32>
    %454 = arith.subf %446, %453 : vector<8x32xf32>
    %455 = arith.mulf %454, %454 : vector<8x32xf32>
    %cst_140 = arith.constant dense<0.000000e+00> : vector<8xf32>
    %456 = vector.multi_reduction <add>, %455, %cst_140 [1] : vector<8x32xf32> to vector<8xf32>
    %457 = vector.shape_cast %456 : vector<8xf32> to vector<8x1xf32>
    %cst_141 = arith.constant 3.200000e+01 : f32
    %458 = vector.broadcast %cst_141 : f32 to vector<8x1xf32>
    %459 = arith.divf %457, %458 : vector<8x1xf32>
    %460 = vector.broadcast %452 : vector<8x1xf32> to vector<8x32xf32>
    %461 = arith.subf %446, %460 : vector<8x32xf32>
    %cst_142 = arith.constant 9.99999974E-6 : f32
    %462 = vector.broadcast %cst_142 : f32 to vector<8x1xf32>
    %463 = arith.addf %459, %462 : vector<8x1xf32>
    %464 = math.rsqrt %463 : vector<8x1xf32>
    %465 = vector.broadcast %464 : vector<8x1xf32> to vector<8x32xf32>
    %466 = arith.mulf %461, %465 : vector<8x32xf32>
    %467 = vector.broadcast %447 : vector<1x32xf32> to vector<8x32xf32>
    %468 = arith.mulf %466, %467 : vector<8x32xf32>
    %469 = vector.broadcast %448 : vector<1x32xf32> to vector<8x32xf32>
    %470 = arith.addf %468, %469 : vector<8x32xf32>
    %c1_143 = arith.constant 1 : index
    %c0_144 = arith.constant 0 : index
    %c0_145 = arith.constant 0 : index
    %471 = vector.load %arg9[%c1_143, %c0_144, %c0_145] : memref<2x32x64xf32, #tpu.memory_space<vmem>>, vector<1x32x64xf32>
    %472 = vector.shape_cast %471 : vector<1x32x64xf32> to vector<32x64xf32>
    %cst_146 = arith.constant dense<0.000000e+00> : vector<8x64xf32>
    %473 = tpu.matmul %470, %472, %cst_146 {dimension_numbers = #tpu.dot_dimension_numbers<[1], [0], [0], [1], [0, 0, 1, 1], [], []>} : vector<8x32xf32>, vector<32x64xf32>, vector<8x64xf32> -> vector<8x64xf32>
    %474 = vector.extract_strided_slice %0 {offsets = [14, 0], sizes = [1, 64], strides = [1, 1]} : vector<41x128xf32> to vector<1x64xf32>
    %475 = vector.broadcast %474 : vector<1x64xf32> to vector<8x64xf32>
    %476 = arith.addf %473, %475 : vector<8x64xf32>
    %cst_147 = arith.constant 5.000000e-01 : f32
    %477 = vector.broadcast %cst_147 : f32 to vector<8x64xf32>
    %478 = arith.mulf %477, %476 : vector<8x64xf32>
    %cst_148 = arith.constant 4.471500e-02 : f32
    %479 = vector.broadcast %cst_148 : f32 to vector<8x64xf32>
    %480 = arith.mulf %479, %476 : vector<8x64xf32>
    %481 = arith.mulf %480, %476 : vector<8x64xf32>
    %482 = arith.mulf %481, %476 : vector<8x64xf32>
    %483 = arith.addf %476, %482 : vector<8x64xf32>
    %cst_149 = arith.constant 0.797884583 : f32
    %484 = vector.broadcast %cst_149 : f32 to vector<8x64xf32>
    %485 = arith.mulf %484, %483 : vector<8x64xf32>
    %486 = math.tanh %485 : vector<8x64xf32>
    %cst_150 = arith.constant 1.000000e+00 : f32
    %487 = vector.broadcast %cst_150 : f32 to vector<8x64xf32>
    %488 = arith.addf %487, %486 : vector<8x64xf32>
    %489 = arith.mulf %478, %488 : vector<8x64xf32>
    %c1_151 = arith.constant 1 : index
    %c0_152 = arith.constant 0 : index
    %c0_153 = arith.constant 0 : index
    %490 = vector.load %arg10[%c1_151, %c0_152, %c0_153] : memref<2x64x32xf32, #tpu.memory_space<vmem>>, vector<1x64x32xf32>
    %491 = vector.shape_cast %490 : vector<1x64x32xf32> to vector<64x32xf32>
    %cst_154 = arith.constant dense<0.000000e+00> : vector<8x32xf32>
    %492 = tpu.matmul %489, %491, %cst_154 {dimension_numbers = #tpu.dot_dimension_numbers<[1], [0], [0], [1], [0, 0, 1, 1], [], []>} : vector<8x64xf32>, vector<64x32xf32>, vector<8x32xf32> -> vector<8x32xf32>
    %493 = vector.extract_strided_slice %0 {offsets = [15, 0], sizes = [1, 32], strides = [1, 1]} : vector<41x128xf32> to vector<1x32xf32>
    %494 = vector.broadcast %493 : vector<1x32xf32> to vector<8x32xf32>
    %495 = arith.addf %492, %494 : vector<8x32xf32>
    %496 = arith.addf %470, %495 : vector<8x32xf32>
    %497 = vector.extract_strided_slice %0 {offsets = [16, 0], sizes = [1, 32], strides = [1, 1]} : vector<41x128xf32> to vector<1x32xf32>
    %498 = vector.extract_strided_slice %0 {offsets = [17, 0], sizes = [1, 32], strides = [1, 1]} : vector<41x128xf32> to vector<1x32xf32>
    %cst_155 = arith.constant dense<0.000000e+00> : vector<8xf32>
    %499 = vector.multi_reduction <add>, %496, %cst_155 [1] : vector<8x32xf32> to vector<8xf32>
    %500 = vector.shape_cast %499 : vector<8xf32> to vector<8x1xf32>
    %cst_156 = arith.constant 3.200000e+01 : f32
    %501 = vector.broadcast %cst_156 : f32 to vector<8x1xf32>
    %502 = arith.divf %500, %501 : vector<8x1xf32>
    %503 = vector.broadcast %502 : vector<8x1xf32> to vector<8x32xf32>
    %504 = arith.subf %496, %503 : vector<8x32xf32>
    %505 = arith.mulf %504, %504 : vector<8x32xf32>
    %cst_157 = arith.constant dense<0.000000e+00> : vector<8xf32>
    %506 = vector.multi_reduction <add>, %505, %cst_157 [1] : vector<8x32xf32> to vector<8xf32>
    %507 = vector.shape_cast %506 : vector<8xf32> to vector<8x1xf32>
    %cst_158 = arith.constant 3.200000e+01 : f32
    %508 = vector.broadcast %cst_158 : f32 to vector<8x1xf32>
    %509 = arith.divf %507, %508 : vector<8x1xf32>
    %510 = vector.broadcast %502 : vector<8x1xf32> to vector<8x32xf32>
    %511 = arith.subf %496, %510 : vector<8x32xf32>
    %cst_159 = arith.constant 9.99999974E-6 : f32
    %512 = vector.broadcast %cst_159 : f32 to vector<8x1xf32>
    %513 = arith.addf %509, %512 : vector<8x1xf32>
    %514 = math.rsqrt %513 : vector<8x1xf32>
    %515 = vector.broadcast %514 : vector<8x1xf32> to vector<8x32xf32>
    %516 = arith.mulf %511, %515 : vector<8x32xf32>
    %517 = vector.broadcast %497 : vector<1x32xf32> to vector<8x32xf32>
    %518 = arith.mulf %516, %517 : vector<8x32xf32>
    %519 = vector.broadcast %498 : vector<1x32xf32> to vector<8x32xf32>
    %520 = arith.addf %518, %519 : vector<8x32xf32>
    %521 = vector.extract_strided_slice %0 {offsets = [23, 0], sizes = [1, 32], strides = [1, 1]} : vector<41x128xf32> to vector<1x32xf32>
    %522 = vector.extract_strided_slice %0 {offsets = [24, 0], sizes = [1, 32], strides = [1, 1]} : vector<41x128xf32> to vector<1x32xf32>
    %cst_160 = arith.constant dense<0.000000e+00> : vector<8xf32>
    %523 = vector.multi_reduction <add>, %520, %cst_160 [1] : vector<8x32xf32> to vector<8xf32>
    %524 = vector.shape_cast %523 : vector<8xf32> to vector<8x1xf32>
    %cst_161 = arith.constant 3.200000e+01 : f32
    %525 = vector.broadcast %cst_161 : f32 to vector<8x1xf32>
    %526 = arith.divf %524, %525 : vector<8x1xf32>
    %527 = vector.broadcast %526 : vector<8x1xf32> to vector<8x32xf32>
    %528 = arith.subf %520, %527 : vector<8x32xf32>
    %529 = arith.mulf %528, %528 : vector<8x32xf32>
    %cst_162 = arith.constant dense<0.000000e+00> : vector<8xf32>
    %530 = vector.multi_reduction <add>, %529, %cst_162 [1] : vector<8x32xf32> to vector<8xf32>
    %531 = vector.shape_cast %530 : vector<8xf32> to vector<8x1xf32>
    %cst_163 = arith.constant 3.200000e+01 : f32
    %532 = vector.broadcast %cst_163 : f32 to vector<8x1xf32>
    %533 = arith.divf %531, %532 : vector<8x1xf32>
    %534 = vector.broadcast %526 : vector<8x1xf32> to vector<8x32xf32>
    %535 = arith.subf %520, %534 : vector<8x32xf32>
    %cst_164 = arith.constant 9.99999974E-6 : f32
    %536 = vector.broadcast %cst_164 : f32 to vector<8x1xf32>
    %537 = arith.addf %533, %536 : vector<8x1xf32>
    %538 = math.rsqrt %537 : vector<8x1xf32>
    %539 = vector.broadcast %538 : vector<8x1xf32> to vector<8x32xf32>
    %540 = arith.mulf %535, %539 : vector<8x32xf32>
    %541 = vector.broadcast %521 : vector<1x32xf32> to vector<8x32xf32>
    %542 = arith.mulf %540, %541 : vector<8x32xf32>
    %543 = vector.broadcast %522 : vector<1x32xf32> to vector<8x32xf32>
    %544 = arith.addf %542, %543 : vector<8x32xf32>
    %c0_165 = arith.constant 0 : index
    %c0_166 = arith.constant 0 : index
    %c0_167 = arith.constant 0 : index
    %545 = vector.load %arg3[%c0_165, %c0_166, %c0_167] : memref<1x16x12xf32, #tpu.memory_space<vmem>>, vector<1x16x12xf32>
    %546 = vector.shape_cast %545 : vector<1x16x12xf32> to vector<16x12xf32>
    %c0_168 = arith.constant 0 : index
    %c0_169 = arith.constant 0 : index
    %547 = vector.load %arg6[%c0_168, %c0_169] : memref<12x32xf32, #tpu.memory_space<vmem>>, vector<12x32xf32>
    %cst_170 = arith.constant dense<0.000000e+00> : vector<16x32xf32>
    %548 = tpu.matmul %546, %547, %cst_170 {dimension_numbers = #tpu.dot_dimension_numbers<[1], [0], [0], [1], [0, 0, 1, 1], [], []>} : vector<16x12xf32>, vector<12x32xf32>, vector<16x32xf32> -> vector<16x32xf32>
    %549 = vector.extract_strided_slice %0 {offsets = [1, 0], sizes = [1, 32], strides = [1, 1]} : vector<41x128xf32> to vector<1x32xf32>
    %550 = vector.broadcast %549 : vector<1x32xf32> to vector<16x32xf32>
    %551 = arith.addf %548, %550 : vector<16x32xf32>
    %c0_171 = arith.constant 0 : index
    %c0_172 = arith.constant 0 : index
    %c0_173 = arith.constant 0 : index
    %552 = vector.load %arg4[%c0_171, %c0_172, %c0_173] : memref<1x16x32xf32, #tpu.memory_space<vmem>>, vector<1x16x32xf32>
    %553 = vector.shape_cast %552 : vector<1x16x32xf32> to vector<16x32xf32>
    %554 = arith.addf %551, %553 : vector<16x32xf32>
    %c0_174 = arith.constant 0 : index
    %c0_175 = arith.constant 0 : index
    %c0_176 = arith.constant 0 : index
    %555 = vector.load %arg12[%c0_174, %c0_175, %c0_176] : memref<1x32x96xf32, #tpu.memory_space<vmem>>, vector<1x32x96xf32>
    %556 = vector.shape_cast %555 : vector<1x32x96xf32> to vector<32x96xf32>
    %557 = vector.extract_strided_slice %0 {offsets = [25, 0], sizes = [1, 96], strides = [1, 1]} : vector<41x128xf32> to vector<1x96xf32>
    %c0_177 = arith.constant 0 : index
    %c0_178 = arith.constant 0 : index
    %c0_179 = arith.constant 0 : index
    %558 = vector.load %arg13[%c0_177, %c0_178, %c0_179] : memref<1x32x32xf32, #tpu.memory_space<vmem>>, vector<1x32x32xf32>
    %559 = vector.shape_cast %558 : vector<1x32x32xf32> to vector<32x32xf32>
    %560 = vector.extract_strided_slice %0 {offsets = [26, 0], sizes = [1, 32], strides = [1, 1]} : vector<41x128xf32> to vector<1x32xf32>
    %c0_180 = arith.constant 0 : index
    %c0_181 = arith.constant 0 : index
    %c0_182 = arith.constant 0 : index
    %561 = vector.load %arg22[%c0_180, %c0_181, %c0_182] : memref<1x16x16xf32, #tpu.memory_space<vmem>>, vector<1x16x16xf32>
    %562 = vector.shape_cast %561 : vector<1x16x16xf32> to vector<16x16xf32>
    %cst_183 = arith.constant dense<0.000000e+00> : vector<16x96xf32>
    %563 = tpu.matmul %554, %556, %cst_183 {dimension_numbers = #tpu.dot_dimension_numbers<[1], [0], [0], [1], [0, 0, 1, 1], [], []>} : vector<16x32xf32>, vector<32x96xf32>, vector<16x96xf32> -> vector<16x96xf32>
    %564 = vector.broadcast %557 : vector<1x96xf32> to vector<16x96xf32>
    %565 = arith.addf %563, %564 : vector<16x96xf32>
    %cst_184 = arith.constant 0.000000e+00 : f32
    %566 = vector.broadcast %cst_184 : f32 to vector<16x16xf32>
    %567 = arith.cmpf ogt, %562, %566 : vector<16x16xf32>
    %568 = vector.extract_strided_slice %565 {offsets = [0, 0], sizes = [16, 32], strides = [1, 1]} : vector<16x96xf32> to vector<16x32xf32>
    %569 = vector.extract_strided_slice %565 {offsets = [0, 32], sizes = [16, 32], strides = [1, 1]} : vector<16x96xf32> to vector<16x32xf32>
    %570 = vector.extract_strided_slice %565 {offsets = [0, 64], sizes = [16, 32], strides = [1, 1]} : vector<16x96xf32> to vector<16x32xf32>
    %571 = vector.extract_strided_slice %568 {offsets = [0, 0], sizes = [16, 8], strides = [1, 1]} : vector<16x32xf32> to vector<16x8xf32>
    %572 = vector.extract_strided_slice %569 {offsets = [0, 0], sizes = [16, 8], strides = [1, 1]} : vector<16x32xf32> to vector<16x8xf32>
    %573 = vector.extract_strided_slice %570 {offsets = [0, 0], sizes = [16, 8], strides = [1, 1]} : vector<16x32xf32> to vector<16x8xf32>
    %cst_185 = arith.constant dense<0.000000e+00> : vector<16x16xf32>
    %574 = tpu.matmul %571, %572, %cst_185 {dimension_numbers = #tpu.dot_dimension_numbers<[1], [1], [0], [0], [0, 0, 1, 0], [], []>} : vector<16x8xf32>, vector<16x8xf32>, vector<16x16xf32> -> vector<16x16xf32>
    %575 = arith.cmpi sle, %63, %64 : vector<16x16xi32>
    %cst_186 = arith.constant 0.353553385 : f32
    %576 = vector.broadcast %cst_186 : f32 to vector<16x16xf32>
    %577 = arith.mulf %574, %576 : vector<16x16xf32>
    %cst_187 = arith.constant -1.000000e+30 : f32
    %578 = vector.broadcast %cst_187 : f32 to vector<16x16xf32>
    %579 = arith.select %575, %577, %578 : vector<16x16xi1>, vector<16x16xf32>
    %cst_188 = arith.constant dense<0xFF800000> : vector<16xf32>
    %580 = vector.multi_reduction <maximumf>, %579, %cst_188 [1] : vector<16x16xf32> to vector<16xf32>
    %581 = vector.shape_cast %580 : vector<16xf32> to vector<16x1xf32>
    %582 = vector.broadcast %581 : vector<16x1xf32> to vector<16x16xf32>
    %583 = arith.subf %579, %582 : vector<16x16xf32>
    %584 = math.exp %583 : vector<16x16xf32>
    %cst_189 = arith.constant dense<0.000000e+00> : vector<16xf32>
    %585 = vector.multi_reduction <add>, %584, %cst_189 [1] : vector<16x16xf32> to vector<16xf32>
    %586 = vector.shape_cast %585 : vector<16xf32> to vector<16x1xf32>
    %587 = tpu.reciprocal %586 {approx = true} : vector<16x1xf32> -> vector<16x1xf32>
    %588 = vector.broadcast %587 : vector<16x1xf32> to vector<16x16xf32>
    %589 = arith.mulf %584, %588 : vector<16x16xf32>
    %cst_190 = arith.constant dense<0.000000e+00> : vector<16x8xf32>
    %590 = tpu.matmul %589, %573, %cst_190 {dimension_numbers = #tpu.dot_dimension_numbers<[1], [0], [0], [1], [0, 0, 1, 1], [], []>} : vector<16x16xf32>, vector<16x8xf32>, vector<16x8xf32> -> vector<16x8xf32>
    %591 = arith.extui %575 : vector<16x16xi1> to vector<16x16xi32>
    %592 = arith.sitofp %591 : vector<16x16xi32> to vector<16x16xf32>
    %cst_191 = arith.constant dense<0.000000e+00> : vector<16x8xf32>
    %593 = tpu.matmul %592, %573, %cst_191 {dimension_numbers = #tpu.dot_dimension_numbers<[1], [0], [0], [1], [0, 0, 1, 1], [], []>} : vector<16x16xf32>, vector<16x8xf32>, vector<16x8xf32> -> vector<16x8xf32>
    %cst_192 = arith.constant -1.000000e+30 : f32
    %594 = vector.broadcast %cst_192 : f32 to vector<16x16xf32>
    %595 = arith.select %567, %574, %594 : vector<16x16xi1>, vector<16x16xf32>
    %cst_193 = arith.constant dense<0xFF800000> : vector<16xf32>
    %596 = vector.multi_reduction <maximumf>, %595, %cst_193 [1] : vector<16x16xf32> to vector<16xf32>
    %597 = vector.shape_cast %596 : vector<16xf32> to vector<16x1xf32>
    %598 = arith.mulf %574, %562 : vector<16x16xf32>
    %cst_194 = arith.constant dense<0.000000e+00> : vector<16xf32>
    %599 = vector.multi_reduction <add>, %598, %cst_194 [1] : vector<16x16xf32> to vector<16xf32>
    %600 = vector.shape_cast %599 : vector<16xf32> to vector<16x1xf32>
    %cst_195 = arith.constant 1.600000e+01 : f32
    %601 = vector.broadcast %cst_195 : f32 to vector<16x1xf32>
    %602 = arith.divf %600, %601 : vector<16x1xf32>
    %603 = arith.subf %597, %602 : vector<16x1xf32>
    %cst_196 = arith.constant dense<0.000000e+00> : vector<16x16xf32>
    %604 = tpu.matmul %57, %603, %cst_196 {dimension_numbers = #tpu.dot_dimension_numbers<[1], [1], [0], [0], [0, 0, 1, 0], [], []>} : vector<16x1xf32>, vector<16x1xf32>, vector<16x16xf32> -> vector<16x16xf32>
    %605 = vector.broadcast %603 : vector<16x1xf32> to vector<16x16xf32>
    %606 = arith.cmpf ogt, %604, %605 : vector<16x16xf32>
    %607 = vector.broadcast %603 : vector<16x1xf32> to vector<16x16xf32>
    %608 = arith.cmpf oeq, %604, %607 : vector<16x16xf32>
    %609 = arith.andi %608, %65 : vector<16x16xi1>
    %610 = arith.ori %606, %609 : vector<16x16xi1>
    %611 = arith.extui %610 : vector<16x16xi1> to vector<16x16xi32>
    %612 = arith.sitofp %611 : vector<16x16xi32> to vector<16x16xf32>
    %cst_197 = arith.constant dense<0.000000e+00> : vector<16xf32>
    %613 = vector.multi_reduction <add>, %612, %cst_197 [1] : vector<16x16xf32> to vector<16xf32>
    %614 = vector.shape_cast %613 : vector<16xf32> to vector<16x1xf32>
    %cst_198 = arith.constant 1.500000e+01 : f32
    %615 = vector.broadcast %cst_198 : f32 to vector<16x1xf32>
    %616 = arith.cmpf olt, %614, %615 : vector<16x1xf32>
    %617 = vector.shape_cast %616 : vector<16x1xi1> to vector<16x1xi1>
    %618 = vector.broadcast %617 : vector<16x1xi1> to vector<16x8xi1>
    %619 = arith.select %618, %590, %593 : vector<16x8xi1>, vector<16x8xf32>
    %620 = vector.extract_strided_slice %568 {offsets = [0, 8], sizes = [16, 8], strides = [1, 1]} : vector<16x32xf32> to vector<16x8xf32>
    %621 = vector.extract_strided_slice %569 {offsets = [0, 8], sizes = [16, 8], strides = [1, 1]} : vector<16x32xf32> to vector<16x8xf32>
    %622 = vector.extract_strided_slice %570 {offsets = [0, 8], sizes = [16, 8], strides = [1, 1]} : vector<16x32xf32> to vector<16x8xf32>
    %cst_199 = arith.constant dense<0.000000e+00> : vector<16x16xf32>
    %623 = tpu.matmul %620, %621, %cst_199 {dimension_numbers = #tpu.dot_dimension_numbers<[1], [1], [0], [0], [0, 0, 1, 0], [], []>} : vector<16x8xf32>, vector<16x8xf32>, vector<16x16xf32> -> vector<16x16xf32>
    %cst_200 = arith.constant 0.353553385 : f32
    %624 = vector.broadcast %cst_200 : f32 to vector<16x16xf32>
    %625 = arith.mulf %623, %624 : vector<16x16xf32>
    %cst_201 = arith.constant -1.000000e+30 : f32
    %626 = vector.broadcast %cst_201 : f32 to vector<16x16xf32>
    %627 = arith.select %575, %625, %626 : vector<16x16xi1>, vector<16x16xf32>
    %cst_202 = arith.constant dense<0xFF800000> : vector<16xf32>
    %628 = vector.multi_reduction <maximumf>, %627, %cst_202 [1] : vector<16x16xf32> to vector<16xf32>
    %629 = vector.shape_cast %628 : vector<16xf32> to vector<16x1xf32>
    %630 = vector.broadcast %629 : vector<16x1xf32> to vector<16x16xf32>
    %631 = arith.subf %627, %630 : vector<16x16xf32>
    %632 = math.exp %631 : vector<16x16xf32>
    %cst_203 = arith.constant dense<0.000000e+00> : vector<16xf32>
    %633 = vector.multi_reduction <add>, %632, %cst_203 [1] : vector<16x16xf32> to vector<16xf32>
    %634 = vector.shape_cast %633 : vector<16xf32> to vector<16x1xf32>
    %635 = tpu.reciprocal %634 {approx = true} : vector<16x1xf32> -> vector<16x1xf32>
    %636 = vector.broadcast %635 : vector<16x1xf32> to vector<16x16xf32>
    %637 = arith.mulf %632, %636 : vector<16x16xf32>
    %cst_204 = arith.constant dense<0.000000e+00> : vector<16x8xf32>
    %638 = tpu.matmul %637, %622, %cst_204 {dimension_numbers = #tpu.dot_dimension_numbers<[1], [0], [0], [1], [0, 0, 1, 1], [], []>} : vector<16x16xf32>, vector<16x8xf32>, vector<16x8xf32> -> vector<16x8xf32>
    %cst_205 = arith.constant dense<0.000000e+00> : vector<16x8xf32>
    %639 = tpu.matmul %592, %622, %cst_205 {dimension_numbers = #tpu.dot_dimension_numbers<[1], [0], [0], [1], [0, 0, 1, 1], [], []>} : vector<16x16xf32>, vector<16x8xf32>, vector<16x8xf32> -> vector<16x8xf32>
    %cst_206 = arith.constant -1.000000e+30 : f32
    %640 = vector.broadcast %cst_206 : f32 to vector<16x16xf32>
    %641 = arith.select %567, %623, %640 : vector<16x16xi1>, vector<16x16xf32>
    %cst_207 = arith.constant dense<0xFF800000> : vector<16xf32>
    %642 = vector.multi_reduction <maximumf>, %641, %cst_207 [1] : vector<16x16xf32> to vector<16xf32>
    %643 = vector.shape_cast %642 : vector<16xf32> to vector<16x1xf32>
    %644 = arith.mulf %623, %562 : vector<16x16xf32>
    %cst_208 = arith.constant dense<0.000000e+00> : vector<16xf32>
    %645 = vector.multi_reduction <add>, %644, %cst_208 [1] : vector<16x16xf32> to vector<16xf32>
    %646 = vector.shape_cast %645 : vector<16xf32> to vector<16x1xf32>
    %cst_209 = arith.constant 1.600000e+01 : f32
    %647 = vector.broadcast %cst_209 : f32 to vector<16x1xf32>
    %648 = arith.divf %646, %647 : vector<16x1xf32>
    %649 = arith.subf %643, %648 : vector<16x1xf32>
    %cst_210 = arith.constant dense<0.000000e+00> : vector<16x16xf32>
    %650 = tpu.matmul %57, %649, %cst_210 {dimension_numbers = #tpu.dot_dimension_numbers<[1], [1], [0], [0], [0, 0, 1, 0], [], []>} : vector<16x1xf32>, vector<16x1xf32>, vector<16x16xf32> -> vector<16x16xf32>
    %651 = vector.broadcast %649 : vector<16x1xf32> to vector<16x16xf32>
    %652 = arith.cmpf ogt, %650, %651 : vector<16x16xf32>
    %653 = vector.broadcast %649 : vector<16x1xf32> to vector<16x16xf32>
    %654 = arith.cmpf oeq, %650, %653 : vector<16x16xf32>
    %655 = arith.andi %654, %65 : vector<16x16xi1>
    %656 = arith.ori %652, %655 : vector<16x16xi1>
    %657 = arith.extui %656 : vector<16x16xi1> to vector<16x16xi32>
    %658 = arith.sitofp %657 : vector<16x16xi32> to vector<16x16xf32>
    %cst_211 = arith.constant dense<0.000000e+00> : vector<16xf32>
    %659 = vector.multi_reduction <add>, %658, %cst_211 [1] : vector<16x16xf32> to vector<16xf32>
    %660 = vector.shape_cast %659 : vector<16xf32> to vector<16x1xf32>
    %cst_212 = arith.constant 1.500000e+01 : f32
    %661 = vector.broadcast %cst_212 : f32 to vector<16x1xf32>
    %662 = arith.cmpf olt, %660, %661 : vector<16x1xf32>
    %663 = vector.shape_cast %662 : vector<16x1xi1> to vector<16x1xi1>
    %664 = vector.broadcast %663 : vector<16x1xi1> to vector<16x8xi1>
    %665 = arith.select %664, %638, %639 : vector<16x8xi1>, vector<16x8xf32>
    %666 = vector.extract_strided_slice %568 {offsets = [0, 16], sizes = [16, 8], strides = [1, 1]} : vector<16x32xf32> to vector<16x8xf32>
    %667 = vector.extract_strided_slice %569 {offsets = [0, 16], sizes = [16, 8], strides = [1, 1]} : vector<16x32xf32> to vector<16x8xf32>
    %668 = vector.extract_strided_slice %570 {offsets = [0, 16], sizes = [16, 8], strides = [1, 1]} : vector<16x32xf32> to vector<16x8xf32>
    %cst_213 = arith.constant dense<0.000000e+00> : vector<16x16xf32>
    %669 = tpu.matmul %666, %667, %cst_213 {dimension_numbers = #tpu.dot_dimension_numbers<[1], [1], [0], [0], [0, 0, 1, 0], [], []>} : vector<16x8xf32>, vector<16x8xf32>, vector<16x16xf32> -> vector<16x16xf32>
    %cst_214 = arith.constant 0.353553385 : f32
    %670 = vector.broadcast %cst_214 : f32 to vector<16x16xf32>
    %671 = arith.mulf %669, %670 : vector<16x16xf32>
    %cst_215 = arith.constant -1.000000e+30 : f32
    %672 = vector.broadcast %cst_215 : f32 to vector<16x16xf32>
    %673 = arith.select %575, %671, %672 : vector<16x16xi1>, vector<16x16xf32>
    %cst_216 = arith.constant dense<0xFF800000> : vector<16xf32>
    %674 = vector.multi_reduction <maximumf>, %673, %cst_216 [1] : vector<16x16xf32> to vector<16xf32>
    %675 = vector.shape_cast %674 : vector<16xf32> to vector<16x1xf32>
    %676 = vector.broadcast %675 : vector<16x1xf32> to vector<16x16xf32>
    %677 = arith.subf %673, %676 : vector<16x16xf32>
    %678 = math.exp %677 : vector<16x16xf32>
    %cst_217 = arith.constant dense<0.000000e+00> : vector<16xf32>
    %679 = vector.multi_reduction <add>, %678, %cst_217 [1] : vector<16x16xf32> to vector<16xf32>
    %680 = vector.shape_cast %679 : vector<16xf32> to vector<16x1xf32>
    %681 = tpu.reciprocal %680 {approx = true} : vector<16x1xf32> -> vector<16x1xf32>
    %682 = vector.broadcast %681 : vector<16x1xf32> to vector<16x16xf32>
    %683 = arith.mulf %678, %682 : vector<16x16xf32>
    %cst_218 = arith.constant dense<0.000000e+00> : vector<16x8xf32>
    %684 = tpu.matmul %683, %668, %cst_218 {dimension_numbers = #tpu.dot_dimension_numbers<[1], [0], [0], [1], [0, 0, 1, 1], [], []>} : vector<16x16xf32>, vector<16x8xf32>, vector<16x8xf32> -> vector<16x8xf32>
    %cst_219 = arith.constant dense<0.000000e+00> : vector<16x8xf32>
    %685 = tpu.matmul %592, %668, %cst_219 {dimension_numbers = #tpu.dot_dimension_numbers<[1], [0], [0], [1], [0, 0, 1, 1], [], []>} : vector<16x16xf32>, vector<16x8xf32>, vector<16x8xf32> -> vector<16x8xf32>
    %cst_220 = arith.constant -1.000000e+30 : f32
    %686 = vector.broadcast %cst_220 : f32 to vector<16x16xf32>
    %687 = arith.select %567, %669, %686 : vector<16x16xi1>, vector<16x16xf32>
    %cst_221 = arith.constant dense<0xFF800000> : vector<16xf32>
    %688 = vector.multi_reduction <maximumf>, %687, %cst_221 [1] : vector<16x16xf32> to vector<16xf32>
    %689 = vector.shape_cast %688 : vector<16xf32> to vector<16x1xf32>
    %690 = arith.mulf %669, %562 : vector<16x16xf32>
    %cst_222 = arith.constant dense<0.000000e+00> : vector<16xf32>
    %691 = vector.multi_reduction <add>, %690, %cst_222 [1] : vector<16x16xf32> to vector<16xf32>
    %692 = vector.shape_cast %691 : vector<16xf32> to vector<16x1xf32>
    %cst_223 = arith.constant 1.600000e+01 : f32
    %693 = vector.broadcast %cst_223 : f32 to vector<16x1xf32>
    %694 = arith.divf %692, %693 : vector<16x1xf32>
    %695 = arith.subf %689, %694 : vector<16x1xf32>
    %cst_224 = arith.constant dense<0.000000e+00> : vector<16x16xf32>
    %696 = tpu.matmul %57, %695, %cst_224 {dimension_numbers = #tpu.dot_dimension_numbers<[1], [1], [0], [0], [0, 0, 1, 0], [], []>} : vector<16x1xf32>, vector<16x1xf32>, vector<16x16xf32> -> vector<16x16xf32>
    %697 = vector.broadcast %695 : vector<16x1xf32> to vector<16x16xf32>
    %698 = arith.cmpf ogt, %696, %697 : vector<16x16xf32>
    %699 = vector.broadcast %695 : vector<16x1xf32> to vector<16x16xf32>
    %700 = arith.cmpf oeq, %696, %699 : vector<16x16xf32>
    %701 = arith.andi %700, %65 : vector<16x16xi1>
    %702 = arith.ori %698, %701 : vector<16x16xi1>
    %703 = arith.extui %702 : vector<16x16xi1> to vector<16x16xi32>
    %704 = arith.sitofp %703 : vector<16x16xi32> to vector<16x16xf32>
    %cst_225 = arith.constant dense<0.000000e+00> : vector<16xf32>
    %705 = vector.multi_reduction <add>, %704, %cst_225 [1] : vector<16x16xf32> to vector<16xf32>
    %706 = vector.shape_cast %705 : vector<16xf32> to vector<16x1xf32>
    %cst_226 = arith.constant 1.500000e+01 : f32
    %707 = vector.broadcast %cst_226 : f32 to vector<16x1xf32>
    %708 = arith.cmpf olt, %706, %707 : vector<16x1xf32>
    %709 = vector.shape_cast %708 : vector<16x1xi1> to vector<16x1xi1>
    %710 = vector.broadcast %709 : vector<16x1xi1> to vector<16x8xi1>
    %711 = arith.select %710, %684, %685 : vector<16x8xi1>, vector<16x8xf32>
    %712 = vector.extract_strided_slice %568 {offsets = [0, 24], sizes = [16, 8], strides = [1, 1]} : vector<16x32xf32> to vector<16x8xf32>
    %713 = vector.extract_strided_slice %569 {offsets = [0, 24], sizes = [16, 8], strides = [1, 1]} : vector<16x32xf32> to vector<16x8xf32>
    %714 = vector.extract_strided_slice %570 {offsets = [0, 24], sizes = [16, 8], strides = [1, 1]} : vector<16x32xf32> to vector<16x8xf32>
    %cst_227 = arith.constant dense<0.000000e+00> : vector<16x16xf32>
    %715 = tpu.matmul %712, %713, %cst_227 {dimension_numbers = #tpu.dot_dimension_numbers<[1], [1], [0], [0], [0, 0, 1, 0], [], []>} : vector<16x8xf32>, vector<16x8xf32>, vector<16x16xf32> -> vector<16x16xf32>
    %cst_228 = arith.constant 0.353553385 : f32
    %716 = vector.broadcast %cst_228 : f32 to vector<16x16xf32>
    %717 = arith.mulf %715, %716 : vector<16x16xf32>
    %cst_229 = arith.constant -1.000000e+30 : f32
    %718 = vector.broadcast %cst_229 : f32 to vector<16x16xf32>
    %719 = arith.select %575, %717, %718 : vector<16x16xi1>, vector<16x16xf32>
    %cst_230 = arith.constant dense<0xFF800000> : vector<16xf32>
    %720 = vector.multi_reduction <maximumf>, %719, %cst_230 [1] : vector<16x16xf32> to vector<16xf32>
    %721 = vector.shape_cast %720 : vector<16xf32> to vector<16x1xf32>
    %722 = vector.broadcast %721 : vector<16x1xf32> to vector<16x16xf32>
    %723 = arith.subf %719, %722 : vector<16x16xf32>
    %724 = math.exp %723 : vector<16x16xf32>
    %cst_231 = arith.constant dense<0.000000e+00> : vector<16xf32>
    %725 = vector.multi_reduction <add>, %724, %cst_231 [1] : vector<16x16xf32> to vector<16xf32>
    %726 = vector.shape_cast %725 : vector<16xf32> to vector<16x1xf32>
    %727 = tpu.reciprocal %726 {approx = true} : vector<16x1xf32> -> vector<16x1xf32>
    %728 = vector.broadcast %727 : vector<16x1xf32> to vector<16x16xf32>
    %729 = arith.mulf %724, %728 : vector<16x16xf32>
    %cst_232 = arith.constant dense<0.000000e+00> : vector<16x8xf32>
    %730 = tpu.matmul %729, %714, %cst_232 {dimension_numbers = #tpu.dot_dimension_numbers<[1], [0], [0], [1], [0, 0, 1, 1], [], []>} : vector<16x16xf32>, vector<16x8xf32>, vector<16x8xf32> -> vector<16x8xf32>
    %cst_233 = arith.constant dense<0.000000e+00> : vector<16x8xf32>
    %731 = tpu.matmul %592, %714, %cst_233 {dimension_numbers = #tpu.dot_dimension_numbers<[1], [0], [0], [1], [0, 0, 1, 1], [], []>} : vector<16x16xf32>, vector<16x8xf32>, vector<16x8xf32> -> vector<16x8xf32>
    %cst_234 = arith.constant -1.000000e+30 : f32
    %732 = vector.broadcast %cst_234 : f32 to vector<16x16xf32>
    %733 = arith.select %567, %715, %732 : vector<16x16xi1>, vector<16x16xf32>
    %cst_235 = arith.constant dense<0xFF800000> : vector<16xf32>
    %734 = vector.multi_reduction <maximumf>, %733, %cst_235 [1] : vector<16x16xf32> to vector<16xf32>
    %735 = vector.shape_cast %734 : vector<16xf32> to vector<16x1xf32>
    %736 = arith.mulf %715, %562 : vector<16x16xf32>
    %cst_236 = arith.constant dense<0.000000e+00> : vector<16xf32>
    %737 = vector.multi_reduction <add>, %736, %cst_236 [1] : vector<16x16xf32> to vector<16xf32>
    %738 = vector.shape_cast %737 : vector<16xf32> to vector<16x1xf32>
    %cst_237 = arith.constant 1.600000e+01 : f32
    %739 = vector.broadcast %cst_237 : f32 to vector<16x1xf32>
    %740 = arith.divf %738, %739 : vector<16x1xf32>
    %741 = arith.subf %735, %740 : vector<16x1xf32>
    %cst_238 = arith.constant dense<0.000000e+00> : vector<16x16xf32>
    %742 = tpu.matmul %57, %741, %cst_238 {dimension_numbers = #tpu.dot_dimension_numbers<[1], [1], [0], [0], [0, 0, 1, 0], [], []>} : vector<16x1xf32>, vector<16x1xf32>, vector<16x16xf32> -> vector<16x16xf32>
    %743 = vector.broadcast %741 : vector<16x1xf32> to vector<16x16xf32>
    %744 = arith.cmpf ogt, %742, %743 : vector<16x16xf32>
    %745 = vector.broadcast %741 : vector<16x1xf32> to vector<16x16xf32>
    %746 = arith.cmpf oeq, %742, %745 : vector<16x16xf32>
    %747 = arith.andi %746, %65 : vector<16x16xi1>
    %748 = arith.ori %744, %747 : vector<16x16xi1>
    %749 = arith.extui %748 : vector<16x16xi1> to vector<16x16xi32>
    %750 = arith.sitofp %749 : vector<16x16xi32> to vector<16x16xf32>
    %cst_239 = arith.constant dense<0.000000e+00> : vector<16xf32>
    %751 = vector.multi_reduction <add>, %750, %cst_239 [1] : vector<16x16xf32> to vector<16xf32>
    %752 = vector.shape_cast %751 : vector<16xf32> to vector<16x1xf32>
    %cst_240 = arith.constant 1.500000e+01 : f32
    %753 = vector.broadcast %cst_240 : f32 to vector<16x1xf32>
    %754 = arith.cmpf olt, %752, %753 : vector<16x1xf32>
    %755 = vector.shape_cast %754 : vector<16x1xi1> to vector<16x1xi1>
    %756 = vector.broadcast %755 : vector<16x1xi1> to vector<16x8xi1>
    %757 = arith.select %756, %730, %731 : vector<16x8xi1>, vector<16x8xf32>
    %758 = tpu.concatenate %619, %665, %711, %757 in 0 : vector<16x8xf32>, vector<16x8xf32>, vector<16x8xf32>, vector<16x8xf32> -> vector<64x8xf32>
    %759 = tpu.iota {dimensions = array<i32: 0>} : vector<64x64xi32>
    %760 = tpu.iota {dimensions = array<i32: 1>} : vector<64x64xi32>
    %c0_i32 = arith.constant 0 : i32
    %761 = vector.broadcast %c0_i32 : i32 to vector<64x64xi32>
    %762 = arith.cmpi sge, %759, %761 : vector<64x64xi32>
    %c16_i32 = arith.constant 16 : i32
    %763 = vector.broadcast %c16_i32 : i32 to vector<64x64xi32>
    %764 = arith.cmpi slt, %759, %763 : vector<64x64xi32>
    %765 = arith.andi %762, %764 : vector<64x64xi1>
    %c0_i32_241 = arith.constant 0 : i32
    %766 = vector.broadcast %c0_i32_241 : i32 to vector<64x64xi32>
    %767 = arith.subi %759, %766 : vector<64x64xi32>
    %c4_i32 = arith.constant 4 : i32
    %768 = vector.broadcast %c4_i32 : i32 to vector<64x64xi32>
    %769 = arith.muli %767, %768 : vector<64x64xi32>
    %c0_i32_242 = arith.constant 0 : i32
    %770 = vector.broadcast %c0_i32_242 : i32 to vector<64x64xi32>
    %771 = arith.addi %769, %770 : vector<64x64xi32>
    %772 = arith.cmpi eq, %760, %771 : vector<64x64xi32>
    %773 = arith.andi %765, %772 : vector<64x64xi1>
    %c16_i32_243 = arith.constant 16 : i32
    %774 = vector.broadcast %c16_i32_243 : i32 to vector<64x64xi32>
    %775 = arith.cmpi sge, %759, %774 : vector<64x64xi32>
    %c32_i32 = arith.constant 32 : i32
    %776 = vector.broadcast %c32_i32 : i32 to vector<64x64xi32>
    %777 = arith.cmpi slt, %759, %776 : vector<64x64xi32>
    %778 = arith.andi %775, %777 : vector<64x64xi1>
    %c16_i32_244 = arith.constant 16 : i32
    %779 = vector.broadcast %c16_i32_244 : i32 to vector<64x64xi32>
    %780 = arith.subi %759, %779 : vector<64x64xi32>
    %c4_i32_245 = arith.constant 4 : i32
    %781 = vector.broadcast %c4_i32_245 : i32 to vector<64x64xi32>
    %782 = arith.muli %780, %781 : vector<64x64xi32>
    %c1_i32 = arith.constant 1 : i32
    %783 = vector.broadcast %c1_i32 : i32 to vector<64x64xi32>
    %784 = arith.addi %782, %783 : vector<64x64xi32>
    %785 = arith.cmpi eq, %760, %784 : vector<64x64xi32>
    %786 = arith.andi %778, %785 : vector<64x64xi1>
    %787 = arith.ori %773, %786 : vector<64x64xi1>
    %c32_i32_246 = arith.constant 32 : i32
    %788 = vector.broadcast %c32_i32_246 : i32 to vector<64x64xi32>
    %789 = arith.cmpi sge, %759, %788 : vector<64x64xi32>
    %c48_i32 = arith.constant 48 : i32
    %790 = vector.broadcast %c48_i32 : i32 to vector<64x64xi32>
    %791 = arith.cmpi slt, %759, %790 : vector<64x64xi32>
    %792 = arith.andi %789, %791 : vector<64x64xi1>
    %c32_i32_247 = arith.constant 32 : i32
    %793 = vector.broadcast %c32_i32_247 : i32 to vector<64x64xi32>
    %794 = arith.subi %759, %793 : vector<64x64xi32>
    %c4_i32_248 = arith.constant 4 : i32
    %795 = vector.broadcast %c4_i32_248 : i32 to vector<64x64xi32>
    %796 = arith.muli %794, %795 : vector<64x64xi32>
    %c2_i32_249 = arith.constant 2 : i32
    %797 = vector.broadcast %c2_i32_249 : i32 to vector<64x64xi32>
    %798 = arith.addi %796, %797 : vector<64x64xi32>
    %799 = arith.cmpi eq, %760, %798 : vector<64x64xi32>
    %800 = arith.andi %792, %799 : vector<64x64xi1>
    %801 = arith.ori %787, %800 : vector<64x64xi1>
    %c48_i32_250 = arith.constant 48 : i32
    %802 = vector.broadcast %c48_i32_250 : i32 to vector<64x64xi32>
    %803 = arith.cmpi sge, %759, %802 : vector<64x64xi32>
    %c64_i32 = arith.constant 64 : i32
    %804 = vector.broadcast %c64_i32 : i32 to vector<64x64xi32>
    %805 = arith.cmpi slt, %759, %804 : vector<64x64xi32>
    %806 = arith.andi %803, %805 : vector<64x64xi1>
    %c48_i32_251 = arith.constant 48 : i32
    %807 = vector.broadcast %c48_i32_251 : i32 to vector<64x64xi32>
    %808 = arith.subi %759, %807 : vector<64x64xi32>
    %c4_i32_252 = arith.constant 4 : i32
    %809 = vector.broadcast %c4_i32_252 : i32 to vector<64x64xi32>
    %810 = arith.muli %808, %809 : vector<64x64xi32>
    %c3_i32 = arith.constant 3 : i32
    %811 = vector.broadcast %c3_i32 : i32 to vector<64x64xi32>
    %812 = arith.addi %810, %811 : vector<64x64xi32>
    %813 = arith.cmpi eq, %760, %812 : vector<64x64xi32>
    %814 = arith.andi %806, %813 : vector<64x64xi1>
    %815 = arith.ori %801, %814 : vector<64x64xi1>
    %816 = arith.extui %815 : vector<64x64xi1> to vector<64x64xi32>
    %817 = arith.sitofp %816 : vector<64x64xi32> to vector<64x64xf32>
    %cst_253 = arith.constant dense<0.000000e+00> : vector<64x8xf32>
    %818 = tpu.matmul %817, %758, %cst_253 {dimension_numbers = #tpu.dot_dimension_numbers<[1], [0], [0], [1], [0, 0, 1, 1], [], []>} : vector<64x64xf32>, vector<64x8xf32>, vector<64x8xf32> -> vector<64x8xf32>
    %819 = vector.extract_strided_slice %818 {offsets = [0, 0], sizes = [16, 8], strides = [1, 1]} : vector<64x8xf32> to vector<16x8xf32>
    %820 = vector.extract_strided_slice %818 {offsets = [16, 0], sizes = [16, 8], strides = [1, 1]} : vector<64x8xf32> to vector<16x8xf32>
    %821 = vector.extract_strided_slice %818 {offsets = [32, 0], sizes = [16, 8], strides = [1, 1]} : vector<64x8xf32> to vector<16x8xf32>
    %822 = vector.extract_strided_slice %818 {offsets = [48, 0], sizes = [16, 8], strides = [1, 1]} : vector<64x8xf32> to vector<16x8xf32>
    %823 = tpu.concatenate %819, %820, %821, %822 in 1 : vector<16x8xf32>, vector<16x8xf32>, vector<16x8xf32>, vector<16x8xf32> -> vector<16x32xf32>
    %cst_254 = arith.constant dense<0.000000e+00> : vector<16x32xf32>
    %824 = tpu.matmul %823, %559, %cst_254 {dimension_numbers = #tpu.dot_dimension_numbers<[1], [0], [0], [1], [0, 0, 1, 1], [], []>} : vector<16x32xf32>, vector<32x32xf32>, vector<16x32xf32> -> vector<16x32xf32>
    %825 = vector.broadcast %560 : vector<1x32xf32> to vector<16x32xf32>
    %826 = arith.addf %824, %825 : vector<16x32xf32>
    %827 = arith.addf %554, %826 : vector<16x32xf32>
    %828 = vector.extract_strided_slice %0 {offsets = [27, 0], sizes = [1, 32], strides = [1, 1]} : vector<41x128xf32> to vector<1x32xf32>
    %829 = vector.extract_strided_slice %0 {offsets = [28, 0], sizes = [1, 32], strides = [1, 1]} : vector<41x128xf32> to vector<1x32xf32>
    %cst_255 = arith.constant dense<0.000000e+00> : vector<16xf32>
    %830 = vector.multi_reduction <add>, %827, %cst_255 [1] : vector<16x32xf32> to vector<16xf32>
    %831 = vector.shape_cast %830 : vector<16xf32> to vector<16x1xf32>
    %cst_256 = arith.constant 3.200000e+01 : f32
    %832 = vector.broadcast %cst_256 : f32 to vector<16x1xf32>
    %833 = arith.divf %831, %832 : vector<16x1xf32>
    %834 = vector.broadcast %833 : vector<16x1xf32> to vector<16x32xf32>
    %835 = arith.subf %827, %834 : vector<16x32xf32>
    %836 = arith.mulf %835, %835 : vector<16x32xf32>
    %cst_257 = arith.constant dense<0.000000e+00> : vector<16xf32>
    %837 = vector.multi_reduction <add>, %836, %cst_257 [1] : vector<16x32xf32> to vector<16xf32>
    %838 = vector.shape_cast %837 : vector<16xf32> to vector<16x1xf32>
    %cst_258 = arith.constant 3.200000e+01 : f32
    %839 = vector.broadcast %cst_258 : f32 to vector<16x1xf32>
    %840 = arith.divf %838, %839 : vector<16x1xf32>
    %841 = vector.broadcast %833 : vector<16x1xf32> to vector<16x32xf32>
    %842 = arith.subf %827, %841 : vector<16x32xf32>
    %cst_259 = arith.constant 9.99999974E-6 : f32
    %843 = vector.broadcast %cst_259 : f32 to vector<16x1xf32>
    %844 = arith.addf %840, %843 : vector<16x1xf32>
    %845 = math.rsqrt %844 : vector<16x1xf32>
    %846 = vector.broadcast %845 : vector<16x1xf32> to vector<16x32xf32>
    %847 = arith.mulf %842, %846 : vector<16x32xf32>
    %848 = vector.broadcast %828 : vector<1x32xf32> to vector<16x32xf32>
    %849 = arith.mulf %847, %848 : vector<16x32xf32>
    %850 = vector.broadcast %829 : vector<1x32xf32> to vector<16x32xf32>
    %851 = arith.addf %849, %850 : vector<16x32xf32>
    %c0_260 = arith.constant 0 : index
    %c0_261 = arith.constant 0 : index
    %c0_262 = arith.constant 0 : index
    %852 = vector.load %arg14[%c0_260, %c0_261, %c0_262] : memref<1x32x32xf32, #tpu.memory_space<vmem>>, vector<1x32x32xf32>
    %853 = vector.shape_cast %852 : vector<1x32x32xf32> to vector<32x32xf32>
    %854 = vector.extract_strided_slice %0 {offsets = [29, 0], sizes = [1, 32], strides = [1, 1]} : vector<41x128xf32> to vector<1x32xf32>
    %c0_263 = arith.constant 0 : index
    %c0_264 = arith.constant 0 : index
    %c0_265 = arith.constant 0 : index
    %855 = vector.load %arg15[%c0_263, %c0_264, %c0_265] : memref<1x32x64xf32, #tpu.memory_space<vmem>>, vector<1x32x64xf32>
    %856 = vector.shape_cast %855 : vector<1x32x64xf32> to vector<32x64xf32>
    %857 = vector.extract_strided_slice %0 {offsets = [30, 0], sizes = [1, 64], strides = [1, 1]} : vector<41x128xf32> to vector<1x64xf32>
    %c0_266 = arith.constant 0 : index
    %c0_267 = arith.constant 0 : index
    %c0_268 = arith.constant 0 : index
    %858 = vector.load %arg16[%c0_266, %c0_267, %c0_268] : memref<1x32x32xf32, #tpu.memory_space<vmem>>, vector<1x32x32xf32>
    %859 = vector.shape_cast %858 : vector<1x32x32xf32> to vector<32x32xf32>
    %860 = vector.extract_strided_slice %0 {offsets = [31, 0], sizes = [1, 32], strides = [1, 1]} : vector<41x128xf32> to vector<1x32xf32>
    %cst_269 = arith.constant dense<0.000000e+00> : vector<16x32xf32>
    %861 = tpu.matmul %851, %853, %cst_269 {dimension_numbers = #tpu.dot_dimension_numbers<[1], [0], [0], [1], [0, 0, 1, 1], [], []>} : vector<16x32xf32>, vector<32x32xf32>, vector<16x32xf32> -> vector<16x32xf32>
    %862 = vector.broadcast %854 : vector<1x32xf32> to vector<16x32xf32>
    %863 = arith.addf %861, %862 : vector<16x32xf32>
    %cst_270 = arith.constant dense<0.000000e+00> : vector<8x64xf32>
    %864 = tpu.matmul %544, %856, %cst_270 {dimension_numbers = #tpu.dot_dimension_numbers<[1], [0], [0], [1], [0, 0, 1, 1], [], []>} : vector<8x32xf32>, vector<32x64xf32>, vector<8x64xf32> -> vector<8x64xf32>
    %865 = vector.broadcast %857 : vector<1x64xf32> to vector<8x64xf32>
    %866 = arith.addf %864, %865 : vector<8x64xf32>
    %867 = vector.extract_strided_slice %866 {offsets = [0, 0], sizes = [8, 32], strides = [1, 1]} : vector<8x64xf32> to vector<8x32xf32>
    %868 = vector.extract_strided_slice %866 {offsets = [0, 32], sizes = [8, 32], strides = [1, 1]} : vector<8x64xf32> to vector<8x32xf32>
    %869 = vector.extract_strided_slice %863 {offsets = [0, 0], sizes = [16, 8], strides = [1, 1]} : vector<16x32xf32> to vector<16x8xf32>
    %870 = vector.extract_strided_slice %867 {offsets = [0, 0], sizes = [8, 8], strides = [1, 1]} : vector<8x32xf32> to vector<8x8xf32>
    %871 = vector.extract_strided_slice %868 {offsets = [0, 0], sizes = [8, 8], strides = [1, 1]} : vector<8x32xf32> to vector<8x8xf32>
    %cst_271 = arith.constant dense<0.000000e+00> : vector<16x8xf32>
    %872 = tpu.matmul %869, %870, %cst_271 {dimension_numbers = #tpu.dot_dimension_numbers<[1], [1], [0], [0], [0, 0, 1, 0], [], []>} : vector<16x8xf32>, vector<8x8xf32>, vector<16x8xf32> -> vector<16x8xf32>
    %cst_272 = arith.constant 0.353553385 : f32
    %873 = vector.broadcast %cst_272 : f32 to vector<16x8xf32>
    %874 = arith.mulf %872, %873 : vector<16x8xf32>
    %cst_273 = arith.constant dense<0xFF800000> : vector<16xf32>
    %875 = vector.multi_reduction <maximumf>, %874, %cst_273 [1] : vector<16x8xf32> to vector<16xf32>
    %876 = vector.shape_cast %875 : vector<16xf32> to vector<16x1xf32>
    %877 = vector.broadcast %876 : vector<16x1xf32> to vector<16x8xf32>
    %878 = arith.subf %874, %877 : vector<16x8xf32>
    %879 = math.exp %878 : vector<16x8xf32>
    %cst_274 = arith.constant dense<0.000000e+00> : vector<16xf32>
    %880 = vector.multi_reduction <add>, %879, %cst_274 [1] : vector<16x8xf32> to vector<16xf32>
    %881 = vector.shape_cast %880 : vector<16xf32> to vector<16x1xf32>
    %882 = tpu.reciprocal %881 {approx = true} : vector<16x1xf32> -> vector<16x1xf32>
    %883 = vector.broadcast %882 : vector<16x1xf32> to vector<16x8xf32>
    %884 = arith.mulf %879, %883 : vector<16x8xf32>
    %cst_275 = arith.constant dense<0.000000e+00> : vector<16x8xf32>
    %885 = tpu.matmul %884, %871, %cst_275 {dimension_numbers = #tpu.dot_dimension_numbers<[1], [0], [0], [1], [0, 0, 1, 1], [], []>} : vector<16x8xf32>, vector<8x8xf32>, vector<16x8xf32> -> vector<16x8xf32>
    %886 = vector.extract_strided_slice %863 {offsets = [0, 8], sizes = [16, 8], strides = [1, 1]} : vector<16x32xf32> to vector<16x8xf32>
    %887 = vector.extract_strided_slice %867 {offsets = [0, 8], sizes = [8, 8], strides = [1, 1]} : vector<8x32xf32> to vector<8x8xf32>
    %888 = vector.extract_strided_slice %868 {offsets = [0, 8], sizes = [8, 8], strides = [1, 1]} : vector<8x32xf32> to vector<8x8xf32>
    %cst_276 = arith.constant dense<0.000000e+00> : vector<16x8xf32>
    %889 = tpu.matmul %886, %887, %cst_276 {dimension_numbers = #tpu.dot_dimension_numbers<[1], [1], [0], [0], [0, 0, 1, 0], [], []>} : vector<16x8xf32>, vector<8x8xf32>, vector<16x8xf32> -> vector<16x8xf32>
    %cst_277 = arith.constant 0.353553385 : f32
    %890 = vector.broadcast %cst_277 : f32 to vector<16x8xf32>
    %891 = arith.mulf %889, %890 : vector<16x8xf32>
    %cst_278 = arith.constant dense<0xFF800000> : vector<16xf32>
    %892 = vector.multi_reduction <maximumf>, %891, %cst_278 [1] : vector<16x8xf32> to vector<16xf32>
    %893 = vector.shape_cast %892 : vector<16xf32> to vector<16x1xf32>
    %894 = vector.broadcast %893 : vector<16x1xf32> to vector<16x8xf32>
    %895 = arith.subf %891, %894 : vector<16x8xf32>
    %896 = math.exp %895 : vector<16x8xf32>
    %cst_279 = arith.constant dense<0.000000e+00> : vector<16xf32>
    %897 = vector.multi_reduction <add>, %896, %cst_279 [1] : vector<16x8xf32> to vector<16xf32>
    %898 = vector.shape_cast %897 : vector<16xf32> to vector<16x1xf32>
    %899 = tpu.reciprocal %898 {approx = true} : vector<16x1xf32> -> vector<16x1xf32>
    %900 = vector.broadcast %899 : vector<16x1xf32> to vector<16x8xf32>
    %901 = arith.mulf %896, %900 : vector<16x8xf32>
    %cst_280 = arith.constant dense<0.000000e+00> : vector<16x8xf32>
    %902 = tpu.matmul %901, %888, %cst_280 {dimension_numbers = #tpu.dot_dimension_numbers<[1], [0], [0], [1], [0, 0, 1, 1], [], []>} : vector<16x8xf32>, vector<8x8xf32>, vector<16x8xf32> -> vector<16x8xf32>
    %903 = vector.extract_strided_slice %863 {offsets = [0, 16], sizes = [16, 8], strides = [1, 1]} : vector<16x32xf32> to vector<16x8xf32>
    %904 = vector.extract_strided_slice %867 {offsets = [0, 16], sizes = [8, 8], strides = [1, 1]} : vector<8x32xf32> to vector<8x8xf32>
    %905 = vector.extract_strided_slice %868 {offsets = [0, 16], sizes = [8, 8], strides = [1, 1]} : vector<8x32xf32> to vector<8x8xf32>
    %cst_281 = arith.constant dense<0.000000e+00> : vector<16x8xf32>
    %906 = tpu.matmul %903, %904, %cst_281 {dimension_numbers = #tpu.dot_dimension_numbers<[1], [1], [0], [0], [0, 0, 1, 0], [], []>} : vector<16x8xf32>, vector<8x8xf32>, vector<16x8xf32> -> vector<16x8xf32>
    %cst_282 = arith.constant 0.353553385 : f32
    %907 = vector.broadcast %cst_282 : f32 to vector<16x8xf32>
    %908 = arith.mulf %906, %907 : vector<16x8xf32>
    %cst_283 = arith.constant dense<0xFF800000> : vector<16xf32>
    %909 = vector.multi_reduction <maximumf>, %908, %cst_283 [1] : vector<16x8xf32> to vector<16xf32>
    %910 = vector.shape_cast %909 : vector<16xf32> to vector<16x1xf32>
    %911 = vector.broadcast %910 : vector<16x1xf32> to vector<16x8xf32>
    %912 = arith.subf %908, %911 : vector<16x8xf32>
    %913 = math.exp %912 : vector<16x8xf32>
    %cst_284 = arith.constant dense<0.000000e+00> : vector<16xf32>
    %914 = vector.multi_reduction <add>, %913, %cst_284 [1] : vector<16x8xf32> to vector<16xf32>
    %915 = vector.shape_cast %914 : vector<16xf32> to vector<16x1xf32>
    %916 = tpu.reciprocal %915 {approx = true} : vector<16x1xf32> -> vector<16x1xf32>
    %917 = vector.broadcast %916 : vector<16x1xf32> to vector<16x8xf32>
    %918 = arith.mulf %913, %917 : vector<16x8xf32>
    %cst_285 = arith.constant dense<0.000000e+00> : vector<16x8xf32>
    %919 = tpu.matmul %918, %905, %cst_285 {dimension_numbers = #tpu.dot_dimension_numbers<[1], [0], [0], [1], [0, 0, 1, 1], [], []>} : vector<16x8xf32>, vector<8x8xf32>, vector<16x8xf32> -> vector<16x8xf32>
    %920 = vector.extract_strided_slice %863 {offsets = [0, 24], sizes = [16, 8], strides = [1, 1]} : vector<16x32xf32> to vector<16x8xf32>
    %921 = vector.extract_strided_slice %867 {offsets = [0, 24], sizes = [8, 8], strides = [1, 1]} : vector<8x32xf32> to vector<8x8xf32>
    %922 = vector.extract_strided_slice %868 {offsets = [0, 24], sizes = [8, 8], strides = [1, 1]} : vector<8x32xf32> to vector<8x8xf32>
    %cst_286 = arith.constant dense<0.000000e+00> : vector<16x8xf32>
    %923 = tpu.matmul %920, %921, %cst_286 {dimension_numbers = #tpu.dot_dimension_numbers<[1], [1], [0], [0], [0, 0, 1, 0], [], []>} : vector<16x8xf32>, vector<8x8xf32>, vector<16x8xf32> -> vector<16x8xf32>
    %cst_287 = arith.constant 0.353553385 : f32
    %924 = vector.broadcast %cst_287 : f32 to vector<16x8xf32>
    %925 = arith.mulf %923, %924 : vector<16x8xf32>
    %cst_288 = arith.constant dense<0xFF800000> : vector<16xf32>
    %926 = vector.multi_reduction <maximumf>, %925, %cst_288 [1] : vector<16x8xf32> to vector<16xf32>
    %927 = vector.shape_cast %926 : vector<16xf32> to vector<16x1xf32>
    %928 = vector.broadcast %927 : vector<16x1xf32> to vector<16x8xf32>
    %929 = arith.subf %925, %928 : vector<16x8xf32>
    %930 = math.exp %929 : vector<16x8xf32>
    %cst_289 = arith.constant dense<0.000000e+00> : vector<16xf32>
    %931 = vector.multi_reduction <add>, %930, %cst_289 [1] : vector<16x8xf32> to vector<16xf32>
    %932 = vector.shape_cast %931 : vector<16xf32> to vector<16x1xf32>
    %933 = tpu.reciprocal %932 {approx = true} : vector<16x1xf32> -> vector<16x1xf32>
    %934 = vector.broadcast %933 : vector<16x1xf32> to vector<16x8xf32>
    %935 = arith.mulf %930, %934 : vector<16x8xf32>
    %cst_290 = arith.constant dense<0.000000e+00> : vector<16x8xf32>
    %936 = tpu.matmul %935, %922, %cst_290 {dimension_numbers = #tpu.dot_dimension_numbers<[1], [0], [0], [1], [0, 0, 1, 1], [], []>} : vector<16x8xf32>, vector<8x8xf32>, vector<16x8xf32> -> vector<16x8xf32>
    %937 = tpu.concatenate %885, %902, %919, %936 in 1 : vector<16x8xf32>, vector<16x8xf32>, vector<16x8xf32>, vector<16x8xf32> -> vector<16x32xf32>
    %cst_291 = arith.constant dense<0.000000e+00> : vector<16x32xf32>
    %938 = tpu.matmul %937, %859, %cst_291 {dimension_numbers = #tpu.dot_dimension_numbers<[1], [0], [0], [1], [0, 0, 1, 1], [], []>} : vector<16x32xf32>, vector<32x32xf32>, vector<16x32xf32> -> vector<16x32xf32>
    %939 = vector.broadcast %860 : vector<1x32xf32> to vector<16x32xf32>
    %940 = arith.addf %938, %939 : vector<16x32xf32>
    %941 = arith.addf %851, %940 : vector<16x32xf32>
    %942 = vector.extract_strided_slice %0 {offsets = [32, 0], sizes = [1, 32], strides = [1, 1]} : vector<41x128xf32> to vector<1x32xf32>
    %943 = vector.extract_strided_slice %0 {offsets = [33, 0], sizes = [1, 32], strides = [1, 1]} : vector<41x128xf32> to vector<1x32xf32>
    %cst_292 = arith.constant dense<0.000000e+00> : vector<16xf32>
    %944 = vector.multi_reduction <add>, %941, %cst_292 [1] : vector<16x32xf32> to vector<16xf32>
    %945 = vector.shape_cast %944 : vector<16xf32> to vector<16x1xf32>
    %cst_293 = arith.constant 3.200000e+01 : f32
    %946 = vector.broadcast %cst_293 : f32 to vector<16x1xf32>
    %947 = arith.divf %945, %946 : vector<16x1xf32>
    %948 = vector.broadcast %947 : vector<16x1xf32> to vector<16x32xf32>
    %949 = arith.subf %941, %948 : vector<16x32xf32>
    %950 = arith.mulf %949, %949 : vector<16x32xf32>
    %cst_294 = arith.constant dense<0.000000e+00> : vector<16xf32>
    %951 = vector.multi_reduction <add>, %950, %cst_294 [1] : vector<16x32xf32> to vector<16xf32>
    %952 = vector.shape_cast %951 : vector<16xf32> to vector<16x1xf32>
    %cst_295 = arith.constant 3.200000e+01 : f32
    %953 = vector.broadcast %cst_295 : f32 to vector<16x1xf32>
    %954 = arith.divf %952, %953 : vector<16x1xf32>
    %955 = vector.broadcast %947 : vector<16x1xf32> to vector<16x32xf32>
    %956 = arith.subf %941, %955 : vector<16x32xf32>
    %cst_296 = arith.constant 9.99999974E-6 : f32
    %957 = vector.broadcast %cst_296 : f32 to vector<16x1xf32>
    %958 = arith.addf %954, %957 : vector<16x1xf32>
    %959 = math.rsqrt %958 : vector<16x1xf32>
    %960 = vector.broadcast %959 : vector<16x1xf32> to vector<16x32xf32>
    %961 = arith.mulf %956, %960 : vector<16x32xf32>
    %962 = vector.broadcast %942 : vector<1x32xf32> to vector<16x32xf32>
    %963 = arith.mulf %961, %962 : vector<16x32xf32>
    %964 = vector.broadcast %943 : vector<1x32xf32> to vector<16x32xf32>
    %965 = arith.addf %963, %964 : vector<16x32xf32>
    %c0_297 = arith.constant 0 : index
    %c0_298 = arith.constant 0 : index
    %c0_299 = arith.constant 0 : index
    %966 = vector.load %arg17[%c0_297, %c0_298, %c0_299] : memref<1x32x64xf32, #tpu.memory_space<vmem>>, vector<1x32x64xf32>
    %967 = vector.shape_cast %966 : vector<1x32x64xf32> to vector<32x64xf32>
    %cst_300 = arith.constant dense<0.000000e+00> : vector<16x64xf32>
    %968 = tpu.matmul %965, %967, %cst_300 {dimension_numbers = #tpu.dot_dimension_numbers<[1], [0], [0], [1], [0, 0, 1, 1], [], []>} : vector<16x32xf32>, vector<32x64xf32>, vector<16x64xf32> -> vector<16x64xf32>
    %969 = vector.extract_strided_slice %0 {offsets = [34, 0], sizes = [1, 64], strides = [1, 1]} : vector<41x128xf32> to vector<1x64xf32>
    %970 = vector.broadcast %969 : vector<1x64xf32> to vector<16x64xf32>
    %971 = arith.addf %968, %970 : vector<16x64xf32>
    %cst_301 = arith.constant 5.000000e-01 : f32
    %972 = vector.broadcast %cst_301 : f32 to vector<16x64xf32>
    %973 = arith.mulf %972, %971 : vector<16x64xf32>
    %cst_302 = arith.constant 4.471500e-02 : f32
    %974 = vector.broadcast %cst_302 : f32 to vector<16x64xf32>
    %975 = arith.mulf %974, %971 : vector<16x64xf32>
    %976 = arith.mulf %975, %971 : vector<16x64xf32>
    %977 = arith.mulf %976, %971 : vector<16x64xf32>
    %978 = arith.addf %971, %977 : vector<16x64xf32>
    %cst_303 = arith.constant 0.797884583 : f32
    %979 = vector.broadcast %cst_303 : f32 to vector<16x64xf32>
    %980 = arith.mulf %979, %978 : vector<16x64xf32>
    %981 = math.tanh %980 : vector<16x64xf32>
    %cst_304 = arith.constant 1.000000e+00 : f32
    %982 = vector.broadcast %cst_304 : f32 to vector<16x64xf32>
    %983 = arith.addf %982, %981 : vector<16x64xf32>
    %984 = arith.mulf %973, %983 : vector<16x64xf32>
    %c0_305 = arith.constant 0 : index
    %c0_306 = arith.constant 0 : index
    %c0_307 = arith.constant 0 : index
    %985 = vector.load %arg18[%c0_305, %c0_306, %c0_307] : memref<1x64x32xf32, #tpu.memory_space<vmem>>, vector<1x64x32xf32>
    %986 = vector.shape_cast %985 : vector<1x64x32xf32> to vector<64x32xf32>
    %cst_308 = arith.constant dense<0.000000e+00> : vector<16x32xf32>
    %987 = tpu.matmul %984, %986, %cst_308 {dimension_numbers = #tpu.dot_dimension_numbers<[1], [0], [0], [1], [0, 0, 1, 1], [], []>} : vector<16x64xf32>, vector<64x32xf32>, vector<16x32xf32> -> vector<16x32xf32>
    %988 = vector.extract_strided_slice %0 {offsets = [35, 0], sizes = [1, 32], strides = [1, 1]} : vector<41x128xf32> to vector<1x32xf32>
    %989 = vector.broadcast %988 : vector<1x32xf32> to vector<16x32xf32>
    %990 = arith.addf %987, %989 : vector<16x32xf32>
    %991 = arith.addf %965, %990 : vector<16x32xf32>
    %992 = vector.extract_strided_slice %0 {offsets = [36, 0], sizes = [1, 32], strides = [1, 1]} : vector<41x128xf32> to vector<1x32xf32>
    %993 = vector.extract_strided_slice %0 {offsets = [37, 0], sizes = [1, 32], strides = [1, 1]} : vector<41x128xf32> to vector<1x32xf32>
    %cst_309 = arith.constant dense<0.000000e+00> : vector<16xf32>
    %994 = vector.multi_reduction <add>, %991, %cst_309 [1] : vector<16x32xf32> to vector<16xf32>
    %995 = vector.shape_cast %994 : vector<16xf32> to vector<16x1xf32>
    %cst_310 = arith.constant 3.200000e+01 : f32
    %996 = vector.broadcast %cst_310 : f32 to vector<16x1xf32>
    %997 = arith.divf %995, %996 : vector<16x1xf32>
    %998 = vector.broadcast %997 : vector<16x1xf32> to vector<16x32xf32>
    %999 = arith.subf %991, %998 : vector<16x32xf32>
    %1000 = arith.mulf %999, %999 : vector<16x32xf32>
    %cst_311 = arith.constant dense<0.000000e+00> : vector<16xf32>
    %1001 = vector.multi_reduction <add>, %1000, %cst_311 [1] : vector<16x32xf32> to vector<16xf32>
    %1002 = vector.shape_cast %1001 : vector<16xf32> to vector<16x1xf32>
    %cst_312 = arith.constant 3.200000e+01 : f32
    %1003 = vector.broadcast %cst_312 : f32 to vector<16x1xf32>
    %1004 = arith.divf %1002, %1003 : vector<16x1xf32>
    %1005 = vector.broadcast %997 : vector<16x1xf32> to vector<16x32xf32>
    %1006 = arith.subf %991, %1005 : vector<16x32xf32>
    %cst_313 = arith.constant 9.99999974E-6 : f32
    %1007 = vector.broadcast %cst_313 : f32 to vector<16x1xf32>
    %1008 = arith.addf %1004, %1007 : vector<16x1xf32>
    %1009 = math.rsqrt %1008 : vector<16x1xf32>
    %1010 = vector.broadcast %1009 : vector<16x1xf32> to vector<16x32xf32>
    %1011 = arith.mulf %1006, %1010 : vector<16x32xf32>
    %1012 = vector.broadcast %992 : vector<1x32xf32> to vector<16x32xf32>
    %1013 = arith.mulf %1011, %1012 : vector<16x32xf32>
    %1014 = vector.broadcast %993 : vector<1x32xf32> to vector<16x32xf32>
    %1015 = arith.addf %1013, %1014 : vector<16x32xf32>
    %1016 = vector.extract_strided_slice %0 {offsets = [38, 0], sizes = [1, 32], strides = [1, 1]} : vector<41x128xf32> to vector<1x32xf32>
    %1017 = vector.extract_strided_slice %0 {offsets = [39, 0], sizes = [1, 32], strides = [1, 1]} : vector<41x128xf32> to vector<1x32xf32>
    %cst_314 = arith.constant dense<0.000000e+00> : vector<16xf32>
    %1018 = vector.multi_reduction <add>, %1015, %cst_314 [1] : vector<16x32xf32> to vector<16xf32>
    %1019 = vector.shape_cast %1018 : vector<16xf32> to vector<16x1xf32>
    %cst_315 = arith.constant 3.200000e+01 : f32
    %1020 = vector.broadcast %cst_315 : f32 to vector<16x1xf32>
    %1021 = arith.divf %1019, %1020 : vector<16x1xf32>
    %1022 = vector.broadcast %1021 : vector<16x1xf32> to vector<16x32xf32>
    %1023 = arith.subf %1015, %1022 : vector<16x32xf32>
    %1024 = arith.mulf %1023, %1023 : vector<16x32xf32>
    %cst_316 = arith.constant dense<0.000000e+00> : vector<16xf32>
    %1025 = vector.multi_reduction <add>, %1024, %cst_316 [1] : vector<16x32xf32> to vector<16xf32>
    %1026 = vector.shape_cast %1025 : vector<16xf32> to vector<16x1xf32>
    %cst_317 = arith.constant 3.200000e+01 : f32
    %1027 = vector.broadcast %cst_317 : f32 to vector<16x1xf32>
    %1028 = arith.divf %1026, %1027 : vector<16x1xf32>
    %1029 = vector.broadcast %1021 : vector<16x1xf32> to vector<16x32xf32>
    %1030 = arith.subf %1015, %1029 : vector<16x32xf32>
    %cst_318 = arith.constant 9.99999974E-6 : f32
    %1031 = vector.broadcast %cst_318 : f32 to vector<16x1xf32>
    %1032 = arith.addf %1028, %1031 : vector<16x1xf32>
    %1033 = math.rsqrt %1032 : vector<16x1xf32>
    %1034 = vector.broadcast %1033 : vector<16x1xf32> to vector<16x32xf32>
    %1035 = arith.mulf %1030, %1034 : vector<16x32xf32>
    %1036 = vector.broadcast %1016 : vector<1x32xf32> to vector<16x32xf32>
    %1037 = arith.mulf %1035, %1036 : vector<16x32xf32>
    %1038 = vector.broadcast %1017 : vector<1x32xf32> to vector<16x32xf32>
    %1039 = arith.addf %1037, %1038 : vector<16x32xf32>
    %c0_319 = arith.constant 0 : index
    %c0_320 = arith.constant 0 : index
    %1040 = vector.load %arg19[%c0_319, %c0_320] : memref<32x128xf32, #tpu.memory_space<vmem>>, vector<32x128xf32>
    %cst_321 = arith.constant dense<0.000000e+00> : vector<16x128xf32>
    %1041 = tpu.matmul %1039, %1040, %cst_321 {dimension_numbers = #tpu.dot_dimension_numbers<[1], [0], [0], [1], [0, 0, 1, 1], [], []>} : vector<16x32xf32>, vector<32x128xf32>, vector<16x128xf32> -> vector<16x128xf32>
    %1042 = vector.extract_strided_slice %0 {offsets = [40, 0], sizes = [1, 128], strides = [1, 1]} : vector<41x128xf32> to vector<1x128xf32>
    %1043 = vector.broadcast %1042 : vector<1x128xf32> to vector<16x128xf32>
    %1044 = arith.addf %1041, %1043 : vector<16x128xf32>
    %c0_322 = arith.constant 0 : index
    %c0_323 = arith.constant 0 : index
    %c0_324 = arith.constant 0 : index
    %1045 = vector.load %arg24[%c0_322, %c0_323, %c0_324] : memref<1x16x128xf32, #tpu.memory_space<vmem>>, vector<1x16x128xf32>
    %1046 = vector.shape_cast %1045 : vector<1x16x128xf32> to vector<16x128xf32>
    %1047 = vector.shape_cast %1044 : vector<16x128xf32> to vector<1x16x128xf32>
    tpu.vector_store %arg24[%c0_322, %c0_323, %c0_324], %1047 {strides = array<i32>} : memref<1x16x128xf32, #tpu.memory_space<vmem>>, vector<1x16x128xf32>,
    return
  }
  func.func @transform_0(%arg0: i32) -> (i32, i32, i32) {
    %c0_i32 = arith.constant 0 : i32
    %c0_i32_0 = arith.constant 0 : i32
    %c0_i32_1 = arith.constant 0 : i32
    return %arg0, %c0_i32, %c0_i32_0 : i32, i32, i32
  }
  func.func @transform_1(%arg0: i32) -> (i32, i32, i32) {
    %c0_i32 = arith.constant 0 : i32
    %c0_i32_0 = arith.constant 0 : i32
    %c0_i32_1 = arith.constant 0 : i32
    return %arg0, %c0_i32, %c0_i32_0 : i32, i32, i32
  }
  func.func @transform_2(%arg0: i32) -> (i32, i32, i32) {
    %c0_i32 = arith.constant 0 : i32
    %c0_i32_0 = arith.constant 0 : i32
    %c0_i32_1 = arith.constant 0 : i32
    return %arg0, %c0_i32, %c0_i32_0 : i32, i32, i32
  }
  func.func @transform_3(%arg0: i32) -> (i32, i32, i32) {
    %c0_i32 = arith.constant 0 : i32
    %c0_i32_0 = arith.constant 0 : i32
    %c0_i32_1 = arith.constant 0 : i32
    return %arg0, %c0_i32, %c0_i32_0 : i32, i32, i32
  }
  func.func @transform_4(%arg0: i32) -> (i32, i32) {
    %c0_i32 = arith.constant 0 : i32
    %c0_i32_0 = arith.constant 0 : i32
    %c0_i32_1 = arith.constant 0 : i32
    return %c0_i32, %c0_i32_0 : i32, i32
  }
  func.func @transform_5(%arg0: i32) -> (i32, i32) {
    %c0_i32 = arith.constant 0 : i32
    %c0_i32_0 = arith.constant 0 : i32
    %c0_i32_1 = arith.constant 0 : i32
    return %c0_i32, %c0_i32_0 : i32, i32
  }
  func.func @transform_6(%arg0: i32) -> (i32, i32, i32) {
    %c0_i32 = arith.constant 0 : i32
    %c0_i32_0 = arith.constant 0 : i32
    %c0_i32_1 = arith.constant 0 : i32
    %c0_i32_2 = arith.constant 0 : i32
    return %c0_i32, %c0_i32_0, %c0_i32_1 : i32, i32, i32
  }
  func.func @transform_7(%arg0: i32) -> (i32, i32, i32) {
    %c0_i32 = arith.constant 0 : i32
    %c0_i32_0 = arith.constant 0 : i32
    %c0_i32_1 = arith.constant 0 : i32
    %c0_i32_2 = arith.constant 0 : i32
    return %c0_i32, %c0_i32_0, %c0_i32_1 : i32, i32, i32
  }
  func.func @transform_8(%arg0: i32) -> (i32, i32, i32) {
    %c0_i32 = arith.constant 0 : i32
    %c0_i32_0 = arith.constant 0 : i32
    %c0_i32_1 = arith.constant 0 : i32
    %c0_i32_2 = arith.constant 0 : i32
    return %c0_i32, %c0_i32_0, %c0_i32_1 : i32, i32, i32
  }
  func.func @transform_9(%arg0: i32) -> (i32, i32, i32) {
    %c0_i32 = arith.constant 0 : i32
    %c0_i32_0 = arith.constant 0 : i32
    %c0_i32_1 = arith.constant 0 : i32
    %c0_i32_2 = arith.constant 0 : i32
    return %c0_i32, %c0_i32_0, %c0_i32_1 : i32, i32, i32
  }
  func.func @transform_10(%arg0: i32) -> (i32, i32, i32) {
    %c0_i32 = arith.constant 0 : i32
    %c0_i32_0 = arith.constant 0 : i32
    %c0_i32_1 = arith.constant 0 : i32
    %c0_i32_2 = arith.constant 0 : i32
    return %c0_i32, %c0_i32_0, %c0_i32_1 : i32, i32, i32
  }
  func.func @transform_11(%arg0: i32) -> (i32, i32, i32) {
    %c0_i32 = arith.constant 0 : i32
    %c0_i32_0 = arith.constant 0 : i32
    %c0_i32_1 = arith.constant 0 : i32
    %c0_i32_2 = arith.constant 0 : i32
    return %c0_i32, %c0_i32_0, %c0_i32_1 : i32, i32, i32
  }
  func.func @transform_12(%arg0: i32) -> (i32, i32, i32) {
    %c0_i32 = arith.constant 0 : i32
    %c0_i32_0 = arith.constant 0 : i32
    %c0_i32_1 = arith.constant 0 : i32
    %c0_i32_2 = arith.constant 0 : i32
    return %c0_i32, %c0_i32_0, %c0_i32_1 : i32, i32, i32
  }
  func.func @transform_13(%arg0: i32) -> (i32, i32, i32) {
    %c0_i32 = arith.constant 0 : i32
    %c0_i32_0 = arith.constant 0 : i32
    %c0_i32_1 = arith.constant 0 : i32
    %c0_i32_2 = arith.constant 0 : i32
    return %c0_i32, %c0_i32_0, %c0_i32_1 : i32, i32, i32
  }
  func.func @transform_14(%arg0: i32) -> (i32, i32, i32) {
    %c0_i32 = arith.constant 0 : i32
    %c0_i32_0 = arith.constant 0 : i32
    %c0_i32_1 = arith.constant 0 : i32
    %c0_i32_2 = arith.constant 0 : i32
    return %c0_i32, %c0_i32_0, %c0_i32_1 : i32, i32, i32
  }
  func.func @transform_15(%arg0: i32) -> (i32, i32, i32) {
    %c0_i32 = arith.constant 0 : i32
    %c0_i32_0 = arith.constant 0 : i32
    %c0_i32_1 = arith.constant 0 : i32
    %c0_i32_2 = arith.constant 0 : i32
    return %c0_i32, %c0_i32_0, %c0_i32_1 : i32, i32, i32
  }
  func.func @transform_16(%arg0: i32) -> (i32, i32, i32) {
    %c0_i32 = arith.constant 0 : i32
    %c0_i32_0 = arith.constant 0 : i32
    %c0_i32_1 = arith.constant 0 : i32
    %c0_i32_2 = arith.constant 0 : i32
    return %c0_i32, %c0_i32_0, %c0_i32_1 : i32, i32, i32
  }
  func.func @transform_17(%arg0: i32) -> (i32, i32, i32) {
    %c0_i32 = arith.constant 0 : i32
    %c0_i32_0 = arith.constant 0 : i32
    %c0_i32_1 = arith.constant 0 : i32
    %c0_i32_2 = arith.constant 0 : i32
    return %c0_i32, %c0_i32_0, %c0_i32_1 : i32, i32, i32
  }
  func.func @transform_18(%arg0: i32) -> (i32, i32) {
    %c0_i32 = arith.constant 0 : i32
    %c0_i32_0 = arith.constant 0 : i32
    %c0_i32_1 = arith.constant 0 : i32
    return %c0_i32, %c0_i32_0 : i32, i32
  }
  func.func @transform_19(%arg0: i32) -> (i32, i32) {
    %c0_i32 = arith.constant 0 : i32
    %c0_i32_0 = arith.constant 0 : i32
    %c0_i32_1 = arith.constant 0 : i32
    return %c0_i32, %c0_i32_0 : i32, i32
  }
  func.func @transform_20(%arg0: i32) -> (i32, i32) {
    %c0_i32 = arith.constant 0 : i32
    %c0_i32_0 = arith.constant 0 : i32
    %c0_i32_1 = arith.constant 0 : i32
    return %c0_i32, %c0_i32_0 : i32, i32
  }
  func.func @transform_21(%arg0: i32) -> (i32, i32, i32) {
    %c0_i32 = arith.constant 0 : i32
    %c0_i32_0 = arith.constant 0 : i32
    %c0_i32_1 = arith.constant 0 : i32
    %c0_i32_2 = arith.constant 0 : i32
    return %c0_i32, %c0_i32_0, %c0_i32_1 : i32, i32, i32
  }
  func.func @transform_22(%arg0: i32) -> (i32, i32) {
    %c0_i32 = arith.constant 0 : i32
    %c0_i32_0 = arith.constant 0 : i32
    %c0_i32_1 = arith.constant 0 : i32
    return %c0_i32, %c0_i32_0 : i32, i32
  }
  func.func @transform_23(%arg0: i32) -> (i32, i32, i32) {
    %c0_i32 = arith.constant 0 : i32
    %c0_i32_0 = arith.constant 0 : i32
    %c0_i32_1 = arith.constant 0 : i32
    return %arg0, %c0_i32, %c0_i32_0 : i32, i32, i32
  }
}

</mosaic_0001>

<llo_original>
// kernel: tpu_custom_call.1
$region0: #{tpu_custom_call.1}
  #allocation0 [shape = 'u32[]', space=smem, size = 0x4, offset = 0x4, fixed_abs, tag = 'smem constant byte address 0x4 - core index']
  #allocation1 [shape = 'u32[144,128]{1,0:T(1,128)}', space=vmem, size = 0x12000, scoped, tag = 'internal scratch']
  %s0 = inlined_call_operand.vmem [shape: f32[2,16,12], index: 0, kind: input, shape index: {}]
  %s1 = inlined_call_operand.vmem [shape: f32[2,16,32], index: 1, kind: input, shape index: {}]
  %s2 = inlined_call_operand.vmem [shape: f32[2,16,12], index: 2, kind: input, shape index: {}]
  %s3 = inlined_call_operand.vmem [shape: f32[2,16,32], index: 3, kind: input, shape index: {}]
  %s4 = inlined_call_operand.hbm [shape: f32[12,32], index: 4, kind: input, shape index: {}]
  %s5 = inlined_call_operand.hbm [shape: f32[12,32], index: 5, kind: input, shape index: {}]
  %s6 = inlined_call_operand.vmem [shape: f32[2,32,96], index: 6, kind: input, shape index: {}]
  %s7 = inlined_call_operand.vmem [shape: f32[2,32,32], index: 7, kind: input, shape index: {}]
  %s8 = inlined_call_operand.vmem [shape: f32[2,32,64], index: 8, kind: input, shape index: {}]
  %s9 = inlined_call_operand.vmem [shape: f32[2,64,32], index: 9, kind: input, shape index: {}]
  %s10 = inlined_call_operand.vmem [shape: f32[1,96,32], index: 10, kind: input, shape index: {}]
  %s11 = inlined_call_operand.vmem [shape: f32[1,32,96], index: 11, kind: input, shape index: {}]
  %s12 = inlined_call_operand.vmem [shape: f32[1,32,32], index: 12, kind: input, shape index: {}]
  %s13 = inlined_call_operand.vmem [shape: f32[1,32,32], index: 13, kind: input, shape index: {}]
  %s14 = inlined_call_operand.vmem [shape: f32[1,32,64], index: 14, kind: input, shape index: {}]
  %s15 = inlined_call_operand.vmem [shape: f32[1,32,32], index: 15, kind: input, shape index: {}]
  %s16 = inlined_call_operand.hbm [shape: f32[1,32,64], index: 16, kind: input, shape index: {}]
  %s17 = inlined_call_operand.vmem [shape: f32[1,64,32], index: 17, kind: input, shape index: {}]
  %s18 = inlined_call_operand.vmem [shape: f32[32,128], index: 18, kind: input, shape index: {}]
  %s19 = inlined_call_operand.hbm [shape: f32[16,16], index: 19, kind: input, shape index: {}]
  %s20 = inlined_call_operand.vmem [shape: f32[8,8], index: 20, kind: input, shape index: {}]
  %s21 = inlined_call_operand.hbm [shape: f32[1,16,16], index: 21, kind: input, shape index: {}]
  %s22 = inlined_call_operand.vmem [shape: f32[41,128], index: 22, kind: input, shape index: {}]
  %s23 = inlined_call_operand.hbm [shape: f32[2,16,128], index: 23, kind: output, shape index: {}]
  %s24 = sld [smem:[#allocation0]]
  $region145: #{tpu_custom_call.1} parent=0
    _
  %s26 = ssub.s32 1, %s24
  %s27 = scalar_select 0, %s26, %s24
  $region1: #{tpu_custom_call.1} parent=0
    #allocation2 [shape = 'u8[8192]{0}', space=vmem, size = 0x2000, scoped, tag = 'input window, operand 4, single buffered']
    #allocation3 [shape = 's32[2]{0}', space=sflag, size = 0x8, scoped, tag = 'scoped memory for tpu_custom_call.1']
    #allocation4 [shape = 's32[2]{0}', space=sflag, size = 0x8, scoped, tag = 'scoped memory for tpu_custom_call.1']
    #allocation5 [shape = 'u8[8192]{0}', space=vmem, size = 0x2000, scoped, tag = 'input window, operand 5, single buffered']
    #allocation6 [shape = 's32[1]{0}', space=sflag, size = 0x4, scoped, tag = 'scoped memory for tpu_custom_call.1']
    #allocation7 [shape = 'u8[16384]{0}', space=vmem, size = 0x4000, scoped, tag = 'input window, operand 16, single buffered']
    #allocation8 [shape = 'u8[8192]{0}', space=vmem, size = 0x2000, scoped, tag = 'input window, operand 19, single buffered']
    #allocation9 [shape = 's32[1]{0}', space=sflag, size = 0x4, scoped, tag = 'scoped memory for tpu_custom_call.1']
    #allocation10 [shape = 'u8[8192]{0}', space=vmem, size = 0x2000, scoped, tag = 'input window, operand 21, single buffered']
    #allocation11 [shape = 'u8[16384]{0}', space=vmem, size = 0x4000, scoped, tag = 'output window, operand 0']
    %28 = vsyncpa [#allocation3], 0
    %29 = vsyncpa [#allocation6], 0
    %30 = vsyncpa [#allocation9], 0
    %31 = vsyncpa [#allocation4], 0
    %s32 = scalar_lea.sflag [#allocation4], 1
    %33 = vsyncpa %s32, 0
    loop: start=0, step=1, limit=4
    $region2: #{tpu_custom_call.1} parent=1 // loop_pre_header
      _
    $region3: #{tpu_custom_call.1} parent=1 // loop_header
      %s35 = sphi 0, %s39
      %p36 = scmp.ge.s32.totalorder %s35, 4
      %s45 = sphi 0, %s47
      %s48 = sphi 0, %s45
      %s49 = sphi 0, %s48
      %s65 = sphi 0, %s49
      %s71 = sphi 0, %s73
      %s74 = sphi 0, %s71
      %s75 = sphi 0, %s74
      %s91 = sphi 0, %s75
      %s97 = sphi 0, %s99
      %s100 = sphi 0, %s97
      %s101 = sphi 0, %s100
      %s117 = sphi 0, %s101
      %s123 = sphi 0, %s125
      %s126 = sphi 0, %s123
      %s127 = sphi 0, %s126
      %s143 = sphi 0, %s127
      %s147 = sphi 0, %s147
      %s149 = sphi 0, %s147
      %s150 = sphi 0, %s149
      %s164 = sphi 0, %s150
      %s168 = sphi 0, %s168
      %s170 = sphi 0, %s168
      %s171 = sphi 0, %s170
      %s185 = sphi 0, %s171
      %s189 = sphi 0, %s189
      %s191 = sphi 0, %s189
      %s192 = sphi 0, %s191
      %s206 = sphi 0, %s192
      %s210 = sphi 0, %s210
      %s212 = sphi 0, %s210
      %s213 = sphi 0, %s212
      %s227 = sphi 0, %s213
      %s231 = sphi 0, %s231
      %s233 = sphi 0, %s231
      %s234 = sphi 0, %s233
      %s248 = sphi 0, %s234
      %s252 = sphi 0, %s252
      %s254 = sphi 0, %s252
      %s255 = sphi 0, %s254
      %s269 = sphi 0, %s255
      %s273 = sphi 0, %s273
      %s275 = sphi 0, %s273
      %s276 = sphi 0, %s275
      %s290 = sphi 0, %s276
      %s294 = sphi 0, %s294
      %s296 = sphi 0, %s294
      %s297 = sphi 0, %s296
      %s311 = sphi 0, %s297
      %s315 = sphi 0, %s315
      %s317 = sphi 0, %s315
      %s318 = sphi 0, %s317
      %s332 = sphi 0, %s318
      %s336 = sphi 0, %s336
      %s338 = sphi 0, %s336
      %s339 = sphi 0, %s338
      %s353 = sphi 0, %s339
      %s357 = sphi 0, %s357
      %s359 = sphi 0, %s357
      %s360 = sphi 0, %s359
      %s374 = sphi 0, %s360
      %s378 = sphi 0, %s378
      %s380 = sphi 0, %s378
      %s381 = sphi 0, %s380
      %s395 = sphi 0, %s381
      %s399 = sphi 0, %s399
      %s401 = sphi 0, %s399
      %s402 = sphi 0, %s401
      %s416 = sphi 0, %s402
      %s420 = sphi 0, %s420
      %s422 = sphi 0, %s420
      %s423 = sphi 0, %s422
      %s437 = sphi 0, %s423
      %s441 = sphi 0, %s441
      %s443 = sphi 0, %s441
      %s444 = sphi 0, %s443
      %s458 = sphi 0, %s444
      %s462 = sphi 0, %s462
      %s464 = sphi 0, %s462
      %s465 = sphi 0, %s464
      %s479 = sphi 0, %s465
      %s483 = sphi 0, %s483
      %s485 = sphi 0, %s483
      %s486 = sphi 0, %s485
      %s500 = sphi 0, %s486
      %s504 = sphi 0, %s504
      %s506 = sphi 0, %s504
      %s507 = sphi 0, %s506
      %s521 = sphi 0, %s507
      %s525 = sphi 0, %s525
      %s527 = sphi 0, %s525
      %s528 = sphi 0, %s527
      %s542 = sphi 0, %s528
      %s548 = sphi 0, %s550
      %s551 = sphi 0, %s548
      %s552 = sphi 0, %s551
      %s568 = sphi 0, %s552
    $region4: #{tpu_custom_call.1} parent=1 // loop_header_branch
      %38 = sbr.rel (%p36) target = $region8
    $region5: #{tpu_custom_call.1} parent=1 // loop_body
      %s40 = ssub.s32 %s35, 1
      %s41 = ssub.s32 %s35, 2
      %s42 = sadd.s32 %s35, 1
      %s43 = ssub.s32 %s35, %s42
      %p44 = scmp.eq.s32.totalorder %s43, 0
      %s46 = sadd.s32 %s45, 1
      %s47 = scalar_select %p44, %s45, %s46
      %p50 = pneg %p44
      %p51 = scmp.eq.s32.totalorder %s35, 1
      %p52 = por %p50, %p51
      %p53 = scmp.ne.s32.totalorder %s45, %s48
      %p54 = scmp.eq.s32.totalorder %s35, 0
      %p55 = por %p53, %p54
      %p56 = scmp.ne.s32.totalorder %s45, %s48
      %p57 = scmp.eq.s32.totalorder %s40, 1
      %p58 = por %p56, %p57
      %p59 = scmp.ne.s32.totalorder %s48, %s49
      %p60 = scmp.eq.s32.totalorder %s40, 0
      %p61 = por %p59, %p60
      %p62 = scmp.ne.s32.totalorder %s48, %s49
      %p63 = scmp.eq.s32.totalorder %s41, 1
      %p64 = por %p62, %p63
      %p66 = scmp.ne.s32.totalorder %s49, %s65
      %p67 = scmp.eq.s32.totalorder %s41, 0
      %p68 = por %p66, %p67
      %s69 = ssub.s32 %s35, %s42
      %p70 = scmp.eq.s32.totalorder %s69, 0
      %s72 = sadd.s32 %s71, 1
      %s73 = scalar_select %p70, %s71, %s72
      %p76 = pneg %p70
      %p77 = scmp.eq.s32.totalorder %s35, 1
      %p78 = por %p76, %p77
      %p79 = scmp.ne.s32.totalorder %s71, %s74
      %p80 = scmp.eq.s32.totalorder %s35, 0
      %p81 = por %p79, %p80
      %p82 = scmp.ne.s32.totalorder %s71, %s74
      %p83 = scmp.eq.s32.totalorder %s40, 1
      %p84 = por %p82, %p83
      %p85 = scmp.ne.s32.totalorder %s74, %s75
      %p86 = scmp.eq.s32.totalorder %s40, 0
      %p87 = por %p85, %p86
      %p88 = scmp.ne.s32.totalorder %s74, %s75
      %p89 = scmp.eq.s32.totalorder %s41, 1
      %p90 = por %p88, %p89
      %p92 = scmp.ne.s32.totalorder %s75, %s91
      %p93 = scmp.eq.s32.totalorder %s41, 0
      %p94 = por %p92, %p93
      %s95 = ssub.s32 %s35, %s42
      %p96 = scmp.eq.s32.totalorder %s95, 0
      %s98 = sadd.s32 %s97, 1
      %s99 = scalar_select %p96, %s97, %s98
      %p102 = pneg %p96
      %p103 = scmp.eq.s32.totalorder %s35, 1
      %p104 = por %p102, %p103
      %p105 = scmp.ne.s32.totalorder %s97, %s100
      %p106 = scmp.eq.s32.totalorder %s35, 0
      %p107 = por %p105, %p106
      %p108 = scmp.ne.s32.totalorder %s97, %s100
      %p109 = scmp.eq.s32.totalorder %s40, 1
      %p110 = por %p108, %p109
      %p111 = scmp.ne.s32.totalorder %s100, %s101
      %p112 = scmp.eq.s32.totalorder %s40, 0
      %p113 = por %p111, %p112
      %p114 = scmp.ne.s32.totalorder %s100, %s101
      %p115 = scmp.eq.s32.totalorder %s41, 1
      %p116 = por %p114, %p115
      %p118 = scmp.ne.s32.totalorder %s101, %s117
      %p119 = scmp.eq.s32.totalorder %s41, 0
      %p120 = por %p118, %p119
      %s121 = ssub.s32 %s35, %s42
      %p122 = scmp.eq.s32.totalorder %s121, 0
      %s124 = sadd.s32 %s123, 1
      %s125 = scalar_select %p122, %s123, %s124
      %p128 = pneg %p122
      %p129 = scmp.eq.s32.totalorder %s35, 1
      %p130 = por %p128, %p129
      %p131 = scmp.ne.s32.totalorder %s123, %s126
      %p132 = scmp.eq.s32.totalorder %s35, 0
      %p133 = por %p131, %p132
      %p134 = scmp.ne.s32.totalorder %s123, %s126
      %p135 = scmp.eq.s32.totalorder %s40, 1
      %p136 = por %p134, %p135
      %p137 = scmp.ne.s32.totalorder %s126, %s127
      %p138 = scmp.eq.s32.totalorder %s40, 0
      %p139 = por %p137, %p138
      %p140 = scmp.ne.s32.totalorder %s126, %s127
      %p141 = scmp.eq.s32.totalorder %s41, 1
      %p142 = por %p140, %p141
      %p144 = scmp.ne.s32.totalorder %s127, %s143
      %p145 = scmp.eq.s32.totalorder %s41, 0
      %p146 = por %p144, %p145
      %s148 = sadd.s32 %s147, 1
      %p151 = scmp.eq.s32.totalorder %s35, 1
      %p152 = scmp.ne.s32.totalorder %s147, %s149
      %p153 = scmp.eq.s32.totalorder %s35, 0
      %p154 = por %p152, %p153
      %p155 = scmp.ne.s32.totalorder %s147, %s149
      %p156 = scmp.eq.s32.totalorder %s40, 1
      %p157 = por %p155, %p156
      %p158 = scmp.ne.s32.totalorder %s149, %s150
      %p159 = scmp.eq.s32.totalorder %s40, 0
      %p160 = por %p158, %p159
      %p161 = scmp.ne.s32.totalorder %s149, %s150
      %p162 = scmp.eq.s32.totalorder %s41, 1
      %p163 = por %p161, %p162
      %p165 = scmp.ne.s32.totalorder %s150, %s164
      %p166 = scmp.eq.s32.totalorder %s41, 0
      %p167 = por %p165, %p166
      %s169 = sadd.s32 %s168, 1
      %p172 = scmp.eq.s32.totalorder %s35, 1
      %p173 = scmp.ne.s32.totalorder %s168, %s170
      %p174 = scmp.eq.s32.totalorder %s35, 0
      %p175 = por %p173, %p174
      %p176 = scmp.ne.s32.totalorder %s168, %s170
      %p177 = scmp.eq.s32.totalorder %s40, 1
      %p178 = por %p176, %p177
      %p179 = scmp.ne.s32.totalorder %s170, %s171
      %p180 = scmp.eq.s32.totalorder %s40, 0
      %p181 = por %p179, %p180
      %p182 = scmp.ne.s32.totalorder %s170, %s171
      %p183 = scmp.eq.s32.totalorder %s41, 1
      %p184 = por %p182, %p183
      %p186 = scmp.ne.s32.totalorder %s171, %s185
      %p187 = scmp.eq.s32.totalorder %s41, 0
      %p188 = por %p186, %p187
      %s190 = sadd.s32 %s189, 1
      %p193 = scmp.eq.s32.totalorder %s35, 1
      %p194 = scmp.ne.s32.totalorder %s189, %s191
      %p195 = scmp.eq.s32.totalorder %s35, 0
      %p196 = por %p194, %p195
      %p197 = scmp.ne.s32.totalorder %s189, %s191
      %p198 = scmp.eq.s32.totalorder %s40, 1
      %p199 = por %p197, %p198
      %p200 = scmp.ne.s32.totalorder %s191, %s192
      %p201 = scmp.eq.s32.totalorder %s40, 0
      %p202 = por %p200, %p201
      %p203 = scmp.ne.s32.totalorder %s191, %s192
      %p204 = scmp.eq.s32.totalorder %s41, 1
      %p205 = por %p203, %p204
      %p207 = scmp.ne.s32.totalorder %s192, %s206
      %p208 = scmp.eq.s32.totalorder %s41, 0
      %p209 = por %p207, %p208
      %s211 = sadd.s32 %s210, 1
      %p214 = scmp.eq.s32.totalorder %s35, 1
      %p215 = scmp.ne.s32.totalorder %s210, %s212
      %p216 = scmp.eq.s32.totalorder %s35, 0
      %p217 = por %p215, %p216
      %p218 = scmp.ne.s32.totalorder %s210, %s212
      %p219 = scmp.eq.s32.totalorder %s40, 1
      %p220 = por %p218, %p219
      %p221 = scmp.ne.s32.totalorder %s212, %s213
      %p222 = scmp.eq.s32.totalorder %s40, 0
      %p223 = por %p221, %p222
      %p224 = scmp.ne.s32.totalorder %s212, %s213
      %p225 = scmp.eq.s32.totalorder %s41, 1
      %p226 = por %p224, %p225
      %p228 = scmp.ne.s32.totalorder %s213, %s227
      %p229 = scmp.eq.s32.totalorder %s41, 0
      %p230 = por %p228, %p229
      %s232 = sadd.s32 %s231, 1
      %p235 = scmp.eq.s32.totalorder %s35, 1
      %p236 = scmp.ne.s32.totalorder %s231, %s233
      %p237 = scmp.eq.s32.totalorder %s35, 0
      %p238 = por %p236, %p237
      %p239 = scmp.ne.s32.totalorder %s231, %s233
      %p240 = scmp.eq.s32.totalorder %s40, 1
      %p241 = por %p239, %p240
      %p242 = scmp.ne.s32.totalorder %s233, %s234
      %p243 = scmp.eq.s32.totalorder %s40, 0
      %p244 = por %p242, %p243
      %p245 = scmp.ne.s32.totalorder %s233, %s234
      %p246 = scmp.eq.s32.totalorder %s41, 1
      %p247 = por %p245, %p246
      %p249 = scmp.ne.s32.totalorder %s234, %s248
      %p250 = scmp.eq.s32.totalorder %s41, 0
      %p251 = por %p249, %p250
      %s253 = sadd.s32 %s252, 1
      %p256 = scmp.eq.s32.totalorder %s35, 1
      %p257 = scmp.ne.s32.totalorder %s252, %s254
      %p258 = scmp.eq.s32.totalorder %s35, 0
      %p259 = por %p257, %p258
      %p260 = scmp.ne.s32.totalorder %s252, %s254
      %p261 = scmp.eq.s32.totalorder %s40, 1
      %p262 = por %p260, %p261
      %p263 = scmp.ne.s32.totalorder %s254, %s255
      %p264 = scmp.eq.s32.totalorder %s40, 0
      %p265 = por %p263, %p264
      %p266 = scmp.ne.s32.totalorder %s254, %s255
      %p267 = scmp.eq.s32.totalorder %s41, 1
      %p268 = por %p266, %p267
      %p270 = scmp.ne.s32.totalorder %s255, %s269
      %p271 = scmp.eq.s32.totalorder %s41, 0
      %p272 = por %p270, %p271
      %s274 = sadd.s32 %s273, 1
      %p277 = scmp.eq.s32.totalorder %s35, 1
      %p278 = scmp.ne.s32.totalorder %s273, %s275
      %p279 = scmp.eq.s32.totalorder %s35, 0
      %p280 = por %p278, %p279
      %p281 = scmp.ne.s32.totalorder %s273, %s275
      %p282 = scmp.eq.s32.totalorder %s40, 1
      %p283 = por %p281, %p282
      %p284 = scmp.ne.s32.totalorder %s275, %s276
      %p285 = scmp.eq.s32.totalorder %s40, 0
      %p286 = por %p284, %p285
      %p287 = scmp.ne.s32.totalorder %s275, %s276
      %p288 = scmp.eq.s32.totalorder %s41, 1
      %p289 = por %p287, %p288
      %p291 = scmp.ne.s32.totalorder %s276, %s290
      %p292 = scmp.eq.s32.totalorder %s41, 0
      %p293 = por %p291, %p292
      %s295 = sadd.s32 %s294, 1
      %p298 = scmp.eq.s32.totalorder %s35, 1
      %p299 = scmp.ne.s32.totalorder %s294, %s296
      %p300 = scmp.eq.s32.totalorder %s35, 0
      %p301 = por %p299, %p300
      %p302 = scmp.ne.s32.totalorder %s294, %s296
      %p303 = scmp.eq.s32.totalorder %s40, 1
      %p304 = por %p302, %p303
      %p305 = scmp.ne.s32.totalorder %s296, %s297
      %p306 = scmp.eq.s32.totalorder %s40, 0
      %p307 = por %p305, %p306
      %p308 = scmp.ne.s32.totalorder %s296, %s297
      %p309 = scmp.eq.s32.totalorder %s41, 1
      %p310 = por %p308, %p309
      %p312 = scmp.ne.s32.totalorder %s297, %s311
      %p313 = scmp.eq.s32.totalorder %s41, 0
      %p314 = por %p312, %p313
      %s316 = sadd.s32 %s315, 1
      %p319 = scmp.eq.s32.totalorder %s35, 1
      %p320 = scmp.ne.s32.totalorder %s315, %s317
      %p321 = scmp.eq.s32.totalorder %s35, 0
      %p322 = por %p320, %p321
      %p323 = scmp.ne.s32.totalorder %s315, %s317
      %p324 = scmp.eq.s32.totalorder %s40, 1
      %p325 = por %p323, %p324
      %p326 = scmp.ne.s32.totalorder %s317, %s318
      %p327 = scmp.eq.s32.totalorder %s40, 0
      %p328 = por %p326, %p327
      %p329 = scmp.ne.s32.totalorder %s317, %s318
      %p330 = scmp.eq.s32.totalorder %s41, 1
      %p331 = por %p329, %p330
      %p333 = scmp.ne.s32.totalorder %s318, %s332
      %p334 = scmp.eq.s32.totalorder %s41, 0
      %p335 = por %p333, %p334
      %s337 = sadd.s32 %s336, 1
      %p340 = scmp.eq.s32.totalorder %s35, 1
      %p341 = scmp.ne.s32.totalorder %s336, %s338
      %p342 = scmp.eq.s32.totalorder %s35, 0
      %p343 = por %p341, %p342
      %p344 = scmp.ne.s32.totalorder %s336, %s338
      %p345 = scmp.eq.s32.totalorder %s40, 1
      %p346 = por %p344, %p345
      %p347 = scmp.ne.s32.totalorder %s338, %s339
      %p348 = scmp.eq.s32.totalorder %s40, 0
      %p349 = por %p347, %p348
      %p350 = scmp.ne.s32.totalorder %s338, %s339
      %p351 = scmp.eq.s32.totalorder %s41, 1
      %p352 = por %p350, %p351
      %p354 = scmp.ne.s32.totalorder %s339, %s353
      %p355 = scmp.eq.s32.totalorder %s41, 0
      %p356 = por %p354, %p355
      %s358 = sadd.s32 %s357, 1
      %p361 = scmp.eq.s32.totalorder %s35, 1
      %p362 = scmp.ne.s32.totalorder %s357, %s359
      %p363 = scmp.eq.s32.totalorder %s35, 0
      %p364 = por %p362, %p363
      %p365 = scmp.ne.s32.totalorder %s357, %s359
      %p366 = scmp.eq.s32.totalorder %s40, 1
      %p367 = por %p365, %p366
      %p368 = scmp.ne.s32.totalorder %s359, %s360
      %p369 = scmp.eq.s32.totalorder %s40, 0
      %p370 = por %p368, %p369
      %p371 = scmp.ne.s32.totalorder %s359, %s360
      %p372 = scmp.eq.s32.totalorder %s41, 1
      %p373 = por %p371, %p372
      %p375 = scmp.ne.s32.totalorder %s360, %s374
      %p376 = scmp.eq.s32.totalorder %s41, 0
      %p377 = por %p375, %p376
      %s379 = sadd.s32 %s378, 1
      %p382 = scmp.eq.s32.totalorder %s35, 1
      %p383 = scmp.ne.s32.totalorder %s378, %s380
      %p384 = scmp.eq.s32.totalorder %s35, 0
      %p385 = por %p383, %p384
      %p386 = scmp.ne.s32.totalorder %s378, %s380
      %p387 = scmp.eq.s32.totalorder %s40, 1
      %p388 = por %p386, %p387
      %p389 = scmp.ne.s32.totalorder %s380, %s381
      %p390 = scmp.eq.s32.totalorder %s40, 0
      %p391 = por %p389, %p390
      %p392 = scmp.ne.s32.totalorder %s380, %s381
      %p393 = scmp.eq.s32.totalorder %s41, 1
      %p394 = por %p392, %p393
      %p396 = scmp.ne.s32.totalorder %s381, %s395
      %p397 = scmp.eq.s32.totalorder %s41, 0
      %p398 = por %p396, %p397
      %s400 = sadd.s32 %s399, 1
      %p403 = scmp.eq.s32.totalorder %s35, 1
      %p404 = scmp.ne.s32.totalorder %s399, %s401
      %p405 = scmp.eq.s32.totalorder %s35, 0
      %p406 = por %p404, %p405
      %p407 = scmp.ne.s32.totalorder %s399, %s401
      %p408 = scmp.eq.s32.totalorder %s40, 1
      %p409 = por %p407, %p408
      %p410 = scmp.ne.s32.totalorder %s401, %s402
      %p411 = scmp.eq.s32.totalorder %s40, 0
      %p412 = por %p410, %p411
      %p413 = scmp.ne.s32.totalorder %s401, %s402
      %p414 = scmp.eq.s32.totalorder %s41, 1
      %p415 = por %p413, %p414
      %p417 = scmp.ne.s32.totalorder %s402, %s416
      %p418 = scmp.eq.s32.totalorder %s41, 0
      %p419 = por %p417, %p418
      %s421 = sadd.s32 %s420, 1
      %p424 = scmp.eq.s32.totalorder %s35, 1
      %p425 = scmp.ne.s32.totalorder %s420, %s422
      %p426 = scmp.eq.s32.totalorder %s35, 0
      %p427 = por %p425, %p426
      %p428 = scmp.ne.s32.totalorder %s420, %s422
      %p429 = scmp.eq.s32.totalorder %s40, 1
      %p430 = por %p428, %p429
      %p431 = scmp.ne.s32.totalorder %s422, %s423
      %p432 = scmp.eq.s32.totalorder %s40, 0
      %p433 = por %p431, %p432
      %p434 = scmp.ne.s32.totalorder %s422, %s423
      %p435 = scmp.eq.s32.totalorder %s41, 1
      %p436 = por %p434, %p435
      %p438 = scmp.ne.s32.totalorder %s423, %s437
      %p439 = scmp.eq.s32.totalorder %s41, 0
      %p440 = por %p438, %p439
      %s442 = sadd.s32 %s441, 1
      %p445 = scmp.eq.s32.totalorder %s35, 1
      %p446 = scmp.ne.s32.totalorder %s441, %s443
      %p447 = scmp.eq.s32.totalorder %s35, 0
      %p448 = por %p446, %p447
      %p449 = scmp.ne.s32.totalorder %s441, %s443
      %p450 = scmp.eq.s32.totalorder %s40, 1
      %p451 = por %p449, %p450
      %p452 = scmp.ne.s32.totalorder %s443, %s444
      %p453 = scmp.eq.s32.totalorder %s40, 0
      %p454 = por %p452, %p453
      %p455 = scmp.ne.s32.totalorder %s443, %s444
      %p456 = scmp.eq.s32.totalorder %s41, 1
      %p457 = por %p455, %p456
      %p459 = scmp.ne.s32.totalorder %s444, %s458
      %p460 = scmp.eq.s32.totalorder %s41, 0
      %p461 = por %p459, %p460
      %s463 = sadd.s32 %s462, 1
      %p466 = scmp.eq.s32.totalorder %s35, 1
      %p467 = scmp.ne.s32.totalorder %s462, %s464
      %p468 = scmp.eq.s32.totalorder %s35, 0
      %p469 = por %p467, %p468
      %p470 = scmp.ne.s32.totalorder %s462, %s464
      %p471 = scmp.eq.s32.totalorder %s40, 1
      %p472 = por %p470, %p471
      %p473 = scmp.ne.s32.totalorder %s464, %s465
      %p474 = scmp.eq.s32.totalorder %s40, 0
      %p475 = por %p473, %p474
      %p476 = scmp.ne.s32.totalorder %s464, %s465
      %p477 = scmp.eq.s32.totalorder %s41, 1
      %p478 = por %p476, %p477
      %p480 = scmp.ne.s32.totalorder %s465, %s479
      %p481 = scmp.eq.s32.totalorder %s41, 0
      %p482 = por %p480, %p481
      %s484 = sadd.s32 %s483, 1
      %p487 = scmp.eq.s32.totalorder %s35, 1
      %p488 = scmp.ne.s32.totalorder %s483, %s485
      %p489 = scmp.eq.s32.totalorder %s35, 0
      %p490 = por %p488, %p489
      %p491 = scmp.ne.s32.totalorder %s483, %s485
      %p492 = scmp.eq.s32.totalorder %s40, 1
      %p493 = por %p491, %p492
      %p494 = scmp.ne.s32.totalorder %s485, %s486
      %p495 = scmp.eq.s32.totalorder %s40, 0
      %p496 = por %p494, %p495
      %p497 = scmp.ne.s32.totalorder %s485, %s486
      %p498 = scmp.eq.s32.totalorder %s41, 1
      %p499 = por %p497, %p498
      %p501 = scmp.ne.s32.totalorder %s486, %s500
      %p502 = scmp.eq.s32.totalorder %s41, 0
      %p503 = por %p501, %p502
      %s505 = sadd.s32 %s504, 1
      %p508 = scmp.eq.s32.totalorder %s35, 1
      %p509 = scmp.ne.s32.totalorder %s504, %s506
      %p510 = scmp.eq.s32.totalorder %s35, 0
      %p511 = por %p509, %p510
      %p512 = scmp.ne.s32.totalorder %s504, %s506
      %p513 = scmp.eq.s32.totalorder %s40, 1
      %p514 = por %p512, %p513
      %p515 = scmp.ne.s32.totalorder %s506, %s507
      %p516 = scmp.eq.s32.totalorder %s40, 0
      %p517 = por %p515, %p516
      %p518 = scmp.ne.s32.totalorder %s506, %s507
      %p519 = scmp.eq.s32.totalorder %s41, 1
      %p520 = por %p518, %p519
      %p522 = scmp.ne.s32.totalorder %s507, %s521
      %p523 = scmp.eq.s32.totalorder %s41, 0
      %p524 = por %p522, %p523
      %s526 = sadd.s32 %s525, 1
      %p529 = scmp.eq.s32.totalorder %s35, 1
      %p530 = scmp.ne.s32.totalorder %s525, %s527
      %p531 = scmp.eq.s32.totalorder %s35, 0
      %p532 = por %p530, %p531
      %p533 = scmp.ne.s32.totalorder %s525, %s527
      %p534 = scmp.eq.s32.totalorder %s40, 1
      %p535 = por %p533, %p534
      %p536 = scmp.ne.s32.totalorder %s527, %s528
      %p537 = scmp.eq.s32.totalorder %s40, 0
      %p538 = por %p536, %p537
      %p539 = scmp.ne.s32.totalorder %s527, %s528
      %p540 = scmp.eq.s32.totalorder %s41, 1
      %p541 = por %p539, %p540
      %p543 = scmp.ne.s32.totalorder %s528, %s542
      %p544 = scmp.eq.s32.totalorder %s41, 0
      %p545 = por %p543, %p544
      %s546 = ssub.s32 %s35, %s42
      %p547 = scmp.eq.s32.totalorder %s546, 0
      %s549 = sadd.s32 %s548, 1
      %s550 = scalar_select %p547, %s548, %s549
      %p553 = pneg %p547
      %p554 = scmp.eq.s32.totalorder %s35, 1
      %p555 = por %p553, %p554
      %p556 = scmp.ne.s32.totalorder %s548, %s551
      %p557 = scmp.eq.s32.totalorder %s35, 0
      %p558 = por %p556, %p557
      %p559 = scmp.ne.s32.totalorder %s548, %s551
      %p560 = scmp.eq.s32.totalorder %s40, 1
      %p561 = por %p559, %p560
      %p562 = scmp.ne.s32.totalorder %s551, %s552
      %p563 = scmp.eq.s32.totalorder %s40, 0
      %p564 = por %p562, %p563
      %p565 = scmp.ne.s32.totalorder %s551, %s552
      %p566 = scmp.eq.s32.totalorder %s41, 1
      %p567 = por %p565, %p566
      %p569 = scmp.ne.s32.totalorder %s552, %s568
      %p570 = scmp.eq.s32.totalorder %s41, 0
      %p571 = por %p569, %p570
      %p572 = scmp.le.s32.totalorder 1, %s35
      %p573 = scmp.lt.s32.totalorder %s35, 3
      %p574 = pnand %p572, %p573
      %p575 = pneg %p574
      // Predicated region
      $region9: #{tpu_custom_call.1} parent=5 // pred_check
        _
      $region10: #{tpu_custom_call.1} parent=5 // pred_check_branch
        %577 = sbr.rel (%p574) target = $region12
      $region11: #{tpu_custom_call.1} parent=5 // pred_region
        %s578 = ssub.s32 %s35, 1
        // Predicated region
        $region13: #{tpu_custom_call.1} parent=11 // pred_check
          %p579 = pneg %p160
        $region14: #{tpu_custom_call.1} parent=11 // pred_check_branch
          %581 = sbr.rel (%p579) target = $region16
        $region15: #{tpu_custom_call.1} parent=11 // pred_region
          %s583 = ssub.s32 256, 256
          %584 = vsyncadd [#allocation3], %s583
          %s585 = sshll.u32 [#allocation2], 4
          %s586 = int_to_ptr.vmem [resolvable:$true] %s585
          %591 = dma.hbm_to_vmem [thread:$0]  %s4, 256, %s586, [#allocation3], 128, 128, 8
        $region16: #{tpu_custom_call.1} parent=11 // pred_fallthru
          _
        // Predicated region
        $region17: #{tpu_custom_call.1} parent=11 // pred_check
          %p592 = pneg %p181
        $region18: #{tpu_custom_call.1} parent=11 // pred_check_branch
          %594 = sbr.rel (%p592) target = $region20
        $region19: #{tpu_custom_call.1} parent=11 // pred_region
          %s596 = ssub.s32 256, 256
          %597 = vsyncadd [#allocation6], %s596
          %s598 = sshll.u32 [#allocation5], 4
          %s599 = int_to_ptr.vmem [resolvable:$true] %s598
          %604 = dma.hbm_to_vmem [thread:$0]  %s5, 256, %s599, [#allocation6], 128, 128, 8
        $region20: #{tpu_custom_call.1} parent=11 // pred_fallthru
          _
        // Predicated region
        $region21: #{tpu_custom_call.1} parent=11 // pred_check
          %p605 = pneg %p202
        $region22: #{tpu_custom_call.1} parent=11 // pred_check_branch
          %607 = sbr.rel (%p605) target = $region24
        $region23: #{tpu_custom_call.1} parent=11 // pred_region
          _
        $region24: #{tpu_custom_call.1} parent=11 // pred_fallthru
          _
        // Predicated region
        $region25: #{tpu_custom_call.1} parent=11 // pred_check
          %p608 = pneg %p223
        $region26: #{tpu_custom_call.1} parent=11 // pred_check_branch
          %610 = sbr.rel (%p608) target = $region28
        $region27: #{tpu_custom_call.1} parent=11 // pred_region
          _
        $region28: #{tpu_custom_call.1} parent=11 // pred_fallthru
          _
        // Predicated region
        $region29: #{tpu_custom_call.1} parent=11 // pred_check
          %p611 = pneg %p244
        $region30: #{tpu_custom_call.1} parent=11 // pred_check_branch
          %613 = sbr.rel (%p611) target = $region32
        $region31: #{tpu_custom_call.1} parent=11 // pred_region
          _
        $region32: #{tpu_custom_call.1} parent=11 // pred_fallthru
          _
        // Predicated region
        $region33: #{tpu_custom_call.1} parent=11 // pred_check
          %p614 = pneg %p265
        $region34: #{tpu_custom_call.1} parent=11 // pred_check_branch
          %616 = sbr.rel (%p614) target = $region36
        $region35: #{tpu_custom_call.1} parent=11 // pred_region
          _
        $region36: #{tpu_custom_call.1} parent=11 // pred_fallthru
          _
        // Predicated region
        $region37: #{tpu_custom_call.1} parent=11 // pred_check
          %p617 = pneg %p286
        $region38: #{tpu_custom_call.1} parent=11 // pred_check_branch
          %619 = sbr.rel (%p617) target = $region40
        $region39: #{tpu_custom_call.1} parent=11 // pred_region
          _
        $region40: #{tpu_custom_call.1} parent=11 // pred_fallthru
          _
        // Predicated region
        $region41: #{tpu_custom_call.1} parent=11 // pred_check
          %p620 = pneg %p307
        $region42: #{tpu_custom_call.1} parent=11 // pred_check_branch
          %622 = sbr.rel (%p620) target = $region44
        $region43: #{tpu_custom_call.1} parent=11 // pred_region
          _
        $region44: #{tpu_custom_call.1} parent=11 // pred_fallthru
          _
        // Predicated region
        $region45: #{tpu_custom_call.1} parent=11 // pred_check
          %p623 = pneg %p328
        $region46: #{tpu_custom_call.1} parent=11 // pred_check_branch
          %625 = sbr.rel (%p623) target = $region48
        $region47: #{tpu_custom_call.1} parent=11 // pred_region
          _
        $region48: #{tpu_custom_call.1} parent=11 // pred_fallthru
          _
        // Predicated region
        $region49: #{tpu_custom_call.1} parent=11 // pred_check
          %p626 = pneg %p349
        $region50: #{tpu_custom_call.1} parent=11 // pred_check_branch
          %628 = sbr.rel (%p626) target = $region52
        $region51: #{tpu_custom_call.1} parent=11 // pred_region
          _
        $region52: #{tpu_custom_call.1} parent=11 // pred_fallthru
          _
        // Predicated region
        $region53: #{tpu_custom_call.1} parent=11 // pred_check
          %p629 = pneg %p370
        $region54: #{tpu_custom_call.1} parent=11 // pred_check_branch
          %631 = sbr.rel (%p629) target = $region56
        $region55: #{tpu_custom_call.1} parent=11 // pred_region
          _
        $region56: #{tpu_custom_call.1} parent=11 // pred_fallthru
          _
        // Predicated region
        $region57: #{tpu_custom_call.1} parent=11 // pred_check
          %p632 = pneg %p391
        $region58: #{tpu_custom_call.1} parent=11 // pred_check_branch
          %634 = sbr.rel (%p632) target = $region60
        $region59: #{tpu_custom_call.1} parent=11 // pred_region
          _
        $region60: #{tpu_custom_call.1} parent=11 // pred_fallthru
          _
        // Predicated region
        $region61: #{tpu_custom_call.1} parent=11 // pred_check
          %p635 = pneg %p412
        $region62: #{tpu_custom_call.1} parent=11 // pred_check_branch
          %637 = sbr.rel (%p635) target = $region64
        $region63: #{tpu_custom_call.1} parent=11 // pred_region
          %s639 = ssub.s32 512, 512
          %640 = vsyncadd [#allocation6], %s639
          %s641 = sshll.u32 [#allocation7], 4
          %s642 = int_to_ptr.vmem [resolvable:$true] %s641
          %647 = dma.hbm_to_vmem [thread:$0]  %s16, 512, %s642, [#allocation6], 128, 128, 8
        $region64: #{tpu_custom_call.1} parent=11 // pred_fallthru
          _
        // Predicated region
        $region65: #{tpu_custom_call.1} parent=11 // pred_check
          %p648 = pneg %p433
        $region66: #{tpu_custom_call.1} parent=11 // pred_check_branch
          %650 = sbr.rel (%p648) target = $region68
        $region67: #{tpu_custom_call.1} parent=11 // pred_region
          _
        $region68: #{tpu_custom_call.1} parent=11 // pred_fallthru
          _
        // Predicated region
        $region69: #{tpu_custom_call.1} parent=11 // pred_check
          %p651 = pneg %p454
        $region70: #{tpu_custom_call.1} parent=11 // pred_check_branch
          %653 = sbr.rel (%p651) target = $region72
        $region71: #{tpu_custom_call.1} parent=11 // pred_region
          _
        $region72: #{tpu_custom_call.1} parent=11 // pred_fallthru
          _
        // Predicated region
        $region73: #{tpu_custom_call.1} parent=11 // pred_check
          %p654 = pneg %p475
        $region74: #{tpu_custom_call.1} parent=11 // pred_check_branch
          %656 = sbr.rel (%p654) target = $region76
        $region75: #{tpu_custom_call.1} parent=11 // pred_region
          %s658 = ssub.s32 256, 256
          %659 = vsyncadd [#allocation9], %s658
          %s660 = sshll.u32 [#allocation8], 4
          %s661 = int_to_ptr.vmem [resolvable:$true] %s660
          %666 = dma.hbm_to_vmem [thread:$0]  %s19, 256, %s661, [#allocation9], 128, 128, 8
        $region76: #{tpu_custom_call.1} parent=11 // pred_fallthru
          _
        // Predicated region
        $region77: #{tpu_custom_call.1} parent=11 // pred_check
          %p667 = pneg %p496
        $region78: #{tpu_custom_call.1} parent=11 // pred_check_branch
          %669 = sbr.rel (%p667) target = $region80
        $region79: #{tpu_custom_call.1} parent=11 // pred_region
          _
        $region80: #{tpu_custom_call.1} parent=11 // pred_fallthru
          _
        // Predicated region
        $region81: #{tpu_custom_call.1} parent=11 // pred_check
          %p670 = pneg %p517
        $region82: #{tpu_custom_call.1} parent=11 // pred_check_branch
          %672 = sbr.rel (%p670) target = $region84
        $region83: #{tpu_custom_call.1} parent=11 // pred_region
          %s674 = ssub.s32 256, 256
          %675 = vsyncadd [#allocation9], %s674
          %s676 = sshll.u32 [#allocation10], 4
          %s677 = int_to_ptr.vmem [resolvable:$true] %s676
          %682 = dma.hbm_to_vmem [thread:$0]  %s21, 256, %s677, [#allocation9], 128, 128, 8
        $region84: #{tpu_custom_call.1} parent=11 // pred_fallthru
          _
        // Predicated region
        $region85: #{tpu_custom_call.1} parent=11 // pred_check
          %p683 = pneg %p538
        $region86: #{tpu_custom_call.1} parent=11 // pred_check_branch
          %685 = sbr.rel (%p683) target = $region88
        $region87: #{tpu_custom_call.1} parent=11 // pred_region
          _
        $region88: #{tpu_custom_call.1} parent=11 // pred_fallthru
          _
      $region12: #{tpu_custom_call.1} parent=5 // pred_fallthru
        _
      %p686 = scmp.lt.s32.totalorder %s35, 2
      // Predicated region
      $region89: #{tpu_custom_call.1} parent=5 // pred_check
        %p687 = pneg %p686
      $region90: #{tpu_custom_call.1} parent=5 // pred_check_branch
        %689 = sbr.rel (%p687) target = $region92
      $region91: #{tpu_custom_call.1} parent=5 // pred_region
        // Predicated region
        $region93: #{tpu_custom_call.1} parent=91 // pred_check
          %p690 = pneg %p55
        $region94: #{tpu_custom_call.1} parent=91 // pred_check_branch
          %692 = sbr.rel (%p690) target = $region96
        $region95: #{tpu_custom_call.1} parent=91 // pred_region
          %p693 = scmp.lt.s32.totalorder %s35, 1
          %s694 = scalar_select %p693, %s35, 1
          %s695 = smul.addr %s694, 2
          %s696 = smul.addr %s695, 8
          %s697 = scalar_lea.vmem %s0, %s696
        $region96: #{tpu_custom_call.1} parent=91 // pred_fallthru
          _
        // Predicated region
        $region97: #{tpu_custom_call.1} parent=91 // pred_check
          %p698 = pneg %p81
        $region98: #{tpu_custom_call.1} parent=91 // pred_check_branch
          %700 = sbr.rel (%p698) target = $region100
        $region99: #{tpu_custom_call.1} parent=91 // pred_region
          %p701 = scmp.lt.s32.totalorder %s35, 1
          %s702 = scalar_select %p701, %s35, 1
          %s703 = smul.addr %s702, 2
          %s704 = smul.addr %s703, 8
          %s705 = scalar_lea.vmem %s1, %s704
        $region100: #{tpu_custom_call.1} parent=91 // pred_fallthru
          _
        // Predicated region
        $region101: #{tpu_custom_call.1} parent=91 // pred_check
          %p706 = pneg %p107
        $region102: #{tpu_custom_call.1} parent=91 // pred_check_branch
          %708 = sbr.rel (%p706) target = $region104
        $region103: #{tpu_custom_call.1} parent=91 // pred_region
          %p709 = scmp.lt.s32.totalorder %s35, 1
          %s710 = scalar_select %p709, %s35, 1
          %s711 = smul.addr %s710, 2
          %s712 = smul.addr %s711, 8
          %s713 = scalar_lea.vmem %s2, %s712
        $region104: #{tpu_custom_call.1} parent=91 // pred_fallthru
          _
        // Predicated region
        $region105: #{tpu_custom_call.1} parent=91 // pred_check
          %p714 = pneg %p133
        $region106: #{tpu_custom_call.1} parent=91 // pred_check_branch
          %716 = sbr.rel (%p714) target = $region108
        $region107: #{tpu_custom_call.1} parent=91 // pred_region
          %p717 = scmp.lt.s32.totalorder %s35, 1
          %s718 = scalar_select %p717, %s35, 1
          %s719 = smul.addr %s718, 2
          %s720 = smul.addr %s719, 8
          %s721 = scalar_lea.vmem %s3, %s720
        $region108: #{tpu_custom_call.1} parent=91 // pred_fallthru
          _
      $region92: #{tpu_custom_call.1} parent=5 // pred_fallthru
        _
      %p722 = scmp.le.s32.totalorder 1, %s35
      %p723 = scmp.lt.s32.totalorder %s35, 3
      %p724 = pnand %p722, %p723
      %p725 = pneg %p724
      // Predicated region
      $region109: #{tpu_custom_call.1} parent=5 // pred_check
        _
      $region110: #{tpu_custom_call.1} parent=5 // pred_check_branch
        %727 = sbr.rel (%p724) target = $region112
      $region111: #{tpu_custom_call.1} parent=5 // pred_region
        %s728 = ssub.s32 %s35, 1
        // Predicated region
        $region113: #{tpu_custom_call.1} parent=111 // pred_check
          %p729 = pneg %p160
        $region114: #{tpu_custom_call.1} parent=111 // pred_check_branch
          %731 = sbr.rel (%p729) target = $region116
        $region115: #{tpu_custom_call.1} parent=111 // pred_region
          %732 = dma.done [#allocation3], 256
        $region116: #{tpu_custom_call.1} parent=111 // pred_fallthru
          _
        // Predicated region
        $region117: #{tpu_custom_call.1} parent=111 // pred_check
          %p733 = pneg %p181
        $region118: #{tpu_custom_call.1} parent=111 // pred_check_branch
          %735 = sbr.rel (%p733) target = $region120
        $region119: #{tpu_custom_call.1} parent=111 // pred_region
          %736 = dma.done [#allocation6], 256
        $region120: #{tpu_custom_call.1} parent=111 // pred_fallthru
          _
        // Predicated region
        $region121: #{tpu_custom_call.1} parent=111 // pred_check
          %p737 = pneg %p412
        $region122: #{tpu_custom_call.1} parent=111 // pred_check_branch
          %739 = sbr.rel (%p737) target = $region124
        $region123: #{tpu_custom_call.1} parent=111 // pred_region
          %740 = dma.done [#allocation6], 512
        $region124: #{tpu_custom_call.1} parent=111 // pred_fallthru
          _
        // Predicated region
        $region125: #{tpu_custom_call.1} parent=111 // pred_check
          %p741 = pneg %p475
        $region126: #{tpu_custom_call.1} parent=111 // pred_check_branch
          %743 = sbr.rel (%p741) target = $region128
        $region127: #{tpu_custom_call.1} parent=111 // pred_region
          %744 = dma.done [#allocation9], 256
        $region128: #{tpu_custom_call.1} parent=111 // pred_fallthru
          _
        // Predicated region
        $region129: #{tpu_custom_call.1} parent=111 // pred_check
          %p745 = pneg %p517
        $region130: #{tpu_custom_call.1} parent=111 // pred_check_branch
          %747 = sbr.rel (%p745) target = $region132
        $region131: #{tpu_custom_call.1} parent=111 // pred_region
          %748 = dma.done [#allocation9], 256
        $region132: #{tpu_custom_call.1} parent=111 // pred_fallthru
          _
        %p749 = scmp.lt.s32.totalorder %s40, 1
        %s750 = scalar_select %p749, %s40, 1
        %s751 = smul.addr %s750, 2
        %s752 = smul.addr %s751, 8
        %s753 = scalar_lea.vmem %s0, %s752
        %p754 = pneg %p61
        %p755 = pneg %p58
        %p756 = scmp.lt.s32.totalorder %s40, 1
        %s757 = scalar_select %p756, %s40, 1
        %s758 = smul.addr %s757, 2
        %s759 = smul.addr %s758, 8
        %s760 = scalar_lea.vmem %s1, %s759
        %p761 = pneg %p87
        %p762 = pneg %p84
        %p763 = scmp.lt.s32.totalorder %s40, 1
        %s764 = scalar_select %p763, %s40, 1
        %s765 = smul.addr %s764, 2
        %s766 = smul.addr %s765, 8
        %s767 = scalar_lea.vmem %s2, %s766
        %p768 = pneg %p113
        %p769 = pneg %p110
        %p770 = scmp.lt.s32.totalorder %s40, 1
        %s771 = scalar_select %p770, %s40, 1
        %s772 = smul.addr %s771, 2
        %s773 = smul.addr %s772, 8
        %s774 = scalar_lea.vmem %s3, %s773
        %p775 = pneg %p139
        %p776 = pneg %p136
        %p777 = pneg %p160
        %p778 = pneg %p157
        %p779 = pneg %p181
        %p780 = pneg %p178
        %p781 = pneg %p202
        %p782 = pneg %p199
        %p783 = pneg %p223
        %p784 = pneg %p220
        %p785 = pneg %p244
        %p786 = pneg %p241
        %p787 = pneg %p265
        %p788 = pneg %p262
        %p789 = pneg %p286
        %p790 = pneg %p283
        %p791 = pneg %p307
        %p792 = pneg %p304
        %p793 = pneg %p328
        %p794 = pneg %p325
        %p795 = pneg %p349
        %p796 = pneg %p346
        %p797 = pneg %p370
        %p798 = pneg %p367
        %p799 = pneg %p391
        %p800 = pneg %p388
        %p801 = pneg %p412
        %p802 = pneg %p409
        %p803 = pneg %p433
        %p804 = pneg %p430
        %p805 = pneg %p454
        %p806 = pneg %p451
        %p807 = pneg %p475
        %p808 = pneg %p472
        %p809 = pneg %p496
        %p810 = pneg %p493
        %p811 = pneg %p517
        %p812 = pneg %p514
        %p813 = pneg %p538
        %p814 = pneg %p535
        %p815 = pneg %p564
        %p816 = pneg %p561
        %s817 = sand.u32 %s551, 1
        %s818 = scalar_lea.sflag [#allocation4], %s817
        %s819 = sand.u32 %s551, 1
        %s820 = smul.addr %s819, 16
        %s821 = scalar_lea.vmem [#allocation11], %s820
        %p822 = scmp.lt.s32.totalorder %s40, 1
        %s823 = scalar_select %p822, %s40, 1
        %s824 = smul.addr %s823, 2
        %s825 = smul.addr %s824, 8
        %s826 = scalar_lea.vmem %s0, %s825
        %p827 = scmp.lt.s32.totalorder %s40, 1
        %s828 = scalar_select %p827, %s40, 1
        %s829 = smul.addr %s828, 2
        %s830 = smul.addr %s829, 8
        %s831 = scalar_lea.vmem %s1, %s830
        %p832 = scmp.lt.s32.totalorder %s40, 1
        %s833 = scalar_select %p832, %s40, 1
        %s834 = smul.addr %s833, 2
        %s835 = smul.addr %s834, 8
        %s836 = scalar_lea.vmem %s2, %s835
        %p837 = scmp.lt.s32.totalorder %s40, 1
        %s838 = scalar_select %p837, %s40, 1
        %s839 = smul.addr %s838, 2
        %s840 = smul.addr %s839, 8
        %s841 = scalar_lea.vmem %s3, %s840
        %v842 = vld [vmem:[%s22] sm:$0xff]
        %v843 = vld [vmem:[%s22 + $0x8] sm:$0xff]
        %v844 = vld [vmem:[%s22 + $0x10] sm:$0xff]
        %v845 = vld [vmem:[%s22 + $0x18] sm:$0xff]
        %v846 = vld [vmem:[%s22 + $0x20] sm:$0xff]
        %v847 = vld [vmem:[%s22 + $0x28] sm:$0x1]
        %v848 = vld [vmem:[%s826] sm:$0xff]
        %v849 = vld [vmem:[%s826 + $0x8] sm:$0xff]
        %v850 = vld [vmem:[#allocation2] sm:$0xff]
        %v851 = vld [vmem:[#allocation2 + $0x8] sm:$0xf]
        %v852 = vlaneseq
        %v853 = vshrl.u32 %v852, 7
        %v854 = vsub.s32 0, %v853
        %v855 = vrot.slane %v842, %v854
        %vm856 = vcmask 97280
        %v858 = vsel %vm856, %v848, 0
        %v861 = vsel %vm856, %v849, 0
        %vm863 = vcmask 1043456
        %v865 = vsel %vm863, %v851, 0
        %867 = vmatprep.subr.mxu0 0.0
        %868 = vmatpush1.msra.mxu0 %v850
        %869 = vmatprep.subr.mxu0 0.0
        %870 = vmatpush1.msra.mxu0 %v865
        %871 = vmatprep.subr.mxu0 0.0
        %872 = vmatpush1.msra.mxu0 0.0
        %873 = vmatprep.subr.mxu0 0.0
        %874 = vmatpush1.msra.mxu0 0.0
        %875 = vmatprep.subr.mxu0 0.0
        %876 = vmatpush1.msra.mxu0 0.0
        %877 = vmatprep.subr.mxu0 0.0
        %878 = vmatpush1.msra.mxu0 0.0
        %879 = vmatprep.subr.mxu0 0.0
        %880 = vmatpush1.msra.mxu0 0.0
        %881 = vmatprep.subr.mxu0 0.0
        %882 = vmatpush1.msra.mxu0 0.0
        %883 = vmatprep.subr.mxu0 0.0
        %884 = vmatpush1.msra.mxu0 0.0
        %885 = vmatprep.subr.mxu0 0.0
        %886 = vmatpush1.msra.mxu0 0.0
        %887 = vmatprep.subr.mxu0 0.0
        %888 = vmatpush1.msra.mxu0 0.0
        %889 = vmatprep.subr.mxu0 0.0
        %890 = vmatpush1.msra.mxu0 0.0
        %891 = vmatprep.subr.mxu0 0.0
        %892 = vmatpush1.msra.mxu0 0.0
        %893 = vmatprep.subr.mxu0 0.0
        %894 = vmatpush1.msra.mxu0 0.0
        %895 = vmatprep.subr.mxu0 0.0
        %896 = vmatpush1.msra.mxu0 0.0
        %897 = vmatprep.subr.mxu0 0.0
        %898 = vmatpush1.msra.mxu0 0.0
        %899 = vmatprep.subr.mxu0 0.0
        %900 = vmatpush1.msra.mxu0 0.0
        %901 = vmatprep.subr.mxu0 0.0
        %902 = vmatpush1.msra.mxu0 0.0
        %903 = vmatprep.subr.mxu0 0.0
        %904 = vmatpush1.msra.mxu0 0.0
        %905 = vmatprep.subr.mxu0 0.0
        %906 = vmatpush1.msra.mxu0 0.0
        %907 = vmatprep.subr.mxu0 0.0
        %908 = vmatpush1.msra.mxu0 0.0
        %909 = vmatprep.subr.mxu0 0.0
        %910 = vmatpush1.msra.mxu0 0.0
        %911 = vmatprep.subr.mxu0 0.0
        %912 = vmatpush1.msra.mxu0 0.0
        %913 = vmatprep.subr.mxu0 0.0
        %914 = vmatpush1.msra.mxu0 0.0
        %915 = vmatprep.subr.mxu0 0.0
        %916 = vmatpush1.msra.mxu0 0.0
        %917 = vmatprep.subr.mxu0 0.0
        %918 = vmatpush1.msra.mxu0 0.0
        %919 = vmatprep.subr.mxu0 0.0
        %920 = vmatpush1.msra.mxu0 0.0
        %921 = vmatprep.subr.mxu0 0.0
        %922 = vmatpush1.msra.mxu0 0.0
        %923 = vmatprep.subr.mxu0 0.0
        %924 = vmatpush1.msra.mxu0 0.0
        %925 = vmatprep.subr.mxu0 0.0
        %926 = vmatpush1.msra.mxu0 0.0
        %927 = vmatprep.subr.mxu0 0.0
        %928 = vmatpush1.msra.mxu0 0.0
        %929 = vmatprep.subr.mxu0 0.0
        %930 = vmatpush1.msra.mxu0 0.0
        %931 = vmatprep.mubr.f32.mxu0 0.0
        %932 = vmatmul.mubr.f32.gmra.mrb[0].mxu0 %v858
        %v933 = vpop.f32.mrb[0].mxu0
        %v934 = vadd.f32 %v855, %v933
        %v935 = vpop.f32.mrb[0].mxu0
        %936 = vmatprep.mubr.f32.mxu0 0.0
        %937 = vmatmul.mubr.f32.gmra.mrb[0].mxu0 %v861
        %v938 = vpop.f32.mrb[0].mxu0
        %v939 = vadd.f32 %v855, %v938
        %v940 = vpop.f32.mrb[0].mxu0
        %941 = vdwg.mxu0
        %v942 = vld [vmem:[%s831] sm:$0xff]
        %v943 = vld [vmem:[%s831 + $0x8] sm:$0xff]
        %v944 = vadd.f32 %v934, %v942
        %v945 = vadd.f32 %v939, %v943
        %v946 = vld [vmem:[%s6] sm:$0xff]
        %v947 = vld [vmem:[%s6 + $0x8] sm:$0xff]
        %v948 = vld [vmem:[%s6 + $0x10] sm:$0xff]
        %v949 = vld [vmem:[%s6 + $0x18] sm:$0xff]
        %v950 = vld [vmem:[%s7] sm:$0xff]
        %v951 = vld [vmem:[%s7 + $0x8] sm:$0xff]
        %v952 = vld [vmem:[%s7 + $0x10] sm:$0xff]
        %v953 = vld [vmem:[%s7 + $0x18] sm:$0xff]
        %v954 = vld [vmem:[#allocation8] sm:$0xff]
        %v955 = vld [vmem:[#allocation8 + $0x8] sm:$0xff]
        %v956 = vlaneseq
        %v957 = vshrl.u32 %v956, 7
        %v958 = vsub.s32 2, %v957
        %v959 = vrot.slane %v842, %v958
        %vm960 = vcmask 261120
        %v962 = vsel %vm960, %v944, 0
        %v965 = vsel %vm960, %v945, 0
        %967 = vmatprep.subr.mxu0 0.0
        %968 = vmatpush1.msra.mxu0 %v946
        %969 = vmatprep.subr.mxu0 0.0
        %970 = vmatpush1.msra.mxu0 %v947
        %971 = vmatprep.subr.mxu0 0.0
        %972 = vmatpush1.msra.mxu0 %v948
        %973 = vmatprep.subr.mxu0 0.0
        %974 = vmatpush1.msra.mxu0 %v949
        %975 = vmatprep.subr.mxu0 0.0
        %976 = vmatpush1.msra.mxu0 0.0
        %977 = vmatprep.subr.mxu0 0.0
        %978 = vmatpush1.msra.mxu0 0.0
        %979 = vmatprep.subr.mxu0 0.0
        %980 = vmatpush1.msra.mxu0 0.0
        %981 = vmatprep.subr.mxu0 0.0
        %982 = vmatpush1.msra.mxu0 0.0
        %983 = vmatprep.subr.mxu0 0.0
        %984 = vmatpush1.msra.mxu0 0.0
        %985 = vmatprep.subr.mxu0 0.0
        %986 = vmatpush1.msra.mxu0 0.0
        %987 = vmatprep.subr.mxu0 0.0
        %988 = vmatpush1.msra.mxu0 0.0
        %989 = vmatprep.subr.mxu0 0.0
        %990 = vmatpush1.msra.mxu0 0.0
        %991 = vmatprep.subr.mxu0 0.0
        %992 = vmatpush1.msra.mxu0 0.0
        %993 = vmatprep.subr.mxu0 0.0
        %994 = vmatpush1.msra.mxu0 0.0
        %995 = vmatprep.subr.mxu0 0.0
        %996 = vmatpush1.msra.mxu0 0.0
        %997 = vmatprep.subr.mxu0 0.0
        %998 = vmatpush1.msra.mxu0 0.0
        %999 = vmatprep.subr.mxu0 0.0
        %1000 = vmatpush1.msra.mxu0 0.0
        %1001 = vmatprep.subr.mxu0 0.0
        %1002 = vmatpush1.msra.mxu0 0.0
        %1003 = vmatprep.subr.mxu0 0.0
        %1004 = vmatpush1.msra.mxu0 0.0
        %1005 = vmatprep.subr.mxu0 0.0
        %1006 = vmatpush1.msra.mxu0 0.0
        %1007 = vmatprep.subr.mxu0 0.0
        %1008 = vmatpush1.msra.mxu0 0.0
        %1009 = vmatprep.subr.mxu0 0.0
        %1010 = vmatpush1.msra.mxu0 0.0
        %1011 = vmatprep.subr.mxu0 0.0
        %1012 = vmatpush1.msra.mxu0 0.0
        %1013 = vmatprep.subr.mxu0 0.0
        %1014 = vmatpush1.msra.mxu0 0.0
        %1015 = vmatprep.subr.mxu0 0.0
        %1016 = vmatpush1.msra.mxu0 0.0
        %1017 = vmatprep.subr.mxu0 0.0
        %1018 = vmatpush1.msra.mxu0 0.0
        %1019 = vmatprep.subr.mxu0 0.0
        %1020 = vmatpush1.msra.mxu0 0.0
        %1021 = vmatprep.subr.mxu0 0.0
        %1022 = vmatpush1.msra.mxu0 0.0
        %1023 = vmatprep.subr.mxu0 0.0
        %1024 = vmatpush1.msra.mxu0 0.0
        %1025 = vmatprep.subr.mxu0 0.0
        %1026 = vmatpush1.msra.mxu0 0.0
        %1027 = vmatprep.subr.mxu0 0.0
        %1028 = vmatpush1.msra.mxu0 0.0
        %1029 = vmatprep.subr.mxu0 0.0
        %1030 = vmatpush1.msra.mxu0 0.0
        %1031 = vmatprep.mubr.f32.mxu0 0.0
        %1032 = vmatmul.mubr.f32.gmra.mrb[0].mxu0 %v962
        %v1033 = vpop.f32.mrb[0].mxu0
        %v1034 = vadd.f32 %v959, %v1033
        %v1035 = vpop.f32.mrb[0].mxu0
        %1036 = vmatprep.mubr.f32.mxu0 0.0
        %1037 = vmatmul.mubr.f32.gmra.mrb[0].mxu0 %v965
        %v1038 = vpop.f32.mrb[0].mxu0
        %v1039 = vadd.f32 %v959, %v1038
        %v1040 = vpop.f32.mrb[0].mxu0
        %1041 = vdwg.mxu0
        %vm1042 = vcmp.gt.f32.partialorder %v954, 0.0
        %vm1043 = vcmp.gt.f32.partialorder %v955, 0.0
        %1046 = vrot.lane.b32.xlu0 %v1034, 96
        %v1047 = vpop.permute.xlu0 %1046
        %1048 = vrot.lane.b32.xlu0 %v1039, 96
        %v1049 = vpop.permute.xlu0 %1048
        %vm1050 = vcmask 64512
        %v1051 = vsel %vm1050, %v1034, 0
        %v1053 = vsel %vm1050, %v1039, 0
        %v1055 = vsel %vm1050, %v1047, 0
        %v1057 = vsel %vm1050, %v1049, 0
        %1059 = vmatprep.subr.mxu0 0.0
        %1060 = vmatpush1.xpose.msra.mxu0 %v1055
        %1061 = vmatprep.subr.mxu0 0.0
        %1062 = vmatpush1.xpose.msra.mxu0 %v1057
        %1063 = vmatprep.subr.mxu0 0.0
        %1064 = vmatpush1.xpose.msra.mxu0 0.0
        %1065 = vmatprep.subr.mxu0 0.0
        %1066 = vmatpush1.xpose.msra.mxu0 0.0
        %1067 = vmatprep.subr.mxu0 0.0
        %1068 = vmatpush1.xpose.msra.mxu0 0.0
        %1069 = vmatprep.subr.mxu0 0.0
        %1070 = vmatpush1.xpose.msra.mxu0 0.0
        %1071 = vmatprep.subr.mxu0 0.0
        %1072 = vmatpush1.xpose.msra.mxu0 0.0
        %1073 = vmatprep.subr.mxu0 0.0
        %1074 = vmatpush1.xpose.msra.mxu0 0.0
        %1075 = vmatprep.subr.mxu0 0.0
        %1076 = vmatpush1.xpose.msra.mxu0 0.0
        %1077 = vmatprep.subr.mxu0 0.0
        %1078 = vmatpush1.xpose.msra.mxu0 0.0
        %1079 = vmatprep.subr.mxu0 0.0
        %1080 = vmatpush1.xpose.msra.mxu0 0.0
        %1081 = vmatprep.subr.mxu0 0.0
        %1082 = vmatpush1.xpose.msra.mxu0 0.0
        %1083 = vmatprep.subr.mxu0 0.0
        %1084 = vmatpush1.xpose.msra.mxu0 0.0
        %1085 = vmatprep.subr.mxu0 0.0
        %1086 = vmatpush1.xpose.msra.mxu0 0.0
        %1087 = vmatprep.subr.mxu0 0.0
        %1088 = vmatpush1.xpose.msra.mxu0 0.0
        %1089 = vmatprep.subr.mxu0 0.0
        %1090 = vmatpush1.xpose.msra.mxu0 0.0
        %1091 = vmatprep.subr.mxu0 0.0
        %1092 = vmatpush1.xpose.msra.mxu0 0.0
        %1093 = vmatprep.subr.mxu0 0.0
        %1094 = vmatpush1.xpose.msra.mxu0 0.0
        %1095 = vmatprep.subr.mxu0 0.0
        %1096 = vmatpush1.xpose.msra.mxu0 0.0
        %1097 = vmatprep.subr.mxu0 0.0
        %1098 = vmatpush1.xpose.msra.mxu0 0.0
        %1099 = vmatprep.subr.mxu0 0.0
        %1100 = vmatpush1.xpose.msra.mxu0 0.0
        %1101 = vmatprep.subr.mxu0 0.0
        %1102 = vmatpush1.xpose.msra.mxu0 0.0
        %1103 = vmatprep.subr.mxu0 0.0
        %1104 = vmatpush1.xpose.msra.mxu0 0.0
        %1105 = vmatprep.subr.mxu0 0.0
        %1106 = vmatpush1.xpose.msra.mxu0 0.0
        %1107 = vmatprep.subr.mxu0 0.0
        %1108 = vmatpush1.xpose.msra.mxu0 0.0
        %1109 = vmatprep.subr.mxu0 0.0
        %1110 = vmatpush1.xpose.msra.mxu0 0.0
        %1111 = vmatprep.subr.mxu0 0.0
        %1112 = vmatpush1.xpose.msra.mxu0 0.0
        %1113 = vmatprep.subr.mxu0 0.0
        %1114 = vmatpush1.xpose.msra.mxu0 0.0
        %1115 = vmatprep.subr.mxu0 0.0
        %1116 = vmatpush1.xpose.msra.mxu0 0.0
        %1117 = vmatprep.subr.mxu0 0.0
        %1118 = vmatpush1.xpose.msra.mxu0 0.0
        %1119 = vmatprep.subr.mxu0 0.0
        %1120 = vmatpush1.xpose.msra.mxu0 0.0
        %1121 = vmatprep.subr.mxu0 0.0
        %1122 = vmatpush1.xpose.msra.mxu0 0.0
        %1123 = vmatprep.mubr.f32.mxu0 0.0
        %1124 = vmatmul.mubr.f32.gmra.mrb[0].mxu0 %v1051
        %v1125 = vpop.f32.mrb[0].mxu0
        %v1126 = vadd.f32 0.0, %v1125
        %v1127 = vpop.f32.mrb[0].mxu0
        %1128 = vmatprep.mubr.f32.mxu0 0.0
        %1129 = vmatmul.mubr.f32.gmra.mrb[0].mxu0 %v1053
        %v1130 = vpop.f32.mrb[0].mxu0
        %v1131 = vadd.f32 0.0, %v1130
        %v1132 = vpop.f32.mrb[0].mxu0
        %1133 = vdwg.mxu0
        %v1134 = vmul.f32 %v1126, 0.35355338
        %v1135 = vmul.f32 %v1131, 0.35355338
        %vm1136 = vcmask 130048
        %v1137 = vsel %vm1136, %v1134, -inf
        %1138 = vmax.xlane.f32.xlu0 %v1137
        %v1139 = vpop.xlane.xlu0 %1138
        %v1140 = vsel %vm1136, %v1135, -inf
        %1141 = vmax.xlane.f32.xlu0 %v1140
        %v1142 = vpop.xlane.xlu0 %1141
        %v1143 = vsub.f32 %v1134, %v1139
        %v1144 = vsub.f32 %v1135, %v1142
        %v1145 = vmul.f32 %v1143, 1.442695
        %v1146 = vpow.pop %v1145
        %v1147 = vmul.f32 %v1144, 1.442695
        %v1148 = vpow.pop %v1147
        %v1149 = vsel %vm1136, %v1146, 0.0
        %1150 = vadd.xlane.f32.xlu0 %v1149
        %v1151 = vpop.xlane.xlu0 %1150
        %v1152 = vsel %vm1136, %v1148, 0.0
        %1153 = vadd.xlane.f32.xlu0 %v1152
        %v1154 = vpop.xlane.xlu0 %1153
        %v1155 = vrcp.pop %v1151
        %v1156 = vrcp.pop %v1154
        %v1157 = vmul.f32 %v1146, %v1155
        %v1158 = vmul.f32 %v1148, %v1156
        %1159 = vrot.lane.b32.xlu0 %v1034, 64
        %v1160 = vpop.permute.xlu0 %1159
        %1161 = vrot.lane.b32.xlu0 %v1039, 64
        %v1162 = vpop.permute.xlu0 %1161
        %v1166 = vsel %vm1136, %v1157, 0
        %v1169 = vsel %vm1136, %v1158, 0
        %1171 = vmatprep.subr.mxu0 0.0
        %1172 = vmatpush1.msra.mxu0 %v1160
        %1173 = vmatprep.subr.mxu0 0.0
        %1174 = vmatpush1.msra.mxu0 %v1162
        %1175 = vmatprep.subr.mxu0 0.0
        %1176 = vmatpush1.msra.mxu0 0.0
        %1177 = vmatprep.subr.mxu0 0.0
        %1178 = vmatpush1.msra.mxu0 0.0
        %1179 = vmatprep.subr.mxu0 0.0
        %1180 = vmatpush1.msra.mxu0 0.0
        %1181 = vmatprep.subr.mxu0 0.0
        %1182 = vmatpush1.msra.mxu0 0.0
        %1183 = vmatprep.subr.mxu0 0.0
        %1184 = vmatpush1.msra.mxu0 0.0
        %1185 = vmatprep.subr.mxu0 0.0
        %1186 = vmatpush1.msra.mxu0 0.0
        %1187 = vmatprep.subr.mxu0 0.0
        %1188 = vmatpush1.msra.mxu0 0.0
        %1189 = vmatprep.subr.mxu0 0.0
        %1190 = vmatpush1.msra.mxu0 0.0
        %1191 = vmatprep.subr.mxu0 0.0
        %1192 = vmatpush1.msra.mxu0 0.0
        %1193 = vmatprep.subr.mxu0 0.0
        %1194 = vmatpush1.msra.mxu0 0.0
        %1195 = vmatprep.subr.mxu0 0.0
        %1196 = vmatpush1.msra.mxu0 0.0
        %1197 = vmatprep.subr.mxu0 0.0
        %1198 = vmatpush1.msra.mxu0 0.0
        %1199 = vmatprep.subr.mxu0 0.0
        %1200 = vmatpush1.msra.mxu0 0.0
        %1201 = vmatprep.subr.mxu0 0.0
        %1202 = vmatpush1.msra.mxu0 0.0
        %1203 = vmatprep.subr.mxu0 0.0
        %1204 = vmatpush1.msra.mxu0 0.0
        %1205 = vmatprep.subr.mxu0 0.0
        %1206 = vmatpush1.msra.mxu0 0.0
        %1207 = vmatprep.subr.mxu0 0.0
        %1208 = vmatpush1.msra.mxu0 0.0
        %1209 = vmatprep.subr.mxu0 0.0
        %1210 = vmatpush1.msra.mxu0 0.0
        %1211 = vmatprep.subr.mxu0 0.0
        %1212 = vmatpush1.msra.mxu0 0.0
        %1213 = vmatprep.subr.mxu0 0.0
        %1214 = vmatpush1.msra.mxu0 0.0
        %1215 = vmatprep.subr.mxu0 0.0
        %1216 = vmatpush1.msra.mxu0 0.0
        %1217 = vmatprep.subr.mxu0 0.0
        %1218 = vmatpush1.msra.mxu0 0.0
        %1219 = vmatprep.subr.mxu0 0.0
        %1220 = vmatpush1.msra.mxu0 0.0
        %1221 = vmatprep.subr.mxu0 0.0
        %1222 = vmatpush1.msra.mxu0 0.0
        %1223 = vmatprep.subr.mxu0 0.0
        %1224 = vmatpush1.msra.mxu0 0.0
        %1225 = vmatprep.subr.mxu0 0.0
        %1226 = vmatpush1.msra.mxu0 0.0
        %1227 = vmatprep.subr.mxu0 0.0
        %1228 = vmatpush1.msra.mxu0 0.0
        %1229 = vmatprep.subr.mxu0 0.0
        %1230 = vmatpush1.msra.mxu0 0.0
        %1231 = vmatprep.subr.mxu0 0.0
        %1232 = vmatpush1.msra.mxu0 0.0
        %1233 = vmatprep.subr.mxu0 0.0
        %1234 = vmatpush1.msra.mxu0 0.0
        %1235 = vmatprep.mubr.f32.mxu0 0.0
        %1236 = vmatmul.mubr.f32.gmra.mrb[0].mxu0 %v1166
        %v1237 = vpop.f32.mrb[0].mxu0
        %v1238 = vadd.f32 0.0, %v1237
        %v1239 = vpop.f32.mrb[0].mxu0
        %1240 = vmatprep.mubr.f32.mxu0 0.0
        %1241 = vmatmul.mubr.f32.gmra.mrb[0].mxu0 %v1169
        %v1242 = vpop.f32.mrb[0].mxu0
        %v1243 = vadd.f32 0.0, %v1242
        %v1244 = vpop.f32.mrb[0].mxu0
        %1245 = vdwg.mxu0
        %vm1246 = vcmask 589312
        %v1247 = vsel %vm1246, %v1034, 0.0
        %v1248 = vsel %vm1246, %v1039, 0.0
        %v1249 = vadd.f32 %v1247, %v1248
        %v1250 = vrot.slane %v1249, 4
        %v1251 = vadd.f32 %v1249, %v1250
        %v1252 = vrot.slane %v1251, 2
        %v1253 = vadd.f32 %v1251, %v1252
        %v1254 = vrot.slane %v1253, 1
        %v1255 = vadd.f32 %v1253, %v1254
        %v1256 = vrcp.pop 16.0
        %v1257 = vmul.f32 %v1255, %v1256
        %v1258 = vsel %vm1042, %v1126, -1e+30
        %v1259 = vsel %vm1043, %v1131, -1e+30
        %v1260 = vsel %vm1136, %v1258, -inf
        %1261 = vmax.xlane.f32.xlu0 %v1260
        %v1262 = vpop.xlane.xlu0 %1261
        %v1263 = vsel %vm1136, %v1259, -inf
        %1264 = vmax.xlane.f32.xlu0 %v1263
        %v1265 = vpop.xlane.xlu0 %1264
        %v1266 = vmul.f32 %v1126, %v954
        %v1267 = vmul.f32 %v1131, %v955
        %v1268 = vsel %vm1136, %v1266, 0.0
        %1269 = vadd.xlane.f32.xlu0 %v1268
        %v1270 = vpop.xlane.xlu0 %1269
        %v1271 = vsel %vm1136, %v1267, 0.0
        %1272 = vadd.xlane.f32.xlu0 %v1271
        %v1273 = vpop.xlane.xlu0 %1272
        %v1274 = vmul.f32 %v1270, %v1256
        %v1275 = vmul.f32 %v1273, %v1256
        %v1276 = vsub.f32 %v1262, %v1274
        %v1277 = vsub.f32 %v1265, %v1275
        %vm1278 = vcmask 7168
        %v1280 = vsel %vm1278, 1.0, 0
        %v1283 = vsel %vm1278, %v1276, 0
        %v1286 = vsel %vm1278, %v1277, 0
        %1288 = vmatprep.subr.mxu0 0.0
        %1289 = vmatpush1.xpose.msra.mxu0 %v1283
        %1290 = vmatprep.subr.mxu0 0.0
        %1291 = vmatpush1.xpose.msra.mxu0 %v1286
        %1292 = vmatprep.subr.mxu0 0.0
        %1293 = vmatpush1.xpose.msra.mxu0 0.0
        %1294 = vmatprep.subr.mxu0 0.0
        %1295 = vmatpush1.xpose.msra.mxu0 0.0
        %1296 = vmatprep.subr.mxu0 0.0
        %1297 = vmatpush1.xpose.msra.mxu0 0.0
        %1298 = vmatprep.subr.mxu0 0.0
        %1299 = vmatpush1.xpose.msra.mxu0 0.0
        %1300 = vmatprep.subr.mxu0 0.0
        %1301 = vmatpush1.xpose.msra.mxu0 0.0
        %1302 = vmatprep.subr.mxu0 0.0
        %1303 = vmatpush1.xpose.msra.mxu0 0.0
        %1304 = vmatprep.subr.mxu0 0.0
        %1305 = vmatpush1.xpose.msra.mxu0 0.0
        %1306 = vmatprep.subr.mxu0 0.0
        %1307 = vmatpush1.xpose.msra.mxu0 0.0
        %1308 = vmatprep.subr.mxu0 0.0
        %1309 = vmatpush1.xpose.msra.mxu0 0.0
        %1310 = vmatprep.subr.mxu0 0.0
        %1311 = vmatpush1.xpose.msra.mxu0 0.0
        %1312 = vmatprep.subr.mxu0 0.0
        %1313 = vmatpush1.xpose.msra.mxu0 0.0
        %1314 = vmatprep.subr.mxu0 0.0
        %1315 = vmatpush1.xpose.msra.mxu0 0.0
        %1316 = vmatprep.subr.mxu0 0.0
        %1317 = vmatpush1.xpose.msra.mxu0 0.0
        %1318 = vmatprep.subr.mxu0 0.0
        %1319 = vmatpush1.xpose.msra.mxu0 0.0
        %1320 = vmatprep.subr.mxu0 0.0
        %1321 = vmatpush1.xpose.msra.mxu0 0.0
        %1322 = vmatprep.subr.mxu0 0.0
        %1323 = vmatpush1.xpose.msra.mxu0 0.0
        %1324 = vmatprep.subr.mxu0 0.0
        %1325 = vmatpush1.xpose.msra.mxu0 0.0
        %1326 = vmatprep.subr.mxu0 0.0
        %1327 = vmatpush1.xpose.msra.mxu0 0.0
        %1328 = vmatprep.subr.mxu0 0.0
        %1329 = vmatpush1.xpose.msra.mxu0 0.0
        %1330 = vmatprep.subr.mxu0 0.0
        %1331 = vmatpush1.xpose.msra.mxu0 0.0
        %1332 = vmatprep.subr.mxu0 0.0
        %1333 = vmatpush1.xpose.msra.mxu0 0.0
        %1334 = vmatprep.subr.mxu0 0.0
        %1335 = vmatpush1.xpose.msra.mxu0 0.0
        %1336 = vmatprep.subr.mxu0 0.0
        %1337 = vmatpush1.xpose.msra.mxu0 0.0
        %1338 = vmatprep.subr.mxu0 0.0
        %1339 = vmatpush1.xpose.msra.mxu0 0.0
        %1340 = vmatprep.subr.mxu0 0.0
        %1341 = vmatpush1.xpose.msra.mxu0 0.0
        %1342 = vmatprep.subr.mxu0 0.0
        %1343 = vmatpush1.xpose.msra.mxu0 0.0
        %1344 = vmatprep.subr.mxu0 0.0
        %1345 = vmatpush1.xpose.msra.mxu0 0.0
        %1346 = vmatprep.subr.mxu0 0.0
        %1347 = vmatpush1.xpose.msra.mxu0 0.0
        %1348 = vmatprep.subr.mxu0 0.0
        %1349 = vmatpush1.xpose.msra.mxu0 0.0
        %1350 = vmatprep.subr.mxu0 0.0
        %1351 = vmatpush1.xpose.msra.mxu0 0.0
        %1352 = vmatprep.mubr.f32.mxu0 0.0
        %1353 = vmatmul.mubr.f32.gmra.mrb[0].mxu0 %v1280
        %v1354 = vpop.f32.mrb[0].mxu0
        %v1355 = vadd.f32 0.0, %v1354
        %v1356 = vpop.f32.mrb[0].mxu0
        %1357 = vmatprep.mubr.f32.mxu0 0.0
        %1358 = vmatmul.mubr.f32.gmra.mrb[0].mxu0 %v1280
        %v1359 = vpop.f32.mrb[0].mxu0
        %v1360 = vadd.f32 0.0, %v1359
        %v1361 = vpop.f32.mrb[0].mxu0
        %1362 = vdwg.mxu0
        %vm1363 = vcmp.gt.f32.partialorder %v1355, %v1276
        %vm1364 = vcmp.gt.f32.partialorder %v1360, %v1277
        %vm1365 = vcmp.eq.f32.partialorder %v1355, %v1276
        %vm1366 = vcmp.eq.f32.partialorder %v1360, %v1277
        %v1367 = vlaneseq
        %v1368 = vand.u32 %v1367, 127
        %v1369 = vlaneseq
        %v1370 = vshrl.u32 %v1369, 7
        %v1371 = vadd.s32 %v1370, 8
        %vm1372 = vcmp.lt.s32.totalorder %v1368, %v1370
        %vm1373 = vcmp.lt.s32.totalorder %v1368, %v1371
        %vm1374 = vmand %vm1365, %vm1372
        %vm1375 = vmand %vm1366, %vm1373
        %vm1376 = vmor %vm1363, %vm1374
        %vm1377 = vmor %vm1364, %vm1375
        %v1378 = vsel %vm1376, 1, 0
        %v1379 = vsel %vm1377, 1, 0
        %v1380 = vcvt.s32.f32 %v1378
        %v1381 = vcvt.s32.f32 %v1379
        %v1382 = vsel %vm1136, %v1380, 0.0
        %1383 = vadd.xlane.f32.xlu0 %v1382
        %v1384 = vpop.xlane.xlu0 %1383
        %v1385 = vsel %vm1136, %v1381, 0.0
        %1386 = vadd.xlane.f32.xlu0 %v1385
        %v1387 = vpop.xlane.xlu0 %1386
        %vm1388 = vcmp.lt.f32.partialorder %v1384, 15.0
        %vm1389 = vcmp.lt.f32.partialorder %v1387, 15.0
        %v1390 = vsel %vm1388, 1, 0
        %v1391 = vsel %vm1389, 1, 0
        %vm1392 = vcmp.eq.s32.totalorder %v1390, 1
        %vm1393 = vcmp.eq.s32.totalorder %v1391, 1
        %1395 = vrot.lane.b32.xlu0 %v1257, 64
        %v1396 = vpop.permute.xlu0 %1395
        %v1398 = vsel %vm1392, %v1238, %v1396
        %v1399 = vsel %vm1393, %v1243, %v1396
        %1400 = vrot.lane.b32.xlu0 %v1034, 120
        %v1401 = vpop.permute.xlu0 %1400
        %1402 = vrot.lane.b32.xlu0 %v1039, 120
        %v1403 = vpop.permute.xlu0 %1402
        %1404 = vrot.lane.b32.xlu0 %v1034, 88
        %v1405 = vpop.permute.xlu0 %1404
        %1406 = vrot.lane.b32.xlu0 %v1039, 88
        %v1407 = vpop.permute.xlu0 %1406
        %v1408 = vsel %vm1050, %v1401, 0
        %v1410 = vsel %vm1050, %v1403, 0
        %v1412 = vsel %vm1050, %v1405, 0
        %v1414 = vsel %vm1050, %v1407, 0
        %1416 = vmatprep.subr.mxu0 0.0
        %1417 = vmatpush1.xpose.msra.mxu0 %v1412
        %1418 = vmatprep.subr.mxu0 0.0
        %1419 = vmatpush1.xpose.msra.mxu0 %v1414
        %1420 = vmatprep.subr.mxu0 0.0
        %1421 = vmatpush1.xpose.msra.mxu0 0.0
        %1422 = vmatprep.subr.mxu0 0.0
        %1423 = vmatpush1.xpose.msra.mxu0 0.0
        %1424 = vmatprep.subr.mxu0 0.0
        %1425 = vmatpush1.xpose.msra.mxu0 0.0
        %1426 = vmatprep.subr.mxu0 0.0
        %1427 = vmatpush1.xpose.msra.mxu0 0.0
        %1428 = vmatprep.subr.mxu0 0.0
        %1429 = vmatpush1.xpose.msra.mxu0 0.0
        %1430 = vmatprep.subr.mxu0 0.0
        %1431 = vmatpush1.xpose.msra.mxu0 0.0
        %1432 = vmatprep.subr.mxu0 0.0
        %1433 = vmatpush1.xpose.msra.mxu0 0.0
        %1434 = vmatprep.subr.mxu0 0.0
        %1435 = vmatpush1.xpose.msra.mxu0 0.0
        %1436 = vmatprep.subr.mxu0 0.0
        %1437 = vmatpush1.xpose.msra.mxu0 0.0
        %1438 = vmatprep.subr.mxu0 0.0
        %1439 = vmatpush1.xpose.msra.mxu0 0.0
        %1440 = vmatprep.subr.mxu0 0.0
        %1441 = vmatpush1.xpose.msra.mxu0 0.0
        %1442 = vmatprep.subr.mxu0 0.0
        %1443 = vmatpush1.xpose.msra.mxu0 0.0
        %1444 = vmatprep.subr.mxu0 0.0
        %1445 = vmatpush1.xpose.msra.mxu0 0.0
        %1446 = vmatprep.subr.mxu0 0.0
        %1447 = vmatpush1.xpose.msra.mxu0 0.0
        %1448 = vmatprep.subr.mxu0 0.0
        %1449 = vmatpush1.xpose.msra.mxu0 0.0
        %1450 = vmatprep.subr.mxu0 0.0
        %1451 = vmatpush1.xpose.msra.mxu0 0.0
        %1452 = vmatprep.subr.mxu0 0.0
        %1453 = vmatpush1.xpose.msra.mxu0 0.0
        %1454 = vmatprep.subr.mxu0 0.0
        %1455 = vmatpush1.xpose.msra.mxu0 0.0
        %1456 = vmatprep.subr.mxu0 0.0
        %1457 = vmatpush1.xpose.msra.mxu0 0.0
        %1458 = vmatprep.subr.mxu0 0.0
        %1459 = vmatpush1.xpose.msra.mxu0 0.0
        %1460 = vmatprep.subr.mxu0 0.0
        %1461 = vmatpush1.xpose.msra.mxu0 0.0
        %1462 = vmatprep.subr.mxu0 0.0
        %1463 = vmatpush1.xpose.msra.mxu0 0.0
        %1464 = vmatprep.subr.mxu0 0.0
        %1465 = vmatpush1.xpose.msra.mxu0 0.0
        %1466 = vmatprep.subr.mxu0 0.0
        %1467 = vmatpush1.xpose.msra.mxu0 0.0
        %1468 = vmatprep.subr.mxu0 0.0
        %1469 = vmatpush1.xpose.msra.mxu0 0.0
        %1470 = vmatprep.subr.mxu0 0.0
        %1471 = vmatpush1.xpose.msra.mxu0 0.0
        %1472 = vmatprep.subr.mxu0 0.0
        %1473 = vmatpush1.xpose.msra.mxu0 0.0
        %1474 = vmatprep.subr.mxu0 0.0
        %1475 = vmatpush1.xpose.msra.mxu0 0.0
        %1476 = vmatprep.subr.mxu0 0.0
        %1477 = vmatpush1.xpose.msra.mxu0 0.0
        %1478 = vmatprep.subr.mxu0 0.0
        %1479 = vmatpush1.xpose.msra.mxu0 0.0
        %1480 = vmatprep.mubr.f32.mxu0 0.0
        %1481 = vmatmul.mubr.f32.gmra.mrb[0].mxu0 %v1408
        %v1482 = vpop.f32.mrb[0].mxu0
        %v1483 = vadd.f32 0.0, %v1482
        %v1484 = vpop.f32.mrb[0].mxu0
        %1485 = vmatprep.mubr.f32.mxu0 0.0
        %1486 = vmatmul.mubr.f32.gmra.mrb[0].mxu0 %v1410
        %v1487 = vpop.f32.mrb[0].mxu0
        %v1488 = vadd.f32 0.0, %v1487
        %v1489 = vpop.f32.mrb[0].mxu0
        %1490 = vdwg.mxu0
        %v1491 = vmul.f32 %v1483, 0.35355338
        %v1492 = vmul.f32 %v1488, 0.35355338
        %v1493 = vsel %vm1136, %v1491, -inf
        %1494 = vmax.xlane.f32.xlu0 %v1493
        %v1495 = vpop.xlane.xlu0 %1494
        %v1496 = vsel %vm1136, %v1492, -inf
        %1497 = vmax.xlane.f32.xlu0 %v1496
        %v1498 = vpop.xlane.xlu0 %1497
        %v1499 = vsub.f32 %v1491, %v1495
        %v1500 = vsub.f32 %v1492, %v1498
        %v1501 = vmul.f32 %v1499, 1.442695
        %v1502 = vpow.pop %v1501
        %v1503 = vmul.f32 %v1500, 1.442695
        %v1504 = vpow.pop %v1503
        %v1505 = vsel %vm1136, %v1502, 0.0
        %1506 = vadd.xlane.f32.xlu0 %v1505
        %v1507 = vpop.xlane.xlu0 %1506
        %v1508 = vsel %vm1136, %v1504, 0.0
        %1509 = vadd.xlane.f32.xlu0 %v1508
        %v1510 = vpop.xlane.xlu0 %1509
        %v1511 = vrcp.pop %v1507
        %v1512 = vrcp.pop %v1510
        %v1513 = vmul.f32 %v1502, %v1511
        %v1514 = vmul.f32 %v1504, %v1512
        %1515 = vrot.lane.b32.xlu0 %v1034, 56
        %v1516 = vpop.permute.xlu0 %1515
        %1517 = vrot.lane.b32.xlu0 %v1039, 56
        %v1518 = vpop.permute.xlu0 %1517
        %v1522 = vsel %vm1136, %v1513, 0
        %v1525 = vsel %vm1136, %v1514, 0
        %1527 = vmatprep.subr.mxu0 0.0
        %1528 = vmatpush1.msra.mxu0 %v1516
        %1529 = vmatprep.subr.mxu0 0.0
        %1530 = vmatpush1.msra.mxu0 %v1518
        %1531 = vmatprep.subr.mxu0 0.0
        %1532 = vmatpush1.msra.mxu0 0.0
        %1533 = vmatprep.subr.mxu0 0.0
        %1534 = vmatpush1.msra.mxu0 0.0
        %1535 = vmatprep.subr.mxu0 0.0
        %1536 = vmatpush1.msra.mxu0 0.0
        %1537 = vmatprep.subr.mxu0 0.0
        %1538 = vmatpush1.msra.mxu0 0.0
        %1539 = vmatprep.subr.mxu0 0.0
        %1540 = vmatpush1.msra.mxu0 0.0
        %1541 = vmatprep.subr.mxu0 0.0
        %1542 = vmatpush1.msra.mxu0 0.0
        %1543 = vmatprep.subr.mxu0 0.0
        %1544 = vmatpush1.msra.mxu0 0.0
        %1545 = vmatprep.subr.mxu0 0.0
        %1546 = vmatpush1.msra.mxu0 0.0
        %1547 = vmatprep.subr.mxu0 0.0
        %1548 = vmatpush1.msra.mxu0 0.0
        %1549 = vmatprep.subr.mxu0 0.0
        %1550 = vmatpush1.msra.mxu0 0.0
        %1551 = vmatprep.subr.mxu0 0.0
        %1552 = vmatpush1.msra.mxu0 0.0
        %1553 = vmatprep.subr.mxu0 0.0
        %1554 = vmatpush1.msra.mxu0 0.0
        %1555 = vmatprep.subr.mxu0 0.0
        %1556 = vmatpush1.msra.mxu0 0.0
        %1557 = vmatprep.subr.mxu0 0.0
        %1558 = vmatpush1.msra.mxu0 0.0
        %1559 = vmatprep.subr.mxu0 0.0
        %1560 = vmatpush1.msra.mxu0 0.0
        %1561 = vmatprep.subr.mxu0 0.0
        %1562 = vmatpush1.msra.mxu0 0.0
        %1563 = vmatprep.subr.mxu0 0.0
        %1564 = vmatpush1.msra.mxu0 0.0
        %1565 = vmatprep.subr.mxu0 0.0
        %1566 = vmatpush1.msra.mxu0 0.0
        %1567 = vmatprep.subr.mxu0 0.0
        %1568 = vmatpush1.msra.mxu0 0.0
        %1569 = vmatprep.subr.mxu0 0.0
        %1570 = vmatpush1.msra.mxu0 0.0
        %1571 = vmatprep.subr.mxu0 0.0
        %1572 = vmatpush1.msra.mxu0 0.0
        %1573 = vmatprep.subr.mxu0 0.0
        %1574 = vmatpush1.msra.mxu0 0.0
        %1575 = vmatprep.subr.mxu0 0.0
        %1576 = vmatpush1.msra.mxu0 0.0
        %1577 = vmatprep.subr.mxu0 0.0
        %1578 = vmatpush1.msra.mxu0 0.0
        %1579 = vmatprep.subr.mxu0 0.0
        %1580 = vmatpush1.msra.mxu0 0.0
        %1581 = vmatprep.subr.mxu0 0.0
        %1582 = vmatpush1.msra.mxu0 0.0
        %1583 = vmatprep.subr.mxu0 0.0
        %1584 = vmatpush1.msra.mxu0 0.0
        %1585 = vmatprep.subr.mxu0 0.0
        %1586 = vmatpush1.msra.mxu0 0.0
        %1587 = vmatprep.subr.mxu0 0.0
        %1588 = vmatpush1.msra.mxu0 0.0
        %1589 = vmatprep.subr.mxu0 0.0
        %1590 = vmatpush1.msra.mxu0 0.0
        %1591 = vmatprep.mubr.f32.mxu0 0.0
        %1592 = vmatmul.mubr.f32.gmra.mrb[0].mxu0 %v1522
        %v1593 = vpop.f32.mrb[0].mxu0
        %v1594 = vadd.f32 0.0, %v1593
        %v1595 = vpop.f32.mrb[0].mxu0
        %1596 = vmatprep.mubr.f32.mxu0 0.0
        %1597 = vmatmul.mubr.f32.gmra.mrb[0].mxu0 %v1525
        %v1598 = vpop.f32.mrb[0].mxu0
        %v1599 = vadd.f32 0.0, %v1598
        %v1600 = vpop.f32.mrb[0].mxu0
        %1601 = vdwg.mxu0
        %vm1602 = vcmask 654912
        %v1603 = vsel %vm1602, %v1034, 0.0
        %v1604 = vsel %vm1602, %v1039, 0.0
        %v1605 = vadd.f32 %v1603, %v1604
        %v1606 = vrot.slane %v1605, 4
        %v1607 = vadd.f32 %v1605, %v1606
        %v1608 = vrot.slane %v1607, 2
        %v1609 = vadd.f32 %v1607, %v1608
        %v1610 = vrot.slane %v1609, 1
        %v1611 = vadd.f32 %v1609, %v1610
        %v1612 = vmul.f32 %v1611, %v1256
        %v1613 = vsel %vm1042, %v1483, -1e+30
        %v1614 = vsel %vm1043, %v1488, -1e+30
        %v1615 = vsel %vm1136, %v1613, -inf
        %1616 = vmax.xlane.f32.xlu0 %v1615
        %v1617 = vpop.xlane.xlu0 %1616
        %v1618 = vsel %vm1136, %v1614, -inf
        %1619 = vmax.xlane.f32.xlu0 %v1618
        %v1620 = vpop.xlane.xlu0 %1619
        %v1621 = vmul.f32 %v1483, %v954
        %v1622 = vmul.f32 %v1488, %v955
        %v1623 = vsel %vm1136, %v1621, 0.0
        %1624 = vadd.xlane.f32.xlu0 %v1623
        %v1625 = vpop.xlane.xlu0 %1624
        %v1626 = vsel %vm1136, %v1622, 0.0
        %1627 = vadd.xlane.f32.xlu0 %v1626
        %v1628 = vpop.xlane.xlu0 %1627
        %v1629 = vmul.f32 %v1625, %v1256
        %v1630 = vmul.f32 %v1628, %v1256
        %v1631 = vsub.f32 %v1617, %v1629
        %v1632 = vsub.f32 %v1620, %v1630
        %v1634 = vsel %vm1278, %v1631, 0
        %v1637 = vsel %vm1278, %v1632, 0
        %1639 = vmatprep.subr.mxu0 0.0
        %1640 = vmatpush1.xpose.msra.mxu0 %v1634
        %1641 = vmatprep.subr.mxu0 0.0
        %1642 = vmatpush1.xpose.msra.mxu0 %v1637
        %1643 = vmatprep.subr.mxu0 0.0
        %1644 = vmatpush1.xpose.msra.mxu0 0.0
        %1645 = vmatprep.subr.mxu0 0.0
        %1646 = vmatpush1.xpose.msra.mxu0 0.0
        %1647 = vmatprep.subr.mxu0 0.0
        %1648 = vmatpush1.xpose.msra.mxu0 0.0
        %1649 = vmatprep.subr.mxu0 0.0
        %1650 = vmatpush1.xpose.msra.mxu0 0.0
        %1651 = vmatprep.subr.mxu0 0.0
        %1652 = vmatpush1.xpose.msra.mxu0 0.0
        %1653 = vmatprep.subr.mxu0 0.0
        %1654 = vmatpush1.xpose.msra.mxu0 0.0
        %1655 = vmatprep.subr.mxu0 0.0
        %1656 = vmatpush1.xpose.msra.mxu0 0.0
        %1657 = vmatprep.subr.mxu0 0.0
        %1658 = vmatpush1.xpose.msra.mxu0 0.0
        %1659 = vmatprep.subr.mxu0 0.0
        %1660 = vmatpush1.xpose.msra.mxu0 0.0
        %1661 = vmatprep.subr.mxu0 0.0
        %1662 = vmatpush1.xpose.msra.mxu0 0.0
        %1663 = vmatprep.subr.mxu0 0.0
        %1664 = vmatpush1.xpose.msra.mxu0 0.0
        %1665 = vmatprep.subr.mxu0 0.0
        %1666 = vmatpush1.xpose.msra.mxu0 0.0
        %1667 = vmatprep.subr.mxu0 0.0
        %1668 = vmatpush1.xpose.msra.mxu0 0.0
        %1669 = vmatprep.subr.mxu0 0.0
        %1670 = vmatpush1.xpose.msra.mxu0 0.0
        %1671 = vmatprep.subr.mxu0 0.0
        %1672 = vmatpush1.xpose.msra.mxu0 0.0
        %1673 = vmatprep.subr.mxu0 0.0
        %1674 = vmatpush1.xpose.msra.mxu0 0.0
        %1675 = vmatprep.subr.mxu0 0.0
        %1676 = vmatpush1.xpose.msra.mxu0 0.0
        %1677 = vmatprep.subr.mxu0 0.0
        %1678 = vmatpush1.xpose.msra.mxu0 0.0
        %1679 = vmatprep.subr.mxu0 0.0
        %1680 = vmatpush1.xpose.msra.mxu0 0.0
        %1681 = vmatprep.subr.mxu0 0.0
        %1682 = vmatpush1.xpose.msra.mxu0 0.0
        %1683 = vmatprep.subr.mxu0 0.0
        %1684 = vmatpush1.xpose.msra.mxu0 0.0
        %1685 = vmatprep.subr.mxu0 0.0
        %1686 = vmatpush1.xpose.msra.mxu0 0.0
        %1687 = vmatprep.subr.mxu0 0.0
        %1688 = vmatpush1.xpose.msra.mxu0 0.0
        %1689 = vmatprep.subr.mxu0 0.0
        %1690 = vmatpush1.xpose.msra.mxu0 0.0
        %1691 = vmatprep.subr.mxu0 0.0
        %1692 = vmatpush1.xpose.msra.mxu0 0.0
        %1693 = vmatprep.subr.mxu0 0.0
        %1694 = vmatpush1.xpose.msra.mxu0 0.0
        %1695 = vmatprep.subr.mxu0 0.0
        %1696 = vmatpush1.xpose.msra.mxu0 0.0
        %1697 = vmatprep.subr.mxu0 0.0
        %1698 = vmatpush1.xpose.msra.mxu0 0.0
        %1699 = vmatprep.subr.mxu0 0.0
        %1700 = vmatpush1.xpose.msra.mxu0 0.0
        %1701 = vmatprep.subr.mxu0 0.0
        %1702 = vmatpush1.xpose.msra.mxu0 0.0
        %1703 = vmatprep.mubr.f32.mxu0 0.0
        %1704 = vmatmul.mubr.f32.gmra.mrb[0].mxu0 %v1280
        %v1705 = vpop.f32.mrb[0].mxu0
        %v1706 = vadd.f32 0.0, %v1705
        %v1707 = vpop.f32.mrb[0].mxu0
        %1708 = vmatprep.mubr.f32.mxu0 0.0
        %1709 = vmatmul.mubr.f32.gmra.mrb[0].mxu0 %v1280
        %v1710 = vpop.f32.mrb[0].mxu0
        %v1711 = vadd.f32 0.0, %v1710
        %v1712 = vpop.f32.mrb[0].mxu0
        %1713 = vdwg.mxu0
        %vm1714 = vcmp.gt.f32.partialorder %v1706, %v1631
        %vm1715 = vcmp.gt.f32.partialorder %v1711, %v1632
        %vm1716 = vcmp.eq.f32.partialorder %v1706, %v1631
        %vm1717 = vcmp.eq.f32.partialorder %v1711, %v1632
        %vm1718 = vmand %vm1716, %vm1372
        %vm1719 = vmand %vm1717, %vm1373
        %vm1720 = vmor %vm1714, %vm1718
        %vm1721 = vmor %vm1715, %vm1719
        %v1722 = vsel %vm1720, 1, 0
        %v1723 = vsel %vm1721, 1, 0
        %v1724 = vcvt.s32.f32 %v1722
        %v1725 = vcvt.s32.f32 %v1723
        %v1726 = vsel %vm1136, %v1724, 0.0
        %1727 = vadd.xlane.f32.xlu0 %v1726
        %v1728 = vpop.xlane.xlu0 %1727
        %v1729 = vsel %vm1136, %v1725, 0.0
        %1730 = vadd.xlane.f32.xlu0 %v1729
        %v1731 = vpop.xlane.xlu0 %1730
        %vm1732 = vcmp.lt.f32.partialorder %v1728, 15.0
        %vm1733 = vcmp.lt.f32.partialorder %v1731, 15.0
        %v1734 = vsel %vm1732, 1, 0
        %v1735 = vsel %vm1733, 1, 0
        %vm1736 = vcmp.eq.s32.totalorder %v1734, 1
        %vm1737 = vcmp.eq.s32.totalorder %v1735, 1
        %1739 = vrot.lane.b32.xlu0 %v1612, 56
        %v1740 = vpop.permute.xlu0 %1739
        %v1742 = vsel %vm1736, %v1594, %v1740
        %v1743 = vsel %vm1737, %v1599, %v1740
        %1744 = vrot.lane.b32.xlu0 %v1034, 112
        %v1745 = vpop.permute.xlu0 %1744
        %1746 = vrot.lane.b32.xlu0 %v1039, 112
        %v1747 = vpop.permute.xlu0 %1746
        %1748 = vrot.lane.b32.xlu0 %v1034, 80
        %v1749 = vpop.permute.xlu0 %1748
        %1750 = vrot.lane.b32.xlu0 %v1039, 80
        %v1751 = vpop.permute.xlu0 %1750
        %v1752 = vsel %vm1050, %v1745, 0
        %v1754 = vsel %vm1050, %v1747, 0
        %v1756 = vsel %vm1050, %v1749, 0
        %v1758 = vsel %vm1050, %v1751, 0
        %1760 = vmatprep.subr.mxu0 0.0
        %1761 = vmatpush1.xpose.msra.mxu0 %v1756
        %1762 = vmatprep.subr.mxu0 0.0
        %1763 = vmatpush1.xpose.msra.mxu0 %v1758
        %1764 = vmatprep.subr.mxu0 0.0
        %1765 = vmatpush1.xpose.msra.mxu0 0.0
        %1766 = vmatprep.subr.mxu0 0.0
        %1767 = vmatpush1.xpose.msra.mxu0 0.0
        %1768 = vmatprep.subr.mxu0 0.0
        %1769 = vmatpush1.xpose.msra.mxu0 0.0
        %1770 = vmatprep.subr.mxu0 0.0
        %1771 = vmatpush1.xpose.msra.mxu0 0.0
        %1772 = vmatprep.subr.mxu0 0.0
        %1773 = vmatpush1.xpose.msra.mxu0 0.0
        %1774 = vmatprep.subr.mxu0 0.0
        %1775 = vmatpush1.xpose.msra.mxu0 0.0
        %1776 = vmatprep.subr.mxu0 0.0
        %1777 = vmatpush1.xpose.msra.mxu0 0.0
        %1778 = vmatprep.subr.mxu0 0.0
        %1779 = vmatpush1.xpose.msra.mxu0 0.0
        %1780 = vmatprep.subr.mxu0 0.0
        %1781 = vmatpush1.xpose.msra.mxu0 0.0
        %1782 = vmatprep.subr.mxu0 0.0
        %1783 = vmatpush1.xpose.msra.mxu0 0.0
        %1784 = vmatprep.subr.mxu0 0.0
        %1785 = vmatpush1.xpose.msra.mxu0 0.0
        %1786 = vmatprep.subr.mxu0 0.0
        %1787 = vmatpush1.xpose.msra.mxu0 0.0
        %1788 = vmatprep.subr.mxu0 0.0
        %1789 = vmatpush1.xpose.msra.mxu0 0.0
        %1790 = vmatprep.subr.mxu0 0.0
        %1791 = vmatpush1.xpose.msra.mxu0 0.0
        %1792 = vmatprep.subr.mxu0 0.0
        %1793 = vmatpush1.xpose.msra.mxu0 0.0
        %1794 = vmatprep.subr.mxu0 0.0
        %1795 = vmatpush1.xpose.msra.mxu0 0.0
        %1796 = vmatprep.subr.mxu0 0.0
        %1797 = vmatpush1.xpose.msra.mxu0 0.0
        %1798 = vmatprep.subr.mxu0 0.0
        %1799 = vmatpush1.xpose.msra.mxu0 0.0
        %1800 = vmatprep.subr.mxu0 0.0
        %1801 = vmatpush1.xpose.msra.mxu0 0.0
        %1802 = vmatprep.subr.mxu0 0.0
        %1803 = vmatpush1.xpose.msra.mxu0 0.0
        %1804 = vmatprep.subr.mxu0 0.0
        %1805 = vmatpush1.xpose.msra.mxu0 0.0
        %1806 = vmatprep.subr.mxu0 0.0
        %1807 = vmatpush1.xpose.msra.mxu0 0.0
        %1808 = vmatprep.subr.mxu0 0.0
        %1809 = vmatpush1.xpose.msra.mxu0 0.0
        %1810 = vmatprep.subr.mxu0 0.0
        %1811 = vmatpush1.xpose.msra.mxu0 0.0
        %1812 = vmatprep.subr.mxu0 0.0
        %1813 = vmatpush1.xpose.msra.mxu0 0.0
        %1814 = vmatprep.subr.mxu0 0.0
        %1815 = vmatpush1.xpose.msra.mxu0 0.0
        %1816 = vmatprep.subr.mxu0 0.0
        %1817 = vmatpush1.xpose.msra.mxu0 0.0
        %1818 = vmatprep.subr.mxu0 0.0
        %1819 = vmatpush1.xpose.msra.mxu0 0.0
        %1820 = vmatprep.subr.mxu0 0.0
        %1821 = vmatpush1.xpose.msra.mxu0 0.0
        %1822 = vmatprep.subr.mxu0 0.0
        %1823 = vmatpush1.xpose.msra.mxu0 0.0
        %1824 = vmatprep.mubr.f32.mxu0 0.0
        %1825 = vmatmul.mubr.f32.gmra.mrb[0].mxu0 %v1752
        %v1826 = vpop.f32.mrb[0].mxu0
        %v1827 = vadd.f32 0.0, %v1826
        %v1828 = vpop.f32.mrb[0].mxu0
        %1829 = vmatprep.mubr.f32.mxu0 0.0
        %1830 = vmatmul.mubr.f32.gmra.mrb[0].mxu0 %v1754
        %v1831 = vpop.f32.mrb[0].mxu0
        %v1832 = vadd.f32 0.0, %v1831
        %v1833 = vpop.f32.mrb[0].mxu0
        %1834 = vdwg.mxu0
        %v1835 = vmul.f32 %v1827, 0.35355338
        %v1836 = vmul.f32 %v1832, 0.35355338
        %v1837 = vsel %vm1136, %v1835, -inf
        %1838 = vmax.xlane.f32.xlu0 %v1837
        %v1839 = vpop.xlane.xlu0 %1838
        %v1840 = vsel %vm1136, %v1836, -inf
        %1841 = vmax.xlane.f32.xlu0 %v1840
        %v1842 = vpop.xlane.xlu0 %1841
        %v1843 = vsub.f32 %v1835, %v1839
        %v1844 = vsub.f32 %v1836, %v1842
        %v1845 = vmul.f32 %v1843, 1.442695
        %v1846 = vpow.pop %v1845
        %v1847 = vmul.f32 %v1844, 1.442695
        %v1848 = vpow.pop %v1847
        %v1849 = vsel %vm1136, %v1846, 0.0
        %1850 = vadd.xlane.f32.xlu0 %v1849
        %v1851 = vpop.xlane.xlu0 %1850
        %v1852 = vsel %vm1136, %v1848, 0.0
        %1853 = vadd.xlane.f32.xlu0 %v1852
        %v1854 = vpop.xlane.xlu0 %1853
        %v1855 = vrcp.pop %v1851
        %v1856 = vrcp.pop %v1854
        %v1857 = vmul.f32 %v1846, %v1855
        %v1858 = vmul.f32 %v1848, %v1856
        %1859 = vrot.lane.b32.xlu0 %v1034, 48
        %v1860 = vpop.permute.xlu0 %1859
        %1861 = vrot.lane.b32.xlu0 %v1039, 48
        %v1862 = vpop.permute.xlu0 %1861
        %v1866 = vsel %vm1136, %v1857, 0
        %v1869 = vsel %vm1136, %v1858, 0
        %1871 = vmatprep.subr.mxu0 0.0
        %1872 = vmatpush1.msra.mxu0 %v1860
        %1873 = vmatprep.subr.mxu0 0.0
        %1874 = vmatpush1.msra.mxu0 %v1862
        %1875 = vmatprep.subr.mxu0 0.0
        %1876 = vmatpush1.msra.mxu0 0.0
        %1877 = vmatprep.subr.mxu0 0.0
        %1878 = vmatpush1.msra.mxu0 0.0
        %1879 = vmatprep.subr.mxu0 0.0
        %1880 = vmatpush1.msra.mxu0 0.0
        %1881 = vmatprep.subr.mxu0 0.0
        %1882 = vmatpush1.msra.mxu0 0.0
        %1883 = vmatprep.subr.mxu0 0.0
        %1884 = vmatpush1.msra.mxu0 0.0
        %1885 = vmatprep.subr.mxu0 0.0
        %1886 = vmatpush1.msra.mxu0 0.0
        %1887 = vmatprep.subr.mxu0 0.0
        %1888 = vmatpush1.msra.mxu0 0.0
        %1889 = vmatprep.subr.mxu0 0.0
        %1890 = vmatpush1.msra.mxu0 0.0
        %1891 = vmatprep.subr.mxu0 0.0
        %1892 = vmatpush1.msra.mxu0 0.0
        %1893 = vmatprep.subr.mxu0 0.0
        %1894 = vmatpush1.msra.mxu0 0.0
        %1895 = vmatprep.subr.mxu0 0.0
        %1896 = vmatpush1.msra.mxu0 0.0
        %1897 = vmatprep.subr.mxu0 0.0
        %1898 = vmatpush1.msra.mxu0 0.0
        %1899 = vmatprep.subr.mxu0 0.0
        %1900 = vmatpush1.msra.mxu0 0.0
        %1901 = vmatprep.subr.mxu0 0.0
        %1902 = vmatpush1.msra.mxu0 0.0
        %1903 = vmatprep.subr.mxu0 0.0
        %1904 = vmatpush1.msra.mxu0 0.0
        %1905 = vmatprep.subr.mxu0 0.0
        %1906 = vmatpush1.msra.mxu0 0.0
        %1907 = vmatprep.subr.mxu0 0.0
        %1908 = vmatpush1.msra.mxu0 0.0
        %1909 = vmatprep.subr.mxu0 0.0
        %1910 = vmatpush1.msra.mxu0 0.0
        %1911 = vmatprep.subr.mxu0 0.0
        %1912 = vmatpush1.msra.mxu0 0.0
        %1913 = vmatprep.subr.mxu0 0.0
        %1914 = vmatpush1.msra.mxu0 0.0
        %1915 = vmatprep.subr.mxu0 0.0
        %1916 = vmatpush1.msra.mxu0 0.0
        %1917 = vmatprep.subr.mxu0 0.0
        %1918 = vmatpush1.msra.mxu0 0.0
        %1919 = vmatprep.subr.mxu0 0.0
        %1920 = vmatpush1.msra.mxu0 0.0
        %1921 = vmatprep.subr.mxu0 0.0
        %1922 = vmatpush1.msra.mxu0 0.0
        %1923 = vmatprep.subr.mxu0 0.0
        %1924 = vmatpush1.msra.mxu0 0.0
        %1925 = vmatprep.subr.mxu0 0.0
        %1926 = vmatpush1.msra.mxu0 0.0
        %1927 = vmatprep.subr.mxu0 0.0
        %1928 = vmatpush1.msra.mxu0 0.0
        %1929 = vmatprep.subr.mxu0 0.0
        %1930 = vmatpush1.msra.mxu0 0.0
        %1931 = vmatprep.subr.mxu0 0.0
        %1932 = vmatpush1.msra.mxu0 0.0
        %1933 = vmatprep.subr.mxu0 0.0
        %1934 = vmatpush1.msra.mxu0 0.0
        %1935 = vmatprep.mubr.f32.mxu0 0.0
        %1936 = vmatmul.mubr.f32.gmra.mrb[0].mxu0 %v1866
        %v1937 = vpop.f32.mrb[0].mxu0
        %v1938 = vadd.f32 0.0, %v1937
        %v1939 = vpop.f32.mrb[0].mxu0
        %1940 = vmatprep.mubr.f32.mxu0 0.0
        %1941 = vmatmul.mubr.f32.gmra.mrb[0].mxu0 %v1869
        %v1942 = vpop.f32.mrb[0].mxu0
        %v1943 = vadd.f32 0.0, %v1942
        %v1944 = vpop.f32.mrb[0].mxu0
        %1945 = vdwg.mxu0
        %vm1946 = vcmask 720512
        %v1947 = vsel %vm1946, %v1034, 0.0
        %v1948 = vsel %vm1946, %v1039, 0.0
        %v1949 = vadd.f32 %v1947, %v1948
        %v1950 = vrot.slane %v1949, 4
        %v1951 = vadd.f32 %v1949, %v1950
        %v1952 = vrot.slane %v1951, 2
        %v1953 = vadd.f32 %v1951, %v1952
        %v1954 = vrot.slane %v1953, 1
        %v1955 = vadd.f32 %v1953, %v1954
        %v1956 = vmul.f32 %v1955, %v1256
        %v1957 = vsel %vm1042, %v1827, -1e+30
        %v1958 = vsel %vm1043, %v1832, -1e+30
        %v1959 = vsel %vm1136, %v1957, -inf
        %1960 = vmax.xlane.f32.xlu0 %v1959
        %v1961 = vpop.xlane.xlu0 %1960
        %v1962 = vsel %vm1136, %v1958, -inf
        %1963 = vmax.xlane.f32.xlu0 %v1962
        %v1964 = vpop.xlane.xlu0 %1963
        %v1965 = vmul.f32 %v1827, %v954
        %v1966 = vmul.f32 %v1832, %v955
        %v1967 = vsel %vm1136, %v1965, 0.0
        %1968 = vadd.xlane.f32.xlu0 %v1967
        %v1969 = vpop.xlane.xlu0 %1968
        %v1970 = vsel %vm1136, %v1966, 0.0
        %1971 = vadd.xlane.f32.xlu0 %v1970
        %v1972 = vpop.xlane.xlu0 %1971
        %v1973 = vmul.f32 %v1969, %v1256
        %v1974 = vmul.f32 %v1972, %v1256
        %v1975 = vsub.f32 %v1961, %v1973
        %v1976 = vsub.f32 %v1964, %v1974
        %v1978 = vsel %vm1278, %v1975, 0
        %v1981 = vsel %vm1278, %v1976, 0
        %1983 = vmatprep.subr.mxu0 0.0
        %1984 = vmatpush1.xpose.msra.mxu0 %v1978
        %1985 = vmatprep.subr.mxu0 0.0
        %1986 = vmatpush1.xpose.msra.mxu0 %v1981
        %1987 = vmatprep.subr.mxu0 0.0
        %1988 = vmatpush1.xpose.msra.mxu0 0.0
        %1989 = vmatprep.subr.mxu0 0.0
        %1990 = vmatpush1.xpose.msra.mxu0 0.0
        %1991 = vmatprep.subr.mxu0 0.0
        %1992 = vmatpush1.xpose.msra.mxu0 0.0
        %1993 = vmatprep.subr.mxu0 0.0
        %1994 = vmatpush1.xpose.msra.mxu0 0.0
        %1995 = vmatprep.subr.mxu0 0.0
        %1996 = vmatpush1.xpose.msra.mxu0 0.0
        %1997 = vmatprep.subr.mxu0 0.0
        %1998 = vmatpush1.xpose.msra.mxu0 0.0
        %1999 = vmatprep.subr.mxu0 0.0
        %2000 = vmatpush1.xpose.msra.mxu0 0.0
        %2001 = vmatprep.subr.mxu0 0.0
        %2002 = vmatpush1.xpose.msra.mxu0 0.0
        %2003 = vmatprep.subr.mxu0 0.0
        %2004 = vmatpush1.xpose.msra.mxu0 0.0
        %2005 = vmatprep.subr.mxu0 0.0
        %2006 = vmatpush1.xpose.msra.mxu0 0.0
        %2007 = vmatprep.subr.mxu0 0.0
        %2008 = vmatpush1.xpose.msra.mxu0 0.0
        %2009 = vmatprep.subr.mxu0 0.0
        %2010 = vmatpush1.xpose.msra.mxu0 0.0
        %2011 = vmatprep.subr.mxu0 0.0
        %2012 = vmatpush1.xpose.msra.mxu0 0.0
        %2013 = vmatprep.subr.mxu0 0.0
        %2014 = vmatpush1.xpose.msra.mxu0 0.0
        %2015 = vmatprep.subr.mxu0 0.0
        %2016 = vmatpush1.xpose.msra.mxu0 0.0
        %2017 = vmatprep.subr.mxu0 0.0
        %2018 = vmatpush1.xpose.msra.mxu0 0.0
        %2019 = vmatprep.subr.mxu0 0.0
        %2020 = vmatpush1.xpose.msra.mxu0 0.0
        %2021 = vmatprep.subr.mxu0 0.0
        %2022 = vmatpush1.xpose.msra.mxu0 0.0
        %2023 = vmatprep.subr.mxu0 0.0
        %2024 = vmatpush1.xpose.msra.mxu0 0.0
        %2025 = vmatprep.subr.mxu0 0.0
        %2026 = vmatpush1.xpose.msra.mxu0 0.0
        %2027 = vmatprep.subr.mxu0 0.0
        %2028 = vmatpush1.xpose.msra.mxu0 0.0
        %2029 = vmatprep.subr.mxu0 0.0
        %2030 = vmatpush1.xpose.msra.mxu0 0.0
        %2031 = vmatprep.subr.mxu0 0.0
        %2032 = vmatpush1.xpose.msra.mxu0 0.0
        %2033 = vmatprep.subr.mxu0 0.0
        %2034 = vmatpush1.xpose.msra.mxu0 0.0
        %2035 = vmatprep.subr.mxu0 0.0
        %2036 = vmatpush1.xpose.msra.mxu0 0.0
        %2037 = vmatprep.subr.mxu0 0.0
        %2038 = vmatpush1.xpose.msra.mxu0 0.0
        %2039 = vmatprep.subr.mxu0 0.0
        %2040 = vmatpush1.xpose.msra.mxu0 0.0
        %2041 = vmatprep.subr.mxu0 0.0
        %2042 = vmatpush1.xpose.msra.mxu0 0.0
        %2043 = vmatprep.subr.mxu0 0.0
        %2044 = vmatpush1.xpose.msra.mxu0 0.0
        %2045 = vmatprep.subr.mxu0 0.0
        %2046 = vmatpush1.xpose.msra.mxu0 0.0
        %2047 = vmatprep.mubr.f32.mxu0 0.0
        %2048 = vmatmul.mubr.f32.gmra.mrb[0].mxu0 %v1280
        %v2049 = vpop.f32.mrb[0].mxu0
        %v2050 = vadd.f32 0.0, %v2049
        %v2051 = vpop.f32.mrb[0].mxu0
        %2052 = vmatprep.mubr.f32.mxu0 0.0
        %2053 = vmatmul.mubr.f32.gmra.mrb[0].mxu0 %v1280
        %v2054 = vpop.f32.mrb[0].mxu0
        %v2055 = vadd.f32 0.0, %v2054
        %v2056 = vpop.f32.mrb[0].mxu0
        %2057 = vdwg.mxu0
        %vm2058 = vcmp.gt.f32.partialorder %v2050, %v1975
        %vm2059 = vcmp.gt.f32.partialorder %v2055, %v1976
        %vm2060 = vcmp.eq.f32.partialorder %v2050, %v1975
        %vm2061 = vcmp.eq.f32.partialorder %v2055, %v1976
        %vm2062 = vmand %vm2060, %vm1372
        %vm2063 = vmand %vm2061, %vm1373
        %vm2064 = vmor %vm2058, %vm2062
        %vm2065 = vmor %vm2059, %vm2063
        %v2066 = vsel %vm2064, 1, 0
        %v2067 = vsel %vm2065, 1, 0
        %v2068 = vcvt.s32.f32 %v2066
        %v2069 = vcvt.s32.f32 %v2067
        %v2070 = vsel %vm1136, %v2068, 0.0
        %2071 = vadd.xlane.f32.xlu0 %v2070
        %v2072 = vpop.xlane.xlu0 %2071
        %v2073 = vsel %vm1136, %v2069, 0.0
        %2074 = vadd.xlane.f32.xlu0 %v2073
        %v2075 = vpop.xlane.xlu0 %2074
        %vm2076 = vcmp.lt.f32.partialorder %v2072, 15.0
        %vm2077 = vcmp.lt.f32.partialorder %v2075, 15.0
        %v2078 = vsel %vm2076, 1, 0
        %v2079 = vsel %vm2077, 1, 0
        %vm2080 = vcmp.eq.s32.totalorder %v2078, 1
        %vm2081 = vcmp.eq.s32.totalorder %v2079, 1
        %2083 = vrot.lane.b32.xlu0 %v1956, 48
        %v2084 = vpop.permute.xlu0 %2083
        %v2086 = vsel %vm2080, %v1938, %v2084
        %v2087 = vsel %vm2081, %v1943, %v2084
        %2088 = vrot.lane.b32.xlu0 %v1034, 104
        %v2089 = vpop.permute.xlu0 %2088
        %2090 = vrot.lane.b32.xlu0 %v1039, 104
        %v2091 = vpop.permute.xlu0 %2090
        %2092 = vrot.lane.b32.xlu0 %v1034, 72
        %v2093 = vpop.permute.xlu0 %2092
        %2094 = vrot.lane.b32.xlu0 %v1039, 72
        %v2095 = vpop.permute.xlu0 %2094
        %v2096 = vsel %vm1050, %v2089, 0
        %v2098 = vsel %vm1050, %v2091, 0
        %v2100 = vsel %vm1050, %v2093, 0
        %v2102 = vsel %vm1050, %v2095, 0
        %2104 = vmatprep.subr.mxu0 0.0
        %2105 = vmatpush1.xpose.msra.mxu0 %v2100
        %2106 = vmatprep.subr.mxu0 0.0
        %2107 = vmatpush1.xpose.msra.mxu0 %v2102
        %2108 = vmatprep.subr.mxu0 0.0
        %2109 = vmatpush1.xpose.msra.mxu0 0.0
        %2110 = vmatprep.subr.mxu0 0.0
        %2111 = vmatpush1.xpose.msra.mxu0 0.0
        %2112 = vmatprep.subr.mxu0 0.0
        %2113 = vmatpush1.xpose.msra.mxu0 0.0
        %2114 = vmatprep.subr.mxu0 0.0
        %2115 = vmatpush1.xpose.msra.mxu0 0.0
        %2116 = vmatprep.subr.mxu0 0.0
        %2117 = vmatpush1.xpose.msra.mxu0 0.0
        %2118 = vmatprep.subr.mxu0 0.0
        %2119 = vmatpush1.xpose.msra.mxu0 0.0
        %2120 = vmatprep.subr.mxu0 0.0
        %2121 = vmatpush1.xpose.msra.mxu0 0.0
        %2122 = vmatprep.subr.mxu0 0.0
        %2123 = vmatpush1.xpose.msra.mxu0 0.0
        %2124 = vmatprep.subr.mxu0 0.0
        %2125 = vmatpush1.xpose.msra.mxu0 0.0
        %2126 = vmatprep.subr.mxu0 0.0
        %2127 = vmatpush1.xpose.msra.mxu0 0.0
        %2128 = vmatprep.subr.mxu0 0.0
        %2129 = vmatpush1.xpose.msra.mxu0 0.0
        %2130 = vmatprep.subr.mxu0 0.0
        %2131 = vmatpush1.xpose.msra.mxu0 0.0
        %2132 = vmatprep.subr.mxu0 0.0
        %2133 = vmatpush1.xpose.msra.mxu0 0.0
        %2134 = vmatprep.subr.mxu0 0.0
        %2135 = vmatpush1.xpose.msra.mxu0 0.0
        %2136 = vmatprep.subr.mxu0 0.0
        %2137 = vmatpush1.xpose.msra.mxu0 0.0
        %2138 = vmatprep.subr.mxu0 0.0
        %2139 = vmatpush1.xpose.msra.mxu0 0.0
        %2140 = vmatprep.subr.mxu0 0.0
        %2141 = vmatpush1.xpose.msra.mxu0 0.0
        %2142 = vmatprep.subr.mxu0 0.0
        %2143 = vmatpush1.xpose.msra.mxu0 0.0
        %2144 = vmatprep.subr.mxu0 0.0
        %2145 = vmatpush1.xpose.msra.mxu0 0.0
        %2146 = vmatprep.subr.mxu0 0.0
        %2147 = vmatpush1.xpose.msra.mxu0 0.0
        %2148 = vmatprep.subr.mxu0 0.0
        %2149 = vmatpush1.xpose.msra.mxu0 0.0
        %2150 = vmatprep.subr.mxu0 0.0
        %2151 = vmatpush1.xpose.msra.mxu0 0.0
        %2152 = vmatprep.subr.mxu0 0.0
        %2153 = vmatpush1.xpose.msra.mxu0 0.0
        %2154 = vmatprep.subr.mxu0 0.0
        %2155 = vmatpush1.xpose.msra.mxu0 0.0
        %2156 = vmatprep.subr.mxu0 0.0
        %2157 = vmatpush1.xpose.msra.mxu0 0.0
        %2158 = vmatprep.subr.mxu0 0.0
        %2159 = vmatpush1.xpose.msra.mxu0 0.0
        %2160 = vmatprep.subr.mxu0 0.0
        %2161 = vmatpush1.xpose.msra.mxu0 0.0
        %2162 = vmatprep.subr.mxu0 0.0
        %2163 = vmatpush1.xpose.msra.mxu0 0.0
        %2164 = vmatprep.subr.mxu0 0.0
        %2165 = vmatpush1.xpose.msra.mxu0 0.0
        %2166 = vmatprep.subr.mxu0 0.0
        %2167 = vmatpush1.xpose.msra.mxu0 0.0
        %2168 = vmatprep.mubr.f32.mxu0 0.0
        %2169 = vmatmul.mubr.f32.gmra.mrb[0].mxu0 %v2096
        %v2170 = vpop.f32.mrb[0].mxu0
        %v2171 = vadd.f32 0.0, %v2170
        %v2172 = vpop.f32.mrb[0].mxu0
        %2173 = vmatprep.mubr.f32.mxu0 0.0
        %2174 = vmatmul.mubr.f32.gmra.mrb[0].mxu0 %v2098
        %v2175 = vpop.f32.mrb[0].mxu0
        %v2176 = vadd.f32 0.0, %v2175
        %v2177 = vpop.f32.mrb[0].mxu0
        %2178 = vdwg.mxu0
        %v2179 = vmul.f32 %v2171, 0.35355338
        %v2180 = vmul.f32 %v2176, 0.35355338
        %v2181 = vsel %vm1136, %v2179, -inf
        %2182 = vmax.xlane.f32.xlu0 %v2181
        %v2183 = vpop.xlane.xlu0 %2182
        %v2184 = vsel %vm1136, %v2180, -inf
        %2185 = vmax.xlane.f32.xlu0 %v2184
        %v2186 = vpop.xlane.xlu0 %2185
        %v2187 = vsub.f32 %v2179, %v2183
        %v2188 = vsub.f32 %v2180, %v2186
        %v2189 = vmul.f32 %v2187, 1.442695
        %v2190 = vpow.pop %v2189
        %v2191 = vmul.f32 %v2188, 1.442695
        %v2192 = vpow.pop %v2191
        %v2193 = vsel %vm1136, %v2190, 0.0
        %2194 = vadd.xlane.f32.xlu0 %v2193
        %v2195 = vpop.xlane.xlu0 %2194
        %v2196 = vsel %vm1136, %v2192, 0.0
        %2197 = vadd.xlane.f32.xlu0 %v2196
        %v2198 = vpop.xlane.xlu0 %2197
        %v2199 = vrcp.pop %v2195
        %v2200 = vrcp.pop %v2198
        %v2201 = vmul.f32 %v2190, %v2199
        %v2202 = vmul.f32 %v2192, %v2200
        %2203 = vrot.lane.b32.xlu0 %v1034, 40
        %v2204 = vpop.permute.xlu0 %2203
        %2205 = vrot.lane.b32.xlu0 %v1039, 40
        %v2206 = vpop.permute.xlu0 %2205
        %v2210 = vsel %vm1136, %v2201, 0
        %v2213 = vsel %vm1136, %v2202, 0
        %2215 = vmatprep.subr.mxu0 0.0
        %2216 = vmatpush1.msra.mxu0 %v2204
        %2217 = vmatprep.subr.mxu0 0.0
        %2218 = vmatpush1.msra.mxu0 %v2206
        %2219 = vmatprep.subr.mxu0 0.0
        %2220 = vmatpush1.msra.mxu0 0.0
        %2221 = vmatprep.subr.mxu0 0.0
        %2222 = vmatpush1.msra.mxu0 0.0
        %2223 = vmatprep.subr.mxu0 0.0
        %2224 = vmatpush1.msra.mxu0 0.0
        %2225 = vmatprep.subr.mxu0 0.0
        %2226 = vmatpush1.msra.mxu0 0.0
        %2227 = vmatprep.subr.mxu0 0.0
        %2228 = vmatpush1.msra.mxu0 0.0
        %2229 = vmatprep.subr.mxu0 0.0
        %2230 = vmatpush1.msra.mxu0 0.0
        %2231 = vmatprep.subr.mxu0 0.0
        %2232 = vmatpush1.msra.mxu0 0.0
        %2233 = vmatprep.subr.mxu0 0.0
        %2234 = vmatpush1.msra.mxu0 0.0
        %2235 = vmatprep.subr.mxu0 0.0
        %2236 = vmatpush1.msra.mxu0 0.0
        %2237 = vmatprep.subr.mxu0 0.0
        %2238 = vmatpush1.msra.mxu0 0.0
        %2239 = vmatprep.subr.mxu0 0.0
        %2240 = vmatpush1.msra.mxu0 0.0
        %2241 = vmatprep.subr.mxu0 0.0
        %2242 = vmatpush1.msra.mxu0 0.0
        %2243 = vmatprep.subr.mxu0 0.0
        %2244 = vmatpush1.msra.mxu0 0.0
        %2245 = vmatprep.subr.mxu0 0.0
        %2246 = vmatpush1.msra.mxu0 0.0
        %2247 = vmatprep.subr.mxu0 0.0
        %2248 = vmatpush1.msra.mxu0 0.0
        %2249 = vmatprep.subr.mxu0 0.0
        %2250 = vmatpush1.msra.mxu0 0.0
        %2251 = vmatprep.subr.mxu0 0.0
        %2252 = vmatpush1.msra.mxu0 0.0
        %2253 = vmatprep.subr.mxu0 0.0
        %2254 = vmatpush1.msra.mxu0 0.0
        %2255 = vmatprep.subr.mxu0 0.0
        %2256 = vmatpush1.msra.mxu0 0.0
        %2257 = vmatprep.subr.mxu0 0.0
        %2258 = vmatpush1.msra.mxu0 0.0
        %2259 = vmatprep.subr.mxu0 0.0
        %2260 = vmatpush1.msra.mxu0 0.0
        %2261 = vmatprep.subr.mxu0 0.0
        %2262 = vmatpush1.msra.mxu0 0.0
        %2263 = vmatprep.subr.mxu0 0.0
        %2264 = vmatpush1.msra.mxu0 0.0
        %2265 = vmatprep.subr.mxu0 0.0
        %2266 = vmatpush1.msra.mxu0 0.0
        %2267 = vmatprep.subr.mxu0 0.0
        %2268 = vmatpush1.msra.mxu0 0.0
        %2269 = vmatprep.subr.mxu0 0.0
        %2270 = vmatpush1.msra.mxu0 0.0
        %2271 = vmatprep.subr.mxu0 0.0
        %2272 = vmatpush1.msra.mxu0 0.0
        %2273 = vmatprep.subr.mxu0 0.0
        %2274 = vmatpush1.msra.mxu0 0.0
        %2275 = vmatprep.subr.mxu0 0.0
        %2276 = vmatpush1.msra.mxu0 0.0
        %2277 = vmatprep.subr.mxu0 0.0
        %2278 = vmatpush1.msra.mxu0 0.0
        %2279 = vmatprep.mubr.f32.mxu0 0.0
        %2280 = vmatmul.mubr.f32.gmra.mrb[0].mxu0 %v2210
        %v2281 = vpop.f32.mrb[0].mxu0
        %v2282 = vadd.f32 0.0, %v2281
        %v2283 = vpop.f32.mrb[0].mxu0
        %2284 = vmatprep.mubr.f32.mxu0 0.0
        %2285 = vmatmul.mubr.f32.gmra.mrb[0].mxu0 %v2213
        %v2286 = vpop.f32.mrb[0].mxu0
        %v2287 = vadd.f32 0.0, %v2286
        %v2288 = vpop.f32.mrb[0].mxu0
        %2289 = vdwg.mxu0
        %vm2290 = vcmask 786112
        %v2291 = vsel %vm2290, %v1034, 0.0
        %v2292 = vsel %vm2290, %v1039, 0.0
        %v2293 = vadd.f32 %v2291, %v2292
        %v2294 = vrot.slane %v2293, 4
        %v2295 = vadd.f32 %v2293, %v2294
        %v2296 = vrot.slane %v2295, 2
        %v2297 = vadd.f32 %v2295, %v2296
        %v2298 = vrot.slane %v2297, 1
        %v2299 = vadd.f32 %v2297, %v2298
        %v2300 = vmul.f32 %v2299, %v1256
        %v2301 = vsel %vm1042, %v2171, -1e+30
        %v2302 = vsel %vm1043, %v2176, -1e+30
        %v2303 = vsel %vm1136, %v2301, -inf
        %2304 = vmax.xlane.f32.xlu0 %v2303
        %v2305 = vpop.xlane.xlu0 %2304
        %v2306 = vsel %vm1136, %v2302, -inf
        %2307 = vmax.xlane.f32.xlu0 %v2306
        %v2308 = vpop.xlane.xlu0 %2307
        %v2309 = vmul.f32 %v2171, %v954
        %v2310 = vmul.f32 %v2176, %v955
        %v2311 = vsel %vm1136, %v2309, 0.0
        %2312 = vadd.xlane.f32.xlu0 %v2311
        %v2313 = vpop.xlane.xlu0 %2312
        %v2314 = vsel %vm1136, %v2310, 0.0
        %2315 = vadd.xlane.f32.xlu0 %v2314
        %v2316 = vpop.xlane.xlu0 %2315
        %v2317 = vmul.f32 %v2313, %v1256
        %v2318 = vmul.f32 %v2316, %v1256
        %v2319 = vsub.f32 %v2305, %v2317
        %v2320 = vsub.f32 %v2308, %v2318
        %v2322 = vsel %vm1278, %v2319, 0
        %v2325 = vsel %vm1278, %v2320, 0
        %2327 = vmatprep.subr.mxu0 0.0
        %2328 = vmatpush1.xpose.msra.mxu0 %v2322
        %2329 = vmatprep.subr.mxu0 0.0
        %2330 = vmatpush1.xpose.msra.mxu0 %v2325
        %2331 = vmatprep.subr.mxu0 0.0
        %2332 = vmatpush1.xpose.msra.mxu0 0.0
        %2333 = vmatprep.subr.mxu0 0.0
        %2334 = vmatpush1.xpose.msra.mxu0 0.0
        %2335 = vmatprep.subr.mxu0 0.0
        %2336 = vmatpush1.xpose.msra.mxu0 0.0
        %2337 = vmatprep.subr.mxu0 0.0
        %2338 = vmatpush1.xpose.msra.mxu0 0.0
        %2339 = vmatprep.subr.mxu0 0.0
        %2340 = vmatpush1.xpose.msra.mxu0 0.0
        %2341 = vmatprep.subr.mxu0 0.0
        %2342 = vmatpush1.xpose.msra.mxu0 0.0
        %2343 = vmatprep.subr.mxu0 0.0
        %2344 = vmatpush1.xpose.msra.mxu0 0.0
        %2345 = vmatprep.subr.mxu0 0.0
        %2346 = vmatpush1.xpose.msra.mxu0 0.0
        %2347 = vmatprep.subr.mxu0 0.0
        %2348 = vmatpush1.xpose.msra.mxu0 0.0
        %2349 = vmatprep.subr.mxu0 0.0
        %2350 = vmatpush1.xpose.msra.mxu0 0.0
        %2351 = vmatprep.subr.mxu0 0.0
        %2352 = vmatpush1.xpose.msra.mxu0 0.0
        %2353 = vmatprep.subr.mxu0 0.0
        %2354 = vmatpush1.xpose.msra.mxu0 0.0
        %2355 = vmatprep.subr.mxu0 0.0
        %2356 = vmatpush1.xpose.msra.mxu0 0.0
        %2357 = vmatprep.subr.mxu0 0.0
        %2358 = vmatpush1.xpose.msra.mxu0 0.0
        %2359 = vmatprep.subr.mxu0 0.0
        %2360 = vmatpush1.xpose.msra.mxu0 0.0
        %2361 = vmatprep.subr.mxu0 0.0
        %2362 = vmatpush1.xpose.msra.mxu0 0.0
        %2363 = vmatprep.subr.mxu0 0.0
        %2364 = vmatpush1.xpose.msra.mxu0 0.0
        %2365 = vmatprep.subr.mxu0 0.0
        %2366 = vmatpush1.xpose.msra.mxu0 0.0
        %2367 = vmatprep.subr.mxu0 0.0
        %2368 = vmatpush1.xpose.msra.mxu0 0.0
        %2369 = vmatprep.subr.mxu0 0.0
        %2370 = vmatpush1.xpose.msra.mxu0 0.0
        %2371 = vmatprep.subr.mxu0 0.0
        %2372 = vmatpush1.xpose.msra.mxu0 0.0
        %2373 = vmatprep.subr.mxu0 0.0
        %2374 = vmatpush1.xpose.msra.mxu0 0.0
        %2375 = vmatprep.subr.mxu0 0.0
        %2376 = vmatpush1.xpose.msra.mxu0 0.0
        %2377 = vmatprep.subr.mxu0 0.0
        %2378 = vmatpush1.xpose.msra.mxu0 0.0
        %2379 = vmatprep.subr.mxu0 0.0
        %2380 = vmatpush1.xpose.msra.mxu0 0.0
        %2381 = vmatprep.subr.mxu0 0.0
        %2382 = vmatpush1.xpose.msra.mxu0 0.0
        %2383 = vmatprep.subr.mxu0 0.0
        %2384 = vmatpush1.xpose.msra.mxu0 0.0
        %2385 = vmatprep.subr.mxu0 0.0
        %2386 = vmatpush1.xpose.msra.mxu0 0.0
        %2387 = vmatprep.subr.mxu0 0.0
        %2388 = vmatpush1.xpose.msra.mxu0 0.0
        %2389 = vmatprep.subr.mxu0 0.0
        %2390 = vmatpush1.xpose.msra.mxu0 0.0
        %2391 = vmatprep.mubr.f32.mxu0 0.0
        %2392 = vmatmul.mubr.f32.gmra.mrb[0].mxu0 %v1280
        %v2393 = vpop.f32.mrb[0].mxu0
        %v2394 = vadd.f32 0.0, %v2393
        %v2395 = vpop.f32.mrb[0].mxu0
        %2396 = vmatprep.mubr.f32.mxu0 0.0
        %2397 = vmatmul.mubr.f32.gmra.mrb[0].mxu0 %v1280
        %v2398 = vpop.f32.mrb[0].mxu0
        %v2399 = vadd.f32 0.0, %v2398
        %v2400 = vpop.f32.mrb[0].mxu0
        %2401 = vdwg.mxu0
        %vm2402 = vcmp.gt.f32.partialorder %v2394, %v2319
        %vm2403 = vcmp.gt.f32.partialorder %v2399, %v2320
        %vm2404 = vcmp.eq.f32.partialorder %v2394, %v2319
        %vm2405 = vcmp.eq.f32.partialorder %v2399, %v2320
        %vm2406 = vmand %vm2404, %vm1372
        %vm2407 = vmand %vm2405, %vm1373
        %vm2408 = vmor %vm2402, %vm2406
        %vm2409 = vmor %vm2403, %vm2407
        %v2410 = vsel %vm2408, 1, 0
        %v2411 = vsel %vm2409, 1, 0
        %v2412 = vcvt.s32.f32 %v2410
        %v2413 = vcvt.s32.f32 %v2411
        %v2414 = vsel %vm1136, %v2412, 0.0
        %2415 = vadd.xlane.f32.xlu0 %v2414
        %v2416 = vpop.xlane.xlu0 %2415
        %v2417 = vsel %vm1136, %v2413, 0.0
        %2418 = vadd.xlane.f32.xlu0 %v2417
        %v2419 = vpop.xlane.xlu0 %2418
        %vm2420 = vcmp.lt.f32.partialorder %v2416, 15.0
        %vm2421 = vcmp.lt.f32.partialorder %v2419, 15.0
        %v2422 = vsel %vm2420, 1, 0
        %v2423 = vsel %vm2421, 1, 0
        %vm2424 = vcmp.eq.s32.totalorder %v2422, 1
        %vm2425 = vcmp.eq.s32.totalorder %v2423, 1
        %2427 = vrot.lane.b32.xlu0 %v2300, 40
        %v2428 = vpop.permute.xlu0 %2427
        %v2430 = vsel %vm2424, %v2282, %v2428
        %v2431 = vsel %vm2425, %v2287, %v2428
        %2434 = vrot.lane.b32.xlu0 %v1742, 8
        %v2435 = vpop.permute.xlu0 %2434
        %2436 = vrot.lane.b32.xlu0 %v1743, 8
        %v2437 = vpop.permute.xlu0 %2436
        %2442 = vrot.lane.b32.xlu0 %v2086, 16
        %v2443 = vpop.permute.xlu0 %2442
        %2444 = vrot.lane.b32.xlu0 %v2087, 16
        %v2445 = vpop.permute.xlu0 %2444
        %2450 = vrot.lane.b32.xlu0 %v2430, 24
        %v2451 = vpop.permute.xlu0 %2450
        %2452 = vrot.lane.b32.xlu0 %v2431, 24
        %v2453 = vpop.permute.xlu0 %2452
        %v2456 = vsel %vm1050, %v1398, %v2435
        %v2457 = vsel %vm1050, %v1399, %v2437
        %v2458 = vsel %vm1136, %v2456, %v2443
        %v2459 = vsel %vm1136, %v2457, %v2445
        %vm2460 = vcmask 195584
        %v2461 = vsel %vm2460, %v2458, %v2451
        %v2462 = vsel %vm2460, %v2459, %v2453
        %v2463 = vlaneseq
        %v2464 = vshrl.u32 %v2463, 7
        %v2465 = vsub.s32 3, %v2464
        %v2466 = vrot.slane %v842, %v2465
        %v2468 = vsel %vm960, %v2461, 0
        %v2471 = vsel %vm960, %v2462, 0
        %2473 = vmatprep.subr.mxu0 0.0
        %2474 = vmatpush1.msra.mxu0 %v950
        %2475 = vmatprep.subr.mxu0 0.0
        %2476 = vmatpush1.msra.mxu0 %v951
        %2477 = vmatprep.subr.mxu0 0.0
        %2478 = vmatpush1.msra.mxu0 %v952
        %2479 = vmatprep.subr.mxu0 0.0
        %2480 = vmatpush1.msra.mxu0 %v953
        %2481 = vmatprep.subr.mxu0 0.0
        %2482 = vmatpush1.msra.mxu0 0.0
        %2483 = vmatprep.subr.mxu0 0.0
        %2484 = vmatpush1.msra.mxu0 0.0
        %2485 = vmatprep.subr.mxu0 0.0
        %2486 = vmatpush1.msra.mxu0 0.0
        %2487 = vmatprep.subr.mxu0 0.0
        %2488 = vmatpush1.msra.mxu0 0.0
        %2489 = vmatprep.subr.mxu0 0.0
        %2490 = vmatpush1.msra.mxu0 0.0
        %2491 = vmatprep.subr.mxu0 0.0
        %2492 = vmatpush1.msra.mxu0 0.0
        %2493 = vmatprep.subr.mxu0 0.0
        %2494 = vmatpush1.msra.mxu0 0.0
        %2495 = vmatprep.subr.mxu0 0.0
        %2496 = vmatpush1.msra.mxu0 0.0
        %2497 = vmatprep.subr.mxu0 0.0
        %2498 = vmatpush1.msra.mxu0 0.0
        %2499 = vmatprep.subr.mxu0 0.0
        %2500 = vmatpush1.msra.mxu0 0.0
        %2501 = vmatprep.subr.mxu0 0.0
        %2502 = vmatpush1.msra.mxu0 0.0
        %2503 = vmatprep.subr.mxu0 0.0
        %2504 = vmatpush1.msra.mxu0 0.0
        %2505 = vmatprep.subr.mxu0 0.0
        %2506 = vmatpush1.msra.mxu0 0.0
        %2507 = vmatprep.subr.mxu0 0.0
        %2508 = vmatpush1.msra.mxu0 0.0
        %2509 = vmatprep.subr.mxu0 0.0
        %2510 = vmatpush1.msra.mxu0 0.0
        %2511 = vmatprep.subr.mxu0 0.0
        %2512 = vmatpush1.msra.mxu0 0.0
        %2513 = vmatprep.subr.mxu0 0.0
        %2514 = vmatpush1.msra.mxu0 0.0
        %2515 = vmatprep.subr.mxu0 0.0
        %2516 = vmatpush1.msra.mxu0 0.0
        %2517 = vmatprep.subr.mxu0 0.0
        %2518 = vmatpush1.msra.mxu0 0.0
        %2519 = vmatprep.subr.mxu0 0.0
        %2520 = vmatpush1.msra.mxu0 0.0
        %2521 = vmatprep.subr.mxu0 0.0
        %2522 = vmatpush1.msra.mxu0 0.0
        %2523 = vmatprep.subr.mxu0 0.0
        %2524 = vmatpush1.msra.mxu0 0.0
        %2525 = vmatprep.subr.mxu0 0.0
        %2526 = vmatpush1.msra.mxu0 0.0
        %2527 = vmatprep.subr.mxu0 0.0
        %2528 = vmatpush1.msra.mxu0 0.0
        %2529 = vmatprep.subr.mxu0 0.0
        %2530 = vmatpush1.msra.mxu0 0.0
        %2531 = vmatprep.subr.mxu0 0.0
        %2532 = vmatpush1.msra.mxu0 0.0
        %2533 = vmatprep.subr.mxu0 0.0
        %2534 = vmatpush1.msra.mxu0 0.0
        %2535 = vmatprep.subr.mxu0 0.0
        %2536 = vmatpush1.msra.mxu0 0.0
        %2537 = vmatprep.mubr.f32.mxu0 0.0
        %2538 = vmatmul.mubr.f32.gmra.mrb[0].mxu0 %v2468
        %v2539 = vpop.f32.mrb[0].mxu0
        %v2540 = vadd.f32 %v2466, %v2539
        %v2541 = vpop.f32.mrb[0].mxu0
        %2542 = vmatprep.mubr.f32.mxu0 0.0
        %2543 = vmatmul.mubr.f32.gmra.mrb[0].mxu0 %v2471
        %v2544 = vpop.f32.mrb[0].mxu0
        %v2545 = vadd.f32 %v2466, %v2544
        %v2546 = vpop.f32.mrb[0].mxu0
        %2547 = vdwg.mxu0
        %v2548 = vadd.f32 %v944, %v2540
        %v2549 = vadd.f32 %v945, %v2545
        %v2550 = vsel %vm960, %v2548, 0.0
        %2551 = vadd.xlane.f32.xlu0 %v2550
        %v2552 = vpop.xlane.xlu0 %2551
        %v2553 = vsel %vm960, %v2549, 0.0
        %2554 = vadd.xlane.f32.xlu0 %v2553
        %v2555 = vpop.xlane.xlu0 %2554
        %v2556 = vrcp.pop 32.0
        %v2557 = vmul.f32 %v2552, %v2556
        %v2558 = vmul.f32 %v2555, %v2556
        %v2559 = vsub.f32 %v2548, %v2557
        %v2560 = vsub.f32 %v2549, %v2558
        %v2561 = vmul.f32 %v2559, %v2559
        %v2562 = vmul.f32 %v2560, %v2560
        %v2563 = vsel %vm960, %v2561, 0.0
        %2564 = vadd.xlane.f32.xlu0 %v2563
        %v2565 = vpop.xlane.xlu0 %2564
        %v2566 = vsel %vm960, %v2562, 0.0
        %2567 = vadd.xlane.f32.xlu0 %v2566
        %v2568 = vpop.xlane.xlu0 %2567
        %v2569 = vmul.f32 %v2565, %v2556
        %v2570 = vmul.f32 %v2568, %v2556
        %v2571 = vadd.f32 %v2569, 1e-05
        %v2572 = vadd.f32 %v2570, 1e-05
        %v2573 = vrsqrt.pop %v2571
        %v2574 = vrsqrt.pop %v2572
        %v2575 = vmul.f32 %v2559, %v2573
        %v2576 = vmul.f32 %v2560, %v2574
        %v2577 = vlaneseq
        %v2578 = vshrl.u32 %v2577, 7
        %v2579 = vsub.s32 4, %v2578
        %v2580 = vrot.slane %v842, %v2579
        %v2581 = vmul.f32 %v2575, %v2580
        %v2582 = vmul.f32 %v2576, %v2580
        %v2583 = vlaneseq
        %v2584 = vshrl.u32 %v2583, 7
        %v2585 = vsub.s32 5, %v2584
        %v2586 = vrot.slane %v842, %v2585
        %v2587 = vadd.f32 %v2581, %v2586
        %v2588 = vadd.f32 %v2582, %v2586
        %v2589 = vld [vmem:[%s8] sm:$0xff]
        %v2590 = vld [vmem:[%s8 + $0x8] sm:$0xff]
        %v2591 = vld [vmem:[%s8 + $0x10] sm:$0xff]
        %v2592 = vld [vmem:[%s8 + $0x18] sm:$0xff]
        %v2593 = vlaneseq
        %v2594 = vshrl.u32 %v2593, 7
        %v2595 = vsub.s32 6, %v2594
        %v2596 = vrot.slane %v842, %v2595
        %v2598 = vsel %vm960, %v2587, 0
        %v2601 = vsel %vm960, %v2588, 0
        %2603 = vmatprep.subr.mxu0 0.0
        %2604 = vmatpush1.msra.mxu0 %v2589
        %2605 = vmatprep.subr.mxu0 0.0
        %2606 = vmatpush1.msra.mxu0 %v2590
        %2607 = vmatprep.subr.mxu0 0.0
        %2608 = vmatpush1.msra.mxu0 %v2591
        %2609 = vmatprep.subr.mxu0 0.0
        %2610 = vmatpush1.msra.mxu0 %v2592
        %2611 = vmatprep.subr.mxu0 0.0
        %2612 = vmatpush1.msra.mxu0 0.0
        %2613 = vmatprep.subr.mxu0 0.0
        %2614 = vmatpush1.msra.mxu0 0.0
        %2615 = vmatprep.subr.mxu0 0.0
        %2616 = vmatpush1.msra.mxu0 0.0
        %2617 = vmatprep.subr.mxu0 0.0
        %2618 = vmatpush1.msra.mxu0 0.0
        %2619 = vmatprep.subr.mxu0 0.0
        %2620 = vmatpush1.msra.mxu0 0.0
        %2621 = vmatprep.subr.mxu0 0.0
        %2622 = vmatpush1.msra.mxu0 0.0
        %2623 = vmatprep.subr.mxu0 0.0
        %2624 = vmatpush1.msra.mxu0 0.0
        %2625 = vmatprep.subr.mxu0 0.0
        %2626 = vmatpush1.msra.mxu0 0.0
        %2627 = vmatprep.subr.mxu0 0.0
        %2628 = vmatpush1.msra.mxu0 0.0
        %2629 = vmatprep.subr.mxu0 0.0
        %2630 = vmatpush1.msra.mxu0 0.0
        %2631 = vmatprep.subr.mxu0 0.0
        %2632 = vmatpush1.msra.mxu0 0.0
        %2633 = vmatprep.subr.mxu0 0.0
        %2634 = vmatpush1.msra.mxu0 0.0
        %2635 = vmatprep.subr.mxu0 0.0
        %2636 = vmatpush1.msra.mxu0 0.0
        %2637 = vmatprep.subr.mxu0 0.0
        %2638 = vmatpush1.msra.mxu0 0.0
        %2639 = vmatprep.subr.mxu0 0.0
        %2640 = vmatpush1.msra.mxu0 0.0
        %2641 = vmatprep.subr.mxu0 0.0
        %2642 = vmatpush1.msra.mxu0 0.0
        %2643 = vmatprep.subr.mxu0 0.0
        %2644 = vmatpush1.msra.mxu0 0.0
        %2645 = vmatprep.subr.mxu0 0.0
        %2646 = vmatpush1.msra.mxu0 0.0
        %2647 = vmatprep.subr.mxu0 0.0
        %2648 = vmatpush1.msra.mxu0 0.0
        %2649 = vmatprep.subr.mxu0 0.0
        %2650 = vmatpush1.msra.mxu0 0.0
        %2651 = vmatprep.subr.mxu0 0.0
        %2652 = vmatpush1.msra.mxu0 0.0
        %2653 = vmatprep.subr.mxu0 0.0
        %2654 = vmatpush1.msra.mxu0 0.0
        %2655 = vmatprep.subr.mxu0 0.0
        %2656 = vmatpush1.msra.mxu0 0.0
        %2657 = vmatprep.subr.mxu0 0.0
        %2658 = vmatpush1.msra.mxu0 0.0
        %2659 = vmatprep.subr.mxu0 0.0
        %2660 = vmatpush1.msra.mxu0 0.0
        %2661 = vmatprep.subr.mxu0 0.0
        %2662 = vmatpush1.msra.mxu0 0.0
        %2663 = vmatprep.subr.mxu0 0.0
        %2664 = vmatpush1.msra.mxu0 0.0
        %2665 = vmatprep.subr.mxu0 0.0
        %2666 = vmatpush1.msra.mxu0 0.0
        %2667 = vmatprep.mubr.f32.mxu0 0.0
        %2668 = vmatmul.mubr.f32.gmra.mrb[0].mxu0 %v2598
        %v2669 = vpop.f32.mrb[0].mxu0
        %v2670 = vadd.f32 %v2596, %v2669
        %v2671 = vpop.f32.mrb[0].mxu0
        %2672 = vmatprep.mubr.f32.mxu0 0.0
        %2673 = vmatmul.mubr.f32.gmra.mrb[0].mxu0 %v2601
        %v2674 = vpop.f32.mrb[0].mxu0
        %v2675 = vadd.f32 %v2596, %v2674
        %v2676 = vpop.f32.mrb[0].mxu0
        %2677 = vdwg.mxu0
        %v2678 = vmul.f32 %v2670, 0.5
        %v2679 = vmul.f32 %v2675, 0.5
        %v2680 = vmul.f32 %v2670, 0.044715
        %v2681 = vmul.f32 %v2675, 0.044715
        %v2682 = vmul.f32 %v2680, %v2670
        %v2683 = vmul.f32 %v2681, %v2675
        %v2684 = vmul.f32 %v2682, %v2670
        %v2685 = vmul.f32 %v2683, %v2675
        %v2686 = vadd.f32 %v2670, %v2684
        %v2687 = vadd.f32 %v2675, %v2685
        %v2688 = vmul.f32 %v2686, 0.7978846
        %v2689 = vmul.f32 %v2687, 0.7978846
        %v2690 = vtanh.pop %v2688
        %v2691 = vtanh.pop %v2689
        %v2692 = vadd.f32 %v2690, 1.0
        %v2693 = vadd.f32 %v2691, 1.0
        %v2694 = vmul.f32 %v2678, %v2692
        %v2695 = vmul.f32 %v2679, %v2693
        %v2696 = vld [vmem:[%s9] sm:$0xff]
        %v2697 = vld [vmem:[%s9 + $0x8] sm:$0xff]
        %v2698 = vld [vmem:[%s9 + $0x10] sm:$0xff]
        %v2699 = vld [vmem:[%s9 + $0x18] sm:$0xff]
        %v2700 = vld [vmem:[%s9 + $0x20] sm:$0xff]
        %v2701 = vld [vmem:[%s9 + $0x28] sm:$0xff]
        %v2702 = vld [vmem:[%s9 + $0x30] sm:$0xff]
        %v2703 = vld [vmem:[%s9 + $0x38] sm:$0xff]
        %v2704 = vlaneseq
        %v2705 = vshrl.u32 %v2704, 7
        %v2706 = vsub.s32 7, %v2705
        %v2707 = vrot.slane %v842, %v2706
        %vm2708 = vcmask 523264
        %v2710 = vsel %vm2708, %v2694, 0
        %v2713 = vsel %vm2708, %v2695, 0
        %2715 = vmatprep.subr.mxu0 0.0
        %2716 = vmatpush1.msra.mxu0 %v2696
        %2717 = vmatprep.subr.mxu0 0.0
        %2718 = vmatpush1.msra.mxu0 %v2697
        %2719 = vmatprep.subr.mxu0 0.0
        %2720 = vmatpush1.msra.mxu0 %v2698
        %2721 = vmatprep.subr.mxu0 0.0
        %2722 = vmatpush1.msra.mxu0 %v2699
        %2723 = vmatprep.subr.mxu0 0.0
        %2724 = vmatpush1.msra.mxu0 %v2700
        %2725 = vmatprep.subr.mxu0 0.0
        %2726 = vmatpush1.msra.mxu0 %v2701
        %2727 = vmatprep.subr.mxu0 0.0
        %2728 = vmatpush1.msra.mxu0 %v2702
        %2729 = vmatprep.subr.mxu0 0.0
        %2730 = vmatpush1.msra.mxu0 %v2703
        %2731 = vmatprep.subr.mxu0 0.0
        %2732 = vmatpush1.msra.mxu0 0.0
        %2733 = vmatprep.subr.mxu0 0.0
        %2734 = vmatpush1.msra.mxu0 0.0
        %2735 = vmatprep.subr.mxu0 0.0
        %2736 = vmatpush1.msra.mxu0 0.0
        %2737 = vmatprep.subr.mxu0 0.0
        %2738 = vmatpush1.msra.mxu0 0.0
        %2739 = vmatprep.subr.mxu0 0.0
        %2740 = vmatpush1.msra.mxu0 0.0
        %2741 = vmatprep.subr.mxu0 0.0
        %2742 = vmatpush1.msra.mxu0 0.0
        %2743 = vmatprep.subr.mxu0 0.0
        %2744 = vmatpush1.msra.mxu0 0.0
        %2745 = vmatprep.subr.mxu0 0.0
        %2746 = vmatpush1.msra.mxu0 0.0
        %2747 = vmatprep.subr.mxu0 0.0
        %2748 = vmatpush1.msra.mxu0 0.0
        %2749 = vmatprep.subr.mxu0 0.0
        %2750 = vmatpush1.msra.mxu0 0.0
        %2751 = vmatprep.subr.mxu0 0.0
        %2752 = vmatpush1.msra.mxu0 0.0
        %2753 = vmatprep.subr.mxu0 0.0
        %2754 = vmatpush1.msra.mxu0 0.0
        %2755 = vmatprep.subr.mxu0 0.0
        %2756 = vmatpush1.msra.mxu0 0.0
        %2757 = vmatprep.subr.mxu0 0.0
        %2758 = vmatpush1.msra.mxu0 0.0
        %2759 = vmatprep.subr.mxu0 0.0
        %2760 = vmatpush1.msra.mxu0 0.0
        %2761 = vmatprep.subr.mxu0 0.0
        %2762 = vmatpush1.msra.mxu0 0.0
        %2763 = vmatprep.subr.mxu0 0.0
        %2764 = vmatpush1.msra.mxu0 0.0
        %2765 = vmatprep.subr.mxu0 0.0
        %2766 = vmatpush1.msra.mxu0 0.0
        %2767 = vmatprep.subr.mxu0 0.0
        %2768 = vmatpush1.msra.mxu0 0.0
        %2769 = vmatprep.subr.mxu0 0.0
        %2770 = vmatpush1.msra.mxu0 0.0
        %2771 = vmatprep.subr.mxu0 0.0
        %2772 = vmatpush1.msra.mxu0 0.0
        %2773 = vmatprep.subr.mxu0 0.0
        %2774 = vmatpush1.msra.mxu0 0.0
        %2775 = vmatprep.subr.mxu0 0.0
        %2776 = vmatpush1.msra.mxu0 0.0
        %2777 = vmatprep.subr.mxu0 0.0
        %2778 = vmatpush1.msra.mxu0 0.0
        %2779 = vmatprep.mubr.f32.mxu0 0.0
        %2780 = vmatmul.mubr.f32.gmra.mrb[0].mxu0 %v2710
        %v2781 = vpop.f32.mrb[0].mxu0
        %v2782 = vadd.f32 %v2707, %v2781
        %v2783 = vpop.f32.mrb[0].mxu0
        %2784 = vmatprep.mubr.f32.mxu0 0.0
        %2785 = vmatmul.mubr.f32.gmra.mrb[0].mxu0 %v2713
        %v2786 = vpop.f32.mrb[0].mxu0
        %v2787 = vadd.f32 %v2707, %v2786
        %v2788 = vpop.f32.mrb[0].mxu0
        %2789 = vdwg.mxu0
        %v2790 = vadd.f32 %v2587, %v2782
        %v2791 = vadd.f32 %v2588, %v2787
        %v2792 = vsel %vm960, %v2790, 0.0
        %2793 = vadd.xlane.f32.xlu0 %v2792
        %v2794 = vpop.xlane.xlu0 %2793
        %v2795 = vsel %vm960, %v2791, 0.0
        %2796 = vadd.xlane.f32.xlu0 %v2795
        %v2797 = vpop.xlane.xlu0 %2796
        %v2798 = vmul.f32 %v2794, %v2556
        %v2799 = vmul.f32 %v2797, %v2556
        %v2800 = vsub.f32 %v2790, %v2798
        %v2801 = vsub.f32 %v2791, %v2799
        %v2802 = vmul.f32 %v2800, %v2800
        %v2803 = vmul.f32 %v2801, %v2801
        %v2804 = vsel %vm960, %v2802, 0.0
        %2805 = vadd.xlane.f32.xlu0 %v2804
        %v2806 = vpop.xlane.xlu0 %2805
        %v2807 = vsel %vm960, %v2803, 0.0
        %2808 = vadd.xlane.f32.xlu0 %v2807
        %v2809 = vpop.xlane.xlu0 %2808
        %v2810 = vmul.f32 %v2806, %v2556
        %v2811 = vmul.f32 %v2809, %v2556
        %v2812 = vadd.f32 %v2810, 1e-05
        %v2813 = vadd.f32 %v2811, 1e-05
        %v2814 = vrsqrt.pop %v2812
        %v2815 = vrsqrt.pop %v2813
        %v2816 = vmul.f32 %v2800, %v2814
        %v2817 = vmul.f32 %v2801, %v2815
        %v2818 = vlaneseq
        %v2819 = vshrl.u32 %v2818, 7
        %v2820 = vsub.s32 0, %v2819
        %v2821 = vrot.slane %v843, %v2820
        %v2822 = vmul.f32 %v2816, %v2821
        %v2823 = vmul.f32 %v2817, %v2821
        %v2824 = vlaneseq
        %v2825 = vshrl.u32 %v2824, 7
        %v2826 = vsub.s32 1, %v2825
        %v2827 = vrot.slane %v843, %v2826
        %v2828 = vadd.f32 %v2822, %v2827
        %v2829 = vadd.f32 %v2823, %v2827
        %v2830 = vld [vmem:[%s10] sm:$0xff]
        %v2831 = vld [vmem:[%s10 + $0x8] sm:$0xff]
        %v2832 = vld [vmem:[%s10 + $0x10] sm:$0xff]
        %v2833 = vld [vmem:[%s10 + $0x18] sm:$0xff]
        %v2834 = vld [vmem:[%s10 + $0x20] sm:$0xff]
        %v2835 = vld [vmem:[%s10 + $0x28] sm:$0xff]
        %v2836 = vld [vmem:[%s10 + $0x30] sm:$0xff]
        %v2837 = vld [vmem:[%s10 + $0x38] sm:$0xff]
        %v2838 = vld [vmem:[%s10 + $0x40] sm:$0xff]
        %v2839 = vld [vmem:[%s10 + $0x48] sm:$0xff]
        %v2840 = vld [vmem:[%s10 + $0x50] sm:$0xff]
        %v2841 = vld [vmem:[%s10 + $0x58] sm:$0xff]
        %v2843 = vrot.slane %v2829, 7
        %vm2846 = vcmask 1040384
        %v2847 = vrot.slane %v2828, 7
        %v2848 = vsel %vm2846, %v2847, %v2843
        %v2850 = vsel %vm2846, %v2843, %v2847
        %vm2851 = vcmask 1046528
        %v2852 = vrot.slane %v2828, 1
        %v2853 = vrot.slane %v2829, 1
        %v2854 = vsel %vm2851, %v2852, %v2853
        %v2857 = vsel %vm2851, %v2853, %v2852
        %v2858 = vsel %vm960, %v2828, 0
        %v2860 = vsel %vm960, %v2829, 0
        %2862 = vmatprep.subr.mxu0 0.0
        %2863 = vmatpush1.msra.mxu0 %v2834
        %2864 = vmatprep.subr.mxu0 0.0
        %2865 = vmatpush1.msra.mxu0 %v2835
        %2866 = vmatprep.subr.mxu0 0.0
        %2867 = vmatpush1.msra.mxu0 %v2836
        %2868 = vmatprep.subr.mxu0 0.0
        %2869 = vmatpush1.msra.mxu0 %v2837
        %2870 = vmatprep.subr.mxu0 0.0
        %2871 = vmatpush1.msra.mxu0 0.0
        %2872 = vmatprep.subr.mxu0 0.0
        %2873 = vmatpush1.msra.mxu0 0.0
        %2874 = vmatprep.subr.mxu0 0.0
        %2875 = vmatpush1.msra.mxu0 0.0
        %2876 = vmatprep.subr.mxu0 0.0
        %2877 = vmatpush1.msra.mxu0 0.0
        %2878 = vmatprep.subr.mxu0 0.0
        %2879 = vmatpush1.msra.mxu0 0.0
        %2880 = vmatprep.subr.mxu0 0.0
        %2881 = vmatpush1.msra.mxu0 0.0
        %2882 = vmatprep.subr.mxu0 0.0
        %2883 = vmatpush1.msra.mxu0 0.0
        %2884 = vmatprep.subr.mxu0 0.0
        %2885 = vmatpush1.msra.mxu0 0.0
        %2886 = vmatprep.subr.mxu0 0.0
        %2887 = vmatpush1.msra.mxu0 0.0
        %2888 = vmatprep.subr.mxu0 0.0
        %2889 = vmatpush1.msra.mxu0 0.0
        %2890 = vmatprep.subr.mxu0 0.0
        %2891 = vmatpush1.msra.mxu0 0.0
        %2892 = vmatprep.subr.mxu0 0.0
        %2893 = vmatpush1.msra.mxu0 0.0
        %2894 = vmatprep.subr.mxu0 0.0
        %2895 = vmatpush1.msra.mxu0 0.0
        %2896 = vmatprep.subr.mxu0 0.0
        %2897 = vmatpush1.msra.mxu0 0.0
        %2898 = vmatprep.subr.mxu0 0.0
        %2899 = vmatpush1.msra.mxu0 0.0
        %2900 = vmatprep.subr.mxu0 0.0
        %2901 = vmatpush1.msra.mxu0 0.0
        %2902 = vmatprep.subr.mxu0 0.0
        %2903 = vmatpush1.msra.mxu0 0.0
        %2904 = vmatprep.subr.mxu0 0.0
        %2905 = vmatpush1.msra.mxu0 0.0
        %2906 = vmatprep.subr.mxu0 0.0
        %2907 = vmatpush1.msra.mxu0 0.0
        %2908 = vmatprep.subr.mxu0 0.0
        %2909 = vmatpush1.msra.mxu0 0.0
        %2910 = vmatprep.subr.mxu0 0.0
        %2911 = vmatpush1.msra.mxu0 0.0
        %2912 = vmatprep.subr.mxu0 0.0
        %2913 = vmatpush1.msra.mxu0 0.0
        %2914 = vmatprep.subr.mxu0 0.0
        %2915 = vmatpush1.msra.mxu0 0.0
        %2916 = vmatprep.subr.mxu0 0.0
        %2917 = vmatpush1.msra.mxu0 0.0
        %2918 = vmatprep.subr.mxu0 0.0
        %2919 = vmatpush1.msra.mxu0 0.0
        %2920 = vmatprep.subr.mxu0 0.0
        %2921 = vmatpush1.msra.mxu0 0.0
        %2922 = vmatprep.subr.mxu0 0.0
        %2923 = vmatpush1.msra.mxu0 0.0
        %2924 = vmatprep.subr.mxu0 0.0
        %2925 = vmatpush1.msra.mxu0 0.0
        %2926 = vmatprep.mubr.f32.mxu0 0.0
        %2927 = vmatmul.mubr.f32.gmra.mrb[0].mxu0 %v2858
        %v2928 = vpop.f32.mrb[0].mxu0
        %v2929 = vadd.f32 0.0, %v2928
        %v2930 = vpop.f32.mrb[0].mxu0
        %2931 = vmatprep.mubr.f32.mxu0 0.0
        %2932 = vmatmul.mubr.f32.gmra.mrb[0].mxu0 %v2860
        %v2933 = vpop.f32.mrb[0].mxu0
        %v2934 = vadd.f32 0.0, %v2933
        %v2935 = vpop.f32.mrb[0].mxu0
        %2936 = vdwg.mxu0
        %v2938 = vsel %vm960, %v2850, 0
        %v2940 = vsel %vm960, %v2848, 0
        %2942 = vmatprep.subr.mxu0 0.0
        %2943 = vmatpush1.msra.mxu0 %v2830
        %2944 = vmatprep.subr.mxu0 0.0
        %2945 = vmatpush1.msra.mxu0 %v2831
        %2946 = vmatprep.subr.mxu0 0.0
        %2947 = vmatpush1.msra.mxu0 %v2832
        %2948 = vmatprep.subr.mxu0 0.0
        %2949 = vmatpush1.msra.mxu0 %v2833
        %2950 = vmatprep.subr.mxu0 0.0
        %2951 = vmatpush1.msra.mxu0 0.0
        %2952 = vmatprep.subr.mxu0 0.0
        %2953 = vmatpush1.msra.mxu0 0.0
        %2954 = vmatprep.subr.mxu0 0.0
        %2955 = vmatpush1.msra.mxu0 0.0
        %2956 = vmatprep.subr.mxu0 0.0
        %2957 = vmatpush1.msra.mxu0 0.0
        %2958 = vmatprep.subr.mxu0 0.0
        %2959 = vmatpush1.msra.mxu0 0.0
        %2960 = vmatprep.subr.mxu0 0.0
        %2961 = vmatpush1.msra.mxu0 0.0
        %2962 = vmatprep.subr.mxu0 0.0
        %2963 = vmatpush1.msra.mxu0 0.0
        %2964 = vmatprep.subr.mxu0 0.0
        %2965 = vmatpush1.msra.mxu0 0.0
        %2966 = vmatprep.subr.mxu0 0.0
        %2967 = vmatpush1.msra.mxu0 0.0
        %2968 = vmatprep.subr.mxu0 0.0
        %2969 = vmatpush1.msra.mxu0 0.0
        %2970 = vmatprep.subr.mxu0 0.0
        %2971 = vmatpush1.msra.mxu0 0.0
        %2972 = vmatprep.subr.mxu0 0.0
        %2973 = vmatpush1.msra.mxu0 0.0
        %2974 = vmatprep.subr.mxu0 0.0
        %2975 = vmatpush1.msra.mxu0 0.0
        %2976 = vmatprep.subr.mxu0 0.0
        %2977 = vmatpush1.msra.mxu0 0.0
        %2978 = vmatprep.subr.mxu0 0.0
        %2979 = vmatpush1.msra.mxu0 0.0
        %2980 = vmatprep.subr.mxu0 0.0
        %2981 = vmatpush1.msra.mxu0 0.0
        %2982 = vmatprep.subr.mxu0 0.0
        %2983 = vmatpush1.msra.mxu0 0.0
        %2984 = vmatprep.subr.mxu0 0.0
        %2985 = vmatpush1.msra.mxu0 0.0
        %2986 = vmatprep.subr.mxu0 0.0
        %2987 = vmatpush1.msra.mxu0 0.0
        %2988 = vmatprep.subr.mxu0 0.0
        %2989 = vmatpush1.msra.mxu0 0.0
        %2990 = vmatprep.subr.mxu0 0.0
        %2991 = vmatpush1.msra.mxu0 0.0
        %2992 = vmatprep.subr.mxu0 0.0
        %2993 = vmatpush1.msra.mxu0 0.0
        %2994 = vmatprep.subr.mxu0 0.0
        %2995 = vmatpush1.msra.mxu0 0.0
        %2996 = vmatprep.subr.mxu0 0.0
        %2997 = vmatpush1.msra.mxu0 0.0
        %2998 = vmatprep.subr.mxu0 0.0
        %2999 = vmatpush1.msra.mxu0 0.0
        %3000 = vmatprep.subr.mxu0 0.0
        %3001 = vmatpush1.msra.mxu0 0.0
        %3002 = vmatprep.subr.mxu0 0.0
        %3003 = vmatpush1.msra.mxu0 0.0
        %3004 = vmatprep.subr.mxu0 0.0
        %3005 = vmatpush1.msra.mxu0 0.0
        %3006 = vmatprep.mubr.f32.mxu0 0.0
        %3007 = vmatmul.mubr.f32.gmra.mrb[0].mxu0 %v2938
        %v3008 = vpop.f32.mrb[0].mxu0
        %v3009 = vadd.f32 %v2929, %v3008
        %v3010 = vpop.f32.mrb[0].mxu0
        %3011 = vmatprep.mubr.f32.mxu0 0.0
        %3012 = vmatmul.mubr.f32.gmra.mrb[0].mxu0 %v2940
        %v3013 = vpop.f32.mrb[0].mxu0
        %v3014 = vadd.f32 %v2934, %v3013
        %v3015 = vpop.f32.mrb[0].mxu0
        %3016 = vdwg.mxu0
        %v3017 = vsel %vm960, %v2854, 0
        %v3020 = vsel %vm960, %v2857, 0
        %3022 = vmatprep.subr.mxu0 0.0
        %3023 = vmatpush1.msra.mxu0 %v2838
        %3024 = vmatprep.subr.mxu0 0.0
        %3025 = vmatpush1.msra.mxu0 %v2839
        %3026 = vmatprep.subr.mxu0 0.0
        %3027 = vmatpush1.msra.mxu0 %v2840
        %3028 = vmatprep.subr.mxu0 0.0
        %3029 = vmatpush1.msra.mxu0 %v2841
        %3030 = vmatprep.subr.mxu0 0.0
        %3031 = vmatpush1.msra.mxu0 0.0
        %3032 = vmatprep.subr.mxu0 0.0
        %3033 = vmatpush1.msra.mxu0 0.0
        %3034 = vmatprep.subr.mxu0 0.0
        %3035 = vmatpush1.msra.mxu0 0.0
        %3036 = vmatprep.subr.mxu0 0.0
        %3037 = vmatpush1.msra.mxu0 0.0
        %3038 = vmatprep.subr.mxu0 0.0
        %3039 = vmatpush1.msra.mxu0 0.0
        %3040 = vmatprep.subr.mxu0 0.0
        %3041 = vmatpush1.msra.mxu0 0.0
        %3042 = vmatprep.subr.mxu0 0.0
        %3043 = vmatpush1.msra.mxu0 0.0
        %3044 = vmatprep.subr.mxu0 0.0
        %3045 = vmatpush1.msra.mxu0 0.0
        %3046 = vmatprep.subr.mxu0 0.0
        %3047 = vmatpush1.msra.mxu0 0.0
        %3048 = vmatprep.subr.mxu0 0.0
        %3049 = vmatpush1.msra.mxu0 0.0
        %3050 = vmatprep.subr.mxu0 0.0
        %3051 = vmatpush1.msra.mxu0 0.0
        %3052 = vmatprep.subr.mxu0 0.0
        %3053 = vmatpush1.msra.mxu0 0.0
        %3054 = vmatprep.subr.mxu0 0.0
        %3055 = vmatpush1.msra.mxu0 0.0
        %3056 = vmatprep.subr.mxu0 0.0
        %3057 = vmatpush1.msra.mxu0 0.0
        %3058 = vmatprep.subr.mxu0 0.0
        %3059 = vmatpush1.msra.mxu0 0.0
        %3060 = vmatprep.subr.mxu0 0.0
        %3061 = vmatpush1.msra.mxu0 0.0
        %3062 = vmatprep.subr.mxu0 0.0
        %3063 = vmatpush1.msra.mxu0 0.0
        %3064 = vmatprep.subr.mxu0 0.0
        %3065 = vmatpush1.msra.mxu0 0.0
        %3066 = vmatprep.subr.mxu0 0.0
        %3067 = vmatpush1.msra.mxu0 0.0
        %3068 = vmatprep.subr.mxu0 0.0
        %3069 = vmatpush1.msra.mxu0 0.0
        %3070 = vmatprep.subr.mxu0 0.0
        %3071 = vmatpush1.msra.mxu0 0.0
        %3072 = vmatprep.subr.mxu0 0.0
        %3073 = vmatpush1.msra.mxu0 0.0
        %3074 = vmatprep.subr.mxu0 0.0
        %3075 = vmatpush1.msra.mxu0 0.0
        %3076 = vmatprep.subr.mxu0 0.0
        %3077 = vmatpush1.msra.mxu0 0.0
        %3078 = vmatprep.subr.mxu0 0.0
        %3079 = vmatpush1.msra.mxu0 0.0
        %3080 = vmatprep.subr.mxu0 0.0
        %3081 = vmatpush1.msra.mxu0 0.0
        %3082 = vmatprep.subr.mxu0 0.0
        %3083 = vmatpush1.msra.mxu0 0.0
        %3084 = vmatprep.subr.mxu0 0.0
        %3085 = vmatpush1.msra.mxu0 0.0
        %3086 = vmatprep.mubr.f32.mxu0 0.0
        %3087 = vmatmul.mubr.f32.gmra.mrb[0].mxu0 %v3017
        %v3088 = vpop.f32.mrb[0].mxu0
        %v3089 = vadd.f32 0.0, %v3088
        %v3090 = vpop.f32.mrb[0].mxu0
        %3091 = vmatprep.mubr.f32.mxu0 0.0
        %3092 = vmatmul.mubr.f32.gmra.mrb[0].mxu0 %v3020
        %v3093 = vpop.f32.mrb[0].mxu0
        %v3094 = vadd.f32 0.0, %v3093
        %v3095 = vpop.f32.mrb[0].mxu0
        %3096 = vdwg.mxu0
        %v3097 = vadd.f32 %v3009, %v3089
        %v3098 = vadd.f32 %v3014, %v3094
        %v3099 = vlaneseq
        %v3100 = vshrl.u32 %v3099, 7
        %v3101 = vsub.s32 2, %v3100
        %v3102 = vrot.slane %v844, %v3101
        %v3103 = vadd.f32 %v3097, %v3102
        %v3104 = vadd.f32 %v3098, %v3102
        %v3105 = vlaneseq
        %v3106 = vshrl.u32 %v3105, 7
        %v3107 = vsub.s32 5, %v3106
        %v3108 = vrot.slane %v844, %v3107
        %v3109 = vsub.f32 %v3103, %v3108
        %v3110 = vsub.f32 %v3104, %v3108
        %v3111 = vadd.f32 %v844, 1e-05
        %v3112 = vrsqrt.pop %v3111
        %v3113 = vlaneseq
        %v3114 = vshrl.u32 %v3113, 7
        %v3115 = vsub.s32 6, %v3114
        %v3116 = vrot.slane %v3112, %v3115
        %v3117 = vmul.f32 %v3109, %v3116
        %v3118 = vmul.f32 %v3110, %v3116
        %v3119 = vlaneseq
        %v3120 = vshrl.u32 %v3119, 7
        %v3121 = vsub.s32 3, %v3120
        %v3122 = vrot.slane %v844, %v3121
        %v3123 = vmul.f32 %v3117, %v3122
        %v3124 = vmul.f32 %v3118, %v3122
        %v3125 = vlaneseq
        %v3126 = vshrl.u32 %v3125, 7
        %v3127 = vsub.s32 4, %v3126
        %v3128 = vrot.slane %v844, %v3127
        %v3129 = vadd.f32 %v3123, %v3128
        %v3130 = vadd.f32 %v3124, %v3128
        %vm3131 = vcmp.gt.f32.partialorder %v3129, 0.0
        %vm3132 = vcmp.gt.f32.partialorder %v3130, 0.0
        %v3133 = vmin.f32 %v3129, 0.0
        %v3134 = vmin.f32 %v3130, 0.0
        %v3135 = vmul.f32 %v3133, 1.442695
        %v3136 = vpow.pop %v3135
        %v3137 = vmul.f32 %v3134, 1.442695
        %v3138 = vpow.pop %v3137
        %v3139 = vsub.f32 %v3136, 1.0
        %v3140 = vsub.f32 %v3138, 1.0
        %v3141 = vsel %vm3131, %v3129, %v3139
        %v3142 = vsel %vm3132, %v3130, %v3140
        %v3145 = vrot.slane %v3141, 7
        %v3146 = vrot.slane %v3142, 7
        %v3147 = vsel %vm2846, %v3145, %v3146
        %v3151 = vsel %vm2846, -1e+30, %v3145
        %v3152 = vsel %vm2846, %v3146, -1e+30
        %v3155 = vrot.slane %v3151, 1
        %v3156 = vrot.slane %v3147, 1
        %v3157 = vsel %vm2851, %v3155, %v3156
        %v3158 = vrot.slane %v3152, 1
        %v3159 = vsel %vm2851, %v3156, %v3158
        %v3162 = vmax.f32 %v3151, %v3157
        %v3163 = vmax.f32 %v3147, %v3159
        %vm3164 = vcmask 1045504
        %v3165 = vrot.slane %v3151, 2
        %v3166 = vrot.slane %v3147, 2
        %v3167 = vsel %vm3164, %v3165, %v3166
        %v3168 = vrot.slane %v3152, 2
        %v3169 = vsel %vm3164, %v3166, %v3168
        %v3172 = vmax.f32 %v3162, %v3167
        %v3173 = vmax.f32 %v3163, %v3169
        %v3174 = vmul.u32 %v1370, 2
        %vm3175 = vcmp.eq.s32.totalorder %v1368, %v3174
        %v3176 = vsel %vm3175, 1, 0
        %v3177 = vcvt.s32.f32 %v3176
        %v3179 = vsel %vm1136, %v3177, 0
        %3181 = vmatprep.subr.mxu0 0.0
        %3182 = vmatpush1.msra.mxu0 %v3172
        %3183 = vmatprep.subr.mxu0 0.0
        %3184 = vmatpush1.msra.mxu0 %v3173
        %3185 = vmatprep.subr.mxu0 0.0
        %3186 = vmatpush1.msra.mxu0 0.0
        %3187 = vmatprep.subr.mxu0 0.0
        %3188 = vmatpush1.msra.mxu0 0.0
        %3189 = vmatprep.subr.mxu0 0.0
        %3190 = vmatpush1.msra.mxu0 0.0
        %3191 = vmatprep.subr.mxu0 0.0
        %3192 = vmatpush1.msra.mxu0 0.0
        %3193 = vmatprep.subr.mxu0 0.0
        %3194 = vmatpush1.msra.mxu0 0.0
        %3195 = vmatprep.subr.mxu0 0.0
        %3196 = vmatpush1.msra.mxu0 0.0
        %3197 = vmatprep.subr.mxu0 0.0
        %3198 = vmatpush1.msra.mxu0 0.0
        %3199 = vmatprep.subr.mxu0 0.0
        %3200 = vmatpush1.msra.mxu0 0.0
        %3201 = vmatprep.subr.mxu0 0.0
        %3202 = vmatpush1.msra.mxu0 0.0
        %3203 = vmatprep.subr.mxu0 0.0
        %3204 = vmatpush1.msra.mxu0 0.0
        %3205 = vmatprep.subr.mxu0 0.0
        %3206 = vmatpush1.msra.mxu0 0.0
        %3207 = vmatprep.subr.mxu0 0.0
        %3208 = vmatpush1.msra.mxu0 0.0
        %3209 = vmatprep.subr.mxu0 0.0
        %3210 = vmatpush1.msra.mxu0 0.0
        %3211 = vmatprep.subr.mxu0 0.0
        %3212 = vmatpush1.msra.mxu0 0.0
        %3213 = vmatprep.subr.mxu0 0.0
        %3214 = vmatpush1.msra.mxu0 0.0
        %3215 = vmatprep.subr.mxu0 0.0
        %3216 = vmatpush1.msra.mxu0 0.0
        %3217 = vmatprep.subr.mxu0 0.0
        %3218 = vmatpush1.msra.mxu0 0.0
        %3219 = vmatprep.subr.mxu0 0.0
        %3220 = vmatpush1.msra.mxu0 0.0
        %3221 = vmatprep.subr.mxu0 0.0
        %3222 = vmatpush1.msra.mxu0 0.0
        %3223 = vmatprep.subr.mxu0 0.0
        %3224 = vmatpush1.msra.mxu0 0.0
        %3225 = vmatprep.subr.mxu0 0.0
        %3226 = vmatpush1.msra.mxu0 0.0
        %3227 = vmatprep.subr.mxu0 0.0
        %3228 = vmatpush1.msra.mxu0 0.0
        %3229 = vmatprep.subr.mxu0 0.0
        %3230 = vmatpush1.msra.mxu0 0.0
        %3231 = vmatprep.subr.mxu0 0.0
        %3232 = vmatpush1.msra.mxu0 0.0
        %3233 = vmatprep.subr.mxu0 0.0
        %3234 = vmatpush1.msra.mxu0 0.0
        %3235 = vmatprep.subr.mxu0 0.0
        %3236 = vmatpush1.msra.mxu0 0.0
        %3237 = vmatprep.subr.mxu0 0.0
        %3238 = vmatpush1.msra.mxu0 0.0
        %3239 = vmatprep.subr.mxu0 0.0
        %3240 = vmatpush1.msra.mxu0 0.0
        %3241 = vmatprep.subr.mxu0 0.0
        %3242 = vmatpush1.msra.mxu0 0.0
        %3243 = vmatprep.subr.mxu0 0.0
        %3244 = vmatpush1.msra.mxu0 0.0
        %3245 = vmatprep.mubr.f32.mxu0 0.0
        %3246 = vmatmul.mubr.f32.gmra.mrb[0].mxu0 %v3179
        %v3247 = vpop.f32.mrb[0].mxu0
        %v3248 = vadd.f32 0.0, %v3247
        %v3249 = vpop.f32.mrb[0].mxu0
        %3250 = vdwg.mxu0
        %s3251 = scalar_lea.vmem %s6, 32
        %v3252 = vld [vmem:[%s3251] sm:$0xff]
        %v3253 = vld [vmem:[%s3251 + $0x8] sm:$0xff]
        %v3254 = vld [vmem:[%s3251 + $0x10] sm:$0xff]
        %v3255 = vld [vmem:[%s3251 + $0x18] sm:$0xff]
        %s3256 = scalar_lea.vmem %s7, 32
        %v3257 = vld [vmem:[%s3256] sm:$0xff]
        %v3258 = vld [vmem:[%s3256 + $0x8] sm:$0xff]
        %v3259 = vld [vmem:[%s3256 + $0x10] sm:$0xff]
        %v3260 = vld [vmem:[%s3256 + $0x18] sm:$0xff]
        %v3261 = vlaneseq
        %v3262 = vshrl.u32 %v3261, 7
        %v3263 = vsub.s32 2, %v3262
        %v3264 = vrot.slane %v843, %v3263
        %v3266 = vsel %vm960, %v3248, 0
        %3268 = vmatprep.subr.mxu0 0.0
        %3269 = vmatpush1.msra.mxu0 %v3252
        %3270 = vmatprep.subr.mxu0 0.0
        %3271 = vmatpush1.msra.mxu0 %v3253
        %3272 = vmatprep.subr.mxu0 0.0
        %3273 = vmatpush1.msra.mxu0 %v3254
        %3274 = vmatprep.subr.mxu0 0.0
        %3275 = vmatpush1.msra.mxu0 %v3255
        %3276 = vmatprep.subr.mxu0 0.0
        %3277 = vmatpush1.msra.mxu0 0.0
        %3278 = vmatprep.subr.mxu0 0.0
        %3279 = vmatpush1.msra.mxu0 0.0
        %3280 = vmatprep.subr.mxu0 0.0
        %3281 = vmatpush1.msra.mxu0 0.0
        %3282 = vmatprep.subr.mxu0 0.0
        %3283 = vmatpush1.msra.mxu0 0.0
        %3284 = vmatprep.subr.mxu0 0.0
        %3285 = vmatpush1.msra.mxu0 0.0
        %3286 = vmatprep.subr.mxu0 0.0
        %3287 = vmatpush1.msra.mxu0 0.0
        %3288 = vmatprep.subr.mxu0 0.0
        %3289 = vmatpush1.msra.mxu0 0.0
        %3290 = vmatprep.subr.mxu0 0.0
        %3291 = vmatpush1.msra.mxu0 0.0
        %3292 = vmatprep.subr.mxu0 0.0
        %3293 = vmatpush1.msra.mxu0 0.0
        %3294 = vmatprep.subr.mxu0 0.0
        %3295 = vmatpush1.msra.mxu0 0.0
        %3296 = vmatprep.subr.mxu0 0.0
        %3297 = vmatpush1.msra.mxu0 0.0
        %3298 = vmatprep.subr.mxu0 0.0
        %3299 = vmatpush1.msra.mxu0 0.0
        %3300 = vmatprep.subr.mxu0 0.0
        %3301 = vmatpush1.msra.mxu0 0.0
        %3302 = vmatprep.subr.mxu0 0.0
        %3303 = vmatpush1.msra.mxu0 0.0
        %3304 = vmatprep.subr.mxu0 0.0
        %3305 = vmatpush1.msra.mxu0 0.0
        %3306 = vmatprep.subr.mxu0 0.0
        %3307 = vmatpush1.msra.mxu0 0.0
        %3308 = vmatprep.subr.mxu0 0.0
        %3309 = vmatpush1.msra.mxu0 0.0
        %3310 = vmatprep.subr.mxu0 0.0
        %3311 = vmatpush1.msra.mxu0 0.0
        %3312 = vmatprep.subr.mxu0 0.0
        %3313 = vmatpush1.msra.mxu0 0.0
        %3314 = vmatprep.subr.mxu0 0.0
        %3315 = vmatpush1.msra.mxu0 0.0
        %3316 = vmatprep.subr.mxu0 0.0
        %3317 = vmatpush1.msra.mxu0 0.0
        %3318 = vmatprep.subr.mxu0 0.0
        %3319 = vmatpush1.msra.mxu0 0.0
        %3320 = vmatprep.subr.mxu0 0.0
        %3321 = vmatpush1.msra.mxu0 0.0
        %3322 = vmatprep.subr.mxu0 0.0
        %3323 = vmatpush1.msra.mxu0 0.0
        %3324 = vmatprep.subr.mxu0 0.0
        %3325 = vmatpush1.msra.mxu0 0.0
        %3326 = vmatprep.subr.mxu0 0.0
        %3327 = vmatpush1.msra.mxu0 0.0
        %3328 = vmatprep.subr.mxu0 0.0
        %3329 = vmatpush1.msra.mxu0 0.0
        %3330 = vmatprep.subr.mxu0 0.0
        %3331 = vmatpush1.msra.mxu0 0.0
        %3332 = vmatprep.mubr.f32.mxu0 0.0
        %3333 = vmatmul.mubr.f32.gmra.mrb[0].mxu0 %v3266
        %v3334 = vpop.f32.mrb[0].mxu0
        %v3335 = vadd.f32 %v3264, %v3334
        %v3336 = vpop.f32.mrb[0].mxu0
        %3337 = vdwg.mxu0
        %3339 = vrot.lane.b32.xlu0 %v3335, 96
        %v3340 = vpop.permute.xlu0 %3339
        %v3341 = vsel %vm1050, %v3335, 0
        %v3343 = vsel %vm1050, %v3340, 0
        %3345 = vmatprep.subr.mxu0 0.0
        %3346 = vmatpush1.xpose.msra.mxu0 %v3343
        %3347 = vmatprep.subr.mxu0 0.0
        %3348 = vmatpush1.xpose.msra.mxu0 0.0
        %3349 = vmatprep.subr.mxu0 0.0
        %3350 = vmatpush1.xpose.msra.mxu0 0.0
        %3351 = vmatprep.subr.mxu0 0.0
        %3352 = vmatpush1.xpose.msra.mxu0 0.0
        %3353 = vmatprep.subr.mxu0 0.0
        %3354 = vmatpush1.xpose.msra.mxu0 0.0
        %3355 = vmatprep.subr.mxu0 0.0
        %3356 = vmatpush1.xpose.msra.mxu0 0.0
        %3357 = vmatprep.subr.mxu0 0.0
        %3358 = vmatpush1.xpose.msra.mxu0 0.0
        %3359 = vmatprep.subr.mxu0 0.0
        %3360 = vmatpush1.xpose.msra.mxu0 0.0
        %3361 = vmatprep.subr.mxu0 0.0
        %3362 = vmatpush1.xpose.msra.mxu0 0.0
        %3363 = vmatprep.subr.mxu0 0.0
        %3364 = vmatpush1.xpose.msra.mxu0 0.0
        %3365 = vmatprep.subr.mxu0 0.0
        %3366 = vmatpush1.xpose.msra.mxu0 0.0
        %3367 = vmatprep.subr.mxu0 0.0
        %3368 = vmatpush1.xpose.msra.mxu0 0.0
        %3369 = vmatprep.subr.mxu0 0.0
        %3370 = vmatpush1.xpose.msra.mxu0 0.0
        %3371 = vmatprep.subr.mxu0 0.0
        %3372 = vmatpush1.xpose.msra.mxu0 0.0
        %3373 = vmatprep.subr.mxu0 0.0
        %3374 = vmatpush1.xpose.msra.mxu0 0.0
        %3375 = vmatprep.subr.mxu0 0.0
        %3376 = vmatpush1.xpose.msra.mxu0 0.0
        %3377 = vmatprep.subr.mxu0 0.0
        %3378 = vmatpush1.xpose.msra.mxu0 0.0
        %3379 = vmatprep.subr.mxu0 0.0
        %3380 = vmatpush1.xpose.msra.mxu0 0.0
        %3381 = vmatprep.subr.mxu0 0.0
        %3382 = vmatpush1.xpose.msra.mxu0 0.0
        %3383 = vmatprep.subr.mxu0 0.0
        %3384 = vmatpush1.xpose.msra.mxu0 0.0
        %3385 = vmatprep.subr.mxu0 0.0
        %3386 = vmatpush1.xpose.msra.mxu0 0.0
        %3387 = vmatprep.subr.mxu0 0.0
        %3388 = vmatpush1.xpose.msra.mxu0 0.0
        %3389 = vmatprep.subr.mxu0 0.0
        %3390 = vmatpush1.xpose.msra.mxu0 0.0
        %3391 = vmatprep.subr.mxu0 0.0
        %3392 = vmatpush1.xpose.msra.mxu0 0.0
        %3393 = vmatprep.subr.mxu0 0.0
        %3394 = vmatpush1.xpose.msra.mxu0 0.0
        %3395 = vmatprep.subr.mxu0 0.0
        %3396 = vmatpush1.xpose.msra.mxu0 0.0
        %3397 = vmatprep.subr.mxu0 0.0
        %3398 = vmatpush1.xpose.msra.mxu0 0.0
        %3399 = vmatprep.subr.mxu0 0.0
        %3400 = vmatpush1.xpose.msra.mxu0 0.0
        %3401 = vmatprep.subr.mxu0 0.0
        %3402 = vmatpush1.xpose.msra.mxu0 0.0
        %3403 = vmatprep.subr.mxu0 0.0
        %3404 = vmatpush1.xpose.msra.mxu0 0.0
        %3405 = vmatprep.subr.mxu0 0.0
        %3406 = vmatpush1.xpose.msra.mxu0 0.0
        %3407 = vmatprep.subr.mxu0 0.0
        %3408 = vmatpush1.xpose.msra.mxu0 0.0
        %3409 = vmatprep.mubr.f32.mxu0 0.0
        %3410 = vmatmul.mubr.f32.gmra.mrb[0].mxu0 %v3341
        %v3411 = vpop.f32.mrb[0].mxu0
        %v3412 = vadd.f32 0.0, %v3411
        %v3413 = vpop.f32.mrb[0].mxu0
        %3414 = vdwg.mxu0
        %v3415 = vmul.f32 %v3412, 0.35355338
        %v3416 = vsel %vm1050, %v3415, -inf
        %3417 = vmax.xlane.f32.xlu0 %v3416
        %v3418 = vpop.xlane.xlu0 %3417
        %v3419 = vsub.f32 %v3415, %v3418
        %v3420 = vmul.f32 %v3419, 1.442695
        %v3421 = vpow.pop %v3420
        %v3422 = vsel %vm1050, %v3421, 0.0
        %3423 = vadd.xlane.f32.xlu0 %v3422
        %v3424 = vpop.xlane.xlu0 %3423
        %v3425 = vrcp.pop %v3424
        %v3426 = vmul.f32 %v3421, %v3425
        %3427 = vrot.lane.b32.xlu0 %v3335, 64
        %v3428 = vpop.permute.xlu0 %3427
        %v3431 = vsel %vm1050, %v3426, 0
        %3433 = vmatprep.subr.mxu0 0.0
        %3434 = vmatpush1.msra.mxu0 %v3428
        %3435 = vmatprep.subr.mxu0 0.0
        %3436 = vmatpush1.msra.mxu0 0.0
        %3437 = vmatprep.subr.mxu0 0.0
        %3438 = vmatpush1.msra.mxu0 0.0
        %3439 = vmatprep.subr.mxu0 0.0
        %3440 = vmatpush1.msra.mxu0 0.0
        %3441 = vmatprep.subr.mxu0 0.0
        %3442 = vmatpush1.msra.mxu0 0.0
        %3443 = vmatprep.subr.mxu0 0.0
        %3444 = vmatpush1.msra.mxu0 0.0
        %3445 = vmatprep.subr.mxu0 0.0
        %3446 = vmatpush1.msra.mxu0 0.0
        %3447 = vmatprep.subr.mxu0 0.0
        %3448 = vmatpush1.msra.mxu0 0.0
        %3449 = vmatprep.subr.mxu0 0.0
        %3450 = vmatpush1.msra.mxu0 0.0
        %3451 = vmatprep.subr.mxu0 0.0
        %3452 = vmatpush1.msra.mxu0 0.0
        %3453 = vmatprep.subr.mxu0 0.0
        %3454 = vmatpush1.msra.mxu0 0.0
        %3455 = vmatprep.subr.mxu0 0.0
        %3456 = vmatpush1.msra.mxu0 0.0
        %3457 = vmatprep.subr.mxu0 0.0
        %3458 = vmatpush1.msra.mxu0 0.0
        %3459 = vmatprep.subr.mxu0 0.0
        %3460 = vmatpush1.msra.mxu0 0.0
        %3461 = vmatprep.subr.mxu0 0.0
        %3462 = vmatpush1.msra.mxu0 0.0
        %3463 = vmatprep.subr.mxu0 0.0
        %3464 = vmatpush1.msra.mxu0 0.0
        %3465 = vmatprep.subr.mxu0 0.0
        %3466 = vmatpush1.msra.mxu0 0.0
        %3467 = vmatprep.subr.mxu0 0.0
        %3468 = vmatpush1.msra.mxu0 0.0
        %3469 = vmatprep.subr.mxu0 0.0
        %3470 = vmatpush1.msra.mxu0 0.0
        %3471 = vmatprep.subr.mxu0 0.0
        %3472 = vmatpush1.msra.mxu0 0.0
        %3473 = vmatprep.subr.mxu0 0.0
        %3474 = vmatpush1.msra.mxu0 0.0
        %3475 = vmatprep.subr.mxu0 0.0
        %3476 = vmatpush1.msra.mxu0 0.0
        %3477 = vmatprep.subr.mxu0 0.0
        %3478 = vmatpush1.msra.mxu0 0.0
        %3479 = vmatprep.subr.mxu0 0.0
        %3480 = vmatpush1.msra.mxu0 0.0
        %3481 = vmatprep.subr.mxu0 0.0
        %3482 = vmatpush1.msra.mxu0 0.0
        %3483 = vmatprep.subr.mxu0 0.0
        %3484 = vmatpush1.msra.mxu0 0.0
        %3485 = vmatprep.subr.mxu0 0.0
        %3486 = vmatpush1.msra.mxu0 0.0
        %3487 = vmatprep.subr.mxu0 0.0
        %3488 = vmatpush1.msra.mxu0 0.0
        %3489 = vmatprep.subr.mxu0 0.0
        %3490 = vmatpush1.msra.mxu0 0.0
        %3491 = vmatprep.subr.mxu0 0.0
        %3492 = vmatpush1.msra.mxu0 0.0
        %3493 = vmatprep.subr.mxu0 0.0
        %3494 = vmatpush1.msra.mxu0 0.0
        %3495 = vmatprep.subr.mxu0 0.0
        %3496 = vmatpush1.msra.mxu0 0.0
        %3497 = vmatprep.mubr.f32.mxu0 0.0
        %3498 = vmatmul.mubr.f32.gmra.mrb[0].mxu0 %v3431
        %v3499 = vpop.f32.mrb[0].mxu0
        %v3500 = vadd.f32 0.0, %v3499
        %v3501 = vpop.f32.mrb[0].mxu0
        %3502 = vdwg.mxu0
        %3503 = vrot.lane.b32.xlu0 %v3335, 120
        %v3504 = vpop.permute.xlu0 %3503
        %3505 = vrot.lane.b32.xlu0 %v3335, 88
        %v3506 = vpop.permute.xlu0 %3505
        %v3507 = vsel %vm1050, %v3504, 0
        %v3509 = vsel %vm1050, %v3506, 0
        %3511 = vmatprep.subr.mxu0 0.0
        %3512 = vmatpush1.xpose.msra.mxu0 %v3509
        %3513 = vmatprep.subr.mxu0 0.0
        %3514 = vmatpush1.xpose.msra.mxu0 0.0
        %3515 = vmatprep.subr.mxu0 0.0
        %3516 = vmatpush1.xpose.msra.mxu0 0.0
        %3517 = vmatprep.subr.mxu0 0.0
        %3518 = vmatpush1.xpose.msra.mxu0 0.0
        %3519 = vmatprep.subr.mxu0 0.0
        %3520 = vmatpush1.xpose.msra.mxu0 0.0
        %3521 = vmatprep.subr.mxu0 0.0
        %3522 = vmatpush1.xpose.msra.mxu0 0.0
        %3523 = vmatprep.subr.mxu0 0.0
        %3524 = vmatpush1.xpose.msra.mxu0 0.0
        %3525 = vmatprep.subr.mxu0 0.0
        %3526 = vmatpush1.xpose.msra.mxu0 0.0
        %3527 = vmatprep.subr.mxu0 0.0
        %3528 = vmatpush1.xpose.msra.mxu0 0.0
        %3529 = vmatprep.subr.mxu0 0.0
        %3530 = vmatpush1.xpose.msra.mxu0 0.0
        %3531 = vmatprep.subr.mxu0 0.0
        %3532 = vmatpush1.xpose.msra.mxu0 0.0
        %3533 = vmatprep.subr.mxu0 0.0
        %3534 = vmatpush1.xpose.msra.mxu0 0.0
        %3535 = vmatprep.subr.mxu0 0.0
        %3536 = vmatpush1.xpose.msra.mxu0 0.0
        %3537 = vmatprep.subr.mxu0 0.0
        %3538 = vmatpush1.xpose.msra.mxu0 0.0
        %3539 = vmatprep.subr.mxu0 0.0
        %3540 = vmatpush1.xpose.msra.mxu0 0.0
        %3541 = vmatprep.subr.mxu0 0.0
        %3542 = vmatpush1.xpose.msra.mxu0 0.0
        %3543 = vmatprep.subr.mxu0 0.0
        %3544 = vmatpush1.xpose.msra.mxu0 0.0
        %3545 = vmatprep.subr.mxu0 0.0
        %3546 = vmatpush1.xpose.msra.mxu0 0.0
        %3547 = vmatprep.subr.mxu0 0.0
        %3548 = vmatpush1.xpose.msra.mxu0 0.0
        %3549 = vmatprep.subr.mxu0 0.0
        %3550 = vmatpush1.xpose.msra.mxu0 0.0
        %3551 = vmatprep.subr.mxu0 0.0
        %3552 = vmatpush1.xpose.msra.mxu0 0.0
        %3553 = vmatprep.subr.mxu0 0.0
        %3554 = vmatpush1.xpose.msra.mxu0 0.0
        %3555 = vmatprep.subr.mxu0 0.0
        %3556 = vmatpush1.xpose.msra.mxu0 0.0
        %3557 = vmatprep.subr.mxu0 0.0
        %3558 = vmatpush1.xpose.msra.mxu0 0.0
        %3559 = vmatprep.subr.mxu0 0.0
        %3560 = vmatpush1.xpose.msra.mxu0 0.0
        %3561 = vmatprep.subr.mxu0 0.0
        %3562 = vmatpush1.xpose.msra.mxu0 0.0
        %3563 = vmatprep.subr.mxu0 0.0
        %3564 = vmatpush1.xpose.msra.mxu0 0.0
        %3565 = vmatprep.subr.mxu0 0.0
        %3566 = vmatpush1.xpose.msra.mxu0 0.0
        %3567 = vmatprep.subr.mxu0 0.0
        %3568 = vmatpush1.xpose.msra.mxu0 0.0
        %3569 = vmatprep.subr.mxu0 0.0
        %3570 = vmatpush1.xpose.msra.mxu0 0.0
        %3571 = vmatprep.subr.mxu0 0.0
        %3572 = vmatpush1.xpose.msra.mxu0 0.0
        %3573 = vmatprep.subr.mxu0 0.0
        %3574 = vmatpush1.xpose.msra.mxu0 0.0
        %3575 = vmatprep.mubr.f32.mxu0 0.0
        %3576 = vmatmul.mubr.f32.gmra.mrb[0].mxu0 %v3507
        %v3577 = vpop.f32.mrb[0].mxu0
        %v3578 = vadd.f32 0.0, %v3577
        %v3579 = vpop.f32.mrb[0].mxu0
        %3580 = vdwg.mxu0
        %v3581 = vmul.f32 %v3578, 0.35355338
        %v3582 = vsel %vm1050, %v3581, -inf
        %3583 = vmax.xlane.f32.xlu0 %v3582
        %v3584 = vpop.xlane.xlu0 %3583
        %v3585 = vsub.f32 %v3581, %v3584
        %v3586 = vmul.f32 %v3585, 1.442695
        %v3587 = vpow.pop %v3586
        %v3588 = vsel %vm1050, %v3587, 0.0
        %3589 = vadd.xlane.f32.xlu0 %v3588
        %v3590 = vpop.xlane.xlu0 %3589
        %v3591 = vrcp.pop %v3590
        %v3592 = vmul.f32 %v3587, %v3591
        %3593 = vrot.lane.b32.xlu0 %v3335, 56
        %v3594 = vpop.permute.xlu0 %3593
        %v3597 = vsel %vm1050, %v3592, 0
        %3599 = vmatprep.subr.mxu0 0.0
        %3600 = vmatpush1.msra.mxu0 %v3594
        %3601 = vmatprep.subr.mxu0 0.0
        %3602 = vmatpush1.msra.mxu0 0.0
        %3603 = vmatprep.subr.mxu0 0.0
        %3604 = vmatpush1.msra.mxu0 0.0
        %3605 = vmatprep.subr.mxu0 0.0
        %3606 = vmatpush1.msra.mxu0 0.0
        %3607 = vmatprep.subr.mxu0 0.0
        %3608 = vmatpush1.msra.mxu0 0.0
        %3609 = vmatprep.subr.mxu0 0.0
        %3610 = vmatpush1.msra.mxu0 0.0
        %3611 = vmatprep.subr.mxu0 0.0
        %3612 = vmatpush1.msra.mxu0 0.0
        %3613 = vmatprep.subr.mxu0 0.0
        %3614 = vmatpush1.msra.mxu0 0.0
        %3615 = vmatprep.subr.mxu0 0.0
        %3616 = vmatpush1.msra.mxu0 0.0
        %3617 = vmatprep.subr.mxu0 0.0
        %3618 = vmatpush1.msra.mxu0 0.0
        %3619 = vmatprep.subr.mxu0 0.0
        %3620 = vmatpush1.msra.mxu0 0.0
        %3621 = vmatprep.subr.mxu0 0.0
        %3622 = vmatpush1.msra.mxu0 0.0
        %3623 = vmatprep.subr.mxu0 0.0
        %3624 = vmatpush1.msra.mxu0 0.0
        %3625 = vmatprep.subr.mxu0 0.0
        %3626 = vmatpush1.msra.mxu0 0.0
        %3627 = vmatprep.subr.mxu0 0.0
        %3628 = vmatpush1.msra.mxu0 0.0
        %3629 = vmatprep.subr.mxu0 0.0
        %3630 = vmatpush1.msra.mxu0 0.0
        %3631 = vmatprep.subr.mxu0 0.0
        %3632 = vmatpush1.msra.mxu0 0.0
        %3633 = vmatprep.subr.mxu0 0.0
        %3634 = vmatpush1.msra.mxu0 0.0
        %3635 = vmatprep.subr.mxu0 0.0
        %3636 = vmatpush1.msra.mxu0 0.0
        %3637 = vmatprep.subr.mxu0 0.0
        %3638 = vmatpush1.msra.mxu0 0.0
        %3639 = vmatprep.subr.mxu0 0.0
        %3640 = vmatpush1.msra.mxu0 0.0
        %3641 = vmatprep.subr.mxu0 0.0
        %3642 = vmatpush1.msra.mxu0 0.0
        %3643 = vmatprep.subr.mxu0 0.0
        %3644 = vmatpush1.msra.mxu0 0.0
        %3645 = vmatprep.subr.mxu0 0.0
        %3646 = vmatpush1.msra.mxu0 0.0
        %3647 = vmatprep.subr.mxu0 0.0
        %3648 = vmatpush1.msra.mxu0 0.0
        %3649 = vmatprep.subr.mxu0 0.0
        %3650 = vmatpush1.msra.mxu0 0.0
        %3651 = vmatprep.subr.mxu0 0.0
        %3652 = vmatpush1.msra.mxu0 0.0
        %3653 = vmatprep.subr.mxu0 0.0
        %3654 = vmatpush1.msra.mxu0 0.0
        %3655 = vmatprep.subr.mxu0 0.0
        %3656 = vmatpush1.msra.mxu0 0.0
        %3657 = vmatprep.subr.mxu0 0.0
        %3658 = vmatpush1.msra.mxu0 0.0
        %3659 = vmatprep.subr.mxu0 0.0
        %3660 = vmatpush1.msra.mxu0 0.0
        %3661 = vmatprep.subr.mxu0 0.0
        %3662 = vmatpush1.msra.mxu0 0.0
        %3663 = vmatprep.mubr.f32.mxu0 0.0
        %3664 = vmatmul.mubr.f32.gmra.mrb[0].mxu0 %v3597
        %v3665 = vpop.f32.mrb[0].mxu0
        %v3666 = vadd.f32 0.0, %v3665
        %v3667 = vpop.f32.mrb[0].mxu0
        %3668 = vdwg.mxu0
        %3669 = vrot.lane.b32.xlu0 %v3335, 112
        %v3670 = vpop.permute.xlu0 %3669
        %3671 = vrot.lane.b32.xlu0 %v3335, 80
        %v3672 = vpop.permute.xlu0 %3671
        %v3673 = vsel %vm1050, %v3670, 0
        %v3675 = vsel %vm1050, %v3672, 0
        %3677 = vmatprep.subr.mxu0 0.0
        %3678 = vmatpush1.xpose.msra.mxu0 %v3675
        %3679 = vmatprep.subr.mxu0 0.0
        %3680 = vmatpush1.xpose.msra.mxu0 0.0
        %3681 = vmatprep.subr.mxu0 0.0
        %3682 = vmatpush1.xpose.msra.mxu0 0.0
        %3683 = vmatprep.subr.mxu0 0.0
        %3684 = vmatpush1.xpose.msra.mxu0 0.0
        %3685 = vmatprep.subr.mxu0 0.0
        %3686 = vmatpush1.xpose.msra.mxu0 0.0
        %3687 = vmatprep.subr.mxu0 0.0
        %3688 = vmatpush1.xpose.msra.mxu0 0.0
        %3689 = vmatprep.subr.mxu0 0.0
        %3690 = vmatpush1.xpose.msra.mxu0 0.0
        %3691 = vmatprep.subr.mxu0 0.0
        %3692 = vmatpush1.xpose.msra.mxu0 0.0
        %3693 = vmatprep.subr.mxu0 0.0
        %3694 = vmatpush1.xpose.msra.mxu0 0.0
        %3695 = vmatprep.subr.mxu0 0.0
        %3696 = vmatpush1.xpose.msra.mxu0 0.0
        %3697 = vmatprep.subr.mxu0 0.0
        %3698 = vmatpush1.xpose.msra.mxu0 0.0
        %3699 = vmatprep.subr.mxu0 0.0
        %3700 = vmatpush1.xpose.msra.mxu0 0.0
        %3701 = vmatprep.subr.mxu0 0.0
        %3702 = vmatpush1.xpose.msra.mxu0 0.0
        %3703 = vmatprep.subr.mxu0 0.0
        %3704 = vmatpush1.xpose.msra.mxu0 0.0
        %3705 = vmatprep.subr.mxu0 0.0
        %3706 = vmatpush1.xpose.msra.mxu0 0.0
        %3707 = vmatprep.subr.mxu0 0.0
        %3708 = vmatpush1.xpose.msra.mxu0 0.0
        %3709 = vmatprep.subr.mxu0 0.0
        %3710 = vmatpush1.xpose.msra.mxu0 0.0
        %3711 = vmatprep.subr.mxu0 0.0
        %3712 = vmatpush1.xpose.msra.mxu0 0.0
        %3713 = vmatprep.subr.mxu0 0.0
        %3714 = vmatpush1.xpose.msra.mxu0 0.0
        %3715 = vmatprep.subr.mxu0 0.0
        %3716 = vmatpush1.xpose.msra.mxu0 0.0
        %3717 = vmatprep.subr.mxu0 0.0
        %3718 = vmatpush1.xpose.msra.mxu0 0.0
        %3719 = vmatprep.subr.mxu0 0.0
        %3720 = vmatpush1.xpose.msra.mxu0 0.0
        %3721 = vmatprep.subr.mxu0 0.0
        %3722 = vmatpush1.xpose.msra.mxu0 0.0
        %3723 = vmatprep.subr.mxu0 0.0
        %3724 = vmatpush1.xpose.msra.mxu0 0.0
        %3725 = vmatprep.subr.mxu0 0.0
        %3726 = vmatpush1.xpose.msra.mxu0 0.0
        %3727 = vmatprep.subr.mxu0 0.0
        %3728 = vmatpush1.xpose.msra.mxu0 0.0
        %3729 = vmatprep.subr.mxu0 0.0
        %3730 = vmatpush1.xpose.msra.mxu0 0.0
        %3731 = vmatprep.subr.mxu0 0.0
        %3732 = vmatpush1.xpose.msra.mxu0 0.0
        %3733 = vmatprep.subr.mxu0 0.0
        %3734 = vmatpush1.xpose.msra.mxu0 0.0
        %3735 = vmatprep.subr.mxu0 0.0
        %3736 = vmatpush1.xpose.msra.mxu0 0.0
        %3737 = vmatprep.subr.mxu0 0.0
        %3738 = vmatpush1.xpose.msra.mxu0 0.0
        %3739 = vmatprep.subr.mxu0 0.0
        %3740 = vmatpush1.xpose.msra.mxu0 0.0
        %3741 = vmatprep.mubr.f32.mxu0 0.0
        %3742 = vmatmul.mubr.f32.gmra.mrb[0].mxu0 %v3673
        %v3743 = vpop.f32.mrb[0].mxu0
        %v3744 = vadd.f32 0.0, %v3743
        %v3745 = vpop.f32.mrb[0].mxu0
        %3746 = vdwg.mxu0
        %v3747 = vmul.f32 %v3744, 0.35355338
        %v3748 = vsel %vm1050, %v3747, -inf
        %3749 = vmax.xlane.f32.xlu0 %v3748
        %v3750 = vpop.xlane.xlu0 %3749
        %v3751 = vsub.f32 %v3747, %v3750
        %v3752 = vmul.f32 %v3751, 1.442695
        %v3753 = vpow.pop %v3752
        %v3754 = vsel %vm1050, %v3753, 0.0
        %3755 = vadd.xlane.f32.xlu0 %v3754
        %v3756 = vpop.xlane.xlu0 %3755
        %v3757 = vrcp.pop %v3756
        %v3758 = vmul.f32 %v3753, %v3757
        %3759 = vrot.lane.b32.xlu0 %v3335, 48
        %v3760 = vpop.permute.xlu0 %3759
        %v3763 = vsel %vm1050, %v3758, 0
        %3765 = vmatprep.subr.mxu0 0.0
        %3766 = vmatpush1.msra.mxu0 %v3760
        %3767 = vmatprep.subr.mxu0 0.0
        %3768 = vmatpush1.msra.mxu0 0.0
        %3769 = vmatprep.subr.mxu0 0.0
        %3770 = vmatpush1.msra.mxu0 0.0
        %3771 = vmatprep.subr.mxu0 0.0
        %3772 = vmatpush1.msra.mxu0 0.0
        %3773 = vmatprep.subr.mxu0 0.0
        %3774 = vmatpush1.msra.mxu0 0.0
        %3775 = vmatprep.subr.mxu0 0.0
        %3776 = vmatpush1.msra.mxu0 0.0
        %3777 = vmatprep.subr.mxu0 0.0
        %3778 = vmatpush1.msra.mxu0 0.0
        %3779 = vmatprep.subr.mxu0 0.0
        %3780 = vmatpush1.msra.mxu0 0.0
        %3781 = vmatprep.subr.mxu0 0.0
        %3782 = vmatpush1.msra.mxu0 0.0
        %3783 = vmatprep.subr.mxu0 0.0
        %3784 = vmatpush1.msra.mxu0 0.0
        %3785 = vmatprep.subr.mxu0 0.0
        %3786 = vmatpush1.msra.mxu0 0.0
        %3787 = vmatprep.subr.mxu0 0.0
        %3788 = vmatpush1.msra.mxu0 0.0
        %3789 = vmatprep.subr.mxu0 0.0
        %3790 = vmatpush1.msra.mxu0 0.0
        %3791 = vmatprep.subr.mxu0 0.0
        %3792 = vmatpush1.msra.mxu0 0.0
        %3793 = vmatprep.subr.mxu0 0.0
        %3794 = vmatpush1.msra.mxu0 0.0
        %3795 = vmatprep.subr.mxu0 0.0
        %3796 = vmatpush1.msra.mxu0 0.0
        %3797 = vmatprep.subr.mxu0 0.0
        %3798 = vmatpush1.msra.mxu0 0.0
        %3799 = vmatprep.subr.mxu0 0.0
        %3800 = vmatpush1.msra.mxu0 0.0
        %3801 = vmatprep.subr.mxu0 0.0
        %3802 = vmatpush1.msra.mxu0 0.0
        %3803 = vmatprep.subr.mxu0 0.0
        %3804 = vmatpush1.msra.mxu0 0.0
        %3805 = vmatprep.subr.mxu0 0.0
        %3806 = vmatpush1.msra.mxu0 0.0
        %3807 = vmatprep.subr.mxu0 0.0
        %3808 = vmatpush1.msra.mxu0 0.0
        %3809 = vmatprep.subr.mxu0 0.0
        %3810 = vmatpush1.msra.mxu0 0.0
        %3811 = vmatprep.subr.mxu0 0.0
        %3812 = vmatpush1.msra.mxu0 0.0
        %3813 = vmatprep.subr.mxu0 0.0
        %3814 = vmatpush1.msra.mxu0 0.0
        %3815 = vmatprep.subr.mxu0 0.0
        %3816 = vmatpush1.msra.mxu0 0.0
        %3817 = vmatprep.subr.mxu0 0.0
        %3818 = vmatpush1.msra.mxu0 0.0
        %3819 = vmatprep.subr.mxu0 0.0
        %3820 = vmatpush1.msra.mxu0 0.0
        %3821 = vmatprep.subr.mxu0 0.0
        %3822 = vmatpush1.msra.mxu0 0.0
        %3823 = vmatprep.subr.mxu0 0.0
        %3824 = vmatpush1.msra.mxu0 0.0
        %3825 = vmatprep.subr.mxu0 0.0
        %3826 = vmatpush1.msra.mxu0 0.0
        %3827 = vmatprep.subr.mxu0 0.0
        %3828 = vmatpush1.msra.mxu0 0.0
        %3829 = vmatprep.mubr.f32.mxu0 0.0
        %3830 = vmatmul.mubr.f32.gmra.mrb[0].mxu0 %v3763
        %v3831 = vpop.f32.mrb[0].mxu0
        %v3832 = vadd.f32 0.0, %v3831
        %v3833 = vpop.f32.mrb[0].mxu0
        %3834 = vdwg.mxu0
        %3835 = vrot.lane.b32.xlu0 %v3335, 104
        %v3836 = vpop.permute.xlu0 %3835
        %3837 = vrot.lane.b32.xlu0 %v3335, 72
        %v3838 = vpop.permute.xlu0 %3837
        %v3839 = vsel %vm1050, %v3836, 0
        %v3841 = vsel %vm1050, %v3838, 0
        %3843 = vmatprep.subr.mxu0 0.0
        %3844 = vmatpush1.xpose.msra.mxu0 %v3841
        %3845 = vmatprep.subr.mxu0 0.0
        %3846 = vmatpush1.xpose.msra.mxu0 0.0
        %3847 = vmatprep.subr.mxu0 0.0
        %3848 = vmatpush1.xpose.msra.mxu0 0.0
        %3849 = vmatprep.subr.mxu0 0.0
        %3850 = vmatpush1.xpose.msra.mxu0 0.0
        %3851 = vmatprep.subr.mxu0 0.0
        %3852 = vmatpush1.xpose.msra.mxu0 0.0
        %3853 = vmatprep.subr.mxu0 0.0
        %3854 = vmatpush1.xpose.msra.mxu0 0.0
        %3855 = vmatprep.subr.mxu0 0.0
        %3856 = vmatpush1.xpose.msra.mxu0 0.0
        %3857 = vmatprep.subr.mxu0 0.0
        %3858 = vmatpush1.xpose.msra.mxu0 0.0
        %3859 = vmatprep.subr.mxu0 0.0
        %3860 = vmatpush1.xpose.msra.mxu0 0.0
        %3861 = vmatprep.subr.mxu0 0.0
        %3862 = vmatpush1.xpose.msra.mxu0 0.0
        %3863 = vmatprep.subr.mxu0 0.0
        %3864 = vmatpush1.xpose.msra.mxu0 0.0
        %3865 = vmatprep.subr.mxu0 0.0
        %3866 = vmatpush1.xpose.msra.mxu0 0.0
        %3867 = vmatprep.subr.mxu0 0.0
        %3868 = vmatpush1.xpose.msra.mxu0 0.0
        %3869 = vmatprep.subr.mxu0 0.0
        %3870 = vmatpush1.xpose.msra.mxu0 0.0
        %3871 = vmatprep.subr.mxu0 0.0
        %3872 = vmatpush1.xpose.msra.mxu0 0.0
        %3873 = vmatprep.subr.mxu0 0.0
        %3874 = vmatpush1.xpose.msra.mxu0 0.0
        %3875 = vmatprep.subr.mxu0 0.0
        %3876 = vmatpush1.xpose.msra.mxu0 0.0
        %3877 = vmatprep.subr.mxu0 0.0
        %3878 = vmatpush1.xpose.msra.mxu0 0.0
        %3879 = vmatprep.subr.mxu0 0.0
        %3880 = vmatpush1.xpose.msra.mxu0 0.0
        %3881 = vmatprep.subr.mxu0 0.0
        %3882 = vmatpush1.xpose.msra.mxu0 0.0
        %3883 = vmatprep.subr.mxu0 0.0
        %3884 = vmatpush1.xpose.msra.mxu0 0.0
        %3885 = vmatprep.subr.mxu0 0.0
        %3886 = vmatpush1.xpose.msra.mxu0 0.0
        %3887 = vmatprep.subr.mxu0 0.0
        %3888 = vmatpush1.xpose.msra.mxu0 0.0
        %3889 = vmatprep.subr.mxu0 0.0
        %3890 = vmatpush1.xpose.msra.mxu0 0.0
        %3891 = vmatprep.subr.mxu0 0.0
        %3892 = vmatpush1.xpose.msra.mxu0 0.0
        %3893 = vmatprep.subr.mxu0 0.0
        %3894 = vmatpush1.xpose.msra.mxu0 0.0
        %3895 = vmatprep.subr.mxu0 0.0
        %3896 = vmatpush1.xpose.msra.mxu0 0.0
        %3897 = vmatprep.subr.mxu0 0.0
        %3898 = vmatpush1.xpose.msra.mxu0 0.0
        %3899 = vmatprep.subr.mxu0 0.0
        %3900 = vmatpush1.xpose.msra.mxu0 0.0
        %3901 = vmatprep.subr.mxu0 0.0
        %3902 = vmatpush1.xpose.msra.mxu0 0.0
        %3903 = vmatprep.subr.mxu0 0.0
        %3904 = vmatpush1.xpose.msra.mxu0 0.0
        %3905 = vmatprep.subr.mxu0 0.0
        %3906 = vmatpush1.xpose.msra.mxu0 0.0
        %3907 = vmatprep.mubr.f32.mxu0 0.0
        %3908 = vmatmul.mubr.f32.gmra.mrb[0].mxu0 %v3839
        %v3909 = vpop.f32.mrb[0].mxu0
        %v3910 = vadd.f32 0.0, %v3909
        %v3911 = vpop.f32.mrb[0].mxu0
        %3912 = vdwg.mxu0
        %v3913 = vmul.f32 %v3910, 0.35355338
        %v3914 = vsel %vm1050, %v3913, -inf
        %3915 = vmax.xlane.f32.xlu0 %v3914
        %v3916 = vpop.xlane.xlu0 %3915
        %v3917 = vsub.f32 %v3913, %v3916
        %v3918 = vmul.f32 %v3917, 1.442695
        %v3919 = vpow.pop %v3918
        %v3920 = vsel %vm1050, %v3919, 0.0
        %3921 = vadd.xlane.f32.xlu0 %v3920
        %v3922 = vpop.xlane.xlu0 %3921
        %v3923 = vrcp.pop %v3922
        %v3924 = vmul.f32 %v3919, %v3923
        %3925 = vrot.lane.b32.xlu0 %v3335, 40
        %v3926 = vpop.permute.xlu0 %3925
        %v3929 = vsel %vm1050, %v3924, 0
        %3931 = vmatprep.subr.mxu0 0.0
        %3932 = vmatpush1.msra.mxu0 %v3926
        %3933 = vmatprep.subr.mxu0 0.0
        %3934 = vmatpush1.msra.mxu0 0.0
        %3935 = vmatprep.subr.mxu0 0.0
        %3936 = vmatpush1.msra.mxu0 0.0
        %3937 = vmatprep.subr.mxu0 0.0
        %3938 = vmatpush1.msra.mxu0 0.0
        %3939 = vmatprep.subr.mxu0 0.0
        %3940 = vmatpush1.msra.mxu0 0.0
        %3941 = vmatprep.subr.mxu0 0.0
        %3942 = vmatpush1.msra.mxu0 0.0
        %3943 = vmatprep.subr.mxu0 0.0
        %3944 = vmatpush1.msra.mxu0 0.0
        %3945 = vmatprep.subr.mxu0 0.0
        %3946 = vmatpush1.msra.mxu0 0.0
        %3947 = vmatprep.subr.mxu0 0.0
        %3948 = vmatpush1.msra.mxu0 0.0
        %3949 = vmatprep.subr.mxu0 0.0
        %3950 = vmatpush1.msra.mxu0 0.0
        %3951 = vmatprep.subr.mxu0 0.0
        %3952 = vmatpush1.msra.mxu0 0.0
        %3953 = vmatprep.subr.mxu0 0.0
        %3954 = vmatpush1.msra.mxu0 0.0
        %3955 = vmatprep.subr.mxu0 0.0
        %3956 = vmatpush1.msra.mxu0 0.0
        %3957 = vmatprep.subr.mxu0 0.0
        %3958 = vmatpush1.msra.mxu0 0.0
        %3959 = vmatprep.subr.mxu0 0.0
        %3960 = vmatpush1.msra.mxu0 0.0
        %3961 = vmatprep.subr.mxu0 0.0
        %3962 = vmatpush1.msra.mxu0 0.0
        %3963 = vmatprep.subr.mxu0 0.0
        %3964 = vmatpush1.msra.mxu0 0.0
        %3965 = vmatprep.subr.mxu0 0.0
        %3966 = vmatpush1.msra.mxu0 0.0
        %3967 = vmatprep.subr.mxu0 0.0
        %3968 = vmatpush1.msra.mxu0 0.0
        %3969 = vmatprep.subr.mxu0 0.0
        %3970 = vmatpush1.msra.mxu0 0.0
        %3971 = vmatprep.subr.mxu0 0.0
        %3972 = vmatpush1.msra.mxu0 0.0
        %3973 = vmatprep.subr.mxu0 0.0
        %3974 = vmatpush1.msra.mxu0 0.0
        %3975 = vmatprep.subr.mxu0 0.0
        %3976 = vmatpush1.msra.mxu0 0.0
        %3977 = vmatprep.subr.mxu0 0.0
        %3978 = vmatpush1.msra.mxu0 0.0
        %3979 = vmatprep.subr.mxu0 0.0
        %3980 = vmatpush1.msra.mxu0 0.0
        %3981 = vmatprep.subr.mxu0 0.0
        %3982 = vmatpush1.msra.mxu0 0.0
        %3983 = vmatprep.subr.mxu0 0.0
        %3984 = vmatpush1.msra.mxu0 0.0
        %3985 = vmatprep.subr.mxu0 0.0
        %3986 = vmatpush1.msra.mxu0 0.0
        %3987 = vmatprep.subr.mxu0 0.0
        %3988 = vmatpush1.msra.mxu0 0.0
        %3989 = vmatprep.subr.mxu0 0.0
        %3990 = vmatpush1.msra.mxu0 0.0
        %3991 = vmatprep.subr.mxu0 0.0
        %3992 = vmatpush1.msra.mxu0 0.0
        %3993 = vmatprep.subr.mxu0 0.0
        %3994 = vmatpush1.msra.mxu0 0.0
        %3995 = vmatprep.mubr.f32.mxu0 0.0
        %3996 = vmatmul.mubr.f32.gmra.mrb[0].mxu0 %v3929
        %v3997 = vpop.f32.mrb[0].mxu0
        %v3998 = vadd.f32 0.0, %v3997
        %v3999 = vpop.f32.mrb[0].mxu0
        %4000 = vdwg.mxu0
        %4002 = vrot.lane.b32.xlu0 %v3666, 8
        %v4003 = vpop.permute.xlu0 %4002
        %4006 = vrot.lane.b32.xlu0 %v3832, 16
        %v4007 = vpop.permute.xlu0 %4006
        %4010 = vrot.lane.b32.xlu0 %v3998, 24
        %v4011 = vpop.permute.xlu0 %4010
        %v4013 = vsel %vm1050, %v3500, %v4003
        %v4014 = vsel %vm1136, %v4013, %v4007
        %v4015 = vsel %vm2460, %v4014, %v4011
        %v4016 = vlaneseq
        %v4017 = vshrl.u32 %v4016, 7
        %v4018 = vsub.s32 3, %v4017
        %v4019 = vrot.slane %v843, %v4018
        %v4021 = vsel %vm960, %v4015, 0
        %4023 = vmatprep.subr.mxu0 0.0
        %4024 = vmatpush1.msra.mxu0 %v3257
        %4025 = vmatprep.subr.mxu0 0.0
        %4026 = vmatpush1.msra.mxu0 %v3258
        %4027 = vmatprep.subr.mxu0 0.0
        %4028 = vmatpush1.msra.mxu0 %v3259
        %4029 = vmatprep.subr.mxu0 0.0
        %4030 = vmatpush1.msra.mxu0 %v3260
        %4031 = vmatprep.subr.mxu0 0.0
        %4032 = vmatpush1.msra.mxu0 0.0
        %4033 = vmatprep.subr.mxu0 0.0
        %4034 = vmatpush1.msra.mxu0 0.0
        %4035 = vmatprep.subr.mxu0 0.0
        %4036 = vmatpush1.msra.mxu0 0.0
        %4037 = vmatprep.subr.mxu0 0.0
        %4038 = vmatpush1.msra.mxu0 0.0
        %4039 = vmatprep.subr.mxu0 0.0
        %4040 = vmatpush1.msra.mxu0 0.0
        %4041 = vmatprep.subr.mxu0 0.0
        %4042 = vmatpush1.msra.mxu0 0.0
        %4043 = vmatprep.subr.mxu0 0.0
        %4044 = vmatpush1.msra.mxu0 0.0
        %4045 = vmatprep.subr.mxu0 0.0
        %4046 = vmatpush1.msra.mxu0 0.0
        %4047 = vmatprep.subr.mxu0 0.0
        %4048 = vmatpush1.msra.mxu0 0.0
        %4049 = vmatprep.subr.mxu0 0.0
        %4050 = vmatpush1.msra.mxu0 0.0
        %4051 = vmatprep.subr.mxu0 0.0
        %4052 = vmatpush1.msra.mxu0 0.0
        %4053 = vmatprep.subr.mxu0 0.0
        %4054 = vmatpush1.msra.mxu0 0.0
        %4055 = vmatprep.subr.mxu0 0.0
        %4056 = vmatpush1.msra.mxu0 0.0
        %4057 = vmatprep.subr.mxu0 0.0
        %4058 = vmatpush1.msra.mxu0 0.0
        %4059 = vmatprep.subr.mxu0 0.0
        %4060 = vmatpush1.msra.mxu0 0.0
        %4061 = vmatprep.subr.mxu0 0.0
        %4062 = vmatpush1.msra.mxu0 0.0
        %4063 = vmatprep.subr.mxu0 0.0
        %4064 = vmatpush1.msra.mxu0 0.0
        %4065 = vmatprep.subr.mxu0 0.0
        %4066 = vmatpush1.msra.mxu0 0.0
        %4067 = vmatprep.subr.mxu0 0.0
        %4068 = vmatpush1.msra.mxu0 0.0
        %4069 = vmatprep.subr.mxu0 0.0
        %4070 = vmatpush1.msra.mxu0 0.0
        %4071 = vmatprep.subr.mxu0 0.0
        %4072 = vmatpush1.msra.mxu0 0.0
        %4073 = vmatprep.subr.mxu0 0.0
        %4074 = vmatpush1.msra.mxu0 0.0
        %4075 = vmatprep.subr.mxu0 0.0
        %4076 = vmatpush1.msra.mxu0 0.0
        %4077 = vmatprep.subr.mxu0 0.0
        %4078 = vmatpush1.msra.mxu0 0.0
        %4079 = vmatprep.subr.mxu0 0.0
        %4080 = vmatpush1.msra.mxu0 0.0
        %4081 = vmatprep.subr.mxu0 0.0
        %4082 = vmatpush1.msra.mxu0 0.0
        %4083 = vmatprep.subr.mxu0 0.0
        %4084 = vmatpush1.msra.mxu0 0.0
        %4085 = vmatprep.subr.mxu0 0.0
        %4086 = vmatpush1.msra.mxu0 0.0
        %4087 = vmatprep.mubr.f32.mxu0 0.0
        %4088 = vmatmul.mubr.f32.gmra.mrb[0].mxu0 %v4021
        %v4089 = vpop.f32.mrb[0].mxu0
        %v4090 = vadd.f32 %v4019, %v4089
        %v4091 = vpop.f32.mrb[0].mxu0
        %4092 = vdwg.mxu0
        %v4093 = vadd.f32 %v3248, %v4090
        %v4094 = vsel %vm960, %v4093, 0.0
        %4095 = vadd.xlane.f32.xlu0 %v4094
        %v4096 = vpop.xlane.xlu0 %4095
        %v4097 = vmul.f32 %v4096, %v2556
        %v4098 = vsub.f32 %v4093, %v4097
        %v4099 = vmul.f32 %v4098, %v4098
        %v4100 = vsel %vm960, %v4099, 0.0
        %4101 = vadd.xlane.f32.xlu0 %v4100
        %v4102 = vpop.xlane.xlu0 %4101
        %v4103 = vmul.f32 %v4102, %v2556
        %v4104 = vadd.f32 %v4103, 1e-05
        %v4105 = vrsqrt.pop %v4104
        %v4106 = vmul.f32 %v4098, %v4105
        %v4107 = vlaneseq
        %v4108 = vshrl.u32 %v4107, 7
        %v4109 = vsub.s32 4, %v4108
        %v4110 = vrot.slane %v843, %v4109
        %v4111 = vmul.f32 %v4106, %v4110
        %v4112 = vlaneseq
        %v4113 = vshrl.u32 %v4112, 7
        %v4114 = vsub.s32 5, %v4113
        %v4115 = vrot.slane %v843, %v4114
        %v4116 = vadd.f32 %v4111, %v4115
        %s4117 = scalar_lea.vmem %s8, 32
        %v4118 = vld [vmem:[%s4117] sm:$0xff]
        %v4119 = vld [vmem:[%s4117 + $0x8] sm:$0xff]
        %v4120 = vld [vmem:[%s4117 + $0x10] sm:$0xff]
        %v4121 = vld [vmem:[%s4117 + $0x18] sm:$0xff]
        %v4122 = vlaneseq
        %v4123 = vshrl.u32 %v4122, 7
        %v4124 = vsub.s32 6, %v4123
        %v4125 = vrot.slane %v843, %v4124
        %v4127 = vsel %vm960, %v4116, 0
        %4129 = vmatprep.subr.mxu0 0.0
        %4130 = vmatpush1.msra.mxu0 %v4118
        %4131 = vmatprep.subr.mxu0 0.0
        %4132 = vmatpush1.msra.mxu0 %v4119
        %4133 = vmatprep.subr.mxu0 0.0
        %4134 = vmatpush1.msra.mxu0 %v4120
        %4135 = vmatprep.subr.mxu0 0.0
        %4136 = vmatpush1.msra.mxu0 %v4121
        %4137 = vmatprep.subr.mxu0 0.0
        %4138 = vmatpush1.msra.mxu0 0.0
        %4139 = vmatprep.subr.mxu0 0.0
        %4140 = vmatpush1.msra.mxu0 0.0
        %4141 = vmatprep.subr.mxu0 0.0
        %4142 = vmatpush1.msra.mxu0 0.0
        %4143 = vmatprep.subr.mxu0 0.0
        %4144 = vmatpush1.msra.mxu0 0.0
        %4145 = vmatprep.subr.mxu0 0.0
        %4146 = vmatpush1.msra.mxu0 0.0
        %4147 = vmatprep.subr.mxu0 0.0
        %4148 = vmatpush1.msra.mxu0 0.0
        %4149 = vmatprep.subr.mxu0 0.0
        %4150 = vmatpush1.msra.mxu0 0.0
        %4151 = vmatprep.subr.mxu0 0.0
        %4152 = vmatpush1.msra.mxu0 0.0
        %4153 = vmatprep.subr.mxu0 0.0
        %4154 = vmatpush1.msra.mxu0 0.0
        %4155 = vmatprep.subr.mxu0 0.0
        %4156 = vmatpush1.msra.mxu0 0.0
        %4157 = vmatprep.subr.mxu0 0.0
        %4158 = vmatpush1.msra.mxu0 0.0
        %4159 = vmatprep.subr.mxu0 0.0
        %4160 = vmatpush1.msra.mxu0 0.0
        %4161 = vmatprep.subr.mxu0 0.0
        %4162 = vmatpush1.msra.mxu0 0.0
        %4163 = vmatprep.subr.mxu0 0.0
        %4164 = vmatpush1.msra.mxu0 0.0
        %4165 = vmatprep.subr.mxu0 0.0
        %4166 = vmatpush1.msra.mxu0 0.0
        %4167 = vmatprep.subr.mxu0 0.0
        %4168 = vmatpush1.msra.mxu0 0.0
        %4169 = vmatprep.subr.mxu0 0.0
        %4170 = vmatpush1.msra.mxu0 0.0
        %4171 = vmatprep.subr.mxu0 0.0
        %4172 = vmatpush1.msra.mxu0 0.0
        %4173 = vmatprep.subr.mxu0 0.0
        %4174 = vmatpush1.msra.mxu0 0.0
        %4175 = vmatprep.subr.mxu0 0.0
        %4176 = vmatpush1.msra.mxu0 0.0
        %4177 = vmatprep.subr.mxu0 0.0
        %4178 = vmatpush1.msra.mxu0 0.0
        %4179 = vmatprep.subr.mxu0 0.0
        %4180 = vmatpush1.msra.mxu0 0.0
        %4181 = vmatprep.subr.mxu0 0.0
        %4182 = vmatpush1.msra.mxu0 0.0
        %4183 = vmatprep.subr.mxu0 0.0
        %4184 = vmatpush1.msra.mxu0 0.0
        %4185 = vmatprep.subr.mxu0 0.0
        %4186 = vmatpush1.msra.mxu0 0.0
        %4187 = vmatprep.subr.mxu0 0.0
        %4188 = vmatpush1.msra.mxu0 0.0
        %4189 = vmatprep.subr.mxu0 0.0
        %4190 = vmatpush1.msra.mxu0 0.0
        %4191 = vmatprep.subr.mxu0 0.0
        %4192 = vmatpush1.msra.mxu0 0.0
        %4193 = vmatprep.mubr.f32.mxu0 0.0
        %4194 = vmatmul.mubr.f32.gmra.mrb[0].mxu0 %v4127
        %v4195 = vpop.f32.mrb[0].mxu0
        %v4196 = vadd.f32 %v4125, %v4195
        %v4197 = vpop.f32.mrb[0].mxu0
        %4198 = vdwg.mxu0
        %v4199 = vmul.f32 %v4196, 0.5
        %v4200 = vmul.f32 %v4196, 0.044715
        %v4201 = vmul.f32 %v4200, %v4196
        %v4202 = vmul.f32 %v4201, %v4196
        %v4203 = vadd.f32 %v4196, %v4202
        %v4204 = vmul.f32 %v4203, 0.7978846
        %v4205 = vtanh.pop %v4204
        %v4206 = vadd.f32 %v4205, 1.0
        %v4207 = vmul.f32 %v4199, %v4206
        %s4208 = scalar_lea.vmem %s9, 64
        %v4209 = vld [vmem:[%s4208] sm:$0xff]
        %v4210 = vld [vmem:[%s4208 + $0x8] sm:$0xff]
        %v4211 = vld [vmem:[%s4208 + $0x10] sm:$0xff]
        %v4212 = vld [vmem:[%s4208 + $0x18] sm:$0xff]
        %v4213 = vld [vmem:[%s4208 + $0x20] sm:$0xff]
        %v4214 = vld [vmem:[%s4208 + $0x28] sm:$0xff]
        %v4215 = vld [vmem:[%s4208 + $0x30] sm:$0xff]
        %v4216 = vld [vmem:[%s4208 + $0x38] sm:$0xff]
        %v4217 = vlaneseq
        %v4218 = vshrl.u32 %v4217, 7
        %v4219 = vsub.s32 7, %v4218
        %v4220 = vrot.slane %v843, %v4219
        %v4222 = vsel %vm2708, %v4207, 0
        %4224 = vmatprep.subr.mxu0 0.0
        %4225 = vmatpush1.msra.mxu0 %v4209
        %4226 = vmatprep.subr.mxu0 0.0
        %4227 = vmatpush1.msra.mxu0 %v4210
        %4228 = vmatprep.subr.mxu0 0.0
        %4229 = vmatpush1.msra.mxu0 %v4211
        %4230 = vmatprep.subr.mxu0 0.0
        %4231 = vmatpush1.msra.mxu0 %v4212
        %4232 = vmatprep.subr.mxu0 0.0
        %4233 = vmatpush1.msra.mxu0 %v4213
        %4234 = vmatprep.subr.mxu0 0.0
        %4235 = vmatpush1.msra.mxu0 %v4214
        %4236 = vmatprep.subr.mxu0 0.0
        %4237 = vmatpush1.msra.mxu0 %v4215
        %4238 = vmatprep.subr.mxu0 0.0
        %4239 = vmatpush1.msra.mxu0 %v4216
        %4240 = vmatprep.subr.mxu0 0.0
        %4241 = vmatpush1.msra.mxu0 0.0
        %4242 = vmatprep.subr.mxu0 0.0
        %4243 = vmatpush1.msra.mxu0 0.0
        %4244 = vmatprep.subr.mxu0 0.0
        %4245 = vmatpush1.msra.mxu0 0.0
        %4246 = vmatprep.subr.mxu0 0.0
        %4247 = vmatpush1.msra.mxu0 0.0
        %4248 = vmatprep.subr.mxu0 0.0
        %4249 = vmatpush1.msra.mxu0 0.0
        %4250 = vmatprep.subr.mxu0 0.0
        %4251 = vmatpush1.msra.mxu0 0.0
        %4252 = vmatprep.subr.mxu0 0.0
        %4253 = vmatpush1.msra.mxu0 0.0
        %4254 = vmatprep.subr.mxu0 0.0
        %4255 = vmatpush1.msra.mxu0 0.0
        %4256 = vmatprep.subr.mxu0 0.0
        %4257 = vmatpush1.msra.mxu0 0.0
        %4258 = vmatprep.subr.mxu0 0.0
        %4259 = vmatpush1.msra.mxu0 0.0
        %4260 = vmatprep.subr.mxu0 0.0
        %4261 = vmatpush1.msra.mxu0 0.0
        %4262 = vmatprep.subr.mxu0 0.0
        %4263 = vmatpush1.msra.mxu0 0.0
        %4264 = vmatprep.subr.mxu0 0.0
        %4265 = vmatpush1.msra.mxu0 0.0
        %4266 = vmatprep.subr.mxu0 0.0
        %4267 = vmatpush1.msra.mxu0 0.0
        %4268 = vmatprep.subr.mxu0 0.0
        %4269 = vmatpush1.msra.mxu0 0.0
        %4270 = vmatprep.subr.mxu0 0.0
        %4271 = vmatpush1.msra.mxu0 0.0
        %4272 = vmatprep.subr.mxu0 0.0
        %4273 = vmatpush1.msra.mxu0 0.0
        %4274 = vmatprep.subr.mxu0 0.0
        %4275 = vmatpush1.msra.mxu0 0.0
        %4276 = vmatprep.subr.mxu0 0.0
        %4277 = vmatpush1.msra.mxu0 0.0
        %4278 = vmatprep.subr.mxu0 0.0
        %4279 = vmatpush1.msra.mxu0 0.0
        %4280 = vmatprep.subr.mxu0 0.0
        %4281 = vmatpush1.msra.mxu0 0.0
        %4282 = vmatprep.subr.mxu0 0.0
        %4283 = vmatpush1.msra.mxu0 0.0
        %4284 = vmatprep.subr.mxu0 0.0
        %4285 = vmatpush1.msra.mxu0 0.0
        %4286 = vmatprep.subr.mxu0 0.0
        %4287 = vmatpush1.msra.mxu0 0.0
        %4288 = vmatprep.mubr.f32.mxu0 0.0
        %4289 = vmatmul.mubr.f32.gmra.mrb[0].mxu0 %v4222
        %v4290 = vpop.f32.mrb[0].mxu0
        %v4291 = vadd.f32 %v4220, %v4290
        %v4292 = vpop.f32.mrb[0].mxu0
        %4293 = vdwg.mxu0
        %v4294 = vadd.f32 %v4116, %v4291
        %v4295 = vsel %vm960, %v4294, 0.0
        %4296 = vadd.xlane.f32.xlu0 %v4295
        %v4297 = vpop.xlane.xlu0 %4296
        %v4298 = vmul.f32 %v4297, %v2556
        %v4299 = vsub.f32 %v4294, %v4298
        %v4300 = vmul.f32 %v4299, %v4299
        %v4301 = vsel %vm960, %v4300, 0.0
        %4302 = vadd.xlane.f32.xlu0 %v4301
        %v4303 = vpop.xlane.xlu0 %4302
        %v4304 = vmul.f32 %v4303, %v2556
        %v4305 = vadd.f32 %v4304, 1e-05
        %v4306 = vrsqrt.pop %v4305
        %v4307 = vmul.f32 %v4299, %v4306
        %v4308 = vlaneseq
        %v4309 = vshrl.u32 %v4308, 7
        %v4310 = vsub.s32 0, %v4309
        %v4311 = vrot.slane %v844, %v4310
        %v4312 = vmul.f32 %v4307, %v4311
        %v4313 = vlaneseq
        %v4314 = vshrl.u32 %v4313, 7
        %v4315 = vsub.s32 1, %v4314
        %v4316 = vrot.slane %v844, %v4315
        %v4317 = vadd.f32 %v4312, %v4316
        %v4318 = vsel %vm960, %v4317, 0.0
        %4319 = vadd.xlane.f32.xlu0 %v4318
        %v4320 = vpop.xlane.xlu0 %4319
        %v4321 = vmul.f32 %v4320, %v2556
        %v4322 = vsub.f32 %v4317, %v4321
        %v4323 = vmul.f32 %v4322, %v4322
        %v4324 = vsel %vm960, %v4323, 0.0
        %4325 = vadd.xlane.f32.xlu0 %v4324
        %v4326 = vpop.xlane.xlu0 %4325
        %v4327 = vmul.f32 %v4326, %v2556
        %v4328 = vadd.f32 %v4327, 1e-05
        %v4329 = vrsqrt.pop %v4328
        %v4330 = vmul.f32 %v4322, %v4329
        %v4331 = vlaneseq
        %v4332 = vshrl.u32 %v4331, 7
        %v4333 = vsub.s32 7, %v4332
        %v4334 = vrot.slane %v844, %v4333
        %v4335 = vmul.f32 %v4330, %v4334
        %v4336 = vlaneseq
        %v4337 = vshrl.u32 %v4336, 7
        %v4338 = vsub.s32 0, %v4337
        %v4339 = vrot.slane %v845, %v4338
        %v4340 = vadd.f32 %v4335, %v4339
        %v4341 = vld [vmem:[%s836] sm:$0xff]
        %v4342 = vld [vmem:[%s836 + $0x8] sm:$0xff]
        %v4343 = vld [vmem:[#allocation5] sm:$0xff]
        %v4344 = vld [vmem:[#allocation5 + $0x8] sm:$0xf]
        %v4345 = vlaneseq
        %v4346 = vshrl.u32 %v4345, 7
        %v4347 = vsub.s32 1, %v4346
        %v4348 = vrot.slane %v842, %v4347
        %v4350 = vsel %vm856, %v4341, 0
        %v4353 = vsel %vm856, %v4342, 0
        %v4356 = vsel %vm863, %v4344, 0
        %4358 = vmatprep.subr.mxu0 0.0
        %4359 = vmatpush1.msra.mxu0 %v4343
        %4360 = vmatprep.subr.mxu0 0.0
        %4361 = vmatpush1.msra.mxu0 %v4356
        %4362 = vmatprep.subr.mxu0 0.0
        %4363 = vmatpush1.msra.mxu0 0.0
        %4364 = vmatprep.subr.mxu0 0.0
        %4365 = vmatpush1.msra.mxu0 0.0
        %4366 = vmatprep.subr.mxu0 0.0
        %4367 = vmatpush1.msra.mxu0 0.0
        %4368 = vmatprep.subr.mxu0 0.0
        %4369 = vmatpush1.msra.mxu0 0.0
        %4370 = vmatprep.subr.mxu0 0.0
        %4371 = vmatpush1.msra.mxu0 0.0
        %4372 = vmatprep.subr.mxu0 0.0
        %4373 = vmatpush1.msra.mxu0 0.0
        %4374 = vmatprep.subr.mxu0 0.0
        %4375 = vmatpush1.msra.mxu0 0.0
        %4376 = vmatprep.subr.mxu0 0.0
        %4377 = vmatpush1.msra.mxu0 0.0
        %4378 = vmatprep.subr.mxu0 0.0
        %4379 = vmatpush1.msra.mxu0 0.0
        %4380 = vmatprep.subr.mxu0 0.0
        %4381 = vmatpush1.msra.mxu0 0.0
        %4382 = vmatprep.subr.mxu0 0.0
        %4383 = vmatpush1.msra.mxu0 0.0
        %4384 = vmatprep.subr.mxu0 0.0
        %4385 = vmatpush1.msra.mxu0 0.0
        %4386 = vmatprep.subr.mxu0 0.0
        %4387 = vmatpush1.msra.mxu0 0.0
        %4388 = vmatprep.subr.mxu0 0.0
        %4389 = vmatpush1.msra.mxu0 0.0
        %4390 = vmatprep.subr.mxu0 0.0
        %4391 = vmatpush1.msra.mxu0 0.0
        %4392 = vmatprep.subr.mxu0 0.0
        %4393 = vmatpush1.msra.mxu0 0.0
        %4394 = vmatprep.subr.mxu0 0.0
        %4395 = vmatpush1.msra.mxu0 0.0
        %4396 = vmatprep.subr.mxu0 0.0
        %4397 = vmatpush1.msra.mxu0 0.0
        %4398 = vmatprep.subr.mxu0 0.0
        %4399 = vmatpush1.msra.mxu0 0.0
        %4400 = vmatprep.subr.mxu0 0.0
        %4401 = vmatpush1.msra.mxu0 0.0
        %4402 = vmatprep.subr.mxu0 0.0
        %4403 = vmatpush1.msra.mxu0 0.0
        %4404 = vmatprep.subr.mxu0 0.0
        %4405 = vmatpush1.msra.mxu0 0.0
        %4406 = vmatprep.subr.mxu0 0.0
        %4407 = vmatpush1.msra.mxu0 0.0
        %4408 = vmatprep.subr.mxu0 0.0
        %4409 = vmatpush1.msra.mxu0 0.0
        %4410 = vmatprep.subr.mxu0 0.0
        %4411 = vmatpush1.msra.mxu0 0.0
        %4412 = vmatprep.subr.mxu0 0.0
        %4413 = vmatpush1.msra.mxu0 0.0
        %4414 = vmatprep.subr.mxu0 0.0
        %4415 = vmatpush1.msra.mxu0 0.0
        %4416 = vmatprep.subr.mxu0 0.0
        %4417 = vmatpush1.msra.mxu0 0.0
        %4418 = vmatprep.subr.mxu0 0.0
        %4419 = vmatpush1.msra.mxu0 0.0
        %4420 = vmatprep.subr.mxu0 0.0
        %4421 = vmatpush1.msra.mxu0 0.0
        %4422 = vmatprep.mubr.f32.mxu0 0.0
        %4423 = vmatmul.mubr.f32.gmra.mrb[0].mxu0 %v4350
        %v4424 = vpop.f32.mrb[0].mxu0
        %v4425 = vadd.f32 %v4348, %v4424
        %v4426 = vpop.f32.mrb[0].mxu0
        %4427 = vmatprep.mubr.f32.mxu0 0.0
        %4428 = vmatmul.mubr.f32.gmra.mrb[0].mxu0 %v4353
        %v4429 = vpop.f32.mrb[0].mxu0
        %v4430 = vadd.f32 %v4348, %v4429
        %v4431 = vpop.f32.mrb[0].mxu0
        %4432 = vdwg.mxu0
        %v4433 = vld [vmem:[%s841] sm:$0xff]
        %v4434 = vld [vmem:[%s841 + $0x8] sm:$0xff]
        %v4435 = vadd.f32 %v4425, %v4433
        %v4436 = vadd.f32 %v4430, %v4434
        %v4437 = vld [vmem:[%s11] sm:$0xff]
        %v4438 = vld [vmem:[%s11 + $0x8] sm:$0xff]
        %v4439 = vld [vmem:[%s11 + $0x10] sm:$0xff]
        %v4440 = vld [vmem:[%s11 + $0x18] sm:$0xff]
        %v4441 = vld [vmem:[%s12] sm:$0xff]
        %v4442 = vld [vmem:[%s12 + $0x8] sm:$0xff]
        %v4443 = vld [vmem:[%s12 + $0x10] sm:$0xff]
        %v4444 = vld [vmem:[%s12 + $0x18] sm:$0xff]
        %v4445 = vld [vmem:[#allocation10] sm:$0xff]
        %v4446 = vld [vmem:[#allocation10 + $0x8] sm:$0xff]
        %v4447 = vlaneseq
        %v4448 = vshrl.u32 %v4447, 7
        %v4449 = vsub.s32 1, %v4448
        %v4450 = vrot.slane %v845, %v4449
        %v4452 = vsel %vm960, %v4435, 0
        %v4455 = vsel %vm960, %v4436, 0
        %4457 = vmatprep.subr.mxu0 0.0
        %4458 = vmatpush1.msra.mxu0 %v4437
        %4459 = vmatprep.subr.mxu0 0.0
        %4460 = vmatpush1.msra.mxu0 %v4438
        %4461 = vmatprep.subr.mxu0 0.0
        %4462 = vmatpush1.msra.mxu0 %v4439
        %4463 = vmatprep.subr.mxu0 0.0
        %4464 = vmatpush1.msra.mxu0 %v4440
        %4465 = vmatprep.subr.mxu0 0.0
        %4466 = vmatpush1.msra.mxu0 0.0
        %4467 = vmatprep.subr.mxu0 0.0
        %4468 = vmatpush1.msra.mxu0 0.0
        %4469 = vmatprep.subr.mxu0 0.0
        %4470 = vmatpush1.msra.mxu0 0.0
        %4471 = vmatprep.subr.mxu0 0.0
        %4472 = vmatpush1.msra.mxu0 0.0
        %4473 = vmatprep.subr.mxu0 0.0
        %4474 = vmatpush1.msra.mxu0 0.0
        %4475 = vmatprep.subr.mxu0 0.0
        %4476 = vmatpush1.msra.mxu0 0.0
        %4477 = vmatprep.subr.mxu0 0.0
        %4478 = vmatpush1.msra.mxu0 0.0
        %4479 = vmatprep.subr.mxu0 0.0
        %4480 = vmatpush1.msra.mxu0 0.0
        %4481 = vmatprep.subr.mxu0 0.0
        %4482 = vmatpush1.msra.mxu0 0.0
        %4483 = vmatprep.subr.mxu0 0.0
        %4484 = vmatpush1.msra.mxu0 0.0
        %4485 = vmatprep.subr.mxu0 0.0
        %4486 = vmatpush1.msra.mxu0 0.0
        %4487 = vmatprep.subr.mxu0 0.0
        %4488 = vmatpush1.msra.mxu0 0.0
        %4489 = vmatprep.subr.mxu0 0.0
        %4490 = vmatpush1.msra.mxu0 0.0
        %4491 = vmatprep.subr.mxu0 0.0
        %4492 = vmatpush1.msra.mxu0 0.0
        %4493 = vmatprep.subr.mxu0 0.0
        %4494 = vmatpush1.msra.mxu0 0.0
        %4495 = vmatprep.subr.mxu0 0.0
        %4496 = vmatpush1.msra.mxu0 0.0
        %4497 = vmatprep.subr.mxu0 0.0
        %4498 = vmatpush1.msra.mxu0 0.0
        %4499 = vmatprep.subr.mxu0 0.0
        %4500 = vmatpush1.msra.mxu0 0.0
        %4501 = vmatprep.subr.mxu0 0.0
        %4502 = vmatpush1.msra.mxu0 0.0
        %4503 = vmatprep.subr.mxu0 0.0
        %4504 = vmatpush1.msra.mxu0 0.0
        %4505 = vmatprep.subr.mxu0 0.0
        %4506 = vmatpush1.msra.mxu0 0.0
        %4507 = vmatprep.subr.mxu0 0.0
        %4508 = vmatpush1.msra.mxu0 0.0
        %4509 = vmatprep.subr.mxu0 0.0
        %4510 = vmatpush1.msra.mxu0 0.0
        %4511 = vmatprep.subr.mxu0 0.0
        %4512 = vmatpush1.msra.mxu0 0.0
        %4513 = vmatprep.subr.mxu0 0.0
        %4514 = vmatpush1.msra.mxu0 0.0
        %4515 = vmatprep.subr.mxu0 0.0
        %4516 = vmatpush1.msra.mxu0 0.0
        %4517 = vmatprep.subr.mxu0 0.0
        %4518 = vmatpush1.msra.mxu0 0.0
        %4519 = vmatprep.subr.mxu0 0.0
        %4520 = vmatpush1.msra.mxu0 0.0
        %4521 = vmatprep.mubr.f32.mxu0 0.0
        %4522 = vmatmul.mubr.f32.gmra.mrb[0].mxu0 %v4452
        %v4523 = vpop.f32.mrb[0].mxu0
        %v4524 = vadd.f32 %v4450, %v4523
        %v4525 = vpop.f32.mrb[0].mxu0
        %4526 = vmatprep.mubr.f32.mxu0 0.0
        %4527 = vmatmul.mubr.f32.gmra.mrb[0].mxu0 %v4455
        %v4528 = vpop.f32.mrb[0].mxu0
        %v4529 = vadd.f32 %v4450, %v4528
        %v4530 = vpop.f32.mrb[0].mxu0
        %4531 = vdwg.mxu0
        %vm4532 = vcmp.gt.f32.partialorder %v4445, 0.0
        %vm4533 = vcmp.gt.f32.partialorder %v4446, 0.0
        %4536 = vrot.lane.b32.xlu0 %v4524, 96
        %v4537 = vpop.permute.xlu0 %4536
        %4538 = vrot.lane.b32.xlu0 %v4529, 96
        %v4539 = vpop.permute.xlu0 %4538
        %v4540 = vsel %vm1050, %v4524, 0
        %v4542 = vsel %vm1050, %v4529, 0
        %v4544 = vsel %vm1050, %v4537, 0
        %v4546 = vsel %vm1050, %v4539, 0
        %4548 = vmatprep.subr.mxu0 0.0
        %4549 = vmatpush1.xpose.msra.mxu0 %v4544
        %4550 = vmatprep.subr.mxu0 0.0
        %4551 = vmatpush1.xpose.msra.mxu0 %v4546
        %4552 = vmatprep.subr.mxu0 0.0
        %4553 = vmatpush1.xpose.msra.mxu0 0.0
        %4554 = vmatprep.subr.mxu0 0.0
        %4555 = vmatpush1.xpose.msra.mxu0 0.0
        %4556 = vmatprep.subr.mxu0 0.0
        %4557 = vmatpush1.xpose.msra.mxu0 0.0
        %4558 = vmatprep.subr.mxu0 0.0
        %4559 = vmatpush1.xpose.msra.mxu0 0.0
        %4560 = vmatprep.subr.mxu0 0.0
        %4561 = vmatpush1.xpose.msra.mxu0 0.0
        %4562 = vmatprep.subr.mxu0 0.0
        %4563 = vmatpush1.xpose.msra.mxu0 0.0
        %4564 = vmatprep.subr.mxu0 0.0
        %4565 = vmatpush1.xpose.msra.mxu0 0.0
        %4566 = vmatprep.subr.mxu0 0.0
        %4567 = vmatpush1.xpose.msra.mxu0 0.0
        %4568 = vmatprep.subr.mxu0 0.0
        %4569 = vmatpush1.xpose.msra.mxu0 0.0
        %4570 = vmatprep.subr.mxu0 0.0
        %4571 = vmatpush1.xpose.msra.mxu0 0.0
        %4572 = vmatprep.subr.mxu0 0.0
        %4573 = vmatpush1.xpose.msra.mxu0 0.0
        %4574 = vmatprep.subr.mxu0 0.0
        %4575 = vmatpush1.xpose.msra.mxu0 0.0
        %4576 = vmatprep.subr.mxu0 0.0
        %4577 = vmatpush1.xpose.msra.mxu0 0.0
        %4578 = vmatprep.subr.mxu0 0.0
        %4579 = vmatpush1.xpose.msra.mxu0 0.0
        %4580 = vmatprep.subr.mxu0 0.0
        %4581 = vmatpush1.xpose.msra.mxu0 0.0
        %4582 = vmatprep.subr.mxu0 0.0
        %4583 = vmatpush1.xpose.msra.mxu0 0.0
        %4584 = vmatprep.subr.mxu0 0.0
        %4585 = vmatpush1.xpose.msra.mxu0 0.0
        %4586 = vmatprep.subr.mxu0 0.0
        %4587 = vmatpush1.xpose.msra.mxu0 0.0
        %4588 = vmatprep.subr.mxu0 0.0
        %4589 = vmatpush1.xpose.msra.mxu0 0.0
        %4590 = vmatprep.subr.mxu0 0.0
        %4591 = vmatpush1.xpose.msra.mxu0 0.0
        %4592 = vmatprep.subr.mxu0 0.0
        %4593 = vmatpush1.xpose.msra.mxu0 0.0
        %4594 = vmatprep.subr.mxu0 0.0
        %4595 = vmatpush1.xpose.msra.mxu0 0.0
        %4596 = vmatprep.subr.mxu0 0.0
        %4597 = vmatpush1.xpose.msra.mxu0 0.0
        %4598 = vmatprep.subr.mxu0 0.0
        %4599 = vmatpush1.xpose.msra.mxu0 0.0
        %4600 = vmatprep.subr.mxu0 0.0
        %4601 = vmatpush1.xpose.msra.mxu0 0.0
        %4602 = vmatprep.subr.mxu0 0.0
        %4603 = vmatpush1.xpose.msra.mxu0 0.0
        %4604 = vmatprep.subr.mxu0 0.0
        %4605 = vmatpush1.xpose.msra.mxu0 0.0
        %4606 = vmatprep.subr.mxu0 0.0
        %4607 = vmatpush1.xpose.msra.mxu0 0.0
        %4608 = vmatprep.subr.mxu0 0.0
        %4609 = vmatpush1.xpose.msra.mxu0 0.0
        %4610 = vmatprep.subr.mxu0 0.0
        %4611 = vmatpush1.xpose.msra.mxu0 0.0
        %4612 = vmatprep.mubr.f32.mxu0 0.0
        %4613 = vmatmul.mubr.f32.gmra.mrb[0].mxu0 %v4540
        %v4614 = vpop.f32.mrb[0].mxu0
        %v4615 = vadd.f32 0.0, %v4614
        %v4616 = vpop.f32.mrb[0].mxu0
        %4617 = vmatprep.mubr.f32.mxu0 0.0
        %4618 = vmatmul.mubr.f32.gmra.mrb[0].mxu0 %v4542
        %v4619 = vpop.f32.mrb[0].mxu0
        %v4620 = vadd.f32 0.0, %v4619
        %v4621 = vpop.f32.mrb[0].mxu0
        %4622 = vdwg.mxu0
        %vm4623 = vcmp.le.s32.totalorder %v1368, %v1370
        %vm4624 = vcmp.le.s32.totalorder %v1368, %v1371
        %v4625 = vmul.f32 %v4615, 0.35355338
        %v4626 = vmul.f32 %v4620, 0.35355338
        %v4627 = vsel %vm4623, %v4625, -1e+30
        %v4628 = vsel %vm4624, %v4626, -1e+30
        %v4629 = vsel %vm1136, %v4627, -inf
        %4630 = vmax.xlane.f32.xlu0 %v4629
        %v4631 = vpop.xlane.xlu0 %4630
        %v4632 = vsel %vm1136, %v4628, -inf
        %4633 = vmax.xlane.f32.xlu0 %v4632
        %v4634 = vpop.xlane.xlu0 %4633
        %v4635 = vsub.f32 %v4627, %v4631
        %v4636 = vsub.f32 %v4628, %v4634
        %v4637 = vmul.f32 %v4635, 1.442695
        %v4638 = vpow.pop %v4637
        %v4639 = vmul.f32 %v4636, 1.442695
        %v4640 = vpow.pop %v4639
        %v4641 = vsel %vm1136, %v4638, 0.0
        %4642 = vadd.xlane.f32.xlu0 %v4641
        %v4643 = vpop.xlane.xlu0 %4642
        %v4644 = vsel %vm1136, %v4640, 0.0
        %4645 = vadd.xlane.f32.xlu0 %v4644
        %v4646 = vpop.xlane.xlu0 %4645
        %v4647 = vrcp.pop %v4643
        %v4648 = vrcp.pop %v4646
        %v4649 = vmul.f32 %v4638, %v4647
        %v4650 = vmul.f32 %v4640, %v4648
        %4651 = vrot.lane.b32.xlu0 %v4524, 64
        %v4652 = vpop.permute.xlu0 %4651
        %4653 = vrot.lane.b32.xlu0 %v4529, 64
        %v4654 = vpop.permute.xlu0 %4653
        %v4658 = vsel %vm1136, %v4649, 0
        %v4661 = vsel %vm1136, %v4650, 0
        %4663 = vmatprep.subr.mxu0 0.0
        %4664 = vmatpush1.msra.mxu0 %v4652
        %4665 = vmatprep.subr.mxu0 0.0
        %4666 = vmatpush1.msra.mxu0 %v4654
        %4667 = vmatprep.subr.mxu0 0.0
        %4668 = vmatpush1.msra.mxu0 0.0
        %4669 = vmatprep.subr.mxu0 0.0
        %4670 = vmatpush1.msra.mxu0 0.0
        %4671 = vmatprep.subr.mxu0 0.0
        %4672 = vmatpush1.msra.mxu0 0.0
        %4673 = vmatprep.subr.mxu0 0.0
        %4674 = vmatpush1.msra.mxu0 0.0
        %4675 = vmatprep.subr.mxu0 0.0
        %4676 = vmatpush1.msra.mxu0 0.0
        %4677 = vmatprep.subr.mxu0 0.0
        %4678 = vmatpush1.msra.mxu0 0.0
        %4679 = vmatprep.subr.mxu0 0.0
        %4680 = vmatpush1.msra.mxu0 0.0
        %4681 = vmatprep.subr.mxu0 0.0
        %4682 = vmatpush1.msra.mxu0 0.0
        %4683 = vmatprep.subr.mxu0 0.0
        %4684 = vmatpush1.msra.mxu0 0.0
        %4685 = vmatprep.subr.mxu0 0.0
        %4686 = vmatpush1.msra.mxu0 0.0
        %4687 = vmatprep.subr.mxu0 0.0
        %4688 = vmatpush1.msra.mxu0 0.0
        %4689 = vmatprep.subr.mxu0 0.0
        %4690 = vmatpush1.msra.mxu0 0.0
        %4691 = vmatprep.subr.mxu0 0.0
        %4692 = vmatpush1.msra.mxu0 0.0
        %4693 = vmatprep.subr.mxu0 0.0
        %4694 = vmatpush1.msra.mxu0 0.0
        %4695 = vmatprep.subr.mxu0 0.0
        %4696 = vmatpush1.msra.mxu0 0.0
        %4697 = vmatprep.subr.mxu0 0.0
        %4698 = vmatpush1.msra.mxu0 0.0
        %4699 = vmatprep.subr.mxu0 0.0
        %4700 = vmatpush1.msra.mxu0 0.0
        %4701 = vmatprep.subr.mxu0 0.0
        %4702 = vmatpush1.msra.mxu0 0.0
        %4703 = vmatprep.subr.mxu0 0.0
        %4704 = vmatpush1.msra.mxu0 0.0
        %4705 = vmatprep.subr.mxu0 0.0
        %4706 = vmatpush1.msra.mxu0 0.0
        %4707 = vmatprep.subr.mxu0 0.0
        %4708 = vmatpush1.msra.mxu0 0.0
        %4709 = vmatprep.subr.mxu0 0.0
        %4710 = vmatpush1.msra.mxu0 0.0
        %4711 = vmatprep.subr.mxu0 0.0
        %4712 = vmatpush1.msra.mxu0 0.0
        %4713 = vmatprep.subr.mxu0 0.0
        %4714 = vmatpush1.msra.mxu0 0.0
        %4715 = vmatprep.subr.mxu0 0.0
        %4716 = vmatpush1.msra.mxu0 0.0
        %4717 = vmatprep.subr.mxu0 0.0
        %4718 = vmatpush1.msra.mxu0 0.0
        %4719 = vmatprep.subr.mxu0 0.0
        %4720 = vmatpush1.msra.mxu0 0.0
        %4721 = vmatprep.subr.mxu0 0.0
        %4722 = vmatpush1.msra.mxu0 0.0
        %4723 = vmatprep.subr.mxu0 0.0
        %4724 = vmatpush1.msra.mxu0 0.0
        %4725 = vmatprep.subr.mxu0 0.0
        %4726 = vmatpush1.msra.mxu0 0.0
        %4727 = vmatprep.mubr.f32.mxu0 0.0
        %4728 = vmatmul.mubr.f32.gmra.mrb[0].mxu0 %v4658
        %v4729 = vpop.f32.mrb[0].mxu0
        %v4730 = vadd.f32 0.0, %v4729
        %v4731 = vpop.f32.mrb[0].mxu0
        %4732 = vmatprep.mubr.f32.mxu0 0.0
        %4733 = vmatmul.mubr.f32.gmra.mrb[0].mxu0 %v4661
        %v4734 = vpop.f32.mrb[0].mxu0
        %v4735 = vadd.f32 0.0, %v4734
        %v4736 = vpop.f32.mrb[0].mxu0
        %4737 = vdwg.mxu0
        %v4738 = vsel %vm4623, 1, 0
        %v4739 = vsel %vm4624, 1, 0
        %v4740 = vcvt.s32.f32 %v4738
        %v4741 = vcvt.s32.f32 %v4739
        %v4743 = vsel %vm1136, %v4740, 0
        %v4746 = vsel %vm1136, %v4741, 0
        %4748 = vmatprep.subr.mxu0 0.0
        %4749 = vmatpush1.msra.mxu0 %v4652
        %4750 = vmatprep.subr.mxu0 0.0
        %4751 = vmatpush1.msra.mxu0 %v4654
        %4752 = vmatprep.subr.mxu0 0.0
        %4753 = vmatpush1.msra.mxu0 0.0
        %4754 = vmatprep.subr.mxu0 0.0
        %4755 = vmatpush1.msra.mxu0 0.0
        %4756 = vmatprep.subr.mxu0 0.0
        %4757 = vmatpush1.msra.mxu0 0.0
        %4758 = vmatprep.subr.mxu0 0.0
        %4759 = vmatpush1.msra.mxu0 0.0
        %4760 = vmatprep.subr.mxu0 0.0
        %4761 = vmatpush1.msra.mxu0 0.0
        %4762 = vmatprep.subr.mxu0 0.0
        %4763 = vmatpush1.msra.mxu0 0.0
        %4764 = vmatprep.subr.mxu0 0.0
        %4765 = vmatpush1.msra.mxu0 0.0
        %4766 = vmatprep.subr.mxu0 0.0
        %4767 = vmatpush1.msra.mxu0 0.0
        %4768 = vmatprep.subr.mxu0 0.0
        %4769 = vmatpush1.msra.mxu0 0.0
        %4770 = vmatprep.subr.mxu0 0.0
        %4771 = vmatpush1.msra.mxu0 0.0
        %4772 = vmatprep.subr.mxu0 0.0
        %4773 = vmatpush1.msra.mxu0 0.0
        %4774 = vmatprep.subr.mxu0 0.0
        %4775 = vmatpush1.msra.mxu0 0.0
        %4776 = vmatprep.subr.mxu0 0.0
        %4777 = vmatpush1.msra.mxu0 0.0
        %4778 = vmatprep.subr.mxu0 0.0
        %4779 = vmatpush1.msra.mxu0 0.0
        %4780 = vmatprep.subr.mxu0 0.0
        %4781 = vmatpush1.msra.mxu0 0.0
        %4782 = vmatprep.subr.mxu0 0.0
        %4783 = vmatpush1.msra.mxu0 0.0
        %4784 = vmatprep.subr.mxu0 0.0
        %4785 = vmatpush1.msra.mxu0 0.0
        %4786 = vmatprep.subr.mxu0 0.0
        %4787 = vmatpush1.msra.mxu0 0.0
        %4788 = vmatprep.subr.mxu0 0.0
        %4789 = vmatpush1.msra.mxu0 0.0
        %4790 = vmatprep.subr.mxu0 0.0
        %4791 = vmatpush1.msra.mxu0 0.0
        %4792 = vmatprep.subr.mxu0 0.0
        %4793 = vmatpush1.msra.mxu0 0.0
        %4794 = vmatprep.subr.mxu0 0.0
        %4795 = vmatpush1.msra.mxu0 0.0
        %4796 = vmatprep.subr.mxu0 0.0
        %4797 = vmatpush1.msra.mxu0 0.0
        %4798 = vmatprep.subr.mxu0 0.0
        %4799 = vmatpush1.msra.mxu0 0.0
        %4800 = vmatprep.subr.mxu0 0.0
        %4801 = vmatpush1.msra.mxu0 0.0
        %4802 = vmatprep.subr.mxu0 0.0
        %4803 = vmatpush1.msra.mxu0 0.0
        %4804 = vmatprep.subr.mxu0 0.0
        %4805 = vmatpush1.msra.mxu0 0.0
        %4806 = vmatprep.subr.mxu0 0.0
        %4807 = vmatpush1.msra.mxu0 0.0
        %4808 = vmatprep.subr.mxu0 0.0
        %4809 = vmatpush1.msra.mxu0 0.0
        %4810 = vmatprep.subr.mxu0 0.0
        %4811 = vmatpush1.msra.mxu0 0.0
        %4812 = vmatprep.mubr.f32.mxu0 0.0
        %4813 = vmatmul.mubr.f32.gmra.mrb[0].mxu0 %v4743
        %v4814 = vpop.f32.mrb[0].mxu0
        %v4815 = vadd.f32 0.0, %v4814
        %v4816 = vpop.f32.mrb[0].mxu0
        %4817 = vmatprep.mubr.f32.mxu0 0.0
        %4818 = vmatmul.mubr.f32.gmra.mrb[0].mxu0 %v4746
        %v4819 = vpop.f32.mrb[0].mxu0
        %v4820 = vadd.f32 0.0, %v4819
        %v4821 = vpop.f32.mrb[0].mxu0
        %4822 = vdwg.mxu0
        %v4823 = vsel %vm4532, %v4615, -1e+30
        %v4824 = vsel %vm4533, %v4620, -1e+30
        %v4825 = vsel %vm1136, %v4823, -inf
        %4826 = vmax.xlane.f32.xlu0 %v4825
        %v4827 = vpop.xlane.xlu0 %4826
        %v4828 = vsel %vm1136, %v4824, -inf
        %4829 = vmax.xlane.f32.xlu0 %v4828
        %v4830 = vpop.xlane.xlu0 %4829
        %v4831 = vmul.f32 %v4615, %v4445
        %v4832 = vmul.f32 %v4620, %v4446
        %v4833 = vsel %vm1136, %v4831, 0.0
        %4834 = vadd.xlane.f32.xlu0 %v4833
        %v4835 = vpop.xlane.xlu0 %4834
        %v4836 = vsel %vm1136, %v4832, 0.0
        %4837 = vadd.xlane.f32.xlu0 %v4836
        %v4838 = vpop.xlane.xlu0 %4837
        %v4839 = vmul.f32 %v4835, %v1256
        %v4840 = vmul.f32 %v4838, %v1256
        %v4841 = vsub.f32 %v4827, %v4839
        %v4842 = vsub.f32 %v4830, %v4840
        %v4844 = vsel %vm1278, %v4841, 0
        %v4847 = vsel %vm1278, %v4842, 0
        %4849 = vmatprep.subr.mxu0 0.0
        %4850 = vmatpush1.xpose.msra.mxu0 %v4844
        %4851 = vmatprep.subr.mxu0 0.0
        %4852 = vmatpush1.xpose.msra.mxu0 %v4847
        %4853 = vmatprep.subr.mxu0 0.0
        %4854 = vmatpush1.xpose.msra.mxu0 0.0
        %4855 = vmatprep.subr.mxu0 0.0
        %4856 = vmatpush1.xpose.msra.mxu0 0.0
        %4857 = vmatprep.subr.mxu0 0.0
        %4858 = vmatpush1.xpose.msra.mxu0 0.0
        %4859 = vmatprep.subr.mxu0 0.0
        %4860 = vmatpush1.xpose.msra.mxu0 0.0
        %4861 = vmatprep.subr.mxu0 0.0
        %4862 = vmatpush1.xpose.msra.mxu0 0.0
        %4863 = vmatprep.subr.mxu0 0.0
        %4864 = vmatpush1.xpose.msra.mxu0 0.0
        %4865 = vmatprep.subr.mxu0 0.0
        %4866 = vmatpush1.xpose.msra.mxu0 0.0
        %4867 = vmatprep.subr.mxu0 0.0
        %4868 = vmatpush1.xpose.msra.mxu0 0.0
        %4869 = vmatprep.subr.mxu0 0.0
        %4870 = vmatpush1.xpose.msra.mxu0 0.0
        %4871 = vmatprep.subr.mxu0 0.0
        %4872 = vmatpush1.xpose.msra.mxu0 0.0
        %4873 = vmatprep.subr.mxu0 0.0
        %4874 = vmatpush1.xpose.msra.mxu0 0.0
        %4875 = vmatprep.subr.mxu0 0.0
        %4876 = vmatpush1.xpose.msra.mxu0 0.0
        %4877 = vmatprep.subr.mxu0 0.0
        %4878 = vmatpush1.xpose.msra.mxu0 0.0
        %4879 = vmatprep.subr.mxu0 0.0
        %4880 = vmatpush1.xpose.msra.mxu0 0.0
        %4881 = vmatprep.subr.mxu0 0.0
        %4882 = vmatpush1.xpose.msra.mxu0 0.0
        %4883 = vmatprep.subr.mxu0 0.0
        %4884 = vmatpush1.xpose.msra.mxu0 0.0
        %4885 = vmatprep.subr.mxu0 0.0
        %4886 = vmatpush1.xpose.msra.mxu0 0.0
        %4887 = vmatprep.subr.mxu0 0.0
        %4888 = vmatpush1.xpose.msra.mxu0 0.0
        %4889 = vmatprep.subr.mxu0 0.0
        %4890 = vmatpush1.xpose.msra.mxu0 0.0
        %4891 = vmatprep.subr.mxu0 0.0
        %4892 = vmatpush1.xpose.msra.mxu0 0.0
        %4893 = vmatprep.subr.mxu0 0.0
        %4894 = vmatpush1.xpose.msra.mxu0 0.0
        %4895 = vmatprep.subr.mxu0 0.0
        %4896 = vmatpush1.xpose.msra.mxu0 0.0
        %4897 = vmatprep.subr.mxu0 0.0
        %4898 = vmatpush1.xpose.msra.mxu0 0.0
        %4899 = vmatprep.subr.mxu0 0.0
        %4900 = vmatpush1.xpose.msra.mxu0 0.0
        %4901 = vmatprep.subr.mxu0 0.0
        %4902 = vmatpush1.xpose.msra.mxu0 0.0
        %4903 = vmatprep.subr.mxu0 0.0
        %4904 = vmatpush1.xpose.msra.mxu0 0.0
        %4905 = vmatprep.subr.mxu0 0.0
        %4906 = vmatpush1.xpose.msra.mxu0 0.0
        %4907 = vmatprep.subr.mxu0 0.0
        %4908 = vmatpush1.xpose.msra.mxu0 0.0
        %4909 = vmatprep.subr.mxu0 0.0
        %4910 = vmatpush1.xpose.msra.mxu0 0.0
        %4911 = vmatprep.subr.mxu0 0.0
        %4912 = vmatpush1.xpose.msra.mxu0 0.0
        %4913 = vmatprep.mubr.f32.mxu0 0.0
        %4914 = vmatmul.mubr.f32.gmra.mrb[0].mxu0 %v1280
        %v4915 = vpop.f32.mrb[0].mxu0
        %v4916 = vadd.f32 0.0, %v4915
        %v4917 = vpop.f32.mrb[0].mxu0
        %4918 = vmatprep.mubr.f32.mxu0 0.0
        %4919 = vmatmul.mubr.f32.gmra.mrb[0].mxu0 %v1280
        %v4920 = vpop.f32.mrb[0].mxu0
        %v4921 = vadd.f32 0.0, %v4920
        %v4922 = vpop.f32.mrb[0].mxu0
        %4923 = vdwg.mxu0
        %vm4924 = vcmp.gt.f32.partialorder %v4916, %v4841
        %vm4925 = vcmp.gt.f32.partialorder %v4921, %v4842
        %vm4926 = vcmp.eq.f32.partialorder %v4916, %v4841
        %vm4927 = vcmp.eq.f32.partialorder %v4921, %v4842
        %vm4928 = vmand %vm4926, %vm1372
        %vm4929 = vmand %vm4927, %vm1373
        %vm4930 = vmor %vm4924, %vm4928
        %vm4931 = vmor %vm4925, %vm4929
        %v4932 = vsel %vm4930, 1, 0
        %v4933 = vsel %vm4931, 1, 0
        %v4934 = vcvt.s32.f32 %v4932
        %v4935 = vcvt.s32.f32 %v4933
        %v4936 = vsel %vm1136, %v4934, 0.0
        %4937 = vadd.xlane.f32.xlu0 %v4936
        %v4938 = vpop.xlane.xlu0 %4937
        %v4939 = vsel %vm1136, %v4935, 0.0
        %4940 = vadd.xlane.f32.xlu0 %v4939
        %v4941 = vpop.xlane.xlu0 %4940
        %vm4942 = vcmp.lt.f32.partialorder %v4938, 15.0
        %vm4943 = vcmp.lt.f32.partialorder %v4941, 15.0
        %v4944 = vsel %vm4942, 1, 0
        %v4945 = vsel %vm4943, 1, 0
        %vm4946 = vcmp.eq.s32.totalorder %v4944, 1
        %vm4947 = vcmp.eq.s32.totalorder %v4945, 1
        %v4948 = vsel %vm4946, %v4730, %v4815
        %v4949 = vsel %vm4947, %v4735, %v4820
        %4950 = vrot.lane.b32.xlu0 %v4524, 120
        %v4951 = vpop.permute.xlu0 %4950
        %4952 = vrot.lane.b32.xlu0 %v4529, 120
        %v4953 = vpop.permute.xlu0 %4952
        %4954 = vrot.lane.b32.xlu0 %v4524, 88
        %v4955 = vpop.permute.xlu0 %4954
        %4956 = vrot.lane.b32.xlu0 %v4529, 88
        %v4957 = vpop.permute.xlu0 %4956
        %v4958 = vsel %vm1050, %v4951, 0
        %v4960 = vsel %vm1050, %v4953, 0
        %v4962 = vsel %vm1050, %v4955, 0
        %v4964 = vsel %vm1050, %v4957, 0
        %4966 = vmatprep.subr.mxu0 0.0
        %4967 = vmatpush1.xpose.msra.mxu0 %v4962
        %4968 = vmatprep.subr.mxu0 0.0
        %4969 = vmatpush1.xpose.msra.mxu0 %v4964
        %4970 = vmatprep.subr.mxu0 0.0
        %4971 = vmatpush1.xpose.msra.mxu0 0.0
        %4972 = vmatprep.subr.mxu0 0.0
        %4973 = vmatpush1.xpose.msra.mxu0 0.0
        %4974 = vmatprep.subr.mxu0 0.0
        %4975 = vmatpush1.xpose.msra.mxu0 0.0
        %4976 = vmatprep.subr.mxu0 0.0
        %4977 = vmatpush1.xpose.msra.mxu0 0.0
        %4978 = vmatprep.subr.mxu0 0.0
        %4979 = vmatpush1.xpose.msra.mxu0 0.0
        %4980 = vmatprep.subr.mxu0 0.0
        %4981 = vmatpush1.xpose.msra.mxu0 0.0
        %4982 = vmatprep.subr.mxu0 0.0
        %4983 = vmatpush1.xpose.msra.mxu0 0.0
        %4984 = vmatprep.subr.mxu0 0.0
        %4985 = vmatpush1.xpose.msra.mxu0 0.0
        %4986 = vmatprep.subr.mxu0 0.0
        %4987 = vmatpush1.xpose.msra.mxu0 0.0
        %4988 = vmatprep.subr.mxu0 0.0
        %4989 = vmatpush1.xpose.msra.mxu0 0.0
        %4990 = vmatprep.subr.mxu0 0.0
        %4991 = vmatpush1.xpose.msra.mxu0 0.0
        %4992 = vmatprep.subr.mxu0 0.0
        %4993 = vmatpush1.xpose.msra.mxu0 0.0
        %4994 = vmatprep.subr.mxu0 0.0
        %4995 = vmatpush1.xpose.msra.mxu0 0.0
        %4996 = vmatprep.subr.mxu0 0.0
        %4997 = vmatpush1.xpose.msra.mxu0 0.0
        %4998 = vmatprep.subr.mxu0 0.0
        %4999 = vmatpush1.xpose.msra.mxu0 0.0
        %5000 = vmatprep.subr.mxu0 0.0
        %5001 = vmatpush1.xpose.msra.mxu0 0.0
        %5002 = vmatprep.subr.mxu0 0.0
        %5003 = vmatpush1.xpose.msra.mxu0 0.0
        %5004 = vmatprep.subr.mxu0 0.0
        %5005 = vmatpush1.xpose.msra.mxu0 0.0
        %5006 = vmatprep.subr.mxu0 0.0
        %5007 = vmatpush1.xpose.msra.mxu0 0.0
        %5008 = vmatprep.subr.mxu0 0.0
        %5009 = vmatpush1.xpose.msra.mxu0 0.0
        %5010 = vmatprep.subr.mxu0 0.0
        %5011 = vmatpush1.xpose.msra.mxu0 0.0
        %5012 = vmatprep.subr.mxu0 0.0
        %5013 = vmatpush1.xpose.msra.mxu0 0.0
        %5014 = vmatprep.subr.mxu0 0.0
        %5015 = vmatpush1.xpose.msra.mxu0 0.0
        %5016 = vmatprep.subr.mxu0 0.0
        %5017 = vmatpush1.xpose.msra.mxu0 0.0
        %5018 = vmatprep.subr.mxu0 0.0
        %5019 = vmatpush1.xpose.msra.mxu0 0.0
        %5020 = vmatprep.subr.mxu0 0.0
        %5021 = vmatpush1.xpose.msra.mxu0 0.0
        %5022 = vmatprep.subr.mxu0 0.0
        %5023 = vmatpush1.xpose.msra.mxu0 0.0
        %5024 = vmatprep.subr.mxu0 0.0
        %5025 = vmatpush1.xpose.msra.mxu0 0.0
        %5026 = vmatprep.subr.mxu0 0.0
        %5027 = vmatpush1.xpose.msra.mxu0 0.0
        %5028 = vmatprep.subr.mxu0 0.0
        %5029 = vmatpush1.xpose.msra.mxu0 0.0
        %5030 = vmatprep.mubr.f32.mxu0 0.0
        %5031 = vmatmul.mubr.f32.gmra.mrb[0].mxu0 %v4958
        %v5032 = vpop.f32.mrb[0].mxu0
        %v5033 = vadd.f32 0.0, %v5032
        %v5034 = vpop.f32.mrb[0].mxu0
        %5035 = vmatprep.mubr.f32.mxu0 0.0
        %5036 = vmatmul.mubr.f32.gmra.mrb[0].mxu0 %v4960
        %v5037 = vpop.f32.mrb[0].mxu0
        %v5038 = vadd.f32 0.0, %v5037
        %v5039 = vpop.f32.mrb[0].mxu0
        %5040 = vdwg.mxu0
        %v5041 = vmul.f32 %v5033, 0.35355338
        %v5042 = vmul.f32 %v5038, 0.35355338
        %v5043 = vsel %vm4623, %v5041, -1e+30
        %v5044 = vsel %vm4624, %v5042, -1e+30
        %v5045 = vsel %vm1136, %v5043, -inf
        %5046 = vmax.xlane.f32.xlu0 %v5045
        %v5047 = vpop.xlane.xlu0 %5046
        %v5048 = vsel %vm1136, %v5044, -inf
        %5049 = vmax.xlane.f32.xlu0 %v5048
        %v5050 = vpop.xlane.xlu0 %5049
        %v5051 = vsub.f32 %v5043, %v5047
        %v5052 = vsub.f32 %v5044, %v5050
        %v5053 = vmul.f32 %v5051, 1.442695
        %v5054 = vpow.pop %v5053
        %v5055 = vmul.f32 %v5052, 1.442695
        %v5056 = vpow.pop %v5055
        %v5057 = vsel %vm1136, %v5054, 0.0
        %5058 = vadd.xlane.f32.xlu0 %v5057
        %v5059 = vpop.xlane.xlu0 %5058
        %v5060 = vsel %vm1136, %v5056, 0.0
        %5061 = vadd.xlane.f32.xlu0 %v5060
        %v5062 = vpop.xlane.xlu0 %5061
        %v5063 = vrcp.pop %v5059
        %v5064 = vrcp.pop %v5062
        %v5065 = vmul.f32 %v5054, %v5063
        %v5066 = vmul.f32 %v5056, %v5064
        %5067 = vrot.lane.b32.xlu0 %v4524, 56
        %v5068 = vpop.permute.xlu0 %5067
        %5069 = vrot.lane.b32.xlu0 %v4529, 56
        %v5070 = vpop.permute.xlu0 %5069
        %v5074 = vsel %vm1136, %v5065, 0
        %v5077 = vsel %vm1136, %v5066, 0
        %5079 = vmatprep.subr.mxu0 0.0
        %5080 = vmatpush1.msra.mxu0 %v5068
        %5081 = vmatprep.subr.mxu0 0.0
        %5082 = vmatpush1.msra.mxu0 %v5070
        %5083 = vmatprep.subr.mxu0 0.0
        %5084 = vmatpush1.msra.mxu0 0.0
        %5085 = vmatprep.subr.mxu0 0.0
        %5086 = vmatpush1.msra.mxu0 0.0
        %5087 = vmatprep.subr.mxu0 0.0
        %5088 = vmatpush1.msra.mxu0 0.0
        %5089 = vmatprep.subr.mxu0 0.0
        %5090 = vmatpush1.msra.mxu0 0.0
        %5091 = vmatprep.subr.mxu0 0.0
        %5092 = vmatpush1.msra.mxu0 0.0
        %5093 = vmatprep.subr.mxu0 0.0
        %5094 = vmatpush1.msra.mxu0 0.0
        %5095 = vmatprep.subr.mxu0 0.0
        %5096 = vmatpush1.msra.mxu0 0.0
        %5097 = vmatprep.subr.mxu0 0.0
        %5098 = vmatpush1.msra.mxu0 0.0
        %5099 = vmatprep.subr.mxu0 0.0
        %5100 = vmatpush1.msra.mxu0 0.0
        %5101 = vmatprep.subr.mxu0 0.0
        %5102 = vmatpush1.msra.mxu0 0.0
        %5103 = vmatprep.subr.mxu0 0.0
        %5104 = vmatpush1.msra.mxu0 0.0
        %5105 = vmatprep.subr.mxu0 0.0
        %5106 = vmatpush1.msra.mxu0 0.0
        %5107 = vmatprep.subr.mxu0 0.0
        %5108 = vmatpush1.msra.mxu0 0.0
        %5109 = vmatprep.subr.mxu0 0.0
        %5110 = vmatpush1.msra.mxu0 0.0
        %5111 = vmatprep.subr.mxu0 0.0
        %5112 = vmatpush1.msra.mxu0 0.0
        %5113 = vmatprep.subr.mxu0 0.0
        %5114 = vmatpush1.msra.mxu0 0.0
        %5115 = vmatprep.subr.mxu0 0.0
        %5116 = vmatpush1.msra.mxu0 0.0
        %5117 = vmatprep.subr.mxu0 0.0
        %5118 = vmatpush1.msra.mxu0 0.0
        %5119 = vmatprep.subr.mxu0 0.0
        %5120 = vmatpush1.msra.mxu0 0.0
        %5121 = vmatprep.subr.mxu0 0.0
        %5122 = vmatpush1.msra.mxu0 0.0
        %5123 = vmatprep.subr.mxu0 0.0
        %5124 = vmatpush1.msra.mxu0 0.0
        %5125 = vmatprep.subr.mxu0 0.0
        %5126 = vmatpush1.msra.mxu0 0.0
        %5127 = vmatprep.subr.mxu0 0.0
        %5128 = vmatpush1.msra.mxu0 0.0
        %5129 = vmatprep.subr.mxu0 0.0
        %5130 = vmatpush1.msra.mxu0 0.0
        %5131 = vmatprep.subr.mxu0 0.0
        %5132 = vmatpush1.msra.mxu0 0.0
        %5133 = vmatprep.subr.mxu0 0.0
        %5134 = vmatpush1.msra.mxu0 0.0
        %5135 = vmatprep.subr.mxu0 0.0
        %5136 = vmatpush1.msra.mxu0 0.0
        %5137 = vmatprep.subr.mxu0 0.0
        %5138 = vmatpush1.msra.mxu0 0.0
        %5139 = vmatprep.subr.mxu0 0.0
        %5140 = vmatpush1.msra.mxu0 0.0
        %5141 = vmatprep.subr.mxu0 0.0
        %5142 = vmatpush1.msra.mxu0 0.0
        %5143 = vmatprep.mubr.f32.mxu0 0.0
        %5144 = vmatmul.mubr.f32.gmra.mrb[0].mxu0 %v5074
        %v5145 = vpop.f32.mrb[0].mxu0
        %v5146 = vadd.f32 0.0, %v5145
        %v5147 = vpop.f32.mrb[0].mxu0
        %5148 = vmatprep.mubr.f32.mxu0 0.0
        %5149 = vmatmul.mubr.f32.gmra.mrb[0].mxu0 %v5077
        %v5150 = vpop.f32.mrb[0].mxu0
        %v5151 = vadd.f32 0.0, %v5150
        %v5152 = vpop.f32.mrb[0].mxu0
        %5153 = vdwg.mxu0
        %5154 = vmatprep.subr.mxu0 0.0
        %5155 = vmatpush1.msra.mxu0 %v5068
        %5156 = vmatprep.subr.mxu0 0.0
        %5157 = vmatpush1.msra.mxu0 %v5070
        %5158 = vmatprep.subr.mxu0 0.0
        %5159 = vmatpush1.msra.mxu0 0.0
        %5160 = vmatprep.subr.mxu0 0.0
        %5161 = vmatpush1.msra.mxu0 0.0
        %5162 = vmatprep.subr.mxu0 0.0
        %5163 = vmatpush1.msra.mxu0 0.0
        %5164 = vmatprep.subr.mxu0 0.0
        %5165 = vmatpush1.msra.mxu0 0.0
        %5166 = vmatprep.subr.mxu0 0.0
        %5167 = vmatpush1.msra.mxu0 0.0
        %5168 = vmatprep.subr.mxu0 0.0
        %5169 = vmatpush1.msra.mxu0 0.0
        %5170 = vmatprep.subr.mxu0 0.0
        %5171 = vmatpush1.msra.mxu0 0.0
        %5172 = vmatprep.subr.mxu0 0.0
        %5173 = vmatpush1.msra.mxu0 0.0
        %5174 = vmatprep.subr.mxu0 0.0
        %5175 = vmatpush1.msra.mxu0 0.0
        %5176 = vmatprep.subr.mxu0 0.0
        %5177 = vmatpush1.msra.mxu0 0.0
        %5178 = vmatprep.subr.mxu0 0.0
        %5179 = vmatpush1.msra.mxu0 0.0
        %5180 = vmatprep.subr.mxu0 0.0
        %5181 = vmatpush1.msra.mxu0 0.0
        %5182 = vmatprep.subr.mxu0 0.0
        %5183 = vmatpush1.msra.mxu0 0.0
        %5184 = vmatprep.subr.mxu0 0.0
        %5185 = vmatpush1.msra.mxu0 0.0
        %5186 = vmatprep.subr.mxu0 0.0
        %5187 = vmatpush1.msra.mxu0 0.0
        %5188 = vmatprep.subr.mxu0 0.0
        %5189 = vmatpush1.msra.mxu0 0.0
        %5190 = vmatprep.subr.mxu0 0.0
        %5191 = vmatpush1.msra.mxu0 0.0
        %5192 = vmatprep.subr.mxu0 0.0
        %5193 = vmatpush1.msra.mxu0 0.0
        %5194 = vmatprep.subr.mxu0 0.0
        %5195 = vmatpush1.msra.mxu0 0.0
        %5196 = vmatprep.subr.mxu0 0.0
        %5197 = vmatpush1.msra.mxu0 0.0
        %5198 = vmatprep.subr.mxu0 0.0
        %5199 = vmatpush1.msra.mxu0 0.0
        %5200 = vmatprep.subr.mxu0 0.0
        %5201 = vmatpush1.msra.mxu0 0.0
        %5202 = vmatprep.subr.mxu0 0.0
        %5203 = vmatpush1.msra.mxu0 0.0
        %5204 = vmatprep.subr.mxu0 0.0
        %5205 = vmatpush1.msra.mxu0 0.0
        %5206 = vmatprep.subr.mxu0 0.0
        %5207 = vmatpush1.msra.mxu0 0.0
        %5208 = vmatprep.subr.mxu0 0.0
        %5209 = vmatpush1.msra.mxu0 0.0
        %5210 = vmatprep.subr.mxu0 0.0
        %5211 = vmatpush1.msra.mxu0 0.0
        %5212 = vmatprep.subr.mxu0 0.0
        %5213 = vmatpush1.msra.mxu0 0.0
        %5214 = vmatprep.subr.mxu0 0.0
        %5215 = vmatpush1.msra.mxu0 0.0
        %5216 = vmatprep.subr.mxu0 0.0
        %5217 = vmatpush1.msra.mxu0 0.0
        %5218 = vmatprep.mubr.f32.mxu0 0.0
        %5219 = vmatmul.mubr.f32.gmra.mrb[0].mxu0 %v4743
        %v5220 = vpop.f32.mrb[0].mxu0
        %v5221 = vadd.f32 0.0, %v5220
        %v5222 = vpop.f32.mrb[0].mxu0
        %5223 = vmatprep.mubr.f32.mxu0 0.0
        %5224 = vmatmul.mubr.f32.gmra.mrb[0].mxu0 %v4746
        %v5225 = vpop.f32.mrb[0].mxu0
        %v5226 = vadd.f32 0.0, %v5225
        %v5227 = vpop.f32.mrb[0].mxu0
        %5228 = vdwg.mxu0
        %v5229 = vsel %vm4532, %v5033, -1e+30
        %v5230 = vsel %vm4533, %v5038, -1e+30
        %v5231 = vsel %vm1136, %v5229, -inf
        %5232 = vmax.xlane.f32.xlu0 %v5231
        %v5233 = vpop.xlane.xlu0 %5232
        %v5234 = vsel %vm1136, %v5230, -inf
        %5235 = vmax.xlane.f32.xlu0 %v5234
        %v5236 = vpop.xlane.xlu0 %5235
        %v5237 = vmul.f32 %v5033, %v4445
        %v5238 = vmul.f32 %v5038, %v4446
        %v5239 = vsel %vm1136, %v5237, 0.0
        %5240 = vadd.xlane.f32.xlu0 %v5239
        %v5241 = vpop.xlane.xlu0 %5240
        %v5242 = vsel %vm1136, %v5238, 0.0
        %5243 = vadd.xlane.f32.xlu0 %v5242
        %v5244 = vpop.xlane.xlu0 %5243
        %v5245 = vmul.f32 %v5241, %v1256
        %v5246 = vmul.f32 %v5244, %v1256
        %v5247 = vsub.f32 %v5233, %v5245
        %v5248 = vsub.f32 %v5236, %v5246
        %v5250 = vsel %vm1278, %v5247, 0
        %v5253 = vsel %vm1278, %v5248, 0
        %5255 = vmatprep.subr.mxu0 0.0
        %5256 = vmatpush1.xpose.msra.mxu0 %v5250
        %5257 = vmatprep.subr.mxu0 0.0
        %5258 = vmatpush1.xpose.msra.mxu0 %v5253
        %5259 = vmatprep.subr.mxu0 0.0
        %5260 = vmatpush1.xpose.msra.mxu0 0.0
        %5261 = vmatprep.subr.mxu0 0.0
        %5262 = vmatpush1.xpose.msra.mxu0 0.0
        %5263 = vmatprep.subr.mxu0 0.0
        %5264 = vmatpush1.xpose.msra.mxu0 0.0
        %5265 = vmatprep.subr.mxu0 0.0
        %5266 = vmatpush1.xpose.msra.mxu0 0.0
        %5267 = vmatprep.subr.mxu0 0.0
        %5268 = vmatpush1.xpose.msra.mxu0 0.0
        %5269 = vmatprep.subr.mxu0 0.0
        %5270 = vmatpush1.xpose.msra.mxu0 0.0
        %5271 = vmatprep.subr.mxu0 0.0
        %5272 = vmatpush1.xpose.msra.mxu0 0.0
        %5273 = vmatprep.subr.mxu0 0.0
        %5274 = vmatpush1.xpose.msra.mxu0 0.0
        %5275 = vmatprep.subr.mxu0 0.0
        %5276 = vmatpush1.xpose.msra.mxu0 0.0
        %5277 = vmatprep.subr.mxu0 0.0
        %5278 = vmatpush1.xpose.msra.mxu0 0.0
        %5279 = vmatprep.subr.mxu0 0.0
        %5280 = vmatpush1.xpose.msra.mxu0 0.0
        %5281 = vmatprep.subr.mxu0 0.0
        %5282 = vmatpush1.xpose.msra.mxu0 0.0
        %5283 = vmatprep.subr.mxu0 0.0
        %5284 = vmatpush1.xpose.msra.mxu0 0.0
        %5285 = vmatprep.subr.mxu0 0.0
        %5286 = vmatpush1.xpose.msra.mxu0 0.0
        %5287 = vmatprep.subr.mxu0 0.0
        %5288 = vmatpush1.xpose.msra.mxu0 0.0
        %5289 = vmatprep.subr.mxu0 0.0
        %5290 = vmatpush1.xpose.msra.mxu0 0.0
        %5291 = vmatprep.subr.mxu0 0.0
        %5292 = vmatpush1.xpose.msra.mxu0 0.0
        %5293 = vmatprep.subr.mxu0 0.0
        %5294 = vmatpush1.xpose.msra.mxu0 0.0
        %5295 = vmatprep.subr.mxu0 0.0
        %5296 = vmatpush1.xpose.msra.mxu0 0.0
        %5297 = vmatprep.subr.mxu0 0.0
        %5298 = vmatpush1.xpose.msra.mxu0 0.0
        %5299 = vmatprep.subr.mxu0 0.0
        %5300 = vmatpush1.xpose.msra.mxu0 0.0
        %5301 = vmatprep.subr.mxu0 0.0
        %5302 = vmatpush1.xpose.msra.mxu0 0.0
        %5303 = vmatprep.subr.mxu0 0.0
        %5304 = vmatpush1.xpose.msra.mxu0 0.0
        %5305 = vmatprep.subr.mxu0 0.0
        %5306 = vmatpush1.xpose.msra.mxu0 0.0
        %5307 = vmatprep.subr.mxu0 0.0
        %5308 = vmatpush1.xpose.msra.mxu0 0.0
        %5309 = vmatprep.subr.mxu0 0.0
        %5310 = vmatpush1.xpose.msra.mxu0 0.0
        %5311 = vmatprep.subr.mxu0 0.0
        %5312 = vmatpush1.xpose.msra.mxu0 0.0
        %5313 = vmatprep.subr.mxu0 0.0
        %5314 = vmatpush1.xpose.msra.mxu0 0.0
        %5315 = vmatprep.subr.mxu0 0.0
        %5316 = vmatpush1.xpose.msra.mxu0 0.0
        %5317 = vmatprep.subr.mxu0 0.0
        %5318 = vmatpush1.xpose.msra.mxu0 0.0
        %5319 = vmatprep.mubr.f32.mxu0 0.0
        %5320 = vmatmul.mubr.f32.gmra.mrb[0].mxu0 %v1280
        %v5321 = vpop.f32.mrb[0].mxu0
        %v5322 = vadd.f32 0.0, %v5321
        %v5323 = vpop.f32.mrb[0].mxu0
        %5324 = vmatprep.mubr.f32.mxu0 0.0
        %5325 = vmatmul.mubr.f32.gmra.mrb[0].mxu0 %v1280
        %v5326 = vpop.f32.mrb[0].mxu0
        %v5327 = vadd.f32 0.0, %v5326
        %v5328 = vpop.f32.mrb[0].mxu0
        %5329 = vdwg.mxu0
        %vm5330 = vcmp.gt.f32.partialorder %v5322, %v5247
        %vm5331 = vcmp.gt.f32.partialorder %v5327, %v5248
        %vm5332 = vcmp.eq.f32.partialorder %v5322, %v5247
        %vm5333 = vcmp.eq.f32.partialorder %v5327, %v5248
        %vm5334 = vmand %vm5332, %vm1372
        %vm5335 = vmand %vm5333, %vm1373
        %vm5336 = vmor %vm5330, %vm5334
        %vm5337 = vmor %vm5331, %vm5335
        %v5338 = vsel %vm5336, 1, 0
        %v5339 = vsel %vm5337, 1, 0
        %v5340 = vcvt.s32.f32 %v5338
        %v5341 = vcvt.s32.f32 %v5339
        %v5342 = vsel %vm1136, %v5340, 0.0
        %5343 = vadd.xlane.f32.xlu0 %v5342
        %v5344 = vpop.xlane.xlu0 %5343
        %v5345 = vsel %vm1136, %v5341, 0.0
        %5346 = vadd.xlane.f32.xlu0 %v5345
        %v5347 = vpop.xlane.xlu0 %5346
        %vm5348 = vcmp.lt.f32.partialorder %v5344, 15.0
        %vm5349 = vcmp.lt.f32.partialorder %v5347, 15.0
        %v5350 = vsel %vm5348, 1, 0
        %v5351 = vsel %vm5349, 1, 0
        %vm5352 = vcmp.eq.s32.totalorder %v5350, 1
        %vm5353 = vcmp.eq.s32.totalorder %v5351, 1
        %v5354 = vsel %vm5352, %v5146, %v5221
        %v5355 = vsel %vm5353, %v5151, %v5226
        %5356 = vrot.lane.b32.xlu0 %v4524, 112
        %v5357 = vpop.permute.xlu0 %5356
        %5358 = vrot.lane.b32.xlu0 %v4529, 112
        %v5359 = vpop.permute.xlu0 %5358
        %5360 = vrot.lane.b32.xlu0 %v4524, 80
        %v5361 = vpop.permute.xlu0 %5360
        %5362 = vrot.lane.b32.xlu0 %v4529, 80
        %v5363 = vpop.permute.xlu0 %5362
        %v5364 = vsel %vm1050, %v5357, 0
        %v5366 = vsel %vm1050, %v5359, 0
        %v5368 = vsel %vm1050, %v5361, 0
        %v5370 = vsel %vm1050, %v5363, 0
        %5372 = vmatprep.subr.mxu0 0.0
        %5373 = vmatpush1.xpose.msra.mxu0 %v5368
        %5374 = vmatprep.subr.mxu0 0.0
        %5375 = vmatpush1.xpose.msra.mxu0 %v5370
        %5376 = vmatprep.subr.mxu0 0.0
        %5377 = vmatpush1.xpose.msra.mxu0 0.0
        %5378 = vmatprep.subr.mxu0 0.0
        %5379 = vmatpush1.xpose.msra.mxu0 0.0
        %5380 = vmatprep.subr.mxu0 0.0
        %5381 = vmatpush1.xpose.msra.mxu0 0.0
        %5382 = vmatprep.subr.mxu0 0.0
        %5383 = vmatpush1.xpose.msra.mxu0 0.0
        %5384 = vmatprep.subr.mxu0 0.0
        %5385 = vmatpush1.xpose.msra.mxu0 0.0
        %5386 = vmatprep.subr.mxu0 0.0
        %5387 = vmatpush1.xpose.msra.mxu0 0.0
        %5388 = vmatprep.subr.mxu0 0.0
        %5389 = vmatpush1.xpose.msra.mxu0 0.0
        %5390 = vmatprep.subr.mxu0 0.0
        %5391 = vmatpush1.xpose.msra.mxu0 0.0
        %5392 = vmatprep.subr.mxu0 0.0
        %5393 = vmatpush1.xpose.msra.mxu0 0.0
        %5394 = vmatprep.subr.mxu0 0.0
        %5395 = vmatpush1.xpose.msra.mxu0 0.0
        %5396 = vmatprep.subr.mxu0 0.0
        %5397 = vmatpush1.xpose.msra.mxu0 0.0
        %5398 = vmatprep.subr.mxu0 0.0
        %5399 = vmatpush1.xpose.msra.mxu0 0.0
        %5400 = vmatprep.subr.mxu0 0.0
        %5401 = vmatpush1.xpose.msra.mxu0 0.0
        %5402 = vmatprep.subr.mxu0 0.0
        %5403 = vmatpush1.xpose.msra.mxu0 0.0
        %5404 = vmatprep.subr.mxu0 0.0
        %5405 = vmatpush1.xpose.msra.mxu0 0.0
        %5406 = vmatprep.subr.mxu0 0.0
        %5407 = vmatpush1.xpose.msra.mxu0 0.0
        %5408 = vmatprep.subr.mxu0 0.0
        %5409 = vmatpush1.xpose.msra.mxu0 0.0
        %5410 = vmatprep.subr.mxu0 0.0
        %5411 = vmatpush1.xpose.msra.mxu0 0.0
        %5412 = vmatprep.subr.mxu0 0.0
        %5413 = vmatpush1.xpose.msra.mxu0 0.0
        %5414 = vmatprep.subr.mxu0 0.0
        %5415 = vmatpush1.xpose.msra.mxu0 0.0
        %5416 = vmatprep.subr.mxu0 0.0
        %5417 = vmatpush1.xpose.msra.mxu0 0.0
        %5418 = vmatprep.subr.mxu0 0.0
        %5419 = vmatpush1.xpose.msra.mxu0 0.0
        %5420 = vmatprep.subr.mxu0 0.0
        %5421 = vmatpush1.xpose.msra.mxu0 0.0
        %5422 = vmatprep.subr.mxu0 0.0
        %5423 = vmatpush1.xpose.msra.mxu0 0.0
        %5424 = vmatprep.subr.mxu0 0.0
        %5425 = vmatpush1.xpose.msra.mxu0 0.0
        %5426 = vmatprep.subr.mxu0 0.0
        %5427 = vmatpush1.xpose.msra.mxu0 0.0
        %5428 = vmatprep.subr.mxu0 0.0
        %5429 = vmatpush1.xpose.msra.mxu0 0.0
        %5430 = vmatprep.subr.mxu0 0.0
        %5431 = vmatpush1.xpose.msra.mxu0 0.0
        %5432 = vmatprep.subr.mxu0 0.0
        %5433 = vmatpush1.xpose.msra.mxu0 0.0
        %5434 = vmatprep.subr.mxu0 0.0
        %5435 = vmatpush1.xpose.msra.mxu0 0.0
        %5436 = vmatprep.mubr.f32.mxu0 0.0
        %5437 = vmatmul.mubr.f32.gmra.mrb[0].mxu0 %v5364
        %v5438 = vpop.f32.mrb[0].mxu0
        %v5439 = vadd.f32 0.0, %v5438
        %v5440 = vpop.f32.mrb[0].mxu0
        %5441 = vmatprep.mubr.f32.mxu0 0.0
        %5442 = vmatmul.mubr.f32.gmra.mrb[0].mxu0 %v5366
        %v5443 = vpop.f32.mrb[0].mxu0
        %v5444 = vadd.f32 0.0, %v5443
        %v5445 = vpop.f32.mrb[0].mxu0
        %5446 = vdwg.mxu0
        %v5447 = vmul.f32 %v5439, 0.35355338
        %v5448 = vmul.f32 %v5444, 0.35355338
        %v5449 = vsel %vm4623, %v5447, -1e+30
        %v5450 = vsel %vm4624, %v5448, -1e+30
        %v5451 = vsel %vm1136, %v5449, -inf
        %5452 = vmax.xlane.f32.xlu0 %v5451
        %v5453 = vpop.xlane.xlu0 %5452
        %v5454 = vsel %vm1136, %v5450, -inf
        %5455 = vmax.xlane.f32.xlu0 %v5454
        %v5456 = vpop.xlane.xlu0 %5455
        %v5457 = vsub.f32 %v5449, %v5453
        %v5458 = vsub.f32 %v5450, %v5456
        %v5459 = vmul.f32 %v5457, 1.442695
        %v5460 = vpow.pop %v5459
        %v5461 = vmul.f32 %v5458, 1.442695
        %v5462 = vpow.pop %v5461
        %v5463 = vsel %vm1136, %v5460, 0.0
        %5464 = vadd.xlane.f32.xlu0 %v5463
        %v5465 = vpop.xlane.xlu0 %5464
        %v5466 = vsel %vm1136, %v5462, 0.0
        %5467 = vadd.xlane.f32.xlu0 %v5466
        %v5468 = vpop.xlane.xlu0 %5467
        %v5469 = vrcp.pop %v5465
        %v5470 = vrcp.pop %v5468
        %v5471 = vmul.f32 %v5460, %v5469
        %v5472 = vmul.f32 %v5462, %v5470
        %5473 = vrot.lane.b32.xlu0 %v4524, 48
        %v5474 = vpop.permute.xlu0 %5473
        %5475 = vrot.lane.b32.xlu0 %v4529, 48
        %v5476 = vpop.permute.xlu0 %5475
        %v5480 = vsel %vm1136, %v5471, 0
        %v5483 = vsel %vm1136, %v5472, 0
        %5485 = vmatprep.subr.mxu0 0.0
        %5486 = vmatpush1.msra.mxu0 %v5474
        %5487 = vmatprep.subr.mxu0 0.0
        %5488 = vmatpush1.msra.mxu0 %v5476
        %5489 = vmatprep.subr.mxu0 0.0
        %5490 = vmatpush1.msra.mxu0 0.0
        %5491 = vmatprep.subr.mxu0 0.0
        %5492 = vmatpush1.msra.mxu0 0.0
        %5493 = vmatprep.subr.mxu0 0.0
        %5494 = vmatpush1.msra.mxu0 0.0
        %5495 = vmatprep.subr.mxu0 0.0
        %5496 = vmatpush1.msra.mxu0 0.0
        %5497 = vmatprep.subr.mxu0 0.0
        %5498 = vmatpush1.msra.mxu0 0.0
        %5499 = vmatprep.subr.mxu0 0.0
        %5500 = vmatpush1.msra.mxu0 0.0
        %5501 = vmatprep.subr.mxu0 0.0
        %5502 = vmatpush1.msra.mxu0 0.0
        %5503 = vmatprep.subr.mxu0 0.0
        %5504 = vmatpush1.msra.mxu0 0.0
        %5505 = vmatprep.subr.mxu0 0.0
        %5506 = vmatpush1.msra.mxu0 0.0
        %5507 = vmatprep.subr.mxu0 0.0
        %5508 = vmatpush1.msra.mxu0 0.0
        %5509 = vmatprep.subr.mxu0 0.0
        %5510 = vmatpush1.msra.mxu0 0.0
        %5511 = vmatprep.subr.mxu0 0.0
        %5512 = vmatpush1.msra.mxu0 0.0
        %5513 = vmatprep.subr.mxu0 0.0
        %5514 = vmatpush1.msra.mxu0 0.0
        %5515 = vmatprep.subr.mxu0 0.0
        %5516 = vmatpush1.msra.mxu0 0.0
        %5517 = vmatprep.subr.mxu0 0.0
        %5518 = vmatpush1.msra.mxu0 0.0
        %5519 = vmatprep.subr.mxu0 0.0
        %5520 = vmatpush1.msra.mxu0 0.0
        %5521 = vmatprep.subr.mxu0 0.0
        %5522 = vmatpush1.msra.mxu0 0.0
        %5523 = vmatprep.subr.mxu0 0.0
        %5524 = vmatpush1.msra.mxu0 0.0
        %5525 = vmatprep.subr.mxu0 0.0
        %5526 = vmatpush1.msra.mxu0 0.0
        %5527 = vmatprep.subr.mxu0 0.0
        %5528 = vmatpush1.msra.mxu0 0.0
        %5529 = vmatprep.subr.mxu0 0.0
        %5530 = vmatpush1.msra.mxu0 0.0
        %5531 = vmatprep.subr.mxu0 0.0
        %5532 = vmatpush1.msra.mxu0 0.0
        %5533 = vmatprep.subr.mxu0 0.0
        %5534 = vmatpush1.msra.mxu0 0.0
        %5535 = vmatprep.subr.mxu0 0.0
        %5536 = vmatpush1.msra.mxu0 0.0
        %5537 = vmatprep.subr.mxu0 0.0
        %5538 = vmatpush1.msra.mxu0 0.0
        %5539 = vmatprep.subr.mxu0 0.0
        %5540 = vmatpush1.msra.mxu0 0.0
        %5541 = vmatprep.subr.mxu0 0.0
        %5542 = vmatpush1.msra.mxu0 0.0
        %5543 = vmatprep.subr.mxu0 0.0
        %5544 = vmatpush1.msra.mxu0 0.0
        %5545 = vmatprep.subr.mxu0 0.0
        %5546 = vmatpush1.msra.mxu0 0.0
        %5547 = vmatprep.subr.mxu0 0.0
        %5548 = vmatpush1.msra.mxu0 0.0
        %5549 = vmatprep.mubr.f32.mxu0 0.0
        %5550 = vmatmul.mubr.f32.gmra.mrb[0].mxu0 %v5480
        %v5551 = vpop.f32.mrb[0].mxu0
        %v5552 = vadd.f32 0.0, %v5551
        %v5553 = vpop.f32.mrb[0].mxu0
        %5554 = vmatprep.mubr.f32.mxu0 0.0
        %5555 = vmatmul.mubr.f32.gmra.mrb[0].mxu0 %v5483
        %v5556 = vpop.f32.mrb[0].mxu0
        %v5557 = vadd.f32 0.0, %v5556
        %v5558 = vpop.f32.mrb[0].mxu0
        %5559 = vdwg.mxu0
        %5560 = vmatprep.subr.mxu0 0.0
        %5561 = vmatpush1.msra.mxu0 %v5474
        %5562 = vmatprep.subr.mxu0 0.0
        %5563 = vmatpush1.msra.mxu0 %v5476
        %5564 = vmatprep.subr.mxu0 0.0
        %5565 = vmatpush1.msra.mxu0 0.0
        %5566 = vmatprep.subr.mxu0 0.0
        %5567 = vmatpush1.msra.mxu0 0.0
        %5568 = vmatprep.subr.mxu0 0.0
        %5569 = vmatpush1.msra.mxu0 0.0
        %5570 = vmatprep.subr.mxu0 0.0
        %5571 = vmatpush1.msra.mxu0 0.0
        %5572 = vmatprep.subr.mxu0 0.0
        %5573 = vmatpush1.msra.mxu0 0.0
        %5574 = vmatprep.subr.mxu0 0.0
        %5575 = vmatpush1.msra.mxu0 0.0
        %5576 = vmatprep.subr.mxu0 0.0
        %5577 = vmatpush1.msra.mxu0 0.0
        %5578 = vmatprep.subr.mxu0 0.0
        %5579 = vmatpush1.msra.mxu0 0.0
        %5580 = vmatprep.subr.mxu0 0.0
        %5581 = vmatpush1.msra.mxu0 0.0
        %5582 = vmatprep.subr.mxu0 0.0
        %5583 = vmatpush1.msra.mxu0 0.0
        %5584 = vmatprep.subr.mxu0 0.0
        %5585 = vmatpush1.msra.mxu0 0.0
        %5586 = vmatprep.subr.mxu0 0.0
        %5587 = vmatpush1.msra.mxu0 0.0
        %5588 = vmatprep.subr.mxu0 0.0
        %5589 = vmatpush1.msra.mxu0 0.0
        %5590 = vmatprep.subr.mxu0 0.0
        %5591 = vmatpush1.msra.mxu0 0.0
        %5592 = vmatprep.subr.mxu0 0.0
        %5593 = vmatpush1.msra.mxu0 0.0
        %5594 = vmatprep.subr.mxu0 0.0
        %5595 = vmatpush1.msra.mxu0 0.0
        %5596 = vmatprep.subr.mxu0 0.0
        %5597 = vmatpush1.msra.mxu0 0.0
        %5598 = vmatprep.subr.mxu0 0.0
        %5599 = vmatpush1.msra.mxu0 0.0
        %5600 = vmatprep.subr.mxu0 0.0
        %5601 = vmatpush1.msra.mxu0 0.0
        %5602 = vmatprep.subr.mxu0 0.0
        %5603 = vmatpush1.msra.mxu0 0.0
        %5604 = vmatprep.subr.mxu0 0.0
        %5605 = vmatpush1.msra.mxu0 0.0
        %5606 = vmatprep.subr.mxu0 0.0
        %5607 = vmatpush1.msra.mxu0 0.0
        %5608 = vmatprep.subr.mxu0 0.0
        %5609 = vmatpush1.msra.mxu0 0.0
        %5610 = vmatprep.subr.mxu0 0.0
        %5611 = vmatpush1.msra.mxu0 0.0
        %5612 = vmatprep.subr.mxu0 0.0
        %5613 = vmatpush1.msra.mxu0 0.0
        %5614 = vmatprep.subr.mxu0 0.0
        %5615 = vmatpush1.msra.mxu0 0.0
        %5616 = vmatprep.subr.mxu0 0.0
        %5617 = vmatpush1.msra.mxu0 0.0
        %5618 = vmatprep.subr.mxu0 0.0
        %5619 = vmatpush1.msra.mxu0 0.0
        %5620 = vmatprep.subr.mxu0 0.0
        %5621 = vmatpush1.msra.mxu0 0.0
        %5622 = vmatprep.subr.mxu0 0.0
        %5623 = vmatpush1.msra.mxu0 0.0
        %5624 = vmatprep.mubr.f32.mxu0 0.0
        %5625 = vmatmul.mubr.f32.gmra.mrb[0].mxu0 %v4743
        %v5626 = vpop.f32.mrb[0].mxu0
        %v5627 = vadd.f32 0.0, %v5626
        %v5628 = vpop.f32.mrb[0].mxu0
        %5629 = vmatprep.mubr.f32.mxu0 0.0
        %5630 = vmatmul.mubr.f32.gmra.mrb[0].mxu0 %v4746
        %v5631 = vpop.f32.mrb[0].mxu0
        %v5632 = vadd.f32 0.0, %v5631
        %v5633 = vpop.f32.mrb[0].mxu0
        %5634 = vdwg.mxu0
        %v5635 = vsel %vm4532, %v5439, -1e+30
        %v5636 = vsel %vm4533, %v5444, -1e+30
        %v5637 = vsel %vm1136, %v5635, -inf
        %5638 = vmax.xlane.f32.xlu0 %v5637
        %v5639 = vpop.xlane.xlu0 %5638
        %v5640 = vsel %vm1136, %v5636, -inf
        %5641 = vmax.xlane.f32.xlu0 %v5640
        %v5642 = vpop.xlane.xlu0 %5641
        %v5643 = vmul.f32 %v5439, %v4445
        %v5644 = vmul.f32 %v5444, %v4446
        %v5645 = vsel %vm1136, %v5643, 0.0
        %5646 = vadd.xlane.f32.xlu0 %v5645
        %v5647 = vpop.xlane.xlu0 %5646
        %v5648 = vsel %vm1136, %v5644, 0.0
        %5649 = vadd.xlane.f32.xlu0 %v5648
        %v5650 = vpop.xlane.xlu0 %5649
        %v5651 = vmul.f32 %v5647, %v1256
        %v5652 = vmul.f32 %v5650, %v1256
        %v5653 = vsub.f32 %v5639, %v5651
        %v5654 = vsub.f32 %v5642, %v5652
        %v5656 = vsel %vm1278, %v5653, 0
        %v5659 = vsel %vm1278, %v5654, 0
        %5661 = vmatprep.subr.mxu0 0.0
        %5662 = vmatpush1.xpose.msra.mxu0 %v5656
        %5663 = vmatprep.subr.mxu0 0.0
        %5664 = vmatpush1.xpose.msra.mxu0 %v5659
        %5665 = vmatprep.subr.mxu0 0.0
        %5666 = vmatpush1.xpose.msra.mxu0 0.0
        %5667 = vmatprep.subr.mxu0 0.0
        %5668 = vmatpush1.xpose.msra.mxu0 0.0
        %5669 = vmatprep.subr.mxu0 0.0
        %5670 = vmatpush1.xpose.msra.mxu0 0.0
        %5671 = vmatprep.subr.mxu0 0.0
        %5672 = vmatpush1.xpose.msra.mxu0 0.0
        %5673 = vmatprep.subr.mxu0 0.0
        %5674 = vmatpush1.xpose.msra.mxu0 0.0
        %5675 = vmatprep.subr.mxu0 0.0
        %5676 = vmatpush1.xpose.msra.mxu0 0.0
        %5677 = vmatprep.subr.mxu0 0.0
        %5678 = vmatpush1.xpose.msra.mxu0 0.0
        %5679 = vmatprep.subr.mxu0 0.0
        %5680 = vmatpush1.xpose.msra.mxu0 0.0
        %5681 = vmatprep.subr.mxu0 0.0
        %5682 = vmatpush1.xpose.msra.mxu0 0.0
        %5683 = vmatprep.subr.mxu0 0.0
        %5684 = vmatpush1.xpose.msra.mxu0 0.0
        %5685 = vmatprep.subr.mxu0 0.0
        %5686 = vmatpush1.xpose.msra.mxu0 0.0
        %5687 = vmatprep.subr.mxu0 0.0
        %5688 = vmatpush1.xpose.msra.mxu0 0.0
        %5689 = vmatprep.subr.mxu0 0.0
        %5690 = vmatpush1.xpose.msra.mxu0 0.0
        %5691 = vmatprep.subr.mxu0 0.0
        %5692 = vmatpush1.xpose.msra.mxu0 0.0
        %5693 = vmatprep.subr.mxu0 0.0
        %5694 = vmatpush1.xpose.msra.mxu0 0.0
        %5695 = vmatprep.subr.mxu0 0.0
        %5696 = vmatpush1.xpose.msra.mxu0 0.0
        %5697 = vmatprep.subr.mxu0 0.0
        %5698 = vmatpush1.xpose.msra.mxu0 0.0
        %5699 = vmatprep.subr.mxu0 0.0
        %5700 = vmatpush1.xpose.msra.mxu0 0.0
        %5701 = vmatprep.subr.mxu0 0.0
        %5702 = vmatpush1.xpose.msra.mxu0 0.0
        %5703 = vmatprep.subr.mxu0 0.0
        %5704 = vmatpush1.xpose.msra.mxu0 0.0
        %5705 = vmatprep.subr.mxu0 0.0
        %5706 = vmatpush1.xpose.msra.mxu0 0.0
        %5707 = vmatprep.subr.mxu0 0.0
        %5708 = vmatpush1.xpose.msra.mxu0 0.0
        %5709 = vmatprep.subr.mxu0 0.0
        %5710 = vmatpush1.xpose.msra.mxu0 0.0
        %5711 = vmatprep.subr.mxu0 0.0
        %5712 = vmatpush1.xpose.msra.mxu0 0.0
        %5713 = vmatprep.subr.mxu0 0.0
        %5714 = vmatpush1.xpose.msra.mxu0 0.0
        %5715 = vmatprep.subr.mxu0 0.0
        %5716 = vmatpush1.xpose.msra.mxu0 0.0
        %5717 = vmatprep.subr.mxu0 0.0
        %5718 = vmatpush1.xpose.msra.mxu0 0.0
        %5719 = vmatprep.subr.mxu0 0.0
        %5720 = vmatpush1.xpose.msra.mxu0 0.0
        %5721 = vmatprep.subr.mxu0 0.0
        %5722 = vmatpush1.xpose.msra.mxu0 0.0
        %5723 = vmatprep.subr.mxu0 0.0
        %5724 = vmatpush1.xpose.msra.mxu0 0.0
        %5725 = vmatprep.mubr.f32.mxu0 0.0
        %5726 = vmatmul.mubr.f32.gmra.mrb[0].mxu0 %v1280
        %v5727 = vpop.f32.mrb[0].mxu0
        %v5728 = vadd.f32 0.0, %v5727
        %v5729 = vpop.f32.mrb[0].mxu0
        %5730 = vmatprep.mubr.f32.mxu0 0.0
        %5731 = vmatmul.mubr.f32.gmra.mrb[0].mxu0 %v1280
        %v5732 = vpop.f32.mrb[0].mxu0
        %v5733 = vadd.f32 0.0, %v5732
        %v5734 = vpop.f32.mrb[0].mxu0
        %5735 = vdwg.mxu0
        %vm5736 = vcmp.gt.f32.partialorder %v5728, %v5653
        %vm5737 = vcmp.gt.f32.partialorder %v5733, %v5654
        %vm5738 = vcmp.eq.f32.partialorder %v5728, %v5653
        %vm5739 = vcmp.eq.f32.partialorder %v5733, %v5654
        %vm5740 = vmand %vm5738, %vm1372
        %vm5741 = vmand %vm5739, %vm1373
        %vm5742 = vmor %vm5736, %vm5740
        %vm5743 = vmor %vm5737, %vm5741
        %v5744 = vsel %vm5742, 1, 0
        %v5745 = vsel %vm5743, 1, 0
        %v5746 = vcvt.s32.f32 %v5744
        %v5747 = vcvt.s32.f32 %v5745
        %v5748 = vsel %vm1136, %v5746, 0.0
        %5749 = vadd.xlane.f32.xlu0 %v5748
        %v5750 = vpop.xlane.xlu0 %5749
        %v5751 = vsel %vm1136, %v5747, 0.0
        %5752 = vadd.xlane.f32.xlu0 %v5751
        %v5753 = vpop.xlane.xlu0 %5752
        %vm5754 = vcmp.lt.f32.partialorder %v5750, 15.0
        %vm5755 = vcmp.lt.f32.partialorder %v5753, 15.0
        %v5756 = vsel %vm5754, 1, 0
        %v5757 = vsel %vm5755, 1, 0
        %vm5758 = vcmp.eq.s32.totalorder %v5756, 1
        %vm5759 = vcmp.eq.s32.totalorder %v5757, 1
        %v5760 = vsel %vm5758, %v5552, %v5627
        %v5761 = vsel %vm5759, %v5557, %v5632
        %5762 = vrot.lane.b32.xlu0 %v4524, 104
        %v5763 = vpop.permute.xlu0 %5762
        %5764 = vrot.lane.b32.xlu0 %v4529, 104
        %v5765 = vpop.permute.xlu0 %5764
        %5766 = vrot.lane.b32.xlu0 %v4524, 72
        %v5767 = vpop.permute.xlu0 %5766
        %5768 = vrot.lane.b32.xlu0 %v4529, 72
        %v5769 = vpop.permute.xlu0 %5768
        %v5770 = vsel %vm1050, %v5763, 0
        %v5772 = vsel %vm1050, %v5765, 0
        %v5774 = vsel %vm1050, %v5767, 0
        %v5776 = vsel %vm1050, %v5769, 0
        %5778 = vmatprep.subr.mxu0 0.0
        %5779 = vmatpush1.xpose.msra.mxu0 %v5774
        %5780 = vmatprep.subr.mxu0 0.0
        %5781 = vmatpush1.xpose.msra.mxu0 %v5776
        %5782 = vmatprep.subr.mxu0 0.0
        %5783 = vmatpush1.xpose.msra.mxu0 0.0
        %5784 = vmatprep.subr.mxu0 0.0
        %5785 = vmatpush1.xpose.msra.mxu0 0.0
        %5786 = vmatprep.subr.mxu0 0.0
        %5787 = vmatpush1.xpose.msra.mxu0 0.0
        %5788 = vmatprep.subr.mxu0 0.0
        %5789 = vmatpush1.xpose.msra.mxu0 0.0
        %5790 = vmatprep.subr.mxu0 0.0
        %5791 = vmatpush1.xpose.msra.mxu0 0.0
        %5792 = vmatprep.subr.mxu0 0.0
        %5793 = vmatpush1.xpose.msra.mxu0 0.0
        %5794 = vmatprep.subr.mxu0 0.0
        %5795 = vmatpush1.xpose.msra.mxu0 0.0
        %5796 = vmatprep.subr.mxu0 0.0
        %5797 = vmatpush1.xpose.msra.mxu0 0.0
        %5798 = vmatprep.subr.mxu0 0.0
        %5799 = vmatpush1.xpose.msra.mxu0 0.0
        %5800 = vmatprep.subr.mxu0 0.0
        %5801 = vmatpush1.xpose.msra.mxu0 0.0
        %5802 = vmatprep.subr.mxu0 0.0
        %5803 = vmatpush1.xpose.msra.mxu0 0.0
        %5804 = vmatprep.subr.mxu0 0.0
        %5805 = vmatpush1.xpose.msra.mxu0 0.0
        %5806 = vmatprep.subr.mxu0 0.0
        %5807 = vmatpush1.xpose.msra.mxu0 0.0
        %5808 = vmatprep.subr.mxu0 0.0
        %5809 = vmatpush1.xpose.msra.mxu0 0.0
        %5810 = vmatprep.subr.mxu0 0.0
        %5811 = vmatpush1.xpose.msra.mxu0 0.0
        %5812 = vmatprep.subr.mxu0 0.0
        %5813 = vmatpush1.xpose.msra.mxu0 0.0
        %5814 = vmatprep.subr.mxu0 0.0
        %5815 = vmatpush1.xpose.msra.mxu0 0.0
        %5816 = vmatprep.subr.mxu0 0.0
        %5817 = vmatpush1.xpose.msra.mxu0 0.0
        %5818 = vmatprep.subr.mxu0 0.0
        %5819 = vmatpush1.xpose.msra.mxu0 0.0
        %5820 = vmatprep.subr.mxu0 0.0
        %5821 = vmatpush1.xpose.msra.mxu0 0.0
        %5822 = vmatprep.subr.mxu0 0.0
        %5823 = vmatpush1.xpose.msra.mxu0 0.0
        %5824 = vmatprep.subr.mxu0 0.0
        %5825 = vmatpush1.xpose.msra.mxu0 0.0
        %5826 = vmatprep.subr.mxu0 0.0
        %5827 = vmatpush1.xpose.msra.mxu0 0.0
        %5828 = vmatprep.subr.mxu0 0.0
        %5829 = vmatpush1.xpose.msra.mxu0 0.0
        %5830 = vmatprep.subr.mxu0 0.0
        %5831 = vmatpush1.xpose.msra.mxu0 0.0
        %5832 = vmatprep.subr.mxu0 0.0
        %5833 = vmatpush1.xpose.msra.mxu0 0.0
        %5834 = vmatprep.subr.mxu0 0.0
        %5835 = vmatpush1.xpose.msra.mxu0 0.0
        %5836 = vmatprep.subr.mxu0 0.0
        %5837 = vmatpush1.xpose.msra.mxu0 0.0
        %5838 = vmatprep.subr.mxu0 0.0
        %5839 = vmatpush1.xpose.msra.mxu0 0.0
        %5840 = vmatprep.subr.mxu0 0.0
        %5841 = vmatpush1.xpose.msra.mxu0 0.0
        %5842 = vmatprep.mubr.f32.mxu0 0.0
        %5843 = vmatmul.mubr.f32.gmra.mrb[0].mxu0 %v5770
        %v5844 = vpop.f32.mrb[0].mxu0
        %v5845 = vadd.f32 0.0, %v5844
        %v5846 = vpop.f32.mrb[0].mxu0
        %5847 = vmatprep.mubr.f32.mxu0 0.0
        %5848 = vmatmul.mubr.f32.gmra.mrb[0].mxu0 %v5772
        %v5849 = vpop.f32.mrb[0].mxu0
        %v5850 = vadd.f32 0.0, %v5849
        %v5851 = vpop.f32.mrb[0].mxu0
        %5852 = vdwg.mxu0
        %v5853 = vmul.f32 %v5845, 0.35355338
        %v5854 = vmul.f32 %v5850, 0.35355338
        %v5855 = vsel %vm4623, %v5853, -1e+30
        %v5856 = vsel %vm4624, %v5854, -1e+30
        %v5857 = vsel %vm1136, %v5855, -inf
        %5858 = vmax.xlane.f32.xlu0 %v5857
        %v5859 = vpop.xlane.xlu0 %5858
        %v5860 = vsel %vm1136, %v5856, -inf
        %5861 = vmax.xlane.f32.xlu0 %v5860
        %v5862 = vpop.xlane.xlu0 %5861
        %v5863 = vsub.f32 %v5855, %v5859
        %v5864 = vsub.f32 %v5856, %v5862
        %v5865 = vmul.f32 %v5863, 1.442695
        %v5866 = vpow.pop %v5865
        %v5867 = vmul.f32 %v5864, 1.442695
        %v5868 = vpow.pop %v5867
        %v5869 = vsel %vm1136, %v5866, 0.0
        %5870 = vadd.xlane.f32.xlu0 %v5869
        %v5871 = vpop.xlane.xlu0 %5870
        %v5872 = vsel %vm1136, %v5868, 0.0
        %5873 = vadd.xlane.f32.xlu0 %v5872
        %v5874 = vpop.xlane.xlu0 %5873
        %v5875 = vrcp.pop %v5871
        %v5876 = vrcp.pop %v5874
        %v5877 = vmul.f32 %v5866, %v5875
        %v5878 = vmul.f32 %v5868, %v5876
        %5879 = vrot.lane.b32.xlu0 %v4524, 40
        %v5880 = vpop.permute.xlu0 %5879
        %5881 = vrot.lane.b32.xlu0 %v4529, 40
        %v5882 = vpop.permute.xlu0 %5881
        %v5886 = vsel %vm1136, %v5877, 0
        %v5889 = vsel %vm1136, %v5878, 0
        %5891 = vmatprep.subr.mxu0 0.0
        %5892 = vmatpush1.msra.mxu0 %v5880
        %5893 = vmatprep.subr.mxu0 0.0
        %5894 = vmatpush1.msra.mxu0 %v5882
        %5895 = vmatprep.subr.mxu0 0.0
        %5896 = vmatpush1.msra.mxu0 0.0
        %5897 = vmatprep.subr.mxu0 0.0
        %5898 = vmatpush1.msra.mxu0 0.0
        %5899 = vmatprep.subr.mxu0 0.0
        %5900 = vmatpush1.msra.mxu0 0.0
        %5901 = vmatprep.subr.mxu0 0.0
        %5902 = vmatpush1.msra.mxu0 0.0
        %5903 = vmatprep.subr.mxu0 0.0
        %5904 = vmatpush1.msra.mxu0 0.0
        %5905 = vmatprep.subr.mxu0 0.0
        %5906 = vmatpush1.msra.mxu0 0.0
        %5907 = vmatprep.subr.mxu0 0.0
        %5908 = vmatpush1.msra.mxu0 0.0
        %5909 = vmatprep.subr.mxu0 0.0
        %5910 = vmatpush1.msra.mxu0 0.0
        %5911 = vmatprep.subr.mxu0 0.0
        %5912 = vmatpush1.msra.mxu0 0.0
        %5913 = vmatprep.subr.mxu0 0.0
        %5914 = vmatpush1.msra.mxu0 0.0
        %5915 = vmatprep.subr.mxu0 0.0
        %5916 = vmatpush1.msra.mxu0 0.0
        %5917 = vmatprep.subr.mxu0 0.0
        %5918 = vmatpush1.msra.mxu0 0.0
        %5919 = vmatprep.subr.mxu0 0.0
        %5920 = vmatpush1.msra.mxu0 0.0
        %5921 = vmatprep.subr.mxu0 0.0
        %5922 = vmatpush1.msra.mxu0 0.0
        %5923 = vmatprep.subr.mxu0 0.0
        %5924 = vmatpush1.msra.mxu0 0.0
        %5925 = vmatprep.subr.mxu0 0.0
        %5926 = vmatpush1.msra.mxu0 0.0
        %5927 = vmatprep.subr.mxu0 0.0
        %5928 = vmatpush1.msra.mxu0 0.0
        %5929 = vmatprep.subr.mxu0 0.0
        %5930 = vmatpush1.msra.mxu0 0.0
        %5931 = vmatprep.subr.mxu0 0.0
        %5932 = vmatpush1.msra.mxu0 0.0
        %5933 = vmatprep.subr.mxu0 0.0
        %5934 = vmatpush1.msra.mxu0 0.0
        %5935 = vmatprep.subr.mxu0 0.0
        %5936 = vmatpush1.msra.mxu0 0.0
        %5937 = vmatprep.subr.mxu0 0.0
        %5938 = vmatpush1.msra.mxu0 0.0
        %5939 = vmatprep.subr.mxu0 0.0
        %5940 = vmatpush1.msra.mxu0 0.0
        %5941 = vmatprep.subr.mxu0 0.0
        %5942 = vmatpush1.msra.mxu0 0.0
        %5943 = vmatprep.subr.mxu0 0.0
        %5944 = vmatpush1.msra.mxu0 0.0
        %5945 = vmatprep.subr.mxu0 0.0
        %5946 = vmatpush1.msra.mxu0 0.0
        %5947 = vmatprep.subr.mxu0 0.0
        %5948 = vmatpush1.msra.mxu0 0.0
        %5949 = vmatprep.subr.mxu0 0.0
        %5950 = vmatpush1.msra.mxu0 0.0
        %5951 = vmatprep.subr.mxu0 0.0
        %5952 = vmatpush1.msra.mxu0 0.0
        %5953 = vmatprep.subr.mxu0 0.0
        %5954 = vmatpush1.msra.mxu0 0.0
        %5955 = vmatprep.mubr.f32.mxu0 0.0
        %5956 = vmatmul.mubr.f32.gmra.mrb[0].mxu0 %v5886
        %v5957 = vpop.f32.mrb[0].mxu0
        %v5958 = vadd.f32 0.0, %v5957
        %v5959 = vpop.f32.mrb[0].mxu0
        %5960 = vmatprep.mubr.f32.mxu0 0.0
        %5961 = vmatmul.mubr.f32.gmra.mrb[0].mxu0 %v5889
        %v5962 = vpop.f32.mrb[0].mxu0
        %v5963 = vadd.f32 0.0, %v5962
        %v5964 = vpop.f32.mrb[0].mxu0
        %5965 = vdwg.mxu0
        %5966 = vmatprep.subr.mxu0 0.0
        %5967 = vmatpush1.msra.mxu0 %v5880
        %5968 = vmatprep.subr.mxu0 0.0
        %5969 = vmatpush1.msra.mxu0 %v5882
        %5970 = vmatprep.subr.mxu0 0.0
        %5971 = vmatpush1.msra.mxu0 0.0
        %5972 = vmatprep.subr.mxu0 0.0
        %5973 = vmatpush1.msra.mxu0 0.0
        %5974 = vmatprep.subr.mxu0 0.0
        %5975 = vmatpush1.msra.mxu0 0.0
        %5976 = vmatprep.subr.mxu0 0.0
        %5977 = vmatpush1.msra.mxu0 0.0
        %5978 = vmatprep.subr.mxu0 0.0
        %5979 = vmatpush1.msra.mxu0 0.0
        %5980 = vmatprep.subr.mxu0 0.0
        %5981 = vmatpush1.msra.mxu0 0.0
        %5982 = vmatprep.subr.mxu0 0.0
        %5983 = vmatpush1.msra.mxu0 0.0
        %5984 = vmatprep.subr.mxu0 0.0
        %5985 = vmatpush1.msra.mxu0 0.0
        %5986 = vmatprep.subr.mxu0 0.0
        %5987 = vmatpush1.msra.mxu0 0.0
        %5988 = vmatprep.subr.mxu0 0.0
        %5989 = vmatpush1.msra.mxu0 0.0
        %5990 = vmatprep.subr.mxu0 0.0
        %5991 = vmatpush1.msra.mxu0 0.0
        %5992 = vmatprep.subr.mxu0 0.0
        %5993 = vmatpush1.msra.mxu0 0.0
        %5994 = vmatprep.subr.mxu0 0.0
        %5995 = vmatpush1.msra.mxu0 0.0
        %5996 = vmatprep.subr.mxu0 0.0
        %5997 = vmatpush1.msra.mxu0 0.0
        %5998 = vmatprep.subr.mxu0 0.0
        %5999 = vmatpush1.msra.mxu0 0.0
        %6000 = vmatprep.subr.mxu0 0.0
        %6001 = vmatpush1.msra.mxu0 0.0
        %6002 = vmatprep.subr.mxu0 0.0
        %6003 = vmatpush1.msra.mxu0 0.0
        %6004 = vmatprep.subr.mxu0 0.0
        %6005 = vmatpush1.msra.mxu0 0.0
        %6006 = vmatprep.subr.mxu0 0.0
        %6007 = vmatpush1.msra.mxu0 0.0
        %6008 = vmatprep.subr.mxu0 0.0
        %6009 = vmatpush1.msra.mxu0 0.0
        %6010 = vmatprep.subr.mxu0 0.0
        %6011 = vmatpush1.msra.mxu0 0.0
        %6012 = vmatprep.subr.mxu0 0.0
        %6013 = vmatpush1.msra.mxu0 0.0
        %6014 = vmatprep.subr.mxu0 0.0
        %6015 = vmatpush1.msra.mxu0 0.0
        %6016 = vmatprep.subr.mxu0 0.0
        %6017 = vmatpush1.msra.mxu0 0.0
        %6018 = vmatprep.subr.mxu0 0.0
        %6019 = vmatpush1.msra.mxu0 0.0
        %6020 = vmatprep.subr.mxu0 0.0
        %6021 = vmatpush1.msra.mxu0 0.0
        %6022 = vmatprep.subr.mxu0 0.0
        %6023 = vmatpush1.msra.mxu0 0.0
        %6024 = vmatprep.subr.mxu0 0.0
        %6025 = vmatpush1.msra.mxu0 0.0
        %6026 = vmatprep.subr.mxu0 0.0
        %6027 = vmatpush1.msra.mxu0 0.0
        %6028 = vmatprep.subr.mxu0 0.0
        %6029 = vmatpush1.msra.mxu0 0.0
        %6030 = vmatprep.mubr.f32.mxu0 0.0
        %6031 = vmatmul.mubr.f32.gmra.mrb[0].mxu0 %v4743
        %v6032 = vpop.f32.mrb[0].mxu0
        %v6033 = vadd.f32 0.0, %v6032
        %v6034 = vpop.f32.mrb[0].mxu0
        %6035 = vmatprep.mubr.f32.mxu0 0.0
        %6036 = vmatmul.mubr.f32.gmra.mrb[0].mxu0 %v4746
        %v6037 = vpop.f32.mrb[0].mxu0
        %v6038 = vadd.f32 0.0, %v6037
        %v6039 = vpop.f32.mrb[0].mxu0
        %6040 = vdwg.mxu0
        %v6041 = vsel %vm4532, %v5845, -1e+30
        %v6042 = vsel %vm4533, %v5850, -1e+30
        %v6043 = vsel %vm1136, %v6041, -inf
        %6044 = vmax.xlane.f32.xlu0 %v6043
        %v6045 = vpop.xlane.xlu0 %6044
        %v6046 = vsel %vm1136, %v6042, -inf
        %6047 = vmax.xlane.f32.xlu0 %v6046
        %v6048 = vpop.xlane.xlu0 %6047
        %v6049 = vmul.f32 %v5845, %v4445
        %v6050 = vmul.f32 %v5850, %v4446
        %v6051 = vsel %vm1136, %v6049, 0.0
        %6052 = vadd.xlane.f32.xlu0 %v6051
        %v6053 = vpop.xlane.xlu0 %6052
        %v6054 = vsel %vm1136, %v6050, 0.0
        %6055 = vadd.xlane.f32.xlu0 %v6054
        %v6056 = vpop.xlane.xlu0 %6055
        %v6057 = vmul.f32 %v6053, %v1256
        %v6058 = vmul.f32 %v6056, %v1256
        %v6059 = vsub.f32 %v6045, %v6057
        %v6060 = vsub.f32 %v6048, %v6058
        %v6062 = vsel %vm1278, %v6059, 0
        %v6065 = vsel %vm1278, %v6060, 0
        %6067 = vmatprep.subr.mxu0 0.0
        %6068 = vmatpush1.xpose.msra.mxu0 %v6062
        %6069 = vmatprep.subr.mxu0 0.0
        %6070 = vmatpush1.xpose.msra.mxu0 %v6065
        %6071 = vmatprep.subr.mxu0 0.0
        %6072 = vmatpush1.xpose.msra.mxu0 0.0
        %6073 = vmatprep.subr.mxu0 0.0
        %6074 = vmatpush1.xpose.msra.mxu0 0.0
        %6075 = vmatprep.subr.mxu0 0.0
        %6076 = vmatpush1.xpose.msra.mxu0 0.0
        %6077 = vmatprep.subr.mxu0 0.0
        %6078 = vmatpush1.xpose.msra.mxu0 0.0
        %6079 = vmatprep.subr.mxu0 0.0
        %6080 = vmatpush1.xpose.msra.mxu0 0.0
        %6081 = vmatprep.subr.mxu0 0.0
        %6082 = vmatpush1.xpose.msra.mxu0 0.0
        %6083 = vmatprep.subr.mxu0 0.0
        %6084 = vmatpush1.xpose.msra.mxu0 0.0
        %6085 = vmatprep.subr.mxu0 0.0
        %6086 = vmatpush1.xpose.msra.mxu0 0.0
        %6087 = vmatprep.subr.mxu0 0.0
        %6088 = vmatpush1.xpose.msra.mxu0 0.0
        %6089 = vmatprep.subr.mxu0 0.0
        %6090 = vmatpush1.xpose.msra.mxu0 0.0
        %6091 = vmatprep.subr.mxu0 0.0
        %6092 = vmatpush1.xpose.msra.mxu0 0.0
        %6093 = vmatprep.subr.mxu0 0.0
        %6094 = vmatpush1.xpose.msra.mxu0 0.0
        %6095 = vmatprep.subr.mxu0 0.0
        %6096 = vmatpush1.xpose.msra.mxu0 0.0
        %6097 = vmatprep.subr.mxu0 0.0
        %6098 = vmatpush1.xpose.msra.mxu0 0.0
        %6099 = vmatprep.subr.mxu0 0.0
        %6100 = vmatpush1.xpose.msra.mxu0 0.0
        %6101 = vmatprep.subr.mxu0 0.0
        %6102 = vmatpush1.xpose.msra.mxu0 0.0
        %6103 = vmatprep.subr.mxu0 0.0
        %6104 = vmatpush1.xpose.msra.mxu0 0.0
        %6105 = vmatprep.subr.mxu0 0.0
        %6106 = vmatpush1.xpose.msra.mxu0 0.0
        %6107 = vmatprep.subr.mxu0 0.0
        %6108 = vmatpush1.xpose.msra.mxu0 0.0
        %6109 = vmatprep.subr.mxu0 0.0
        %6110 = vmatpush1.xpose.msra.mxu0 0.0
        %6111 = vmatprep.subr.mxu0 0.0
        %6112 = vmatpush1.xpose.msra.mxu0 0.0
        %6113 = vmatprep.subr.mxu0 0.0
        %6114 = vmatpush1.xpose.msra.mxu0 0.0
        %6115 = vmatprep.subr.mxu0 0.0
        %6116 = vmatpush1.xpose.msra.mxu0 0.0
        %6117 = vmatprep.subr.mxu0 0.0
        %6118 = vmatpush1.xpose.msra.mxu0 0.0
        %6119 = vmatprep.subr.mxu0 0.0
        %6120 = vmatpush1.xpose.msra.mxu0 0.0
        %6121 = vmatprep.subr.mxu0 0.0
        %6122 = vmatpush1.xpose.msra.mxu0 0.0
        %6123 = vmatprep.subr.mxu0 0.0
        %6124 = vmatpush1.xpose.msra.mxu0 0.0
        %6125 = vmatprep.subr.mxu0 0.0
        %6126 = vmatpush1.xpose.msra.mxu0 0.0
        %6127 = vmatprep.subr.mxu0 0.0
        %6128 = vmatpush1.xpose.msra.mxu0 0.0
        %6129 = vmatprep.subr.mxu0 0.0
        %6130 = vmatpush1.xpose.msra.mxu0 0.0
        %6131 = vmatprep.mubr.f32.mxu0 0.0
        %6132 = vmatmul.mubr.f32.gmra.mrb[0].mxu0 %v1280
        %v6133 = vpop.f32.mrb[0].mxu0
        %v6134 = vadd.f32 0.0, %v6133
        %v6135 = vpop.f32.mrb[0].mxu0
        %6136 = vmatprep.mubr.f32.mxu0 0.0
        %6137 = vmatmul.mubr.f32.gmra.mrb[0].mxu0 %v1280
        %v6138 = vpop.f32.mrb[0].mxu0
        %v6139 = vadd.f32 0.0, %v6138
        %v6140 = vpop.f32.mrb[0].mxu0
        %6141 = vdwg.mxu0
        %vm6142 = vcmp.gt.f32.partialorder %v6134, %v6059
        %vm6143 = vcmp.gt.f32.partialorder %v6139, %v6060
        %vm6144 = vcmp.eq.f32.partialorder %v6134, %v6059
        %vm6145 = vcmp.eq.f32.partialorder %v6139, %v6060
        %vm6146 = vmand %vm6144, %vm1372
        %vm6147 = vmand %vm6145, %vm1373
        %vm6148 = vmor %vm6142, %vm6146
        %vm6149 = vmor %vm6143, %vm6147
        %v6150 = vsel %vm6148, 1, 0
        %v6151 = vsel %vm6149, 1, 0
        %v6152 = vcvt.s32.f32 %v6150
        %v6153 = vcvt.s32.f32 %v6151
        %v6154 = vsel %vm1136, %v6152, 0.0
        %6155 = vadd.xlane.f32.xlu0 %v6154
        %v6156 = vpop.xlane.xlu0 %6155
        %v6157 = vsel %vm1136, %v6153, 0.0
        %6158 = vadd.xlane.f32.xlu0 %v6157
        %v6159 = vpop.xlane.xlu0 %6158
        %vm6160 = vcmp.lt.f32.partialorder %v6156, 15.0
        %vm6161 = vcmp.lt.f32.partialorder %v6159, 15.0
        %v6162 = vsel %vm6160, 1, 0
        %v6163 = vsel %vm6161, 1, 0
        %vm6164 = vcmp.eq.s32.totalorder %v6162, 1
        %vm6165 = vcmp.eq.s32.totalorder %v6163, 1
        %v6166 = vsel %vm6164, %v5958, %v6033
        %v6167 = vsel %vm6165, %v5963, %v6038
        %v6168 = vadd.s32 %v1370, 16
        %v6169 = vadd.s32 %v1370, 24
        %v6170 = vadd.s32 %v1370, 32
        %v6171 = vadd.s32 %v1370, 40
        %v6172 = vadd.s32 %v1370, 48
        %v6173 = vadd.s32 %v1370, 56
        %vm6174 = vcmp.ge.s32.totalorder %v1370, 0
        %vm6175 = vcmp.ge.s32.totalorder %v1371, 0
        %vm6176 = vcmp.ge.s32.totalorder %v6168, 0
        %vm6177 = vcmp.ge.s32.totalorder %v6169, 0
        %vm6178 = vcmp.ge.s32.totalorder %v6170, 0
        %vm6179 = vcmp.ge.s32.totalorder %v6171, 0
        %vm6180 = vcmp.ge.s32.totalorder %v6172, 0
        %vm6181 = vcmp.ge.s32.totalorder %v6173, 0
        %vm6182 = vcmp.lt.s32.totalorder %v1370, 16
        %vm6183 = vcmp.lt.s32.totalorder %v1371, 16
        %vm6184 = vcmp.lt.s32.totalorder %v6168, 16
        %vm6185 = vcmp.lt.s32.totalorder %v6169, 16
        %vm6186 = vcmp.lt.s32.totalorder %v6170, 16
        %vm6187 = vcmp.lt.s32.totalorder %v6171, 16
        %vm6188 = vcmp.lt.s32.totalorder %v6172, 16
        %vm6189 = vcmp.lt.s32.totalorder %v6173, 16
        %vm6190 = vmand %vm6174, %vm6182
        %vm6191 = vmand %vm6175, %vm6183
        %vm6192 = vmand %vm6176, %vm6184
        %vm6193 = vmand %vm6177, %vm6185
        %vm6194 = vmand %vm6178, %vm6186
        %vm6195 = vmand %vm6179, %vm6187
        %vm6196 = vmand %vm6180, %vm6188
        %vm6197 = vmand %vm6181, %vm6189
        %v6198 = vmul.u32 %v1370, 4
        %v6199 = vmul.u32 %v1371, 4
        %v6200 = vmul.u32 %v6168, 4
        %v6201 = vmul.u32 %v6169, 4
        %v6202 = vmul.u32 %v6170, 4
        %v6203 = vmul.u32 %v6171, 4
        %v6204 = vmul.u32 %v6172, 4
        %v6205 = vmul.u32 %v6173, 4
        %vm6206 = vcmp.eq.s32.totalorder %v1368, %v6198
        %vm6207 = vcmp.eq.s32.totalorder %v1368, %v6199
        %vm6208 = vcmp.eq.s32.totalorder %v1368, %v6200
        %vm6209 = vcmp.eq.s32.totalorder %v1368, %v6201
        %vm6210 = vcmp.eq.s32.totalorder %v1368, %v6202
        %vm6211 = vcmp.eq.s32.totalorder %v1368, %v6203
        %vm6212 = vcmp.eq.s32.totalorder %v1368, %v6204
        %vm6213 = vcmp.eq.s32.totalorder %v1368, %v6205
        %vm6214 = vmand %vm6190, %vm6206
        %vm6215 = vmand %vm6191, %vm6207
        %vm6216 = vmand %vm6192, %vm6208
        %vm6217 = vmand %vm6193, %vm6209
        %vm6218 = vmand %vm6194, %vm6210
        %vm6219 = vmand %vm6195, %vm6211
        %vm6220 = vmand %vm6196, %vm6212
        %vm6221 = vmand %vm6197, %vm6213
        %vm6222 = vcmp.ge.s32.totalorder %v1370, 16
        %vm6223 = vcmp.ge.s32.totalorder %v1371, 16
        %vm6224 = vcmp.ge.s32.totalorder %v6168, 16
        %vm6225 = vcmp.ge.s32.totalorder %v6169, 16
        %vm6226 = vcmp.ge.s32.totalorder %v6170, 16
        %vm6227 = vcmp.ge.s32.totalorder %v6171, 16
        %vm6228 = vcmp.ge.s32.totalorder %v6172, 16
        %vm6229 = vcmp.ge.s32.totalorder %v6173, 16
        %vm6230 = vcmp.lt.s32.totalorder %v1370, 32
        %vm6231 = vcmp.lt.s32.totalorder %v1371, 32
        %vm6232 = vcmp.lt.s32.totalorder %v6168, 32
        %vm6233 = vcmp.lt.s32.totalorder %v6169, 32
        %vm6234 = vcmp.lt.s32.totalorder %v6170, 32
        %vm6235 = vcmp.lt.s32.totalorder %v6171, 32
        %vm6236 = vcmp.lt.s32.totalorder %v6172, 32
        %vm6237 = vcmp.lt.s32.totalorder %v6173, 32
        %vm6238 = vmand %vm6222, %vm6230
        %vm6239 = vmand %vm6223, %vm6231
        %vm6240 = vmand %vm6224, %vm6232
        %vm6241 = vmand %vm6225, %vm6233
        %vm6242 = vmand %vm6226, %vm6234
        %vm6243 = vmand %vm6227, %vm6235
        %vm6244 = vmand %vm6228, %vm6236
        %vm6245 = vmand %vm6229, %vm6237
        %v6246 = vsub.s32 %v1370, 16
        %v6247 = vsub.s32 %v1371, 16
        %v6248 = vsub.s32 %v6169, 16
        %v6249 = vsub.s32 %v6170, 16
        %v6250 = vsub.s32 %v6171, 16
        %v6251 = vsub.s32 %v6172, 16
        %v6252 = vsub.s32 %v6173, 16
        %v6253 = vmul.u32 %v6246, 4
        %v6254 = vmul.u32 %v6247, 4
        %v6255 = vmul.u32 %v6248, 4
        %v6256 = vmul.u32 %v6249, 4
        %v6257 = vmul.u32 %v6250, 4
        %v6258 = vmul.u32 %v6251, 4
        %v6259 = vmul.u32 %v6252, 4
        %v6260 = vadd.s32 %v6253, 1
        %v6261 = vadd.s32 %v6254, 1
        %v6262 = vadd.s32 %v6198, 1
        %v6263 = vadd.s32 %v6255, 1
        %v6264 = vadd.s32 %v6256, 1
        %v6265 = vadd.s32 %v6257, 1
        %v6266 = vadd.s32 %v6258, 1
        %v6267 = vadd.s32 %v6259, 1
        %vm6268 = vcmp.eq.s32.totalorder %v1368, %v6260
        %vm6269 = vcmp.eq.s32.totalorder %v1368, %v6261
        %vm6270 = vcmp.eq.s32.totalorder %v1368, %v6262
        %vm6271 = vcmp.eq.s32.totalorder %v1368, %v6263
        %vm6272 = vcmp.eq.s32.totalorder %v1368, %v6264
        %vm6273 = vcmp.eq.s32.totalorder %v1368, %v6265
        %vm6274 = vcmp.eq.s32.totalorder %v1368, %v6266
        %vm6275 = vcmp.eq.s32.totalorder %v1368, %v6267
        %vm6276 = vmand %vm6238, %vm6268
        %vm6277 = vmand %vm6239, %vm6269
        %vm6278 = vmand %vm6240, %vm6270
        %vm6279 = vmand %vm6241, %vm6271
        %vm6280 = vmand %vm6242, %vm6272
        %vm6281 = vmand %vm6243, %vm6273
        %vm6282 = vmand %vm6244, %vm6274
        %vm6283 = vmand %vm6245, %vm6275
        %vm6284 = vmor %vm6214, %vm6276
        %vm6285 = vmor %vm6215, %vm6277
        %vm6286 = vmor %vm6216, %vm6278
        %vm6287 = vmor %vm6217, %vm6279
        %vm6288 = vmor %vm6218, %vm6280
        %vm6289 = vmor %vm6219, %vm6281
        %vm6290 = vmor %vm6220, %vm6282
        %vm6291 = vmor %vm6221, %vm6283
        %vm6292 = vcmp.ge.s32.totalorder %v1370, 32
        %vm6293 = vcmp.ge.s32.totalorder %v1371, 32
        %vm6294 = vcmp.ge.s32.totalorder %v6168, 32
        %vm6295 = vcmp.ge.s32.totalorder %v6169, 32
        %vm6296 = vcmp.ge.s32.totalorder %v6170, 32
        %vm6297 = vcmp.ge.s32.totalorder %v6171, 32
        %vm6298 = vcmp.ge.s32.totalorder %v6172, 32
        %vm6299 = vcmp.ge.s32.totalorder %v6173, 32
        %vm6300 = vcmp.lt.s32.totalorder %v1370, 48
        %vm6301 = vcmp.lt.s32.totalorder %v1371, 48
        %vm6302 = vcmp.lt.s32.totalorder %v6168, 48
        %vm6303 = vcmp.lt.s32.totalorder %v6169, 48
        %vm6304 = vcmp.lt.s32.totalorder %v6170, 48
        %vm6305 = vcmp.lt.s32.totalorder %v6171, 48
        %vm6306 = vcmp.lt.s32.totalorder %v6172, 48
        %vm6307 = vcmp.lt.s32.totalorder %v6173, 48
        %vm6308 = vmand %vm6292, %vm6300
        %vm6309 = vmand %vm6293, %vm6301
        %vm6310 = vmand %vm6294, %vm6302
        %vm6311 = vmand %vm6295, %vm6303
        %vm6312 = vmand %vm6296, %vm6304
        %vm6313 = vmand %vm6297, %vm6305
        %vm6314 = vmand %vm6298, %vm6306
        %vm6315 = vmand %vm6299, %vm6307
        %v6316 = vsub.s32 %v1370, 32
        %v6317 = vsub.s32 %v1371, 32
        %v6318 = vsub.s32 %v6168, 32
        %v6319 = vsub.s32 %v6169, 32
        %v6320 = vsub.s32 %v6171, 32
        %v6321 = vsub.s32 %v6172, 32
        %v6322 = vsub.s32 %v6173, 32
        %v6323 = vmul.u32 %v6316, 4
        %v6324 = vmul.u32 %v6317, 4
        %v6325 = vmul.u32 %v6318, 4
        %v6326 = vmul.u32 %v6319, 4
        %v6327 = vmul.u32 %v6320, 4
        %v6328 = vmul.u32 %v6321, 4
        %v6329 = vmul.u32 %v6322, 4
        %v6330 = vadd.s32 %v6323, 2
        %v6331 = vadd.s32 %v6324, 2
        %v6332 = vadd.s32 %v6325, 2
        %v6333 = vadd.s32 %v6326, 2
        %v6334 = vadd.s32 %v6198, 2
        %v6335 = vadd.s32 %v6327, 2
        %v6336 = vadd.s32 %v6328, 2
        %v6337 = vadd.s32 %v6329, 2
        %vm6338 = vcmp.eq.s32.totalorder %v1368, %v6330
        %vm6339 = vcmp.eq.s32.totalorder %v1368, %v6331
        %vm6340 = vcmp.eq.s32.totalorder %v1368, %v6332
        %vm6341 = vcmp.eq.s32.totalorder %v1368, %v6333
        %vm6342 = vcmp.eq.s32.totalorder %v1368, %v6334
        %vm6343 = vcmp.eq.s32.totalorder %v1368, %v6335
        %vm6344 = vcmp.eq.s32.totalorder %v1368, %v6336
        %vm6345 = vcmp.eq.s32.totalorder %v1368, %v6337
        %vm6346 = vmand %vm6308, %vm6338
        %vm6347 = vmand %vm6309, %vm6339
        %vm6348 = vmand %vm6310, %vm6340
        %vm6349 = vmand %vm6311, %vm6341
        %vm6350 = vmand %vm6312, %vm6342
        %vm6351 = vmand %vm6313, %vm6343
        %vm6352 = vmand %vm6314, %vm6344
        %vm6353 = vmand %vm6315, %vm6345
        %vm6354 = vmor %vm6284, %vm6346
        %vm6355 = vmor %vm6285, %vm6347
        %vm6356 = vmor %vm6286, %vm6348
        %vm6357 = vmor %vm6287, %vm6349
        %vm6358 = vmor %vm6288, %vm6350
        %vm6359 = vmor %vm6289, %vm6351
        %vm6360 = vmor %vm6290, %vm6352
        %vm6361 = vmor %vm6291, %vm6353
        %vm6362 = vcmp.ge.s32.totalorder %v1370, 48
        %vm6363 = vcmp.ge.s32.totalorder %v1371, 48
        %vm6364 = vcmp.ge.s32.totalorder %v6168, 48
        %vm6365 = vcmp.ge.s32.totalorder %v6169, 48
        %vm6366 = vcmp.ge.s32.totalorder %v6170, 48
        %vm6367 = vcmp.ge.s32.totalorder %v6171, 48
        %vm6368 = vcmp.ge.s32.totalorder %v6172, 48
        %vm6369 = vcmp.ge.s32.totalorder %v6173, 48
        %vm6370 = vcmp.lt.s32.totalorder %v1370, 64
        %vm6371 = vcmp.lt.s32.totalorder %v1371, 64
        %vm6372 = vcmp.lt.s32.totalorder %v6168, 64
        %vm6373 = vcmp.lt.s32.totalorder %v6169, 64
        %vm6374 = vcmp.lt.s32.totalorder %v6170, 64
        %vm6375 = vcmp.lt.s32.totalorder %v6171, 64
        %vm6376 = vcmp.lt.s32.totalorder %v6172, 64
        %vm6377 = vcmp.lt.s32.totalorder %v6173, 64
        %vm6378 = vmand %vm6362, %vm6370
        %vm6379 = vmand %vm6363, %vm6371
        %vm6380 = vmand %vm6364, %vm6372
        %vm6381 = vmand %vm6365, %vm6373
        %vm6382 = vmand %vm6366, %vm6374
        %vm6383 = vmand %vm6367, %vm6375
        %vm6384 = vmand %vm6368, %vm6376
        %vm6385 = vmand %vm6369, %vm6377
        %v6386 = vsub.s32 %v1370, 48
        %v6387 = vsub.s32 %v1371, 48
        %v6388 = vsub.s32 %v6168, 48
        %v6389 = vsub.s32 %v6169, 48
        %v6390 = vsub.s32 %v6170, 48
        %v6391 = vsub.s32 %v6171, 48
        %v6392 = vsub.s32 %v6173, 48
        %v6393 = vmul.u32 %v6386, 4
        %v6394 = vmul.u32 %v6387, 4
        %v6395 = vmul.u32 %v6388, 4
        %v6396 = vmul.u32 %v6389, 4
        %v6397 = vmul.u32 %v6390, 4
        %v6398 = vmul.u32 %v6391, 4
        %v6399 = vmul.u32 %v6392, 4
        %v6400 = vadd.s32 %v6393, 3
        %v6401 = vadd.s32 %v6394, 3
        %v6402 = vadd.s32 %v6395, 3
        %v6403 = vadd.s32 %v6396, 3
        %v6404 = vadd.s32 %v6397, 3
        %v6405 = vadd.s32 %v6398, 3
        %v6406 = vadd.s32 %v6198, 3
        %v6407 = vadd.s32 %v6399, 3
        %vm6408 = vcmp.eq.s32.totalorder %v1368, %v6400
        %vm6409 = vcmp.eq.s32.totalorder %v1368, %v6401
        %vm6410 = vcmp.eq.s32.totalorder %v1368, %v6402
        %vm6411 = vcmp.eq.s32.totalorder %v1368, %v6403
        %vm6412 = vcmp.eq.s32.totalorder %v1368, %v6404
        %vm6413 = vcmp.eq.s32.totalorder %v1368, %v6405
        %vm6414 = vcmp.eq.s32.totalorder %v1368, %v6406
        %vm6415 = vcmp.eq.s32.totalorder %v1368, %v6407
        %vm6416 = vmand %vm6378, %vm6408
        %vm6417 = vmand %vm6379, %vm6409
        %vm6418 = vmand %vm6380, %vm6410
        %vm6419 = vmand %vm6381, %vm6411
        %vm6420 = vmand %vm6382, %vm6412
        %vm6421 = vmand %vm6383, %vm6413
        %vm6422 = vmand %vm6384, %vm6414
        %vm6423 = vmand %vm6385, %vm6415
        %vm6424 = vmor %vm6354, %vm6416
        %vm6425 = vmor %vm6355, %vm6417
        %vm6426 = vmor %vm6356, %vm6418
        %vm6427 = vmor %vm6357, %vm6419
        %vm6428 = vmor %vm6358, %vm6420
        %vm6429 = vmor %vm6359, %vm6421
        %vm6430 = vmor %vm6360, %vm6422
        %vm6431 = vmor %vm6361, %vm6423
        %v6432 = vsel %vm6424, 1, 0
        %v6433 = vsel %vm6425, 1, 0
        %v6434 = vsel %vm6426, 1, 0
        %v6435 = vsel %vm6427, 1, 0
        %v6436 = vsel %vm6428, 1, 0
        %v6437 = vsel %vm6429, 1, 0
        %v6438 = vsel %vm6430, 1, 0
        %v6439 = vsel %vm6431, 1, 0
        %v6440 = vcvt.s32.f32 %v6432
        %v6441 = vcvt.s32.f32 %v6433
        %v6442 = vcvt.s32.f32 %v6434
        %v6443 = vcvt.s32.f32 %v6435
        %v6444 = vcvt.s32.f32 %v6436
        %v6445 = vcvt.s32.f32 %v6437
        %v6446 = vcvt.s32.f32 %v6438
        %v6447 = vcvt.s32.f32 %v6439
        %v6449 = vsel %vm2708, %v6440, 0
        %v6452 = vsel %vm2708, %v6441, 0
        %v6455 = vsel %vm2708, %v6442, 0
        %v6458 = vsel %vm2708, %v6443, 0
        %v6461 = vsel %vm2708, %v6444, 0
        %v6464 = vsel %vm2708, %v6445, 0
        %v6467 = vsel %vm2708, %v6446, 0
        %v6470 = vsel %vm2708, %v6447, 0
        %6472 = vmatprep.subr.mxu0 0.0
        %6473 = vmatpush1.msra.mxu0 %v4948
        %6474 = vmatprep.subr.mxu0 0.0
        %6475 = vmatpush1.msra.mxu0 %v4949
        %6476 = vmatprep.subr.mxu0 0.0
        %6477 = vmatpush1.msra.mxu0 %v5354
        %6478 = vmatprep.subr.mxu0 0.0
        %6479 = vmatpush1.msra.mxu0 %v5355
        %6480 = vmatprep.subr.mxu0 0.0
        %6481 = vmatpush1.msra.mxu0 %v5760
        %6482 = vmatprep.subr.mxu0 0.0
        %6483 = vmatpush1.msra.mxu0 %v5761
        %6484 = vmatprep.subr.mxu0 0.0
        %6485 = vmatpush1.msra.mxu0 %v6166
        %6486 = vmatprep.subr.mxu0 0.0
        %6487 = vmatpush1.msra.mxu0 %v6167
        %6488 = vmatprep.subr.mxu0 0.0
        %6489 = vmatpush1.msra.mxu0 0.0
        %6490 = vmatprep.subr.mxu0 0.0
        %6491 = vmatpush1.msra.mxu0 0.0
        %6492 = vmatprep.subr.mxu0 0.0
        %6493 = vmatpush1.msra.mxu0 0.0
        %6494 = vmatprep.subr.mxu0 0.0
        %6495 = vmatpush1.msra.mxu0 0.0
        %6496 = vmatprep.subr.mxu0 0.0
        %6497 = vmatpush1.msra.mxu0 0.0
        %6498 = vmatprep.subr.mxu0 0.0
        %6499 = vmatpush1.msra.mxu0 0.0
        %6500 = vmatprep.subr.mxu0 0.0
        %6501 = vmatpush1.msra.mxu0 0.0
        %6502 = vmatprep.subr.mxu0 0.0
        %6503 = vmatpush1.msra.mxu0 0.0
        %6504 = vmatprep.subr.mxu0 0.0
        %6505 = vmatpush1.msra.mxu0 0.0
        %6506 = vmatprep.subr.mxu0 0.0
        %6507 = vmatpush1.msra.mxu0 0.0
        %6508 = vmatprep.subr.mxu0 0.0
        %6509 = vmatpush1.msra.mxu0 0.0
        %6510 = vmatprep.subr.mxu0 0.0
        %6511 = vmatpush1.msra.mxu0 0.0
        %6512 = vmatprep.subr.mxu0 0.0
        %6513 = vmatpush1.msra.mxu0 0.0
        %6514 = vmatprep.subr.mxu0 0.0
        %6515 = vmatpush1.msra.mxu0 0.0
        %6516 = vmatprep.subr.mxu0 0.0
        %6517 = vmatpush1.msra.mxu0 0.0
        %6518 = vmatprep.subr.mxu0 0.0
        %6519 = vmatpush1.msra.mxu0 0.0
        %6520 = vmatprep.subr.mxu0 0.0
        %6521 = vmatpush1.msra.mxu0 0.0
        %6522 = vmatprep.subr.mxu0 0.0
        %6523 = vmatpush1.msra.mxu0 0.0
        %6524 = vmatprep.subr.mxu0 0.0
        %6525 = vmatpush1.msra.mxu0 0.0
        %6526 = vmatprep.subr.mxu0 0.0
        %6527 = vmatpush1.msra.mxu0 0.0
        %6528 = vmatprep.subr.mxu0 0.0
        %6529 = vmatpush1.msra.mxu0 0.0
        %6530 = vmatprep.subr.mxu0 0.0
        %6531 = vmatpush1.msra.mxu0 0.0
        %6532 = vmatprep.subr.mxu0 0.0
        %6533 = vmatpush1.msra.mxu0 0.0
        %6534 = vmatprep.subr.mxu0 0.0
        %6535 = vmatpush1.msra.mxu0 0.0
        %6536 = vmatprep.mubr.f32.mxu0 0.0
        %6537 = vmatmul.mubr.f32.gmra.mrb[0].mxu0 %v6449
        %v6538 = vpop.f32.mrb[0].mxu0
        %v6539 = vadd.f32 0.0, %v6538
        %v6540 = vpop.f32.mrb[0].mxu0
        %6541 = vmatprep.mubr.f32.mxu0 0.0
        %6542 = vmatmul.mubr.f32.gmra.mrb[0].mxu0 %v6452
        %v6543 = vpop.f32.mrb[0].mxu0
        %v6544 = vadd.f32 0.0, %v6543
        %v6545 = vpop.f32.mrb[0].mxu0
        %6546 = vmatprep.mubr.f32.mxu0 0.0
        %6547 = vmatmul.mubr.f32.gmra.mrb[0].mxu0 %v6455
        %v6548 = vpop.f32.mrb[0].mxu0
        %v6549 = vadd.f32 0.0, %v6548
        %v6550 = vpop.f32.mrb[0].mxu0
        %6551 = vmatprep.mubr.f32.mxu0 0.0
        %6552 = vmatmul.mubr.f32.gmra.mrb[0].mxu0 %v6458
        %v6553 = vpop.f32.mrb[0].mxu0
        %v6554 = vadd.f32 0.0, %v6553
        %v6555 = vpop.f32.mrb[0].mxu0
        %6556 = vmatprep.mubr.f32.mxu0 0.0
        %6557 = vmatmul.mubr.f32.gmra.mrb[0].mxu0 %v6461
        %v6558 = vpop.f32.mrb[0].mxu0
        %v6559 = vadd.f32 0.0, %v6558
        %v6560 = vpop.f32.mrb[0].mxu0
        %6561 = vmatprep.mubr.f32.mxu0 0.0
        %6562 = vmatmul.mubr.f32.gmra.mrb[0].mxu0 %v6464
        %v6563 = vpop.f32.mrb[0].mxu0
        %v6564 = vadd.f32 0.0, %v6563
        %v6565 = vpop.f32.mrb[0].mxu0
        %6566 = vmatprep.mubr.f32.mxu0 0.0
        %6567 = vmatmul.mubr.f32.gmra.mrb[0].mxu0 %v6467
        %v6568 = vpop.f32.mrb[0].mxu0
        %v6569 = vadd.f32 0.0, %v6568
        %v6570 = vpop.f32.mrb[0].mxu0
        %6571 = vmatprep.mubr.f32.mxu0 0.0
        %6572 = vmatmul.mubr.f32.gmra.mrb[0].mxu0 %v6470
        %v6573 = vpop.f32.mrb[0].mxu0
        %v6574 = vadd.f32 0.0, %v6573
        %v6575 = vpop.f32.mrb[0].mxu0
        %6576 = vdwg.mxu0
        %6579 = vrot.lane.b32.xlu0 %v6549, 8
        %v6580 = vpop.permute.xlu0 %6579
        %6581 = vrot.lane.b32.xlu0 %v6554, 8
        %v6582 = vpop.permute.xlu0 %6581
        %6587 = vrot.lane.b32.xlu0 %v6559, 16
        %v6588 = vpop.permute.xlu0 %6587
        %6589 = vrot.lane.b32.xlu0 %v6564, 16
        %v6590 = vpop.permute.xlu0 %6589
        %6595 = vrot.lane.b32.xlu0 %v6569, 24
        %v6596 = vpop.permute.xlu0 %6595
        %6597 = vrot.lane.b32.xlu0 %v6574, 24
        %v6598 = vpop.permute.xlu0 %6597
        %v6601 = vsel %vm1050, %v6539, %v6580
        %v6602 = vsel %vm1050, %v6544, %v6582
        %v6603 = vsel %vm1136, %v6601, %v6588
        %v6604 = vsel %vm1136, %v6602, %v6590
        %v6605 = vsel %vm2460, %v6603, %v6596
        %v6606 = vsel %vm2460, %v6604, %v6598
        %v6607 = vlaneseq
        %v6608 = vshrl.u32 %v6607, 7
        %v6609 = vsub.s32 2, %v6608
        %v6610 = vrot.slane %v845, %v6609
        %v6612 = vsel %vm960, %v6605, 0
        %v6615 = vsel %vm960, %v6606, 0
        %6617 = vmatprep.subr.mxu0 0.0
        %6618 = vmatpush1.msra.mxu0 %v4441
        %6619 = vmatprep.subr.mxu0 0.0
        %6620 = vmatpush1.msra.mxu0 %v4442
        %6621 = vmatprep.subr.mxu0 0.0
        %6622 = vmatpush1.msra.mxu0 %v4443
        %6623 = vmatprep.subr.mxu0 0.0
        %6624 = vmatpush1.msra.mxu0 %v4444
        %6625 = vmatprep.subr.mxu0 0.0
        %6626 = vmatpush1.msra.mxu0 0.0
        %6627 = vmatprep.subr.mxu0 0.0
        %6628 = vmatpush1.msra.mxu0 0.0
        %6629 = vmatprep.subr.mxu0 0.0
        %6630 = vmatpush1.msra.mxu0 0.0
        %6631 = vmatprep.subr.mxu0 0.0
        %6632 = vmatpush1.msra.mxu0 0.0
        %6633 = vmatprep.subr.mxu0 0.0
        %6634 = vmatpush1.msra.mxu0 0.0
        %6635 = vmatprep.subr.mxu0 0.0
        %6636 = vmatpush1.msra.mxu0 0.0
        %6637 = vmatprep.subr.mxu0 0.0
        %6638 = vmatpush1.msra.mxu0 0.0
        %6639 = vmatprep.subr.mxu0 0.0
        %6640 = vmatpush1.msra.mxu0 0.0
        %6641 = vmatprep.subr.mxu0 0.0
        %6642 = vmatpush1.msra.mxu0 0.0
        %6643 = vmatprep.subr.mxu0 0.0
        %6644 = vmatpush1.msra.mxu0 0.0
        %6645 = vmatprep.subr.mxu0 0.0
        %6646 = vmatpush1.msra.mxu0 0.0
        %6647 = vmatprep.subr.mxu0 0.0
        %6648 = vmatpush1.msra.mxu0 0.0
        %6649 = vmatprep.subr.mxu0 0.0
        %6650 = vmatpush1.msra.mxu0 0.0
        %6651 = vmatprep.subr.mxu0 0.0
        %6652 = vmatpush1.msra.mxu0 0.0
        %6653 = vmatprep.subr.mxu0 0.0
        %6654 = vmatpush1.msra.mxu0 0.0
        %6655 = vmatprep.subr.mxu0 0.0
        %6656 = vmatpush1.msra.mxu0 0.0
        %6657 = vmatprep.subr.mxu0 0.0
        %6658 = vmatpush1.msra.mxu0 0.0
        %6659 = vmatprep.subr.mxu0 0.0
        %6660 = vmatpush1.msra.mxu0 0.0
        %6661 = vmatprep.subr.mxu0 0.0
        %6662 = vmatpush1.msra.mxu0 0.0
        %6663 = vmatprep.subr.mxu0 0.0
        %6664 = vmatpush1.msra.mxu0 0.0
        %6665 = vmatprep.subr.mxu0 0.0
        %6666 = vmatpush1.msra.mxu0 0.0
        %6667 = vmatprep.subr.mxu0 0.0
        %6668 = vmatpush1.msra.mxu0 0.0
        %6669 = vmatprep.subr.mxu0 0.0
        %6670 = vmatpush1.msra.mxu0 0.0
        %6671 = vmatprep.subr.mxu0 0.0
        %6672 = vmatpush1.msra.mxu0 0.0
        %6673 = vmatprep.subr.mxu0 0.0
        %6674 = vmatpush1.msra.mxu0 0.0
        %6675 = vmatprep.subr.mxu0 0.0
        %6676 = vmatpush1.msra.mxu0 0.0
        %6677 = vmatprep.subr.mxu0 0.0
        %6678 = vmatpush1.msra.mxu0 0.0
        %6679 = vmatprep.subr.mxu0 0.0
        %6680 = vmatpush1.msra.mxu0 0.0
        %6681 = vmatprep.mubr.f32.mxu0 0.0
        %6682 = vmatmul.mubr.f32.gmra.mrb[0].mxu0 %v6612
        %v6683 = vpop.f32.mrb[0].mxu0
        %v6684 = vadd.f32 %v6610, %v6683
        %v6685 = vpop.f32.mrb[0].mxu0
        %6686 = vmatprep.mubr.f32.mxu0 0.0
        %6687 = vmatmul.mubr.f32.gmra.mrb[0].mxu0 %v6615
        %v6688 = vpop.f32.mrb[0].mxu0
        %v6689 = vadd.f32 %v6610, %v6688
        %v6690 = vpop.f32.mrb[0].mxu0
        %6691 = vdwg.mxu0
        %v6692 = vadd.f32 %v4435, %v6684
        %v6693 = vadd.f32 %v4436, %v6689
        %v6694 = vsel %vm960, %v6692, 0.0
        %6695 = vadd.xlane.f32.xlu0 %v6694
        %v6696 = vpop.xlane.xlu0 %6695
        %v6697 = vsel %vm960, %v6693, 0.0
        %6698 = vadd.xlane.f32.xlu0 %v6697
        %v6699 = vpop.xlane.xlu0 %6698
        %v6700 = vmul.f32 %v6696, %v2556
        %v6701 = vmul.f32 %v6699, %v2556
        %v6702 = vsub.f32 %v6692, %v6700
        %v6703 = vsub.f32 %v6693, %v6701
        %v6704 = vmul.f32 %v6702, %v6702
        %v6705 = vmul.f32 %v6703, %v6703
        %v6706 = vsel %vm960, %v6704, 0.0
        %6707 = vadd.xlane.f32.xlu0 %v6706
        %v6708 = vpop.xlane.xlu0 %6707
        %v6709 = vsel %vm960, %v6705, 0.0
        %6710 = vadd.xlane.f32.xlu0 %v6709
        %v6711 = vpop.xlane.xlu0 %6710
        %v6712 = vmul.f32 %v6708, %v2556
        %v6713 = vmul.f32 %v6711, %v2556
        %v6714 = vadd.f32 %v6712, 1e-05
        %v6715 = vadd.f32 %v6713, 1e-05
        %v6716 = vrsqrt.pop %v6714
        %v6717 = vrsqrt.pop %v6715
        %v6718 = vmul.f32 %v6702, %v6716
        %v6719 = vmul.f32 %v6703, %v6717
        %v6720 = vlaneseq
        %v6721 = vshrl.u32 %v6720, 7
        %v6722 = vsub.s32 3, %v6721
        %v6723 = vrot.slane %v845, %v6722
        %v6724 = vmul.f32 %v6718, %v6723
        %v6725 = vmul.f32 %v6719, %v6723
        %v6726 = vlaneseq
        %v6727 = vshrl.u32 %v6726, 7
        %v6728 = vsub.s32 4, %v6727
        %v6729 = vrot.slane %v845, %v6728
        %v6730 = vadd.f32 %v6724, %v6729
        %v6731 = vadd.f32 %v6725, %v6729
        %v6732 = vld [vmem:[%s13] sm:$0xff]
        %v6733 = vld [vmem:[%s13 + $0x8] sm:$0xff]
        %v6734 = vld [vmem:[%s13 + $0x10] sm:$0xff]
        %v6735 = vld [vmem:[%s13 + $0x18] sm:$0xff]
        %v6736 = vld [vmem:[%s14] sm:$0xff]
        %v6737 = vld [vmem:[%s14 + $0x8] sm:$0xff]
        %v6738 = vld [vmem:[%s14 + $0x10] sm:$0xff]
        %v6739 = vld [vmem:[%s14 + $0x18] sm:$0xff]
        %v6740 = vld [vmem:[%s15] sm:$0xff]
        %v6741 = vld [vmem:[%s15 + $0x8] sm:$0xff]
        %v6742 = vld [vmem:[%s15 + $0x10] sm:$0xff]
        %v6743 = vld [vmem:[%s15 + $0x18] sm:$0xff]
        %v6744 = vlaneseq
        %v6745 = vshrl.u32 %v6744, 7
        %v6746 = vsub.s32 5, %v6745
        %v6747 = vrot.slane %v845, %v6746
        %v6749 = vsel %vm960, %v6730, 0
        %v6752 = vsel %vm960, %v6731, 0
        %6754 = vmatprep.subr.mxu0 0.0
        %6755 = vmatpush1.msra.mxu0 %v6732
        %6756 = vmatprep.subr.mxu0 0.0
        %6757 = vmatpush1.msra.mxu0 %v6733
        %6758 = vmatprep.subr.mxu0 0.0
        %6759 = vmatpush1.msra.mxu0 %v6734
        %6760 = vmatprep.subr.mxu0 0.0
        %6761 = vmatpush1.msra.mxu0 %v6735
        %6762 = vmatprep.subr.mxu0 0.0
        %6763 = vmatpush1.msra.mxu0 0.0
        %6764 = vmatprep.subr.mxu0 0.0
        %6765 = vmatpush1.msra.mxu0 0.0
        %6766 = vmatprep.subr.mxu0 0.0
        %6767 = vmatpush1.msra.mxu0 0.0
        %6768 = vmatprep.subr.mxu0 0.0
        %6769 = vmatpush1.msra.mxu0 0.0
        %6770 = vmatprep.subr.mxu0 0.0
        %6771 = vmatpush1.msra.mxu0 0.0
        %6772 = vmatprep.subr.mxu0 0.0
        %6773 = vmatpush1.msra.mxu0 0.0
        %6774 = vmatprep.subr.mxu0 0.0
        %6775 = vmatpush1.msra.mxu0 0.0
        %6776 = vmatprep.subr.mxu0 0.0
        %6777 = vmatpush1.msra.mxu0 0.0
        %6778 = vmatprep.subr.mxu0 0.0
        %6779 = vmatpush1.msra.mxu0 0.0
        %6780 = vmatprep.subr.mxu0 0.0
        %6781 = vmatpush1.msra.mxu0 0.0
        %6782 = vmatprep.subr.mxu0 0.0
        %6783 = vmatpush1.msra.mxu0 0.0
        %6784 = vmatprep.subr.mxu0 0.0
        %6785 = vmatpush1.msra.mxu0 0.0
        %6786 = vmatprep.subr.mxu0 0.0
        %6787 = vmatpush1.msra.mxu0 0.0
        %6788 = vmatprep.subr.mxu0 0.0
        %6789 = vmatpush1.msra.mxu0 0.0
        %6790 = vmatprep.subr.mxu0 0.0
        %6791 = vmatpush1.msra.mxu0 0.0
        %6792 = vmatprep.subr.mxu0 0.0
        %6793 = vmatpush1.msra.mxu0 0.0
        %6794 = vmatprep.subr.mxu0 0.0
        %6795 = vmatpush1.msra.mxu0 0.0
        %6796 = vmatprep.subr.mxu0 0.0
        %6797 = vmatpush1.msra.mxu0 0.0
        %6798 = vmatprep.subr.mxu0 0.0
        %6799 = vmatpush1.msra.mxu0 0.0
        %6800 = vmatprep.subr.mxu0 0.0
        %6801 = vmatpush1.msra.mxu0 0.0
        %6802 = vmatprep.subr.mxu0 0.0
        %6803 = vmatpush1.msra.mxu0 0.0
        %6804 = vmatprep.subr.mxu0 0.0
        %6805 = vmatpush1.msra.mxu0 0.0
        %6806 = vmatprep.subr.mxu0 0.0
        %6807 = vmatpush1.msra.mxu0 0.0
        %6808 = vmatprep.subr.mxu0 0.0
        %6809 = vmatpush1.msra.mxu0 0.0
        %6810 = vmatprep.subr.mxu0 0.0
        %6811 = vmatpush1.msra.mxu0 0.0
        %6812 = vmatprep.subr.mxu0 0.0
        %6813 = vmatpush1.msra.mxu0 0.0
        %6814 = vmatprep.subr.mxu0 0.0
        %6815 = vmatpush1.msra.mxu0 0.0
        %6816 = vmatprep.subr.mxu0 0.0
        %6817 = vmatpush1.msra.mxu0 0.0
        %6818 = vmatprep.mubr.f32.mxu0 0.0
        %6819 = vmatmul.mubr.f32.gmra.mrb[0].mxu0 %v6749
        %v6820 = vpop.f32.mrb[0].mxu0
        %v6821 = vadd.f32 %v6747, %v6820
        %v6822 = vpop.f32.mrb[0].mxu0
        %6823 = vmatprep.mubr.f32.mxu0 0.0
        %6824 = vmatmul.mubr.f32.gmra.mrb[0].mxu0 %v6752
        %v6825 = vpop.f32.mrb[0].mxu0
        %v6826 = vadd.f32 %v6747, %v6825
        %v6827 = vpop.f32.mrb[0].mxu0
        %6828 = vdwg.mxu0
        %v6829 = vlaneseq
        %v6830 = vshrl.u32 %v6829, 7
        %v6831 = vsub.s32 6, %v6830
        %v6832 = vrot.slane %v845, %v6831
        %v6834 = vsel %vm960, %v4340, 0
        %6836 = vmatprep.subr.mxu0 0.0
        %6837 = vmatpush1.msra.mxu0 %v6736
        %6838 = vmatprep.subr.mxu0 0.0
        %6839 = vmatpush1.msra.mxu0 %v6737
        %6840 = vmatprep.subr.mxu0 0.0
        %6841 = vmatpush1.msra.mxu0 %v6738
        %6842 = vmatprep.subr.mxu0 0.0
        %6843 = vmatpush1.msra.mxu0 %v6739
        %6844 = vmatprep.subr.mxu0 0.0
        %6845 = vmatpush1.msra.mxu0 0.0
        %6846 = vmatprep.subr.mxu0 0.0
        %6847 = vmatpush1.msra.mxu0 0.0
        %6848 = vmatprep.subr.mxu0 0.0
        %6849 = vmatpush1.msra.mxu0 0.0
        %6850 = vmatprep.subr.mxu0 0.0
        %6851 = vmatpush1.msra.mxu0 0.0
        %6852 = vmatprep.subr.mxu0 0.0
        %6853 = vmatpush1.msra.mxu0 0.0
        %6854 = vmatprep.subr.mxu0 0.0
        %6855 = vmatpush1.msra.mxu0 0.0
        %6856 = vmatprep.subr.mxu0 0.0
        %6857 = vmatpush1.msra.mxu0 0.0
        %6858 = vmatprep.subr.mxu0 0.0
        %6859 = vmatpush1.msra.mxu0 0.0
        %6860 = vmatprep.subr.mxu0 0.0
        %6861 = vmatpush1.msra.mxu0 0.0
        %6862 = vmatprep.subr.mxu0 0.0
        %6863 = vmatpush1.msra.mxu0 0.0
        %6864 = vmatprep.subr.mxu0 0.0
        %6865 = vmatpush1.msra.mxu0 0.0
        %6866 = vmatprep.subr.mxu0 0.0
        %6867 = vmatpush1.msra.mxu0 0.0
        %6868 = vmatprep.subr.mxu0 0.0
        %6869 = vmatpush1.msra.mxu0 0.0
        %6870 = vmatprep.subr.mxu0 0.0
        %6871 = vmatpush1.msra.mxu0 0.0
        %6872 = vmatprep.subr.mxu0 0.0
        %6873 = vmatpush1.msra.mxu0 0.0
        %6874 = vmatprep.subr.mxu0 0.0
        %6875 = vmatpush1.msra.mxu0 0.0
        %6876 = vmatprep.subr.mxu0 0.0
        %6877 = vmatpush1.msra.mxu0 0.0
        %6878 = vmatprep.subr.mxu0 0.0
        %6879 = vmatpush1.msra.mxu0 0.0
        %6880 = vmatprep.subr.mxu0 0.0
        %6881 = vmatpush1.msra.mxu0 0.0
        %6882 = vmatprep.subr.mxu0 0.0
        %6883 = vmatpush1.msra.mxu0 0.0
        %6884 = vmatprep.subr.mxu0 0.0
        %6885 = vmatpush1.msra.mxu0 0.0
        %6886 = vmatprep.subr.mxu0 0.0
        %6887 = vmatpush1.msra.mxu0 0.0
        %6888 = vmatprep.subr.mxu0 0.0
        %6889 = vmatpush1.msra.mxu0 0.0
        %6890 = vmatprep.subr.mxu0 0.0
        %6891 = vmatpush1.msra.mxu0 0.0
        %6892 = vmatprep.subr.mxu0 0.0
        %6893 = vmatpush1.msra.mxu0 0.0
        %6894 = vmatprep.subr.mxu0 0.0
        %6895 = vmatpush1.msra.mxu0 0.0
        %6896 = vmatprep.subr.mxu0 0.0
        %6897 = vmatpush1.msra.mxu0 0.0
        %6898 = vmatprep.subr.mxu0 0.0
        %6899 = vmatpush1.msra.mxu0 0.0
        %6900 = vmatprep.mubr.f32.mxu0 0.0
        %6901 = vmatmul.mubr.f32.gmra.mrb[0].mxu0 %v6834
        %v6902 = vpop.f32.mrb[0].mxu0
        %v6903 = vadd.f32 %v6832, %v6902
        %v6904 = vpop.f32.mrb[0].mxu0
        %6905 = vdwg.mxu0
        %v6907 = vsel %vm1050, %v6821, 0
        %v6910 = vsel %vm1050, %v6826, 0
        %v6913 = vsel %vm1050, %v6903, 0
        %6915 = vmatprep.subr.mxu0 0.0
        %6916 = vmatpush1.xpose.msra.mxu0 %v6913
        %6917 = vmatprep.subr.mxu0 0.0
        %6918 = vmatpush1.xpose.msra.mxu0 0.0
        %6919 = vmatprep.subr.mxu0 0.0
        %6920 = vmatpush1.xpose.msra.mxu0 0.0
        %6921 = vmatprep.subr.mxu0 0.0
        %6922 = vmatpush1.xpose.msra.mxu0 0.0
        %6923 = vmatprep.subr.mxu0 0.0
        %6924 = vmatpush1.xpose.msra.mxu0 0.0
        %6925 = vmatprep.subr.mxu0 0.0
        %6926 = vmatpush1.xpose.msra.mxu0 0.0
        %6927 = vmatprep.subr.mxu0 0.0
        %6928 = vmatpush1.xpose.msra.mxu0 0.0
        %6929 = vmatprep.subr.mxu0 0.0
        %6930 = vmatpush1.xpose.msra.mxu0 0.0
        %6931 = vmatprep.subr.mxu0 0.0
        %6932 = vmatpush1.xpose.msra.mxu0 0.0
        %6933 = vmatprep.subr.mxu0 0.0
        %6934 = vmatpush1.xpose.msra.mxu0 0.0
        %6935 = vmatprep.subr.mxu0 0.0
        %6936 = vmatpush1.xpose.msra.mxu0 0.0
        %6937 = vmatprep.subr.mxu0 0.0
        %6938 = vmatpush1.xpose.msra.mxu0 0.0
        %6939 = vmatprep.subr.mxu0 0.0
        %6940 = vmatpush1.xpose.msra.mxu0 0.0
        %6941 = vmatprep.subr.mxu0 0.0
        %6942 = vmatpush1.xpose.msra.mxu0 0.0
        %6943 = vmatprep.subr.mxu0 0.0
        %6944 = vmatpush1.xpose.msra.mxu0 0.0
        %6945 = vmatprep.subr.mxu0 0.0
        %6946 = vmatpush1.xpose.msra.mxu0 0.0
        %6947 = vmatprep.subr.mxu0 0.0
        %6948 = vmatpush1.xpose.msra.mxu0 0.0
        %6949 = vmatprep.subr.mxu0 0.0
        %6950 = vmatpush1.xpose.msra.mxu0 0.0
        %6951 = vmatprep.subr.mxu0 0.0
        %6952 = vmatpush1.xpose.msra.mxu0 0.0
        %6953 = vmatprep.subr.mxu0 0.0
        %6954 = vmatpush1.xpose.msra.mxu0 0.0
        %6955 = vmatprep.subr.mxu0 0.0
        %6956 = vmatpush1.xpose.msra.mxu0 0.0
        %6957 = vmatprep.subr.mxu0 0.0
        %6958 = vmatpush1.xpose.msra.mxu0 0.0
        %6959 = vmatprep.subr.mxu0 0.0
        %6960 = vmatpush1.xpose.msra.mxu0 0.0
        %6961 = vmatprep.subr.mxu0 0.0
        %6962 = vmatpush1.xpose.msra.mxu0 0.0
        %6963 = vmatprep.subr.mxu0 0.0
        %6964 = vmatpush1.xpose.msra.mxu0 0.0
        %6965 = vmatprep.subr.mxu0 0.0
        %6966 = vmatpush1.xpose.msra.mxu0 0.0
        %6967 = vmatprep.subr.mxu0 0.0
        %6968 = vmatpush1.xpose.msra.mxu0 0.0
        %6969 = vmatprep.subr.mxu0 0.0
        %6970 = vmatpush1.xpose.msra.mxu0 0.0
        %6971 = vmatprep.subr.mxu0 0.0
        %6972 = vmatpush1.xpose.msra.mxu0 0.0
        %6973 = vmatprep.subr.mxu0 0.0
        %6974 = vmatpush1.xpose.msra.mxu0 0.0
        %6975 = vmatprep.subr.mxu0 0.0
        %6976 = vmatpush1.xpose.msra.mxu0 0.0
        %6977 = vmatprep.subr.mxu0 0.0
        %6978 = vmatpush1.xpose.msra.mxu0 0.0
        %6979 = vmatprep.mubr.f32.mxu0 0.0
        %6980 = vmatmul.mubr.f32.gmra.mrb[0].mxu0 %v6907
        %v6981 = vpop.f32.mrb[0].mxu0
        %v6982 = vadd.f32 0.0, %v6981
        %v6983 = vpop.f32.mrb[0].mxu0
        %6984 = vmatprep.mubr.f32.mxu0 0.0
        %6985 = vmatmul.mubr.f32.gmra.mrb[0].mxu0 %v6910
        %v6986 = vpop.f32.mrb[0].mxu0
        %v6987 = vadd.f32 0.0, %v6986
        %v6988 = vpop.f32.mrb[0].mxu0
        %6989 = vdwg.mxu0
        %v6990 = vmul.f32 %v6982, 0.35355338
        %v6991 = vmul.f32 %v6987, 0.35355338
        %v6992 = vsel %vm1050, %v6990, -inf
        %6993 = vmax.xlane.f32.xlu0 %v6992
        %v6994 = vpop.xlane.xlu0 %6993
        %v6995 = vsel %vm1050, %v6991, -inf
        %6996 = vmax.xlane.f32.xlu0 %v6995
        %v6997 = vpop.xlane.xlu0 %6996
        %v6998 = vsub.f32 %v6990, %v6994
        %v6999 = vsub.f32 %v6991, %v6997
        %v7000 = vmul.f32 %v6998, 1.442695
        %v7001 = vpow.pop %v7000
        %v7002 = vmul.f32 %v6999, 1.442695
        %v7003 = vpow.pop %v7002
        %v7004 = vsel %vm1050, %v7001, 0.0
        %7005 = vadd.xlane.f32.xlu0 %v7004
        %v7006 = vpop.xlane.xlu0 %7005
        %v7007 = vsel %vm1050, %v7003, 0.0
        %7008 = vadd.xlane.f32.xlu0 %v7007
        %v7009 = vpop.xlane.xlu0 %7008
        %v7010 = vrcp.pop %v7006
        %v7011 = vrcp.pop %v7009
        %v7012 = vmul.f32 %v7001, %v7010
        %v7013 = vmul.f32 %v7003, %v7011
        %7014 = vrot.lane.b32.xlu0 %v6903, 96
        %v7015 = vpop.permute.xlu0 %7014
        %v7018 = vsel %vm1050, %v7012, 0
        %v7021 = vsel %vm1050, %v7013, 0
        %7023 = vmatprep.subr.mxu0 0.0
        %7024 = vmatpush1.msra.mxu0 %v7015
        %7025 = vmatprep.subr.mxu0 0.0
        %7026 = vmatpush1.msra.mxu0 0.0
        %7027 = vmatprep.subr.mxu0 0.0
        %7028 = vmatpush1.msra.mxu0 0.0
        %7029 = vmatprep.subr.mxu0 0.0
        %7030 = vmatpush1.msra.mxu0 0.0
        %7031 = vmatprep.subr.mxu0 0.0
        %7032 = vmatpush1.msra.mxu0 0.0
        %7033 = vmatprep.subr.mxu0 0.0
        %7034 = vmatpush1.msra.mxu0 0.0
        %7035 = vmatprep.subr.mxu0 0.0
        %7036 = vmatpush1.msra.mxu0 0.0
        %7037 = vmatprep.subr.mxu0 0.0
        %7038 = vmatpush1.msra.mxu0 0.0
        %7039 = vmatprep.subr.mxu0 0.0
        %7040 = vmatpush1.msra.mxu0 0.0
        %7041 = vmatprep.subr.mxu0 0.0
        %7042 = vmatpush1.msra.mxu0 0.0
        %7043 = vmatprep.subr.mxu0 0.0
        %7044 = vmatpush1.msra.mxu0 0.0
        %7045 = vmatprep.subr.mxu0 0.0
        %7046 = vmatpush1.msra.mxu0 0.0
        %7047 = vmatprep.subr.mxu0 0.0
        %7048 = vmatpush1.msra.mxu0 0.0
        %7049 = vmatprep.subr.mxu0 0.0
        %7050 = vmatpush1.msra.mxu0 0.0
        %7051 = vmatprep.subr.mxu0 0.0
        %7052 = vmatpush1.msra.mxu0 0.0
        %7053 = vmatprep.subr.mxu0 0.0
        %7054 = vmatpush1.msra.mxu0 0.0
        %7055 = vmatprep.subr.mxu0 0.0
        %7056 = vmatpush1.msra.mxu0 0.0
        %7057 = vmatprep.subr.mxu0 0.0
        %7058 = vmatpush1.msra.mxu0 0.0
        %7059 = vmatprep.subr.mxu0 0.0
        %7060 = vmatpush1.msra.mxu0 0.0
        %7061 = vmatprep.subr.mxu0 0.0
        %7062 = vmatpush1.msra.mxu0 0.0
        %7063 = vmatprep.subr.mxu0 0.0
        %7064 = vmatpush1.msra.mxu0 0.0
        %7065 = vmatprep.subr.mxu0 0.0
        %7066 = vmatpush1.msra.mxu0 0.0
        %7067 = vmatprep.subr.mxu0 0.0
        %7068 = vmatpush1.msra.mxu0 0.0
        %7069 = vmatprep.subr.mxu0 0.0
        %7070 = vmatpush1.msra.mxu0 0.0
        %7071 = vmatprep.subr.mxu0 0.0
        %7072 = vmatpush1.msra.mxu0 0.0
        %7073 = vmatprep.subr.mxu0 0.0
        %7074 = vmatpush1.msra.mxu0 0.0
        %7075 = vmatprep.subr.mxu0 0.0
        %7076 = vmatpush1.msra.mxu0 0.0
        %7077 = vmatprep.subr.mxu0 0.0
        %7078 = vmatpush1.msra.mxu0 0.0
        %7079 = vmatprep.subr.mxu0 0.0
        %7080 = vmatpush1.msra.mxu0 0.0
        %7081 = vmatprep.subr.mxu0 0.0
        %7082 = vmatpush1.msra.mxu0 0.0
        %7083 = vmatprep.subr.mxu0 0.0
        %7084 = vmatpush1.msra.mxu0 0.0
        %7085 = vmatprep.subr.mxu0 0.0
        %7086 = vmatpush1.msra.mxu0 0.0
        %7087 = vmatprep.mubr.f32.mxu0 0.0
        %7088 = vmatmul.mubr.f32.gmra.mrb[0].mxu0 %v7018
        %v7089 = vpop.f32.mrb[0].mxu0
        %v7090 = vadd.f32 0.0, %v7089
        %v7091 = vpop.f32.mrb[0].mxu0
        %7092 = vmatprep.mubr.f32.mxu0 0.0
        %7093 = vmatmul.mubr.f32.gmra.mrb[0].mxu0 %v7021
        %v7094 = vpop.f32.mrb[0].mxu0
        %v7095 = vadd.f32 0.0, %v7094
        %v7096 = vpop.f32.mrb[0].mxu0
        %7097 = vdwg.mxu0
        %7098 = vrot.lane.b32.xlu0 %v6821, 120
        %v7099 = vpop.permute.xlu0 %7098
        %7100 = vrot.lane.b32.xlu0 %v6826, 120
        %v7101 = vpop.permute.xlu0 %7100
        %7102 = vrot.lane.b32.xlu0 %v6903, 120
        %v7103 = vpop.permute.xlu0 %7102
        %v7104 = vsel %vm1050, %v7099, 0
        %v7106 = vsel %vm1050, %v7101, 0
        %v7108 = vsel %vm1050, %v7103, 0
        %7110 = vmatprep.subr.mxu0 0.0
        %7111 = vmatpush1.xpose.msra.mxu0 %v7108
        %7112 = vmatprep.subr.mxu0 0.0
        %7113 = vmatpush1.xpose.msra.mxu0 0.0
        %7114 = vmatprep.subr.mxu0 0.0
        %7115 = vmatpush1.xpose.msra.mxu0 0.0
        %7116 = vmatprep.subr.mxu0 0.0
        %7117 = vmatpush1.xpose.msra.mxu0 0.0
        %7118 = vmatprep.subr.mxu0 0.0
        %7119 = vmatpush1.xpose.msra.mxu0 0.0
        %7120 = vmatprep.subr.mxu0 0.0
        %7121 = vmatpush1.xpose.msra.mxu0 0.0
        %7122 = vmatprep.subr.mxu0 0.0
        %7123 = vmatpush1.xpose.msra.mxu0 0.0
        %7124 = vmatprep.subr.mxu0 0.0
        %7125 = vmatpush1.xpose.msra.mxu0 0.0
        %7126 = vmatprep.subr.mxu0 0.0
        %7127 = vmatpush1.xpose.msra.mxu0 0.0
        %7128 = vmatprep.subr.mxu0 0.0
        %7129 = vmatpush1.xpose.msra.mxu0 0.0
        %7130 = vmatprep.subr.mxu0 0.0
        %7131 = vmatpush1.xpose.msra.mxu0 0.0
        %7132 = vmatprep.subr.mxu0 0.0
        %7133 = vmatpush1.xpose.msra.mxu0 0.0
        %7134 = vmatprep.subr.mxu0 0.0
        %7135 = vmatpush1.xpose.msra.mxu0 0.0
        %7136 = vmatprep.subr.mxu0 0.0
        %7137 = vmatpush1.xpose.msra.mxu0 0.0
        %7138 = vmatprep.subr.mxu0 0.0
        %7139 = vmatpush1.xpose.msra.mxu0 0.0
        %7140 = vmatprep.subr.mxu0 0.0
        %7141 = vmatpush1.xpose.msra.mxu0 0.0
        %7142 = vmatprep.subr.mxu0 0.0
        %7143 = vmatpush1.xpose.msra.mxu0 0.0
        %7144 = vmatprep.subr.mxu0 0.0
        %7145 = vmatpush1.xpose.msra.mxu0 0.0
        %7146 = vmatprep.subr.mxu0 0.0
        %7147 = vmatpush1.xpose.msra.mxu0 0.0
        %7148 = vmatprep.subr.mxu0 0.0
        %7149 = vmatpush1.xpose.msra.mxu0 0.0
        %7150 = vmatprep.subr.mxu0 0.0
        %7151 = vmatpush1.xpose.msra.mxu0 0.0
        %7152 = vmatprep.subr.mxu0 0.0
        %7153 = vmatpush1.xpose.msra.mxu0 0.0
        %7154 = vmatprep.subr.mxu0 0.0
        %7155 = vmatpush1.xpose.msra.mxu0 0.0
        %7156 = vmatprep.subr.mxu0 0.0
        %7157 = vmatpush1.xpose.msra.mxu0 0.0
        %7158 = vmatprep.subr.mxu0 0.0
        %7159 = vmatpush1.xpose.msra.mxu0 0.0
        %7160 = vmatprep.subr.mxu0 0.0
        %7161 = vmatpush1.xpose.msra.mxu0 0.0
        %7162 = vmatprep.subr.mxu0 0.0
        %7163 = vmatpush1.xpose.msra.mxu0 0.0
        %7164 = vmatprep.subr.mxu0 0.0
        %7165 = vmatpush1.xpose.msra.mxu0 0.0
        %7166 = vmatprep.subr.mxu0 0.0
        %7167 = vmatpush1.xpose.msra.mxu0 0.0
        %7168 = vmatprep.subr.mxu0 0.0
        %7169 = vmatpush1.xpose.msra.mxu0 0.0
        %7170 = vmatprep.subr.mxu0 0.0
        %7171 = vmatpush1.xpose.msra.mxu0 0.0
        %7172 = vmatprep.subr.mxu0 0.0
        %7173 = vmatpush1.xpose.msra.mxu0 0.0
        %7174 = vmatprep.mubr.f32.mxu0 0.0
        %7175 = vmatmul.mubr.f32.gmra.mrb[0].mxu0 %v7104
        %v7176 = vpop.f32.mrb[0].mxu0
        %v7177 = vadd.f32 0.0, %v7176
        %v7178 = vpop.f32.mrb[0].mxu0
        %7179 = vmatprep.mubr.f32.mxu0 0.0
        %7180 = vmatmul.mubr.f32.gmra.mrb[0].mxu0 %v7106
        %v7181 = vpop.f32.mrb[0].mxu0
        %v7182 = vadd.f32 0.0, %v7181
        %v7183 = vpop.f32.mrb[0].mxu0
        %7184 = vdwg.mxu0
        %v7185 = vmul.f32 %v7177, 0.35355338
        %v7186 = vmul.f32 %v7182, 0.35355338
        %v7187 = vsel %vm1050, %v7185, -inf
        %7188 = vmax.xlane.f32.xlu0 %v7187
        %v7189 = vpop.xlane.xlu0 %7188
        %v7190 = vsel %vm1050, %v7186, -inf
        %7191 = vmax.xlane.f32.xlu0 %v7190
        %v7192 = vpop.xlane.xlu0 %7191
        %v7193 = vsub.f32 %v7185, %v7189
        %v7194 = vsub.f32 %v7186, %v7192
        %v7195 = vmul.f32 %v7193, 1.442695
        %v7196 = vpow.pop %v7195
        %v7197 = vmul.f32 %v7194, 1.442695
        %v7198 = vpow.pop %v7197
        %v7199 = vsel %vm1050, %v7196, 0.0
        %7200 = vadd.xlane.f32.xlu0 %v7199
        %v7201 = vpop.xlane.xlu0 %7200
        %v7202 = vsel %vm1050, %v7198, 0.0
        %7203 = vadd.xlane.f32.xlu0 %v7202
        %v7204 = vpop.xlane.xlu0 %7203
        %v7205 = vrcp.pop %v7201
        %v7206 = vrcp.pop %v7204
        %v7207 = vmul.f32 %v7196, %v7205
        %v7208 = vmul.f32 %v7198, %v7206
        %7209 = vrot.lane.b32.xlu0 %v6903, 88
        %v7210 = vpop.permute.xlu0 %7209
        %v7213 = vsel %vm1050, %v7207, 0
        %v7216 = vsel %vm1050, %v7208, 0
        %7218 = vmatprep.subr.mxu0 0.0
        %7219 = vmatpush1.msra.mxu0 %v7210
        %7220 = vmatprep.subr.mxu0 0.0
        %7221 = vmatpush1.msra.mxu0 0.0
        %7222 = vmatprep.subr.mxu0 0.0
        %7223 = vmatpush1.msra.mxu0 0.0
        %7224 = vmatprep.subr.mxu0 0.0
        %7225 = vmatpush1.msra.mxu0 0.0
        %7226 = vmatprep.subr.mxu0 0.0
        %7227 = vmatpush1.msra.mxu0 0.0
        %7228 = vmatprep.subr.mxu0 0.0
        %7229 = vmatpush1.msra.mxu0 0.0
        %7230 = vmatprep.subr.mxu0 0.0
        %7231 = vmatpush1.msra.mxu0 0.0
        %7232 = vmatprep.subr.mxu0 0.0
        %7233 = vmatpush1.msra.mxu0 0.0
        %7234 = vmatprep.subr.mxu0 0.0
        %7235 = vmatpush1.msra.mxu0 0.0
        %7236 = vmatprep.subr.mxu0 0.0
        %7237 = vmatpush1.msra.mxu0 0.0
        %7238 = vmatprep.subr.mxu0 0.0
        %7239 = vmatpush1.msra.mxu0 0.0
        %7240 = vmatprep.subr.mxu0 0.0
        %7241 = vmatpush1.msra.mxu0 0.0
        %7242 = vmatprep.subr.mxu0 0.0
        %7243 = vmatpush1.msra.mxu0 0.0
        %7244 = vmatprep.subr.mxu0 0.0
        %7245 = vmatpush1.msra.mxu0 0.0
        %7246 = vmatprep.subr.mxu0 0.0
        %7247 = vmatpush1.msra.mxu0 0.0
        %7248 = vmatprep.subr.mxu0 0.0
        %7249 = vmatpush1.msra.mxu0 0.0
        %7250 = vmatprep.subr.mxu0 0.0
        %7251 = vmatpush1.msra.mxu0 0.0
        %7252 = vmatprep.subr.mxu0 0.0
        %7253 = vmatpush1.msra.mxu0 0.0
        %7254 = vmatprep.subr.mxu0 0.0
        %7255 = vmatpush1.msra.mxu0 0.0
        %7256 = vmatprep.subr.mxu0 0.0
        %7257 = vmatpush1.msra.mxu0 0.0
        %7258 = vmatprep.subr.mxu0 0.0
        %7259 = vmatpush1.msra.mxu0 0.0
        %7260 = vmatprep.subr.mxu0 0.0
        %7261 = vmatpush1.msra.mxu0 0.0
        %7262 = vmatprep.subr.mxu0 0.0
        %7263 = vmatpush1.msra.mxu0 0.0
        %7264 = vmatprep.subr.mxu0 0.0
        %7265 = vmatpush1.msra.mxu0 0.0
        %7266 = vmatprep.subr.mxu0 0.0
        %7267 = vmatpush1.msra.mxu0 0.0
        %7268 = vmatprep.subr.mxu0 0.0
        %7269 = vmatpush1.msra.mxu0 0.0
        %7270 = vmatprep.subr.mxu0 0.0
        %7271 = vmatpush1.msra.mxu0 0.0
        %7272 = vmatprep.subr.mxu0 0.0
        %7273 = vmatpush1.msra.mxu0 0.0
        %7274 = vmatprep.subr.mxu0 0.0
        %7275 = vmatpush1.msra.mxu0 0.0
        %7276 = vmatprep.subr.mxu0 0.0
        %7277 = vmatpush1.msra.mxu0 0.0
        %7278 = vmatprep.subr.mxu0 0.0
        %7279 = vmatpush1.msra.mxu0 0.0
        %7280 = vmatprep.subr.mxu0 0.0
        %7281 = vmatpush1.msra.mxu0 0.0
        %7282 = vmatprep.mubr.f32.mxu0 0.0
        %7283 = vmatmul.mubr.f32.gmra.mrb[0].mxu0 %v7213
        %v7284 = vpop.f32.mrb[0].mxu0
        %v7285 = vadd.f32 0.0, %v7284
        %v7286 = vpop.f32.mrb[0].mxu0
        %7287 = vmatprep.mubr.f32.mxu0 0.0
        %7288 = vmatmul.mubr.f32.gmra.mrb[0].mxu0 %v7216
        %v7289 = vpop.f32.mrb[0].mxu0
        %v7290 = vadd.f32 0.0, %v7289
        %v7291 = vpop.f32.mrb[0].mxu0
        %7292 = vdwg.mxu0
        %7293 = vrot.lane.b32.xlu0 %v6821, 112
        %v7294 = vpop.permute.xlu0 %7293
        %7295 = vrot.lane.b32.xlu0 %v6826, 112
        %v7296 = vpop.permute.xlu0 %7295
        %7297 = vrot.lane.b32.xlu0 %v6903, 112
        %v7298 = vpop.permute.xlu0 %7297
        %v7299 = vsel %vm1050, %v7294, 0
        %v7301 = vsel %vm1050, %v7296, 0
        %v7303 = vsel %vm1050, %v7298, 0
        %7305 = vmatprep.subr.mxu0 0.0
        %7306 = vmatpush1.xpose.msra.mxu0 %v7303
        %7307 = vmatprep.subr.mxu0 0.0
        %7308 = vmatpush1.xpose.msra.mxu0 0.0
        %7309 = vmatprep.subr.mxu0 0.0
        %7310 = vmatpush1.xpose.msra.mxu0 0.0
        %7311 = vmatprep.subr.mxu0 0.0
        %7312 = vmatpush1.xpose.msra.mxu0 0.0
        %7313 = vmatprep.subr.mxu0 0.0
        %7314 = vmatpush1.xpose.msra.mxu0 0.0
        %7315 = vmatprep.subr.mxu0 0.0
        %7316 = vmatpush1.xpose.msra.mxu0 0.0
        %7317 = vmatprep.subr.mxu0 0.0
        %7318 = vmatpush1.xpose.msra.mxu0 0.0
        %7319 = vmatprep.subr.mxu0 0.0
        %7320 = vmatpush1.xpose.msra.mxu0 0.0
        %7321 = vmatprep.subr.mxu0 0.0
        %7322 = vmatpush1.xpose.msra.mxu0 0.0
        %7323 = vmatprep.subr.mxu0 0.0
        %7324 = vmatpush1.xpose.msra.mxu0 0.0
        %7325 = vmatprep.subr.mxu0 0.0
        %7326 = vmatpush1.xpose.msra.mxu0 0.0
        %7327 = vmatprep.subr.mxu0 0.0
        %7328 = vmatpush1.xpose.msra.mxu0 0.0
        %7329 = vmatprep.subr.mxu0 0.0
        %7330 = vmatpush1.xpose.msra.mxu0 0.0
        %7331 = vmatprep.subr.mxu0 0.0
        %7332 = vmatpush1.xpose.msra.mxu0 0.0
        %7333 = vmatprep.subr.mxu0 0.0
        %7334 = vmatpush1.xpose.msra.mxu0 0.0
        %7335 = vmatprep.subr.mxu0 0.0
        %7336 = vmatpush1.xpose.msra.mxu0 0.0
        %7337 = vmatprep.subr.mxu0 0.0
        %7338 = vmatpush1.xpose.msra.mxu0 0.0
        %7339 = vmatprep.subr.mxu0 0.0
        %7340 = vmatpush1.xpose.msra.mxu0 0.0
        %7341 = vmatprep.subr.mxu0 0.0
        %7342 = vmatpush1.xpose.msra.mxu0 0.0
        %7343 = vmatprep.subr.mxu0 0.0
        %7344 = vmatpush1.xpose.msra.mxu0 0.0
        %7345 = vmatprep.subr.mxu0 0.0
        %7346 = vmatpush1.xpose.msra.mxu0 0.0
        %7347 = vmatprep.subr.mxu0 0.0
        %7348 = vmatpush1.xpose.msra.mxu0 0.0
        %7349 = vmatprep.subr.mxu0 0.0
        %7350 = vmatpush1.xpose.msra.mxu0 0.0
        %7351 = vmatprep.subr.mxu0 0.0
        %7352 = vmatpush1.xpose.msra.mxu0 0.0
        %7353 = vmatprep.subr.mxu0 0.0
        %7354 = vmatpush1.xpose.msra.mxu0 0.0
        %7355 = vmatprep.subr.mxu0 0.0
        %7356 = vmatpush1.xpose.msra.mxu0 0.0
        %7357 = vmatprep.subr.mxu0 0.0
        %7358 = vmatpush1.xpose.msra.mxu0 0.0
        %7359 = vmatprep.subr.mxu0 0.0
        %7360 = vmatpush1.xpose.msra.mxu0 0.0
        %7361 = vmatprep.subr.mxu0 0.0
        %7362 = vmatpush1.xpose.msra.mxu0 0.0
        %7363 = vmatprep.subr.mxu0 0.0
        %7364 = vmatpush1.xpose.msra.mxu0 0.0
        %7365 = vmatprep.subr.mxu0 0.0
        %7366 = vmatpush1.xpose.msra.mxu0 0.0
        %7367 = vmatprep.subr.mxu0 0.0
        %7368 = vmatpush1.xpose.msra.mxu0 0.0
        %7369 = vmatprep.mubr.f32.mxu0 0.0
        %7370 = vmatmul.mubr.f32.gmra.mrb[0].mxu0 %v7299
        %v7371 = vpop.f32.mrb[0].mxu0
        %v7372 = vadd.f32 0.0, %v7371
        %v7373 = vpop.f32.mrb[0].mxu0
        %7374 = vmatprep.mubr.f32.mxu0 0.0
        %7375 = vmatmul.mubr.f32.gmra.mrb[0].mxu0 %v7301
        %v7376 = vpop.f32.mrb[0].mxu0
        %v7377 = vadd.f32 0.0, %v7376
        %v7378 = vpop.f32.mrb[0].mxu0
        %7379 = vdwg.mxu0
        %v7380 = vmul.f32 %v7372, 0.35355338
        %v7381 = vmul.f32 %v7377, 0.35355338
        %v7382 = vsel %vm1050, %v7380, -inf
        %7383 = vmax.xlane.f32.xlu0 %v7382
        %v7384 = vpop.xlane.xlu0 %7383
        %v7385 = vsel %vm1050, %v7381, -inf
        %7386 = vmax.xlane.f32.xlu0 %v7385
        %v7387 = vpop.xlane.xlu0 %7386
        %v7388 = vsub.f32 %v7380, %v7384
        %v7389 = vsub.f32 %v7381, %v7387
        %v7390 = vmul.f32 %v7388, 1.442695
        %v7391 = vpow.pop %v7390
        %v7392 = vmul.f32 %v7389, 1.442695
        %v7393 = vpow.pop %v7392
        %v7394 = vsel %vm1050, %v7391, 0.0
        %7395 = vadd.xlane.f32.xlu0 %v7394
        %v7396 = vpop.xlane.xlu0 %7395
        %v7397 = vsel %vm1050, %v7393, 0.0
        %7398 = vadd.xlane.f32.xlu0 %v7397
        %v7399 = vpop.xlane.xlu0 %7398
        %v7400 = vrcp.pop %v7396
        %v7401 = vrcp.pop %v7399
        %v7402 = vmul.f32 %v7391, %v7400
        %v7403 = vmul.f32 %v7393, %v7401
        %7404 = vrot.lane.b32.xlu0 %v6903, 80
        %v7405 = vpop.permute.xlu0 %7404
        %v7408 = vsel %vm1050, %v7402, 0
        %v7411 = vsel %vm1050, %v7403, 0
        %7413 = vmatprep.subr.mxu0 0.0
        %7414 = vmatpush1.msra.mxu0 %v7405
        %7415 = vmatprep.subr.mxu0 0.0
        %7416 = vmatpush1.msra.mxu0 0.0
        %7417 = vmatprep.subr.mxu0 0.0
        %7418 = vmatpush1.msra.mxu0 0.0
        %7419 = vmatprep.subr.mxu0 0.0
        %7420 = vmatpush1.msra.mxu0 0.0
        %7421 = vmatprep.subr.mxu0 0.0
        %7422 = vmatpush1.msra.mxu0 0.0
        %7423 = vmatprep.subr.mxu0 0.0
        %7424 = vmatpush1.msra.mxu0 0.0
        %7425 = vmatprep.subr.mxu0 0.0
        %7426 = vmatpush1.msra.mxu0 0.0
        %7427 = vmatprep.subr.mxu0 0.0
        %7428 = vmatpush1.msra.mxu0 0.0
        %7429 = vmatprep.subr.mxu0 0.0
        %7430 = vmatpush1.msra.mxu0 0.0
        %7431 = vmatprep.subr.mxu0 0.0
        %7432 = vmatpush1.msra.mxu0 0.0
        %7433 = vmatprep.subr.mxu0 0.0
        %7434 = vmatpush1.msra.mxu0 0.0
        %7435 = vmatprep.subr.mxu0 0.0
        %7436 = vmatpush1.msra.mxu0 0.0
        %7437 = vmatprep.subr.mxu0 0.0
        %7438 = vmatpush1.msra.mxu0 0.0
        %7439 = vmatprep.subr.mxu0 0.0
        %7440 = vmatpush1.msra.mxu0 0.0
        %7441 = vmatprep.subr.mxu0 0.0
        %7442 = vmatpush1.msra.mxu0 0.0
        %7443 = vmatprep.subr.mxu0 0.0
        %7444 = vmatpush1.msra.mxu0 0.0
        %7445 = vmatprep.subr.mxu0 0.0
        %7446 = vmatpush1.msra.mxu0 0.0
        %7447 = vmatprep.subr.mxu0 0.0
        %7448 = vmatpush1.msra.mxu0 0.0
        %7449 = vmatprep.subr.mxu0 0.0
        %7450 = vmatpush1.msra.mxu0 0.0
        %7451 = vmatprep.subr.mxu0 0.0
        %7452 = vmatpush1.msra.mxu0 0.0
        %7453 = vmatprep.subr.mxu0 0.0
        %7454 = vmatpush1.msra.mxu0 0.0
        %7455 = vmatprep.subr.mxu0 0.0
        %7456 = vmatpush1.msra.mxu0 0.0
        %7457 = vmatprep.subr.mxu0 0.0
        %7458 = vmatpush1.msra.mxu0 0.0
        %7459 = vmatprep.subr.mxu0 0.0
        %7460 = vmatpush1.msra.mxu0 0.0
        %7461 = vmatprep.subr.mxu0 0.0
        %7462 = vmatpush1.msra.mxu0 0.0
        %7463 = vmatprep.subr.mxu0 0.0
        %7464 = vmatpush1.msra.mxu0 0.0
        %7465 = vmatprep.subr.mxu0 0.0
        %7466 = vmatpush1.msra.mxu0 0.0
        %7467 = vmatprep.subr.mxu0 0.0
        %7468 = vmatpush1.msra.mxu0 0.0
        %7469 = vmatprep.subr.mxu0 0.0
        %7470 = vmatpush1.msra.mxu0 0.0
        %7471 = vmatprep.subr.mxu0 0.0
        %7472 = vmatpush1.msra.mxu0 0.0
        %7473 = vmatprep.subr.mxu0 0.0
        %7474 = vmatpush1.msra.mxu0 0.0
        %7475 = vmatprep.subr.mxu0 0.0
        %7476 = vmatpush1.msra.mxu0 0.0
        %7477 = vmatprep.mubr.f32.mxu0 0.0
        %7478 = vmatmul.mubr.f32.gmra.mrb[0].mxu0 %v7408
        %v7479 = vpop.f32.mrb[0].mxu0
        %v7480 = vadd.f32 0.0, %v7479
        %v7481 = vpop.f32.mrb[0].mxu0
        %7482 = vmatprep.mubr.f32.mxu0 0.0
        %7483 = vmatmul.mubr.f32.gmra.mrb[0].mxu0 %v7411
        %v7484 = vpop.f32.mrb[0].mxu0
        %v7485 = vadd.f32 0.0, %v7484
        %v7486 = vpop.f32.mrb[0].mxu0
        %7487 = vdwg.mxu0
        %7488 = vrot.lane.b32.xlu0 %v6821, 104
        %v7489 = vpop.permute.xlu0 %7488
        %7490 = vrot.lane.b32.xlu0 %v6826, 104
        %v7491 = vpop.permute.xlu0 %7490
        %7492 = vrot.lane.b32.xlu0 %v6903, 104
        %v7493 = vpop.permute.xlu0 %7492
        %v7494 = vsel %vm1050, %v7489, 0
        %v7496 = vsel %vm1050, %v7491, 0
        %v7498 = vsel %vm1050, %v7493, 0
        %7500 = vmatprep.subr.mxu0 0.0
        %7501 = vmatpush1.xpose.msra.mxu0 %v7498
        %7502 = vmatprep.subr.mxu0 0.0
        %7503 = vmatpush1.xpose.msra.mxu0 0.0
        %7504 = vmatprep.subr.mxu0 0.0
        %7505 = vmatpush1.xpose.msra.mxu0 0.0
        %7506 = vmatprep.subr.mxu0 0.0
        %7507 = vmatpush1.xpose.msra.mxu0 0.0
        %7508 = vmatprep.subr.mxu0 0.0
        %7509 = vmatpush1.xpose.msra.mxu0 0.0
        %7510 = vmatprep.subr.mxu0 0.0
        %7511 = vmatpush1.xpose.msra.mxu0 0.0
        %7512 = vmatprep.subr.mxu0 0.0
        %7513 = vmatpush1.xpose.msra.mxu0 0.0
        %7514 = vmatprep.subr.mxu0 0.0
        %7515 = vmatpush1.xpose.msra.mxu0 0.0
        %7516 = vmatprep.subr.mxu0 0.0
        %7517 = vmatpush1.xpose.msra.mxu0 0.0
        %7518 = vmatprep.subr.mxu0 0.0
        %7519 = vmatpush1.xpose.msra.mxu0 0.0
        %7520 = vmatprep.subr.mxu0 0.0
        %7521 = vmatpush1.xpose.msra.mxu0 0.0
        %7522 = vmatprep.subr.mxu0 0.0
        %7523 = vmatpush1.xpose.msra.mxu0 0.0
        %7524 = vmatprep.subr.mxu0 0.0
        %7525 = vmatpush1.xpose.msra.mxu0 0.0
        %7526 = vmatprep.subr.mxu0 0.0
        %7527 = vmatpush1.xpose.msra.mxu0 0.0
        %7528 = vmatprep.subr.mxu0 0.0
        %7529 = vmatpush1.xpose.msra.mxu0 0.0
        %7530 = vmatprep.subr.mxu0 0.0
        %7531 = vmatpush1.xpose.msra.mxu0 0.0
        %7532 = vmatprep.subr.mxu0 0.0
        %7533 = vmatpush1.xpose.msra.mxu0 0.0
        %7534 = vmatprep.subr.mxu0 0.0
        %7535 = vmatpush1.xpose.msra.mxu0 0.0
        %7536 = vmatprep.subr.mxu0 0.0
        %7537 = vmatpush1.xpose.msra.mxu0 0.0
        %7538 = vmatprep.subr.mxu0 0.0
        %7539 = vmatpush1.xpose.msra.mxu0 0.0
        %7540 = vmatprep.subr.mxu0 0.0
        %7541 = vmatpush1.xpose.msra.mxu0 0.0
        %7542 = vmatprep.subr.mxu0 0.0
        %7543 = vmatpush1.xpose.msra.mxu0 0.0
        %7544 = vmatprep.subr.mxu0 0.0
        %7545 = vmatpush1.xpose.msra.mxu0 0.0
        %7546 = vmatprep.subr.mxu0 0.0
        %7547 = vmatpush1.xpose.msra.mxu0 0.0
        %7548 = vmatprep.subr.mxu0 0.0
        %7549 = vmatpush1.xpose.msra.mxu0 0.0
        %7550 = vmatprep.subr.mxu0 0.0
        %7551 = vmatpush1.xpose.msra.mxu0 0.0
        %7552 = vmatprep.subr.mxu0 0.0
        %7553 = vmatpush1.xpose.msra.mxu0 0.0
        %7554 = vmatprep.subr.mxu0 0.0
        %7555 = vmatpush1.xpose.msra.mxu0 0.0
        %7556 = vmatprep.subr.mxu0 0.0
        %7557 = vmatpush1.xpose.msra.mxu0 0.0
        %7558 = vmatprep.subr.mxu0 0.0
        %7559 = vmatpush1.xpose.msra.mxu0 0.0
        %7560 = vmatprep.subr.mxu0 0.0
        %7561 = vmatpush1.xpose.msra.mxu0 0.0
        %7562 = vmatprep.subr.mxu0 0.0
        %7563 = vmatpush1.xpose.msra.mxu0 0.0
        %7564 = vmatprep.mubr.f32.mxu0 0.0
        %7565 = vmatmul.mubr.f32.gmra.mrb[0].mxu0 %v7494
        %v7566 = vpop.f32.mrb[0].mxu0
        %v7567 = vadd.f32 0.0, %v7566
        %v7568 = vpop.f32.mrb[0].mxu0
        %7569 = vmatprep.mubr.f32.mxu0 0.0
        %7570 = vmatmul.mubr.f32.gmra.mrb[0].mxu0 %v7496
        %v7571 = vpop.f32.mrb[0].mxu0
        %v7572 = vadd.f32 0.0, %v7571
        %v7573 = vpop.f32.mrb[0].mxu0
        %7574 = vdwg.mxu0
        %v7575 = vmul.f32 %v7567, 0.35355338
        %v7576 = vmul.f32 %v7572, 0.35355338
        %v7577 = vsel %vm1050, %v7575, -inf
        %7578 = vmax.xlane.f32.xlu0 %v7577
        %v7579 = vpop.xlane.xlu0 %7578
        %v7580 = vsel %vm1050, %v7576, -inf
        %7581 = vmax.xlane.f32.xlu0 %v7580
        %v7582 = vpop.xlane.xlu0 %7581
        %v7583 = vsub.f32 %v7575, %v7579
        %v7584 = vsub.f32 %v7576, %v7582
        %v7585 = vmul.f32 %v7583, 1.442695
        %v7586 = vpow.pop %v7585
        %v7587 = vmul.f32 %v7584, 1.442695
        %v7588 = vpow.pop %v7587
        %v7589 = vsel %vm1050, %v7586, 0.0
        %7590 = vadd.xlane.f32.xlu0 %v7589
        %v7591 = vpop.xlane.xlu0 %7590
        %v7592 = vsel %vm1050, %v7588, 0.0
        %7593 = vadd.xlane.f32.xlu0 %v7592
        %v7594 = vpop.xlane.xlu0 %7593
        %v7595 = vrcp.pop %v7591
        %v7596 = vrcp.pop %v7594
        %v7597 = vmul.f32 %v7586, %v7595
        %v7598 = vmul.f32 %v7588, %v7596
        %7599 = vrot.lane.b32.xlu0 %v6903, 72
        %v7600 = vpop.permute.xlu0 %7599
        %v7603 = vsel %vm1050, %v7597, 0
        %v7606 = vsel %vm1050, %v7598, 0
        %7608 = vmatprep.subr.mxu0 0.0
        %7609 = vmatpush1.msra.mxu0 %v7600
        %7610 = vmatprep.subr.mxu0 0.0
        %7611 = vmatpush1.msra.mxu0 0.0
        %7612 = vmatprep.subr.mxu0 0.0
        %7613 = vmatpush1.msra.mxu0 0.0
        %7614 = vmatprep.subr.mxu0 0.0
        %7615 = vmatpush1.msra.mxu0 0.0
        %7616 = vmatprep.subr.mxu0 0.0
        %7617 = vmatpush1.msra.mxu0 0.0
        %7618 = vmatprep.subr.mxu0 0.0
        %7619 = vmatpush1.msra.mxu0 0.0
        %7620 = vmatprep.subr.mxu0 0.0
        %7621 = vmatpush1.msra.mxu0 0.0
        %7622 = vmatprep.subr.mxu0 0.0
        %7623 = vmatpush1.msra.mxu0 0.0
        %7624 = vmatprep.subr.mxu0 0.0
        %7625 = vmatpush1.msra.mxu0 0.0
        %7626 = vmatprep.subr.mxu0 0.0
        %7627 = vmatpush1.msra.mxu0 0.0
        %7628 = vmatprep.subr.mxu0 0.0
        %7629 = vmatpush1.msra.mxu0 0.0
        %7630 = vmatprep.subr.mxu0 0.0
        %7631 = vmatpush1.msra.mxu0 0.0
        %7632 = vmatprep.subr.mxu0 0.0
        %7633 = vmatpush1.msra.mxu0 0.0
        %7634 = vmatprep.subr.mxu0 0.0
        %7635 = vmatpush1.msra.mxu0 0.0
        %7636 = vmatprep.subr.mxu0 0.0
        %7637 = vmatpush1.msra.mxu0 0.0
        %7638 = vmatprep.subr.mxu0 0.0
        %7639 = vmatpush1.msra.mxu0 0.0
        %7640 = vmatprep.subr.mxu0 0.0
        %7641 = vmatpush1.msra.mxu0 0.0
        %7642 = vmatprep.subr.mxu0 0.0
        %7643 = vmatpush1.msra.mxu0 0.0
        %7644 = vmatprep.subr.mxu0 0.0
        %7645 = vmatpush1.msra.mxu0 0.0
        %7646 = vmatprep.subr.mxu0 0.0
        %7647 = vmatpush1.msra.mxu0 0.0
        %7648 = vmatprep.subr.mxu0 0.0
        %7649 = vmatpush1.msra.mxu0 0.0
        %7650 = vmatprep.subr.mxu0 0.0
        %7651 = vmatpush1.msra.mxu0 0.0
        %7652 = vmatprep.subr.mxu0 0.0
        %7653 = vmatpush1.msra.mxu0 0.0
        %7654 = vmatprep.subr.mxu0 0.0
        %7655 = vmatpush1.msra.mxu0 0.0
        %7656 = vmatprep.subr.mxu0 0.0
        %7657 = vmatpush1.msra.mxu0 0.0
        %7658 = vmatprep.subr.mxu0 0.0
        %7659 = vmatpush1.msra.mxu0 0.0
        %7660 = vmatprep.subr.mxu0 0.0
        %7661 = vmatpush1.msra.mxu0 0.0
        %7662 = vmatprep.subr.mxu0 0.0
        %7663 = vmatpush1.msra.mxu0 0.0
        %7664 = vmatprep.subr.mxu0 0.0
        %7665 = vmatpush1.msra.mxu0 0.0
        %7666 = vmatprep.subr.mxu0 0.0
        %7667 = vmatpush1.msra.mxu0 0.0
        %7668 = vmatprep.subr.mxu0 0.0
        %7669 = vmatpush1.msra.mxu0 0.0
        %7670 = vmatprep.subr.mxu0 0.0
        %7671 = vmatpush1.msra.mxu0 0.0
        %7672 = vmatprep.mubr.f32.mxu0 0.0
        %7673 = vmatmul.mubr.f32.gmra.mrb[0].mxu0 %v7603
        %v7674 = vpop.f32.mrb[0].mxu0
        %v7675 = vadd.f32 0.0, %v7674
        %v7676 = vpop.f32.mrb[0].mxu0
        %7677 = vmatprep.mubr.f32.mxu0 0.0
        %7678 = vmatmul.mubr.f32.gmra.mrb[0].mxu0 %v7606
        %v7679 = vpop.f32.mrb[0].mxu0
        %v7680 = vadd.f32 0.0, %v7679
        %v7681 = vpop.f32.mrb[0].mxu0
        %7682 = vdwg.mxu0
        %7685 = vrot.lane.b32.xlu0 %v7285, 8
        %v7686 = vpop.permute.xlu0 %7685
        %7687 = vrot.lane.b32.xlu0 %v7290, 8
        %v7688 = vpop.permute.xlu0 %7687
        %7693 = vrot.lane.b32.xlu0 %v7480, 16
        %v7694 = vpop.permute.xlu0 %7693
        %7695 = vrot.lane.b32.xlu0 %v7485, 16
        %v7696 = vpop.permute.xlu0 %7695
        %7701 = vrot.lane.b32.xlu0 %v7675, 24
        %v7702 = vpop.permute.xlu0 %7701
        %7703 = vrot.lane.b32.xlu0 %v7680, 24
        %v7704 = vpop.permute.xlu0 %7703
        %v7707 = vsel %vm1050, %v7090, %v7686
        %v7708 = vsel %vm1050, %v7095, %v7688
        %v7709 = vsel %vm1136, %v7707, %v7694
        %v7710 = vsel %vm1136, %v7708, %v7696
        %v7711 = vsel %vm2460, %v7709, %v7702
        %v7712 = vsel %vm2460, %v7710, %v7704
        %v7713 = vlaneseq
        %v7714 = vshrl.u32 %v7713, 7
        %v7715 = vsub.s32 7, %v7714
        %v7716 = vrot.slane %v845, %v7715
        %v7718 = vsel %vm960, %v7711, 0
        %v7721 = vsel %vm960, %v7712, 0
        %7723 = vmatprep.subr.mxu0 0.0
        %7724 = vmatpush1.msra.mxu0 %v6740
        %7725 = vmatprep.subr.mxu0 0.0
        %7726 = vmatpush1.msra.mxu0 %v6741
        %7727 = vmatprep.subr.mxu0 0.0
        %7728 = vmatpush1.msra.mxu0 %v6742
        %7729 = vmatprep.subr.mxu0 0.0
        %7730 = vmatpush1.msra.mxu0 %v6743
        %7731 = vmatprep.subr.mxu0 0.0
        %7732 = vmatpush1.msra.mxu0 0.0
        %7733 = vmatprep.subr.mxu0 0.0
        %7734 = vmatpush1.msra.mxu0 0.0
        %7735 = vmatprep.subr.mxu0 0.0
        %7736 = vmatpush1.msra.mxu0 0.0
        %7737 = vmatprep.subr.mxu0 0.0
        %7738 = vmatpush1.msra.mxu0 0.0
        %7739 = vmatprep.subr.mxu0 0.0
        %7740 = vmatpush1.msra.mxu0 0.0
        %7741 = vmatprep.subr.mxu0 0.0
        %7742 = vmatpush1.msra.mxu0 0.0
        %7743 = vmatprep.subr.mxu0 0.0
        %7744 = vmatpush1.msra.mxu0 0.0
        %7745 = vmatprep.subr.mxu0 0.0
        %7746 = vmatpush1.msra.mxu0 0.0
        %7747 = vmatprep.subr.mxu0 0.0
        %7748 = vmatpush1.msra.mxu0 0.0
        %7749 = vmatprep.subr.mxu0 0.0
        %7750 = vmatpush1.msra.mxu0 0.0
        %7751 = vmatprep.subr.mxu0 0.0
        %7752 = vmatpush1.msra.mxu0 0.0
        %7753 = vmatprep.subr.mxu0 0.0
        %7754 = vmatpush1.msra.mxu0 0.0
        %7755 = vmatprep.subr.mxu0 0.0
        %7756 = vmatpush1.msra.mxu0 0.0
        %7757 = vmatprep.subr.mxu0 0.0
        %7758 = vmatpush1.msra.mxu0 0.0
        %7759 = vmatprep.subr.mxu0 0.0
        %7760 = vmatpush1.msra.mxu0 0.0
        %7761 = vmatprep.subr.mxu0 0.0
        %7762 = vmatpush1.msra.mxu0 0.0
        %7763 = vmatprep.subr.mxu0 0.0
        %7764 = vmatpush1.msra.mxu0 0.0
        %7765 = vmatprep.subr.mxu0 0.0
        %7766 = vmatpush1.msra.mxu0 0.0
        %7767 = vmatprep.subr.mxu0 0.0
        %7768 = vmatpush1.msra.mxu0 0.0
        %7769 = vmatprep.subr.mxu0 0.0
        %7770 = vmatpush1.msra.mxu0 0.0
        %7771 = vmatprep.subr.mxu0 0.0
        %7772 = vmatpush1.msra.mxu0 0.0
        %7773 = vmatprep.subr.mxu0 0.0
        %7774 = vmatpush1.msra.mxu0 0.0
        %7775 = vmatprep.subr.mxu0 0.0
        %7776 = vmatpush1.msra.mxu0 0.0
        %7777 = vmatprep.subr.mxu0 0.0
        %7778 = vmatpush1.msra.mxu0 0.0
        %7779 = vmatprep.subr.mxu0 0.0
        %7780 = vmatpush1.msra.mxu0 0.0
        %7781 = vmatprep.subr.mxu0 0.0
        %7782 = vmatpush1.msra.mxu0 0.0
        %7783 = vmatprep.subr.mxu0 0.0
        %7784 = vmatpush1.msra.mxu0 0.0
        %7785 = vmatprep.subr.mxu0 0.0
        %7786 = vmatpush1.msra.mxu0 0.0
        %7787 = vmatprep.mubr.f32.mxu0 0.0
        %7788 = vmatmul.mubr.f32.gmra.mrb[0].mxu0 %v7718
        %v7789 = vpop.f32.mrb[0].mxu0
        %v7790 = vadd.f32 %v7716, %v7789
        %v7791 = vpop.f32.mrb[0].mxu0
        %7792 = vmatprep.mubr.f32.mxu0 0.0
        %7793 = vmatmul.mubr.f32.gmra.mrb[0].mxu0 %v7721
        %v7794 = vpop.f32.mrb[0].mxu0
        %v7795 = vadd.f32 %v7716, %v7794
        %v7796 = vpop.f32.mrb[0].mxu0
        %7797 = vdwg.mxu0
        %v7798 = vadd.f32 %v6730, %v7790
        %v7799 = vadd.f32 %v6731, %v7795
        %v7800 = vsel %vm960, %v7798, 0.0
        %7801 = vadd.xlane.f32.xlu0 %v7800
        %v7802 = vpop.xlane.xlu0 %7801
        %v7803 = vsel %vm960, %v7799, 0.0
        %7804 = vadd.xlane.f32.xlu0 %v7803
        %v7805 = vpop.xlane.xlu0 %7804
        %v7806 = vmul.f32 %v7802, %v2556
        %v7807 = vmul.f32 %v7805, %v2556
        %v7808 = vsub.f32 %v7798, %v7806
        %v7809 = vsub.f32 %v7799, %v7807
        %v7810 = vmul.f32 %v7808, %v7808
        %v7811 = vmul.f32 %v7809, %v7809
        %v7812 = vsel %vm960, %v7810, 0.0
        %7813 = vadd.xlane.f32.xlu0 %v7812
        %v7814 = vpop.xlane.xlu0 %7813
        %v7815 = vsel %vm960, %v7811, 0.0
        %7816 = vadd.xlane.f32.xlu0 %v7815
        %v7817 = vpop.xlane.xlu0 %7816
        %v7818 = vmul.f32 %v7814, %v2556
        %v7819 = vmul.f32 %v7817, %v2556
        %v7820 = vadd.f32 %v7818, 1e-05
        %v7821 = vadd.f32 %v7819, 1e-05
        %v7822 = vrsqrt.pop %v7820
        %v7823 = vrsqrt.pop %v7821
        %v7824 = vmul.f32 %v7808, %v7822
        %v7825 = vmul.f32 %v7809, %v7823
        %v7826 = vlaneseq
        %v7827 = vshrl.u32 %v7826, 7
        %v7828 = vsub.s32 0, %v7827
        %v7829 = vrot.slane %v846, %v7828
        %v7830 = vmul.f32 %v7824, %v7829
        %v7831 = vmul.f32 %v7825, %v7829
        %v7832 = vlaneseq
        %v7833 = vshrl.u32 %v7832, 7
        %v7834 = vsub.s32 1, %v7833
        %v7835 = vrot.slane %v846, %v7834
        %v7836 = vadd.f32 %v7830, %v7835
        %v7837 = vadd.f32 %v7831, %v7835
        %v7838 = vld [vmem:[#allocation7] sm:$0xff]
        %v7839 = vld [vmem:[#allocation7 + $0x8] sm:$0xff]
        %v7840 = vld [vmem:[#allocation7 + $0x10] sm:$0xff]
        %v7841 = vld [vmem:[#allocation7 + $0x18] sm:$0xff]
        %v7842 = vlaneseq
        %v7843 = vshrl.u32 %v7842, 7
        %v7844 = vsub.s32 2, %v7843
        %v7845 = vrot.slane %v846, %v7844
        %v7847 = vsel %vm960, %v7836, 0
        %v7850 = vsel %vm960, %v7837, 0
        %7852 = vmatprep.subr.mxu0 0.0
        %7853 = vmatpush1.msra.mxu0 %v7838
        %7854 = vmatprep.subr.mxu0 0.0
        %7855 = vmatpush1.msra.mxu0 %v7839
        %7856 = vmatprep.subr.mxu0 0.0
        %7857 = vmatpush1.msra.mxu0 %v7840
        %7858 = vmatprep.subr.mxu0 0.0
        %7859 = vmatpush1.msra.mxu0 %v7841
        %7860 = vmatprep.subr.mxu0 0.0
        %7861 = vmatpush1.msra.mxu0 0.0
        %7862 = vmatprep.subr.mxu0 0.0
        %7863 = vmatpush1.msra.mxu0 0.0
        %7864 = vmatprep.subr.mxu0 0.0
        %7865 = vmatpush1.msra.mxu0 0.0
        %7866 = vmatprep.subr.mxu0 0.0
        %7867 = vmatpush1.msra.mxu0 0.0
        %7868 = vmatprep.subr.mxu0 0.0
        %7869 = vmatpush1.msra.mxu0 0.0
        %7870 = vmatprep.subr.mxu0 0.0
        %7871 = vmatpush1.msra.mxu0 0.0
        %7872 = vmatprep.subr.mxu0 0.0
        %7873 = vmatpush1.msra.mxu0 0.0
        %7874 = vmatprep.subr.mxu0 0.0
        %7875 = vmatpush1.msra.mxu0 0.0
        %7876 = vmatprep.subr.mxu0 0.0
        %7877 = vmatpush1.msra.mxu0 0.0
        %7878 = vmatprep.subr.mxu0 0.0
        %7879 = vmatpush1.msra.mxu0 0.0
        %7880 = vmatprep.subr.mxu0 0.0
        %7881 = vmatpush1.msra.mxu0 0.0
        %7882 = vmatprep.subr.mxu0 0.0
        %7883 = vmatpush1.msra.mxu0 0.0
        %7884 = vmatprep.subr.mxu0 0.0
        %7885 = vmatpush1.msra.mxu0 0.0
        %7886 = vmatprep.subr.mxu0 0.0
        %7887 = vmatpush1.msra.mxu0 0.0
        %7888 = vmatprep.subr.mxu0 0.0
        %7889 = vmatpush1.msra.mxu0 0.0
        %7890 = vmatprep.subr.mxu0 0.0
        %7891 = vmatpush1.msra.mxu0 0.0
        %7892 = vmatprep.subr.mxu0 0.0
        %7893 = vmatpush1.msra.mxu0 0.0
        %7894 = vmatprep.subr.mxu0 0.0
        %7895 = vmatpush1.msra.mxu0 0.0
        %7896 = vmatprep.subr.mxu0 0.0
        %7897 = vmatpush1.msra.mxu0 0.0
        %7898 = vmatprep.subr.mxu0 0.0
        %7899 = vmatpush1.msra.mxu0 0.0
        %7900 = vmatprep.subr.mxu0 0.0
        %7901 = vmatpush1.msra.mxu0 0.0
        %7902 = vmatprep.subr.mxu0 0.0
        %7903 = vmatpush1.msra.mxu0 0.0
        %7904 = vmatprep.subr.mxu0 0.0
        %7905 = vmatpush1.msra.mxu0 0.0
        %7906 = vmatprep.subr.mxu0 0.0
        %7907 = vmatpush1.msra.mxu0 0.0
        %7908 = vmatprep.subr.mxu0 0.0
        %7909 = vmatpush1.msra.mxu0 0.0
        %7910 = vmatprep.subr.mxu0 0.0
        %7911 = vmatpush1.msra.mxu0 0.0
        %7912 = vmatprep.subr.mxu0 0.0
        %7913 = vmatpush1.msra.mxu0 0.0
        %7914 = vmatprep.subr.mxu0 0.0
        %7915 = vmatpush1.msra.mxu0 0.0
        %7916 = vmatprep.mubr.f32.mxu0 0.0
        %7917 = vmatmul.mubr.f32.gmra.mrb[0].mxu0 %v7847
        %v7918 = vpop.f32.mrb[0].mxu0
        %v7919 = vadd.f32 %v7845, %v7918
        %v7920 = vpop.f32.mrb[0].mxu0
        %7921 = vmatprep.mubr.f32.mxu0 0.0
        %7922 = vmatmul.mubr.f32.gmra.mrb[0].mxu0 %v7850
        %v7923 = vpop.f32.mrb[0].mxu0
        %v7924 = vadd.f32 %v7845, %v7923
        %v7925 = vpop.f32.mrb[0].mxu0
        %7926 = vdwg.mxu0
        %v7927 = vmul.f32 %v7919, 0.5
        %v7928 = vmul.f32 %v7924, 0.5
        %v7929 = vmul.f32 %v7919, 0.044715
        %v7930 = vmul.f32 %v7924, 0.044715
        %v7931 = vmul.f32 %v7929, %v7919
        %v7932 = vmul.f32 %v7930, %v7924
        %v7933 = vmul.f32 %v7931, %v7919
        %v7934 = vmul.f32 %v7932, %v7924
        %v7935 = vadd.f32 %v7919, %v7933
        %v7936 = vadd.f32 %v7924, %v7934
        %v7937 = vmul.f32 %v7935, 0.7978846
        %v7938 = vmul.f32 %v7936, 0.7978846
        %v7939 = vtanh.pop %v7937
        %v7940 = vtanh.pop %v7938
        %v7941 = vadd.f32 %v7939, 1.0
        %v7942 = vadd.f32 %v7940, 1.0
        %v7943 = vmul.f32 %v7927, %v7941
        %v7944 = vmul.f32 %v7928, %v7942
        %v7945 = vld [vmem:[%s17] sm:$0xff]
        %v7946 = vld [vmem:[%s17 + $0x8] sm:$0xff]
        %v7947 = vld [vmem:[%s17 + $0x10] sm:$0xff]
        %v7948 = vld [vmem:[%s17 + $0x18] sm:$0xff]
        %v7949 = vld [vmem:[%s17 + $0x20] sm:$0xff]
        %v7950 = vld [vmem:[%s17 + $0x28] sm:$0xff]
        %v7951 = vld [vmem:[%s17 + $0x30] sm:$0xff]
        %v7952 = vld [vmem:[%s17 + $0x38] sm:$0xff]
        %v7953 = vlaneseq
        %v7954 = vshrl.u32 %v7953, 7
        %v7955 = vsub.s32 3, %v7954
        %v7956 = vrot.slane %v846, %v7955
        %v7958 = vsel %vm2708, %v7943, 0
        %v7961 = vsel %vm2708, %v7944, 0
        %7963 = vmatprep.subr.mxu0 0.0
        %7964 = vmatpush1.msra.mxu0 %v7945
        %7965 = vmatprep.subr.mxu0 0.0
        %7966 = vmatpush1.msra.mxu0 %v7946
        %7967 = vmatprep.subr.mxu0 0.0
        %7968 = vmatpush1.msra.mxu0 %v7947
        %7969 = vmatprep.subr.mxu0 0.0
        %7970 = vmatpush1.msra.mxu0 %v7948
        %7971 = vmatprep.subr.mxu0 0.0
        %7972 = vmatpush1.msra.mxu0 %v7949
        %7973 = vmatprep.subr.mxu0 0.0
        %7974 = vmatpush1.msra.mxu0 %v7950
        %7975 = vmatprep.subr.mxu0 0.0
        %7976 = vmatpush1.msra.mxu0 %v7951
        %7977 = vmatprep.subr.mxu0 0.0
        %7978 = vmatpush1.msra.mxu0 %v7952
        %7979 = vmatprep.subr.mxu0 0.0
        %7980 = vmatpush1.msra.mxu0 0.0
        %7981 = vmatprep.subr.mxu0 0.0
        %7982 = vmatpush1.msra.mxu0 0.0
        %7983 = vmatprep.subr.mxu0 0.0
        %7984 = vmatpush1.msra.mxu0 0.0
        %7985 = vmatprep.subr.mxu0 0.0
        %7986 = vmatpush1.msra.mxu0 0.0
        %7987 = vmatprep.subr.mxu0 0.0
        %7988 = vmatpush1.msra.mxu0 0.0
        %7989 = vmatprep.subr.mxu0 0.0
        %7990 = vmatpush1.msra.mxu0 0.0
        %7991 = vmatprep.subr.mxu0 0.0
        %7992 = vmatpush1.msra.mxu0 0.0
        %7993 = vmatprep.subr.mxu0 0.0
        %7994 = vmatpush1.msra.mxu0 0.0
        %7995 = vmatprep.subr.mxu0 0.0
        %7996 = vmatpush1.msra.mxu0 0.0
        %7997 = vmatprep.subr.mxu0 0.0
        %7998 = vmatpush1.msra.mxu0 0.0
        %7999 = vmatprep.subr.mxu0 0.0
        %8000 = vmatpush1.msra.mxu0 0.0
        %8001 = vmatprep.subr.mxu0 0.0
        %8002 = vmatpush1.msra.mxu0 0.0
        %8003 = vmatprep.subr.mxu0 0.0
        %8004 = vmatpush1.msra.mxu0 0.0
        %8005 = vmatprep.subr.mxu0 0.0
        %8006 = vmatpush1.msra.mxu0 0.0
        %8007 = vmatprep.subr.mxu0 0.0
        %8008 = vmatpush1.msra.mxu0 0.0
        %8009 = vmatprep.subr.mxu0 0.0
        %8010 = vmatpush1.msra.mxu0 0.0
        %8011 = vmatprep.subr.mxu0 0.0
        %8012 = vmatpush1.msra.mxu0 0.0
        %8013 = vmatprep.subr.mxu0 0.0
        %8014 = vmatpush1.msra.mxu0 0.0
        %8015 = vmatprep.subr.mxu0 0.0
        %8016 = vmatpush1.msra.mxu0 0.0
        %8017 = vmatprep.subr.mxu0 0.0
        %8018 = vmatpush1.msra.mxu0 0.0
        %8019 = vmatprep.subr.mxu0 0.0
        %8020 = vmatpush1.msra.mxu0 0.0
        %8021 = vmatprep.subr.mxu0 0.0
        %8022 = vmatpush1.msra.mxu0 0.0
        %8023 = vmatprep.subr.mxu0 0.0
        %8024 = vmatpush1.msra.mxu0 0.0
        %8025 = vmatprep.subr.mxu0 0.0
        %8026 = vmatpush1.msra.mxu0 0.0
        %8027 = vmatprep.mubr.f32.mxu0 0.0
        %8028 = vmatmul.mubr.f32.gmra.mrb[0].mxu0 %v7958
        %v8029 = vpop.f32.mrb[0].mxu0
        %v8030 = vadd.f32 %v7956, %v8029
        %v8031 = vpop.f32.mrb[0].mxu0
        %8032 = vmatprep.mubr.f32.mxu0 0.0
        %8033 = vmatmul.mubr.f32.gmra.mrb[0].mxu0 %v7961
        %v8034 = vpop.f32.mrb[0].mxu0
        %v8035 = vadd.f32 %v7956, %v8034
        %v8036 = vpop.f32.mrb[0].mxu0
        %8037 = vdwg.mxu0
        %v8038 = vadd.f32 %v7836, %v8030
        %v8039 = vadd.f32 %v7837, %v8035
        %v8040 = vsel %vm960, %v8038, 0.0
        %8041 = vadd.xlane.f32.xlu0 %v8040
        %v8042 = vpop.xlane.xlu0 %8041
        %v8043 = vsel %vm960, %v8039, 0.0
        %8044 = vadd.xlane.f32.xlu0 %v8043
        %v8045 = vpop.xlane.xlu0 %8044
        %v8046 = vmul.f32 %v8042, %v2556
        %v8047 = vmul.f32 %v8045, %v2556
        %v8048 = vsub.f32 %v8038, %v8046
        %v8049 = vsub.f32 %v8039, %v8047
        %v8050 = vmul.f32 %v8048, %v8048
        %v8051 = vmul.f32 %v8049, %v8049
        %v8052 = vsel %vm960, %v8050, 0.0
        %8053 = vadd.xlane.f32.xlu0 %v8052
        %v8054 = vpop.xlane.xlu0 %8053
        %v8055 = vsel %vm960, %v8051, 0.0
        %8056 = vadd.xlane.f32.xlu0 %v8055
        %v8057 = vpop.xlane.xlu0 %8056
        %v8058 = vmul.f32 %v8054, %v2556
        %v8059 = vmul.f32 %v8057, %v2556
        %v8060 = vadd.f32 %v8058, 1e-05
        %v8061 = vadd.f32 %v8059, 1e-05
        %v8062 = vrsqrt.pop %v8060
        %v8063 = vrsqrt.pop %v8061
        %v8064 = vmul.f32 %v8048, %v8062
        %v8065 = vmul.f32 %v8049, %v8063
        %v8066 = vlaneseq
        %v8067 = vshrl.u32 %v8066, 7
        %v8068 = vsub.s32 4, %v8067
        %v8069 = vrot.slane %v846, %v8068
        %v8070 = vmul.f32 %v8064, %v8069
        %v8071 = vmul.f32 %v8065, %v8069
        %v8072 = vlaneseq
        %v8073 = vshrl.u32 %v8072, 7
        %v8074 = vsub.s32 5, %v8073
        %v8075 = vrot.slane %v846, %v8074
        %v8076 = vadd.f32 %v8070, %v8075
        %v8077 = vadd.f32 %v8071, %v8075
        %v8078 = vsel %vm960, %v8076, 0.0
        %8079 = vadd.xlane.f32.xlu0 %v8078
        %v8080 = vpop.xlane.xlu0 %8079
        %v8081 = vsel %vm960, %v8077, 0.0
        %8082 = vadd.xlane.f32.xlu0 %v8081
        %v8083 = vpop.xlane.xlu0 %8082
        %v8084 = vmul.f32 %v8080, %v2556
        %v8085 = vmul.f32 %v8083, %v2556
        %v8086 = vsub.f32 %v8076, %v8084
        %v8087 = vsub.f32 %v8077, %v8085
        %v8088 = vmul.f32 %v8086, %v8086
        %v8089 = vmul.f32 %v8087, %v8087
        %v8090 = vsel %vm960, %v8088, 0.0
        %8091 = vadd.xlane.f32.xlu0 %v8090
        %v8092 = vpop.xlane.xlu0 %8091
        %v8093 = vsel %vm960, %v8089, 0.0
        %8094 = vadd.xlane.f32.xlu0 %v8093
        %v8095 = vpop.xlane.xlu0 %8094
        %v8096 = vmul.f32 %v8092, %v2556
        %v8097 = vmul.f32 %v8095, %v2556
        %v8098 = vadd.f32 %v8096, 1e-05
        %v8099 = vadd.f32 %v8097, 1e-05
        %v8100 = vrsqrt.pop %v8098
        %v8101 = vrsqrt.pop %v8099
        %v8102 = vmul.f32 %v8086, %v8100
        %v8103 = vmul.f32 %v8087, %v8101
        %v8104 = vlaneseq
        %v8105 = vshrl.u32 %v8104, 7
        %v8106 = vsub.s32 6, %v8105
        %v8107 = vrot.slane %v846, %v8106
        %v8108 = vmul.f32 %v8102, %v8107
        %v8109 = vmul.f32 %v8103, %v8107
        %v8110 = vlaneseq
        %v8111 = vshrl.u32 %v8110, 7
        %v8112 = vsub.s32 7, %v8111
        %v8113 = vrot.slane %v846, %v8112
        %v8114 = vadd.f32 %v8108, %v8113
        %v8115 = vadd.f32 %v8109, %v8113
        %v8116 = vld [vmem:[%s18] sm:$0xff]
        %v8117 = vld [vmem:[%s18 + $0x8] sm:$0xff]
        %v8118 = vld [vmem:[%s18 + $0x10] sm:$0xff]
        %v8119 = vld [vmem:[%s18 + $0x18] sm:$0xff]
        %v8120 = vlaneseq
        %v8121 = vshrl.u32 %v8120, 7
        %v8122 = vsub.s32 0, %v8121
        %v8123 = vrot.slane %v847, %v8122
        %v8125 = vsel %vm960, %v8114, 0
        %v8128 = vsel %vm960, %v8115, 0
        %8130 = vmatprep.subr.mxu0 0.0
        %8131 = vmatpush1.msra.mxu0 %v8116
        %8132 = vmatprep.subr.mxu0 0.0
        %8133 = vmatpush1.msra.mxu0 %v8117
        %8134 = vmatprep.subr.mxu0 0.0
        %8135 = vmatpush1.msra.mxu0 %v8118
        %8136 = vmatprep.subr.mxu0 0.0
        %8137 = vmatpush1.msra.mxu0 %v8119
        %8138 = vmatprep.subr.mxu0 0.0
        %8139 = vmatpush1.msra.mxu0 0.0
        %8140 = vmatprep.subr.mxu0 0.0
        %8141 = vmatpush1.msra.mxu0 0.0
        %8142 = vmatprep.subr.mxu0 0.0
        %8143 = vmatpush1.msra.mxu0 0.0
        %8144 = vmatprep.subr.mxu0 0.0
        %8145 = vmatpush1.msra.mxu0 0.0
        %8146 = vmatprep.subr.mxu0 0.0
        %8147 = vmatpush1.msra.mxu0 0.0
        %8148 = vmatprep.subr.mxu0 0.0
        %8149 = vmatpush1.msra.mxu0 0.0
        %8150 = vmatprep.subr.mxu0 0.0
        %8151 = vmatpush1.msra.mxu0 0.0
        %8152 = vmatprep.subr.mxu0 0.0
        %8153 = vmatpush1.msra.mxu0 0.0
        %8154 = vmatprep.subr.mxu0 0.0
        %8155 = vmatpush1.msra.mxu0 0.0
        %8156 = vmatprep.subr.mxu0 0.0
        %8157 = vmatpush1.msra.mxu0 0.0
        %8158 = vmatprep.subr.mxu0 0.0
        %8159 = vmatpush1.msra.mxu0 0.0
        %8160 = vmatprep.subr.mxu0 0.0
        %8161 = vmatpush1.msra.mxu0 0.0
        %8162 = vmatprep.subr.mxu0 0.0
        %8163 = vmatpush1.msra.mxu0 0.0
        %8164 = vmatprep.subr.mxu0 0.0
        %8165 = vmatpush1.msra.mxu0 0.0
        %8166 = vmatprep.subr.mxu0 0.0
        %8167 = vmatpush1.msra.mxu0 0.0
        %8168 = vmatprep.subr.mxu0 0.0
        %8169 = vmatpush1.msra.mxu0 0.0
        %8170 = vmatprep.subr.mxu0 0.0
        %8171 = vmatpush1.msra.mxu0 0.0
        %8172 = vmatprep.subr.mxu0 0.0
        %8173 = vmatpush1.msra.mxu0 0.0
        %8174 = vmatprep.subr.mxu0 0.0
        %8175 = vmatpush1.msra.mxu0 0.0
        %8176 = vmatprep.subr.mxu0 0.0
        %8177 = vmatpush1.msra.mxu0 0.0
        %8178 = vmatprep.subr.mxu0 0.0
        %8179 = vmatpush1.msra.mxu0 0.0
        %8180 = vmatprep.subr.mxu0 0.0
        %8181 = vmatpush1.msra.mxu0 0.0
        %8182 = vmatprep.subr.mxu0 0.0
        %8183 = vmatpush1.msra.mxu0 0.0
        %8184 = vmatprep.subr.mxu0 0.0
        %8185 = vmatpush1.msra.mxu0 0.0
        %8186 = vmatprep.subr.mxu0 0.0
        %8187 = vmatpush1.msra.mxu0 0.0
        %8188 = vmatprep.subr.mxu0 0.0
        %8189 = vmatpush1.msra.mxu0 0.0
        %8190 = vmatprep.subr.mxu0 0.0
        %8191 = vmatpush1.msra.mxu0 0.0
        %8192 = vmatprep.subr.mxu0 0.0
        %8193 = vmatpush1.msra.mxu0 0.0
        %8194 = vmatprep.mubr.f32.mxu0 0.0
        %8195 = vmatmul.mubr.f32.gmra.mrb[0].mxu0 %v8125
        %v8196 = vpop.f32.mrb[0].mxu0
        %v8197 = vadd.f32 %v8123, %v8196
        %v8198 = vpop.f32.mrb[0].mxu0
        %8199 = vmatprep.mubr.f32.mxu0 0.0
        %8200 = vmatmul.mubr.f32.gmra.mrb[0].mxu0 %v8128
        %v8201 = vpop.f32.mrb[0].mxu0
        %v8202 = vadd.f32 %v8123, %v8201
        %v8203 = vpop.f32.mrb[0].mxu0
        %8204 = vdwg.mxu0
        %8205 = vst [vmem:[%s821] sm:$0xff] %v8197
        %8206 = vst [vmem:[%s821 + $0x8] sm:$0xff] %v8202
        %s8207 = sand.u32 %s551, 1
        %s8208 = scalar_lea.sflag [#allocation4], %s8207
        %s8209 = sand.u32 %s551, 1
        %s8210 = smul.addr %s8209, 16
        %s8211 = scalar_lea.vmem [#allocation11], %s8210
        // Predicated region
        $region133: #{tpu_custom_call.1} parent=111 // pred_check
          %p8212 = pneg %p561
        $region134: #{tpu_custom_call.1} parent=111 // pred_check_branch
          %8214 = sbr.rel (%p8212) target = $region136
        $region135: #{tpu_custom_call.1} parent=111 // pred_region
          %s8216 = ssub.s32 256, 256
          %8217 = vsyncadd %s8208, %s8216
          %s8218 = smul.addr %s40, 2
          %s8219 = smul.addr %s8218, 128
          %s8220 = scalar_lea.hbm %s23, %s8219
          %s8221 = sshll.u32 %s8211, 4
          %s8222 = int_to_ptr.vmem [resolvable:$true] %s8221
          %8227 = dma.vmem_to_hbm [thread:$0]  %s8222, 256, %s8220, %s8208, 128, 128, 8
        $region136: #{tpu_custom_call.1} parent=111 // pred_fallthru
          _
      $region112: #{tpu_custom_call.1} parent=5 // pred_fallthru
        _
      %p8228 = scmp.le.s32.totalorder 2, %s35
      // Predicated region
      $region137: #{tpu_custom_call.1} parent=5 // pred_check
        %p8229 = pneg %p8228
      $region138: #{tpu_custom_call.1} parent=5 // pred_check_branch
        %8231 = sbr.rel (%p8229) target = $region140
      $region139: #{tpu_custom_call.1} parent=5 // pred_region
        %s8232 = ssub.s32 %s35, 2
        // Predicated region
        $region141: #{tpu_custom_call.1} parent=139 // pred_check
          %p8233 = pneg %p567
        $region142: #{tpu_custom_call.1} parent=139 // pred_check_branch
          %8235 = sbr.rel (%p8233) target = $region144
        $region143: #{tpu_custom_call.1} parent=139 // pred_region
          %s8236 = sand.u32 %s552, 1
          %s8237 = scalar_lea.sflag [#allocation4], %s8236
          %s8238 = sand.u32 %s552, 1
          %s8239 = smul.addr %s8238, 16
          %s8240 = scalar_lea.vmem [#allocation11], %s8239
          %8241 = dma.done %s8237, 256
        $region144: #{tpu_custom_call.1} parent=139 // pred_fallthru
          _
      $region140: #{tpu_custom_call.1} parent=5 // pred_fallthru
        _
    $region6: #{tpu_custom_call.1} parent=1 // loop_footer
      %s39 = sadd.s32 1, %s35
    $region7: #{tpu_custom_call.1} parent=1 // loop_footer_branch
      %34 = sbr.rel target = $region3
    $region8: #{tpu_custom_call.1} parent=1 // loop_exit
      _
    %8242 = vsyncpa [#allocation3], 1
    %s8243 = scalar_lea.sflag [#allocation3], 1
    %8244 = vsyncpa %s8243, 1
    %8245 = vsyncpa [#allocation6], 1
    %8246 = vsyncpa [#allocation9], 1
    %8247 = vsyncpa [#allocation4], 1
    %s8248 = scalar_lea.sflag [#allocation4], 1
    %8249 = vsyncpa %s8248, 1

</llo_original>
